<compile_context>
chip_gen: v6e
topology: v6e:2x2x1
jax: 0.10.0
libtpu: 0.0.40
codegen_flags: <defaults>
</compile_context>

<pallas_src>
import jax
import jax.numpy as jnp
from jax.experimental import pallas as pl
from jax.experimental.pallas import tpu as pltpu

# ---------------- configuration ----------------
DIM = 32
INPUT_SIZE = 16
SIZE_RATIO = 2                         # type_space=False -> num_batched_groups = size_ratio
DEPTH = 2
HEADS = 4
HEAD_DIM = 8
MLP_DIM = 64
INNER = HEADS * HEAD_DIM               # 32
NUM_TOKENS = INPUT_SIZE // SIZE_RATIO  # 8
SEQ = NUM_TOKENS + 1                   # 9 (cls token at row 0; causal_mask=False)
SEQ_PAD = 16                           # sequence padded to a sublane-tile multiple
SCALE = HEAD_DIM ** -0.5
LN_EPS = 1e-5

# packed-weight column offsets inside the (DEPTH, 64, 384) slab
QKV_W = 2 * INNER + HEADS * DIM        # 192 = Q(32, scaled) | K(32) | V'(4 x 32, Wo folded)
C_QKV = 0
C_W1 = QKV_W                           # (32, 64) at cols 192:256
C_W2 = C_W1 + MLP_DIM                  # (64, 32) at cols 256:288
W_ROWS = 64
W_COLS = 384

TARGET_B_BLK = 256                     # sequences per grid step at large batch (M = 4096)


# ---------------- kernel ----------------
def _layernorm(x, g, b):
    mu = jnp.mean(x, axis=-1, keepdims=True)
    var = jnp.mean(jnp.square(x - mu), axis=-1, keepdims=True)
    return (x - mu) * jax.lax.rsqrt(var + LN_EPS) * g + b


def transformer_kernel(tok_ref, w_ref, v_ref, g_ref, o_ref):
    B = tok_ref.shape[0]                 # B_BLK sequences per grid step (static)
    M = B * SEQ_PAD

    # --- fused prologue: tokens arrive padded (row 0 = cls slot, rows 1..8 = tokens,
    #     rows 9..15 = zero); G rows 0..15 carry cls+pos[0], pos[1:9], zeros.
    x = (tok_ref[...].astype(jnp.float32)
         + g_ref[0:SEQ_PAD, :][None, :, :]).reshape(M, DIM)       # (M, 32)

    # key-padding mask: only columns 0..SEQ-1 are real tokens
    col = jax.lax.broadcasted_iota(jnp.int32, (1, SEQ_PAD, SEQ_PAD), 2)
    key_mask = jnp.where(col >= SEQ, -1e30, 0.0).astype(jnp.float32)

    for l in range(DEPTH):                                        # static unrolled layers
        wl = w_ref[l]                                             # (64, 384) packed matrices
        vl = v_ref[l]                                             # (8, 64) packed vectors
        ln1_g = vl[0:1, :DIM]
        ln1_b = vl[1:2, :DIM]
        bo = vl[2:3, :DIM]
        ln2_g = vl[3:4, :DIM]
        ln2_b = vl[4:5, :DIM]
        b1 = vl[5:6, :MLP_DIM]
        b2 = vl[6:7, :DIM]

        # ---- PreNorm + multi-head attention (Wo folded into V') + residual ----
        xn = _layernorm(x, ln1_g, ln1_b)
        qkv = jnp.dot(xn, wl[:DIM, C_QKV:C_QKV + QKV_W],
                      preferred_element_type=jnp.float32)          # (M, 192)
        qkv3 = qkv.reshape(B, SEQ_PAD, QKV_W)                      # aligned reshape
        attn3 = jnp.zeros((B, SEQ_PAD, DIM), jnp.float32)
        for h in range(HEADS):                                     # static unrolled heads
            qh = qkv3[:, :, h * HEAD_DIM:(h + 1) * HEAD_DIM]       # (B, 16, 8) (scale folded)
            kh = qkv3[:, :, INNER + h * HEAD_DIM:INNER + (h + 1) * HEAD_DIM]
            vh = qkv3[:, :, 2 * INNER + h * DIM:2 * INNER + (h + 1) * DIM]  # (B, 16, 32) V@Wo
            s = jnp.einsum('bid,bjd->bij', qh, kh,
                           preferred_element_type=jnp.float32) + key_mask
            s = s - jnp.max(s, axis=-1, keepdims=True)             # stable softmax
            e = jnp.exp(s)
            inv_l = pl.reciprocal(jnp.sum(e, axis=-1, keepdims=True))   # exact (approx=False)
            p = e * inv_l
            attn3 = attn3 + jnp.einsum('bij,bjd->bid', p, vh,
                                       preferred_element_type=jnp.float32)
        x = x + attn3.reshape(M, DIM) + bo

        # ---- PreNorm + FeedForward + residual ----
        xn = _layernorm(x, ln2_g, ln2_b)
        h1 = jnp.dot(xn, wl[:DIM, C_W1:C_W1 + MLP_DIM],
                     preferred_element_type=jnp.float32) + b1
        # exact erf GELU, matching torch.nn.GELU default
        h1 = 0.5 * h1 * (1.0 + jax.lax.erf(h1 * 0.7071067811865476))
        x = x + jnp.dot(h1, wl[:MLP_DIM, C_W2:C_W2 + DIM],
                        preferred_element_type=jnp.float32) + b2

    # ---- final LayerNorm + single full unmasked store (cls already at row 0) ----
    x = _layernorm(x, g_ref[SEQ_PAD:SEQ_PAD + 1, :], g_ref[SEQ_PAD + 1:SEQ_PAD + 2, :])
    o_ref[...] = x.reshape(B, SEQ_PAD, DIM).astype(o_ref.dtype)


# ---------------- host wrapper ----------------
def _num_tensorcores():
    """2 TensorCores only on v7x; v5e/v6e are single-TC chips."""
    try:
        kind = jax.devices()[0].device_kind.lower()
        if "v7" in kind:
            return 2
    except Exception:
        pass
    return 1


def _choose_b_blk(b_eff, num_tc, target=TARGET_B_BLK):
    if b_eff <= 0:
        return 1
    if num_tc <= 1:
        # single TensorCore: the grid is a serial loop -> one step for small batches
        return min(b_eff, target)
    # dual-TC (v7x) + dimension_semantics=parallel: keep >= 2 blocks so both cores work
    if b_eff >= 2 * target:
        return target
    return max(1, -(-b_eff // 2))


def general_transformer(x, packed, num_tc=None):
    """x: (b, input_size, dim) -> (b*size_ratio, num_tokens+1, dim), cls at row 0."""
    W, V, G = packed
    b = x.shape[0]
    b_eff = b * SIZE_RATIO
    # format_input 'b (c f) d -> (b c) f d' is a pure row-major reshape (free)
    tokens = x.reshape(b_eff, NUM_TOKENS, DIM).astype(jnp.float32)

    if num_tc is None:
        num_tc = _num_tensorcores()
    b_blk = _choose_b_blk(b_eff, num_tc)
    n_blk = -(-b_eff // b_blk)
    b_pad = n_blk * b_blk

    # host-side pad to the kernel layout: row 0 = cls slot, rows 1..8 = tokens,
    # rows 9..15 = pad; also pads the batch up to a whole number of blocks.
    tok_padded = jnp.pad(
        tokens, ((0, b_pad - b_eff), (1, SEQ_PAD - 1 - NUM_TOKENS), (0, 0)))

    out = pl.pallas_call(
        transformer_kernel,
        out_shape=jax.ShapeDtypeStruct((b_pad, SEQ_PAD, DIM), jnp.float32),
        grid=(n_blk,),
        in_specs=[
            pl.BlockSpec((b_blk, SEQ_PAD, DIM), lambda i: (i, 0, 0)),
            pl.BlockSpec(W.shape, lambda i: (0, 0, 0)),   # grid-invariant weight slabs
            pl.BlockSpec(V.shape, lambda i: (0, 0, 0)),
            pl.BlockSpec(G.shape, lambda i: (0, 0)),
        ],
        out_specs=pl.BlockSpec((b_blk, SEQ_PAD, DIM), lambda i: (i, 0, 0)),
        compiler_params=pltpu.CompilerParams(
            dimension_semantics=("parallel",),
            vmem_limit_bytes=48 * 1024 * 1024),
    )(tok_padded, W, V, G)
    return out[:b_eff, :SEQ, :]


# ---------------- parameter init + one-time packing ----------------
def init_params(key):
    ks = jax.random.split(key, 16)
    n = lambda k, shape, s=0.02: jax.random.normal(k, shape, jnp.float32) * s
    return {
        "pos_embedding": jax.random.normal(ks[0], (1, SEQ, DIM), jnp.float32),
        "cls_token":     jax.random.normal(ks[1], (1, DIM), jnp.float32),
        "ln1_g": jnp.ones((DEPTH, 1, DIM), jnp.float32),
        "ln1_b": jnp.zeros((DEPTH, 1, DIM), jnp.float32),
        "ln2_g": jnp.ones((DEPTH, 1, DIM), jnp.float32),
        "ln2_b": jnp.zeros((DEPTH, 1, DIM), jnp.float32),
        "lnf_g": jnp.ones((1, DIM), jnp.float32),
        "lnf_b": jnp.zeros((1, DIM), jnp.float32),
        "wqkv": n(ks[2], (DEPTH, DIM, 3 * INNER)),
        "wo":   n(ks[3], (DEPTH, INNER, DIM)),
        "bo":   n(ks[4], (DEPTH, 1, DIM)),
        "w1":   n(ks[5], (DEPTH, DIM, MLP_DIM)),
        "b1":   n(ks[6], (DEPTH, 1, MLP_DIM)),
        "w2":   n(ks[7], (DEPTH, MLP_DIM, DIM)),
        "b2":   n(ks[8], (DEPTH, 1, DIM)),
    }


def pack_params(params):
    """One-time host-side weight preprocessing: 13 tensors -> 3 slabs.

    Folds head_dim**-0.5 into the Q columns and Wo into the per-head V columns
    (V'_h = Wv_h @ Wo_h, 32x32), so the kernel never runs the K=8 output-projection
    matmuls and the QKV matmul is 192 lanes wide.
    """
    wq = params["wqkv"][:, :, :INNER] * SCALE                 # (D, 32, 32), scale folded
    wk = params["wqkv"][:, :, INNER:2 * INNER]                # (D, 32, 32)
    wv = params["wqkv"][:, :, 2 * INNER:]                     # (D, 32, 32)
    wo = params["wo"]                                         # (D, 32, 32)
    wvp = jnp.concatenate(
        [jnp.einsum('dik,dkj->dij',
                    wv[:, :, h * HEAD_DIM:(h + 1) * HEAD_DIM],
                    wo[:, h * HEAD_DIM:(h + 1) * HEAD_DIM, :])
         for h in range(HEADS)], axis=-1)                     # (D, 32, 128)
    wqkv_packed = jnp.concatenate([wq, wk, wvp], axis=-1)     # (D, 32, 192)

    W = jnp.zeros((DEPTH, W_ROWS, W_COLS), jnp.float32)
    W = W.at[:, :DIM, C_QKV:C_QKV + QKV_W].set(wqkv_packed)
    W = W.at[:, :DIM, C_W1:C_W1 + MLP_DIM].set(params["w1"])
    W = W.at[:, :MLP_DIM, C_W2:C_W2 + DIM].set(params["w2"])

    V = jnp.zeros((DEPTH, 8, 64), jnp.float32)
    V = V.at[:, 0, :DIM].set(params["ln1_g"][:, 0, :])
    V = V.at[:, 1, :DIM].set(params["ln1_b"][:, 0, :])
    V = V.at[:, 2, :DIM].set(params["bo"][:, 0, :])
    V = V.at[:, 3, :DIM].set(params["ln2_g"][:, 0, :])
    V = V.at[:, 4, :DIM].set(params["ln2_b"][:, 0, :])
    V = V.at[:, 5, :MLP_DIM].set(params["b1"][:, 0, :])
    V = V.at[:, 6, :DIM].set(params["b2"][:, 0, :])

    G = jnp.zeros((24, DIM), jnp.float32)
    G = G.at[0, :].set(params["cls_token"][0] + params["pos_embedding"][0, 0, :])  # cls row 0
    G = G.at[1:SEQ, :].set(params["pos_embedding"][0, 1:, :])                      # tokens 1..8
    G = G.at[SEQ_PAD, :].set(params["lnf_g"][0])
    G = G.at[SEQ_PAD + 1, :].set(params["lnf_b"][0])
    return W, V, G


# ---------------- pure-JAX reference (sanity check) ----------------
def reference(x, params):
    def ln(t, g, b):
        mu = jnp.mean(t, axis=-1, keepdims=True)
        var = jnp.mean(jnp.square(t - mu), axis=-1, keepdims=True)
        return (t - mu) * jax.lax.rsqrt(var + LN_EPS) * g + b

    b = x.shape[0]
    xb = x.reshape(b * SIZE_RATIO, NUM_TOKENS, DIM)
    cls = jnp.broadcast_to(params["cls_token"][None], (xb.shape[0], 1, DIM))
    xb = jnp.concatenate([cls, xb], axis=1) + params["pos_embedding"]
    B = xb.shape[0]

    for l in range(DEPTH):
        xn = ln(xb, params["ln1_g"][l], params["ln1_b"][l])
        qkv = xn @ params["wqkv"][l]
        q, k, v = jnp.split(qkv, 3, axis=-1)
        sh = lambda t: t.reshape(B, SEQ, HEADS, HEAD_DIM).transpose(0, 2, 1, 3)
        q, k, v = sh(q), sh(k), sh(v)
        dots = jnp.einsum("bhid,bhjd->bhij", q, k) * SCALE
        attn = jax.nn.softmax(dots, axis=-1)
        o = jnp.einsum("bhij,bhjd->bhid", attn, v)
        o = o.transpose(0, 2, 1, 3).reshape(B, SEQ, INNER)
        xb = xb + (o @ params["wo"][l] + params["bo"][l])

        xn = ln(xb, params["ln2_g"][l], params["ln2_b"][l])
        h = xn @ params["w1"][l] + params["b1"][l]
        h = jax.nn.gelu(h, approximate=False)
        xb = xb + (h @ params["w2"][l] + params["b2"][l])
    return ln(xb, params["lnf_g"], params["lnf_b"])


if __name__ == "__main__":
    key = jax.random.PRNGKey(0)
    kx, kp = jax.random.split(key)
    # input: (batch=2, input_size=16 tokens, dim=32)
    x = jax.random.normal(kx, (2, INPUT_SIZE, DIM), jnp.float32)
    params = init_params(kp)
    packed = pack_params(params)            # one-time weight preprocessing

    out = general_transformer(x, packed)
    out = jax.block_until_ready(out)

    ref = reference(x, params)
    max_diff = float(jnp.max(jnp.abs(out - ref)))
    assert out.shape == (2 * SIZE_RATIO, SEQ, DIM), out.shape
    assert max_diff < 1e-3, f"mismatch vs reference: {max_diff}"
    print("KERNEL_OK")
</pallas_src>

<mosaic_0001>
module attributes {stable_mosaic.version = 11 : i64} {
  func.func @transformer_kernel(%arg0: i32, %arg1: memref<4x16x32xf32, #tpu.memory_space<vmem>>, %arg2: memref<2x64x384xf32, #tpu.memory_space<vmem>>, %arg3: memref<2x8x64xf32, #tpu.memory_space<vmem>>, %arg4: memref<24x32xf32, #tpu.memory_space<vmem>>, %arg5: memref<4x16x32xf32, #tpu.memory_space<vmem>>) attributes {dimension_semantics = [#tpu.dimension_semantics<parallel>], iteration_bounds = array<i64: 1>, scalar_prefetch = 0 : i64, scratch_operands = 0 : i64, tpu.core_type = #tpu.core_type<tc>, window_params = [{transform_indices = @transform_0, window_bounds = array<i64: 4, 16, 32>}, {pipeline_mode = #tpu.pipeline_mode<synchronous>, transform_indices = @transform_1, window_bounds = array<i64: 2, 64, 384>}, {pipeline_mode = #tpu.pipeline_mode<synchronous>, transform_indices = @transform_2, window_bounds = array<i64: 2, 8, 64>}, {pipeline_mode = #tpu.pipeline_mode<synchronous>, transform_indices = @transform_3, window_bounds = array<i64: 24, 32>}, {transform_indices = @transform_4, window_bounds = array<i64: 4, 16, 32>}]} {
    %c0 = arith.constant 0 : index
    %c0_0 = arith.constant 0 : index
    %c0_1 = arith.constant 0 : index
    %0 = vector.load %arg1[%c0, %c0_0, %c0_1] : memref<4x16x32xf32, #tpu.memory_space<vmem>>, vector<4x16x32xf32>
    %c0_2 = arith.constant 0 : index
    %c0_3 = arith.constant 0 : index
    %1 = vector.load %arg4[%c0_2, %c0_3] : memref<24x32xf32, #tpu.memory_space<vmem>>, vector<16x32xf32>
    %2 = vector.shape_cast %1 : vector<16x32xf32> to vector<1x16x32xf32>
    %3 = vector.broadcast %2 : vector<1x16x32xf32> to vector<4x16x32xf32>
    %4 = arith.addf %0, %3 : vector<4x16x32xf32>
    %5 = vector.shape_cast %4 : vector<4x16x32xf32> to vector<64x32xf32>
    %6 = tpu.iota {dimensions = array<i32: 2>} : vector<1x16x16xi32>
    %c9_i32 = arith.constant 9 : i32
    %7 = vector.broadcast %c9_i32 : i32 to vector<1x16x16xi32>
    %8 = arith.cmpi sge, %6, %7 : vector<1x16x16xi32>
    %cst = arith.constant -1.000000e+30 : f32
    %cst_4 = arith.constant 0.000000e+00 : f32
    %9 = vector.broadcast %cst : f32 to vector<1x16x16xf32>
    %10 = vector.broadcast %cst_4 : f32 to vector<1x16x16xf32>
    %11 = arith.select %8, %9, %10 : vector<1x16x16xi1>, vector<1x16x16xf32>
    %c0_5 = arith.constant 0 : index
    %c0_6 = arith.constant 0 : index
    %c0_7 = arith.constant 0 : index
    %12 = vector.load %arg2[%c0_5, %c0_6, %c0_7] : memref<2x64x384xf32, #tpu.memory_space<vmem>>, vector<1x64x384xf32>
    %13 = vector.shape_cast %12 : vector<1x64x384xf32> to vector<64x384xf32>
    %c0_8 = arith.constant 0 : index
    %c0_9 = arith.constant 0 : index
    %c0_10 = arith.constant 0 : index
    %14 = vector.load %arg3[%c0_8, %c0_9, %c0_10] : memref<2x8x64xf32, #tpu.memory_space<vmem>>, vector<1x8x64xf32>
    %15 = vector.shape_cast %14 : vector<1x8x64xf32> to vector<8x64xf32>
    %16 = vector.extract_strided_slice %15 {offsets = [0, 0], sizes = [1, 32], strides = [1, 1]} : vector<8x64xf32> to vector<1x32xf32>
    %17 = vector.extract_strided_slice %15 {offsets = [1, 0], sizes = [1, 32], strides = [1, 1]} : vector<8x64xf32> to vector<1x32xf32>
    %18 = vector.extract_strided_slice %15 {offsets = [2, 0], sizes = [1, 32], strides = [1, 1]} : vector<8x64xf32> to vector<1x32xf32>
    %19 = vector.extract_strided_slice %15 {offsets = [3, 0], sizes = [1, 32], strides = [1, 1]} : vector<8x64xf32> to vector<1x32xf32>
    %20 = vector.extract_strided_slice %15 {offsets = [4, 0], sizes = [1, 32], strides = [1, 1]} : vector<8x64xf32> to vector<1x32xf32>
    %21 = vector.extract_strided_slice %15 {offsets = [5, 0], sizes = [1, 64], strides = [1, 1]} : vector<8x64xf32> to vector<1x64xf32>
    %22 = vector.extract_strided_slice %15 {offsets = [6, 0], sizes = [1, 32], strides = [1, 1]} : vector<8x64xf32> to vector<1x32xf32>
    %cst_11 = arith.constant dense<0.000000e+00> : vector<64xf32>
    %23 = vector.multi_reduction <add>, %5, %cst_11 [1] : vector<64x32xf32> to vector<64xf32>
    %24 = vector.shape_cast %23 : vector<64xf32> to vector<64x1xf32>
    %cst_12 = arith.constant 3.200000e+01 : f32
    %25 = vector.broadcast %cst_12 : f32 to vector<64x1xf32>
    %26 = arith.divf %24, %25 : vector<64x1xf32>
    %27 = vector.broadcast %26 : vector<64x1xf32> to vector<64x32xf32>
    %28 = arith.subf %5, %27 : vector<64x32xf32>
    %29 = arith.mulf %28, %28 : vector<64x32xf32>
    %cst_13 = arith.constant dense<0.000000e+00> : vector<64xf32>
    %30 = vector.multi_reduction <add>, %29, %cst_13 [1] : vector<64x32xf32> to vector<64xf32>
    %31 = vector.shape_cast %30 : vector<64xf32> to vector<64x1xf32>
    %cst_14 = arith.constant 3.200000e+01 : f32
    %32 = vector.broadcast %cst_14 : f32 to vector<64x1xf32>
    %33 = arith.divf %31, %32 : vector<64x1xf32>
    %34 = vector.broadcast %26 : vector<64x1xf32> to vector<64x32xf32>
    %35 = arith.subf %5, %34 : vector<64x32xf32>
    %cst_15 = arith.constant 9.99999974E-6 : f32
    %36 = vector.broadcast %cst_15 : f32 to vector<64x1xf32>
    %37 = arith.addf %33, %36 : vector<64x1xf32>
    %38 = math.rsqrt %37 : vector<64x1xf32>
    %39 = vector.broadcast %38 : vector<64x1xf32> to vector<64x32xf32>
    %40 = arith.mulf %35, %39 : vector<64x32xf32>
    %41 = vector.broadcast %16 : vector<1x32xf32> to vector<64x32xf32>
    %42 = arith.mulf %40, %41 : vector<64x32xf32>
    %43 = vector.broadcast %17 : vector<1x32xf32> to vector<64x32xf32>
    %44 = arith.addf %42, %43 : vector<64x32xf32>
    %45 = vector.extract_strided_slice %13 {offsets = [0, 0], sizes = [32, 192], strides = [1, 1]} : vector<64x384xf32> to vector<32x192xf32>
    %cst_16 = arith.constant dense<0.000000e+00> : vector<64x192xf32>
    %46 = tpu.matmul %44, %45, %cst_16 {dimension_numbers = #tpu.dot_dimension_numbers<[1], [0], [0], [1], [0, 0, 1, 1], [], []>} : vector<64x32xf32>, vector<32x192xf32>, vector<64x192xf32> -> vector<64x192xf32>
    %47 = vector.shape_cast %46 : vector<64x192xf32> to vector<4x16x192xf32>
    %cst_17 = arith.constant 0.000000e+00 : f32
    %48 = vector.broadcast %cst_17 : f32 to vector<4x16x32xf32>
    %49 = vector.extract_strided_slice %47 {offsets = [0, 0, 0], sizes = [4, 16, 8], strides = [1, 1, 1]} : vector<4x16x192xf32> to vector<4x16x8xf32>
    %50 = vector.extract_strided_slice %47 {offsets = [0, 0, 32], sizes = [4, 16, 8], strides = [1, 1, 1]} : vector<4x16x192xf32> to vector<4x16x8xf32>
    %51 = vector.extract_strided_slice %47 {offsets = [0, 0, 64], sizes = [4, 16, 32], strides = [1, 1, 1]} : vector<4x16x192xf32> to vector<4x16x32xf32>
    "tpu.trace_start"() <{level = 10 : i32, message = "bid,bjd->bij"}> : () -> ()
    %cst_18 = arith.constant dense<0.000000e+00> : vector<4x16x16xf32>
    %52 = tpu.matmul %49, %50, %cst_18 {dimension_numbers = #tpu.dot_dimension_numbers<[2], [2], [1], [1], [0, 0, 0, 1, 1, 1], [0], [0]>} : vector<4x16x8xf32>, vector<4x16x8xf32>, vector<4x16x16xf32> -> vector<4x16x16xf32>
    "tpu.trace_stop"() : () -> ()
    %53 = vector.broadcast %11 : vector<1x16x16xf32> to vector<4x16x16xf32>
    %54 = arith.addf %52, %53 : vector<4x16x16xf32>
    %cst_19 = arith.constant dense<0xFF800000> : vector<4x16xf32>
    %55 = vector.multi_reduction <maximumf>, %54, %cst_19 [2] : vector<4x16x16xf32> to vector<4x16xf32>
    %56 = vector.shape_cast %55 : vector<4x16xf32> to vector<4x16x1xf32>
    %57 = vector.broadcast %56 : vector<4x16x1xf32> to vector<4x16x16xf32>
    %58 = arith.subf %54, %57 : vector<4x16x16xf32>
    %59 = math.exp %58 : vector<4x16x16xf32>
    %cst_20 = arith.constant dense<0.000000e+00> : vector<4x16xf32>
    %60 = vector.multi_reduction <add>, %59, %cst_20 [2] : vector<4x16x16xf32> to vector<4x16xf32>
    %61 = vector.shape_cast %60 : vector<4x16xf32> to vector<4x16x1xf32>
    %62 = tpu.reciprocal %61 : vector<4x16x1xf32> -> vector<4x16x1xf32>
    %63 = vector.broadcast %62 : vector<4x16x1xf32> to vector<4x16x16xf32>
    %64 = arith.mulf %59, %63 : vector<4x16x16xf32>
    "tpu.trace_start"() <{level = 10 : i32, message = "bij,bjd->bid"}> : () -> ()
    %cst_21 = arith.constant dense<0.000000e+00> : vector<4x16x32xf32>
    %65 = tpu.matmul %64, %51, %cst_21 {dimension_numbers = #tpu.dot_dimension_numbers<[2], [1], [1], [2], [0, 0, 0, 1, 1, 2], [0], [0]>} : vector<4x16x16xf32>, vector<4x16x32xf32>, vector<4x16x32xf32> -> vector<4x16x32xf32>
    "tpu.trace_stop"() : () -> ()
    %66 = arith.addf %48, %65 : vector<4x16x32xf32>
    %67 = vector.extract_strided_slice %47 {offsets = [0, 0, 8], sizes = [4, 16, 8], strides = [1, 1, 1]} : vector<4x16x192xf32> to vector<4x16x8xf32>
    %68 = vector.extract_strided_slice %47 {offsets = [0, 0, 40], sizes = [4, 16, 8], strides = [1, 1, 1]} : vector<4x16x192xf32> to vector<4x16x8xf32>
    %69 = vector.extract_strided_slice %47 {offsets = [0, 0, 96], sizes = [4, 16, 32], strides = [1, 1, 1]} : vector<4x16x192xf32> to vector<4x16x32xf32>
    "tpu.trace_start"() <{level = 10 : i32, message = "bid,bjd->bij"}> : () -> ()
    %cst_22 = arith.constant dense<0.000000e+00> : vector<4x16x16xf32>
    %70 = tpu.matmul %67, %68, %cst_22 {dimension_numbers = #tpu.dot_dimension_numbers<[2], [2], [1], [1], [0, 0, 0, 1, 1, 1], [0], [0]>} : vector<4x16x8xf32>, vector<4x16x8xf32>, vector<4x16x16xf32> -> vector<4x16x16xf32>
    "tpu.trace_stop"() : () -> ()
    %71 = vector.broadcast %11 : vector<1x16x16xf32> to vector<4x16x16xf32>
    %72 = arith.addf %70, %71 : vector<4x16x16xf32>
    %cst_23 = arith.constant dense<0xFF800000> : vector<4x16xf32>
    %73 = vector.multi_reduction <maximumf>, %72, %cst_23 [2] : vector<4x16x16xf32> to vector<4x16xf32>
    %74 = vector.shape_cast %73 : vector<4x16xf32> to vector<4x16x1xf32>
    %75 = vector.broadcast %74 : vector<4x16x1xf32> to vector<4x16x16xf32>
    %76 = arith.subf %72, %75 : vector<4x16x16xf32>
    %77 = math.exp %76 : vector<4x16x16xf32>
    %cst_24 = arith.constant dense<0.000000e+00> : vector<4x16xf32>
    %78 = vector.multi_reduction <add>, %77, %cst_24 [2] : vector<4x16x16xf32> to vector<4x16xf32>
    %79 = vector.shape_cast %78 : vector<4x16xf32> to vector<4x16x1xf32>
    %80 = tpu.reciprocal %79 : vector<4x16x1xf32> -> vector<4x16x1xf32>
    %81 = vector.broadcast %80 : vector<4x16x1xf32> to vector<4x16x16xf32>
    %82 = arith.mulf %77, %81 : vector<4x16x16xf32>
    "tpu.trace_start"() <{level = 10 : i32, message = "bij,bjd->bid"}> : () -> ()
    %cst_25 = arith.constant dense<0.000000e+00> : vector<4x16x32xf32>
    %83 = tpu.matmul %82, %69, %cst_25 {dimension_numbers = #tpu.dot_dimension_numbers<[2], [1], [1], [2], [0, 0, 0, 1, 1, 2], [0], [0]>} : vector<4x16x16xf32>, vector<4x16x32xf32>, vector<4x16x32xf32> -> vector<4x16x32xf32>
    "tpu.trace_stop"() : () -> ()
    %84 = arith.addf %66, %83 : vector<4x16x32xf32>
    %85 = vector.extract_strided_slice %47 {offsets = [0, 0, 16], sizes = [4, 16, 8], strides = [1, 1, 1]} : vector<4x16x192xf32> to vector<4x16x8xf32>
    %86 = vector.extract_strided_slice %47 {offsets = [0, 0, 48], sizes = [4, 16, 8], strides = [1, 1, 1]} : vector<4x16x192xf32> to vector<4x16x8xf32>
    %87 = vector.extract_strided_slice %47 {offsets = [0, 0, 128], sizes = [4, 16, 32], strides = [1, 1, 1]} : vector<4x16x192xf32> to vector<4x16x32xf32>
    "tpu.trace_start"() <{level = 10 : i32, message = "bid,bjd->bij"}> : () -> ()
    %cst_26 = arith.constant dense<0.000000e+00> : vector<4x16x16xf32>
    %88 = tpu.matmul %85, %86, %cst_26 {dimension_numbers = #tpu.dot_dimension_numbers<[2], [2], [1], [1], [0, 0, 0, 1, 1, 1], [0], [0]>} : vector<4x16x8xf32>, vector<4x16x8xf32>, vector<4x16x16xf32> -> vector<4x16x16xf32>
    "tpu.trace_stop"() : () -> ()
    %89 = vector.broadcast %11 : vector<1x16x16xf32> to vector<4x16x16xf32>
    %90 = arith.addf %88, %89 : vector<4x16x16xf32>
    %cst_27 = arith.constant dense<0xFF800000> : vector<4x16xf32>
    %91 = vector.multi_reduction <maximumf>, %90, %cst_27 [2] : vector<4x16x16xf32> to vector<4x16xf32>
    %92 = vector.shape_cast %91 : vector<4x16xf32> to vector<4x16x1xf32>
    %93 = vector.broadcast %92 : vector<4x16x1xf32> to vector<4x16x16xf32>
    %94 = arith.subf %90, %93 : vector<4x16x16xf32>
    %95 = math.exp %94 : vector<4x16x16xf32>
    %cst_28 = arith.constant dense<0.000000e+00> : vector<4x16xf32>
    %96 = vector.multi_reduction <add>, %95, %cst_28 [2] : vector<4x16x16xf32> to vector<4x16xf32>
    %97 = vector.shape_cast %96 : vector<4x16xf32> to vector<4x16x1xf32>
    %98 = tpu.reciprocal %97 : vector<4x16x1xf32> -> vector<4x16x1xf32>
    %99 = vector.broadcast %98 : vector<4x16x1xf32> to vector<4x16x16xf32>
    %100 = arith.mulf %95, %99 : vector<4x16x16xf32>
    "tpu.trace_start"() <{level = 10 : i32, message = "bij,bjd->bid"}> : () -> ()
    %cst_29 = arith.constant dense<0.000000e+00> : vector<4x16x32xf32>
    %101 = tpu.matmul %100, %87, %cst_29 {dimension_numbers = #tpu.dot_dimension_numbers<[2], [1], [1], [2], [0, 0, 0, 1, 1, 2], [0], [0]>} : vector<4x16x16xf32>, vector<4x16x32xf32>, vector<4x16x32xf32> -> vector<4x16x32xf32>
    "tpu.trace_stop"() : () -> ()
    %102 = arith.addf %84, %101 : vector<4x16x32xf32>
    %103 = vector.extract_strided_slice %47 {offsets = [0, 0, 24], sizes = [4, 16, 8], strides = [1, 1, 1]} : vector<4x16x192xf32> to vector<4x16x8xf32>
    %104 = vector.extract_strided_slice %47 {offsets = [0, 0, 56], sizes = [4, 16, 8], strides = [1, 1, 1]} : vector<4x16x192xf32> to vector<4x16x8xf32>
    %105 = vector.extract_strided_slice %47 {offsets = [0, 0, 160], sizes = [4, 16, 32], strides = [1, 1, 1]} : vector<4x16x192xf32> to vector<4x16x32xf32>
    "tpu.trace_start"() <{level = 10 : i32, message = "bid,bjd->bij"}> : () -> ()
    %cst_30 = arith.constant dense<0.000000e+00> : vector<4x16x16xf32>
    %106 = tpu.matmul %103, %104, %cst_30 {dimension_numbers = #tpu.dot_dimension_numbers<[2], [2], [1], [1], [0, 0, 0, 1, 1, 1], [0], [0]>} : vector<4x16x8xf32>, vector<4x16x8xf32>, vector<4x16x16xf32> -> vector<4x16x16xf32>
    "tpu.trace_stop"() : () -> ()
    %107 = vector.broadcast %11 : vector<1x16x16xf32> to vector<4x16x16xf32>
    %108 = arith.addf %106, %107 : vector<4x16x16xf32>
    %cst_31 = arith.constant dense<0xFF800000> : vector<4x16xf32>
    %109 = vector.multi_reduction <maximumf>, %108, %cst_31 [2] : vector<4x16x16xf32> to vector<4x16xf32>
    %110 = vector.shape_cast %109 : vector<4x16xf32> to vector<4x16x1xf32>
    %111 = vector.broadcast %110 : vector<4x16x1xf32> to vector<4x16x16xf32>
    %112 = arith.subf %108, %111 : vector<4x16x16xf32>
    %113 = math.exp %112 : vector<4x16x16xf32>
    %cst_32 = arith.constant dense<0.000000e+00> : vector<4x16xf32>
    %114 = vector.multi_reduction <add>, %113, %cst_32 [2] : vector<4x16x16xf32> to vector<4x16xf32>
    %115 = vector.shape_cast %114 : vector<4x16xf32> to vector<4x16x1xf32>
    %116 = tpu.reciprocal %115 : vector<4x16x1xf32> -> vector<4x16x1xf32>
    %117 = vector.broadcast %116 : vector<4x16x1xf32> to vector<4x16x16xf32>
    %118 = arith.mulf %113, %117 : vector<4x16x16xf32>
    "tpu.trace_start"() <{level = 10 : i32, message = "bij,bjd->bid"}> : () -> ()
    %cst_33 = arith.constant dense<0.000000e+00> : vector<4x16x32xf32>
    %119 = tpu.matmul %118, %105, %cst_33 {dimension_numbers = #tpu.dot_dimension_numbers<[2], [1], [1], [2], [0, 0, 0, 1, 1, 2], [0], [0]>} : vector<4x16x16xf32>, vector<4x16x32xf32>, vector<4x16x32xf32> -> vector<4x16x32xf32>
    "tpu.trace_stop"() : () -> ()
    %120 = arith.addf %102, %119 : vector<4x16x32xf32>
    %121 = vector.shape_cast %120 : vector<4x16x32xf32> to vector<64x32xf32>
    %122 = arith.addf %5, %121 : vector<64x32xf32>
    %123 = vector.broadcast %18 : vector<1x32xf32> to vector<64x32xf32>
    %124 = arith.addf %122, %123 : vector<64x32xf32>
    %cst_34 = arith.constant dense<0.000000e+00> : vector<64xf32>
    %125 = vector.multi_reduction <add>, %124, %cst_34 [1] : vector<64x32xf32> to vector<64xf32>
    %126 = vector.shape_cast %125 : vector<64xf32> to vector<64x1xf32>
    %cst_35 = arith.constant 3.200000e+01 : f32
    %127 = vector.broadcast %cst_35 : f32 to vector<64x1xf32>
    %128 = arith.divf %126, %127 : vector<64x1xf32>
    %129 = vector.broadcast %128 : vector<64x1xf32> to vector<64x32xf32>
    %130 = arith.subf %124, %129 : vector<64x32xf32>
    %131 = arith.mulf %130, %130 : vector<64x32xf32>
    %cst_36 = arith.constant dense<0.000000e+00> : vector<64xf32>
    %132 = vector.multi_reduction <add>, %131, %cst_36 [1] : vector<64x32xf32> to vector<64xf32>
    %133 = vector.shape_cast %132 : vector<64xf32> to vector<64x1xf32>
    %cst_37 = arith.constant 3.200000e+01 : f32
    %134 = vector.broadcast %cst_37 : f32 to vector<64x1xf32>
    %135 = arith.divf %133, %134 : vector<64x1xf32>
    %136 = vector.broadcast %128 : vector<64x1xf32> to vector<64x32xf32>
    %137 = arith.subf %124, %136 : vector<64x32xf32>
    %cst_38 = arith.constant 9.99999974E-6 : f32
    %138 = vector.broadcast %cst_38 : f32 to vector<64x1xf32>
    %139 = arith.addf %135, %138 : vector<64x1xf32>
    %140 = math.rsqrt %139 : vector<64x1xf32>
    %141 = vector.broadcast %140 : vector<64x1xf32> to vector<64x32xf32>
    %142 = arith.mulf %137, %141 : vector<64x32xf32>
    %143 = vector.broadcast %19 : vector<1x32xf32> to vector<64x32xf32>
    %144 = arith.mulf %142, %143 : vector<64x32xf32>
    %145 = vector.broadcast %20 : vector<1x32xf32> to vector<64x32xf32>
    %146 = arith.addf %144, %145 : vector<64x32xf32>
    %147 = vector.extract_strided_slice %13 {offsets = [0, 192], sizes = [32, 64], strides = [1, 1]} : vector<64x384xf32> to vector<32x64xf32>
    %cst_39 = arith.constant dense<0.000000e+00> : vector<64x64xf32>
    %148 = tpu.matmul %146, %147, %cst_39 {dimension_numbers = #tpu.dot_dimension_numbers<[1], [0], [0], [1], [0, 0, 1, 1], [], []>} : vector<64x32xf32>, vector<32x64xf32>, vector<64x64xf32> -> vector<64x64xf32>
    %149 = vector.broadcast %21 : vector<1x64xf32> to vector<64x64xf32>
    %150 = arith.addf %148, %149 : vector<64x64xf32>
    %cst_40 = arith.constant 5.000000e-01 : f32
    %151 = vector.broadcast %cst_40 : f32 to vector<64x64xf32>
    %152 = arith.mulf %151, %150 : vector<64x64xf32>
    %cst_41 = arith.constant 0.707106769 : f32
    %153 = vector.broadcast %cst_41 : f32 to vector<64x64xf32>
    %154 = arith.mulf %150, %153 : vector<64x64xf32>
    %155 = math.erf %154 : vector<64x64xf32>
    %cst_42 = arith.constant 1.000000e+00 : f32
    %156 = vector.broadcast %cst_42 : f32 to vector<64x64xf32>
    %157 = arith.addf %156, %155 : vector<64x64xf32>
    %158 = arith.mulf %152, %157 : vector<64x64xf32>
    %159 = vector.extract_strided_slice %13 {offsets = [0, 256], sizes = [64, 32], strides = [1, 1]} : vector<64x384xf32> to vector<64x32xf32>
    %cst_43 = arith.constant dense<0.000000e+00> : vector<64x32xf32>
    %160 = tpu.matmul %158, %159, %cst_43 {dimension_numbers = #tpu.dot_dimension_numbers<[1], [0], [0], [1], [0, 0, 1, 1], [], []>} : vector<64x64xf32>, vector<64x32xf32>, vector<64x32xf32> -> vector<64x32xf32>
    %161 = arith.addf %124, %160 : vector<64x32xf32>
    %162 = vector.broadcast %22 : vector<1x32xf32> to vector<64x32xf32>
    %163 = arith.addf %161, %162 : vector<64x32xf32>
    %c1 = arith.constant 1 : index
    %c0_44 = arith.constant 0 : index
    %c0_45 = arith.constant 0 : index
    %164 = vector.load %arg2[%c1, %c0_44, %c0_45] : memref<2x64x384xf32, #tpu.memory_space<vmem>>, vector<1x64x384xf32>
    %165 = vector.shape_cast %164 : vector<1x64x384xf32> to vector<64x384xf32>
    %c1_46 = arith.constant 1 : index
    %c0_47 = arith.constant 0 : index
    %c0_48 = arith.constant 0 : index
    %166 = vector.load %arg3[%c1_46, %c0_47, %c0_48] : memref<2x8x64xf32, #tpu.memory_space<vmem>>, vector<1x8x64xf32>
    %167 = vector.shape_cast %166 : vector<1x8x64xf32> to vector<8x64xf32>
    %168 = vector.extract_strided_slice %167 {offsets = [0, 0], sizes = [1, 32], strides = [1, 1]} : vector<8x64xf32> to vector<1x32xf32>
    %169 = vector.extract_strided_slice %167 {offsets = [1, 0], sizes = [1, 32], strides = [1, 1]} : vector<8x64xf32> to vector<1x32xf32>
    %170 = vector.extract_strided_slice %167 {offsets = [2, 0], sizes = [1, 32], strides = [1, 1]} : vector<8x64xf32> to vector<1x32xf32>
    %171 = vector.extract_strided_slice %167 {offsets = [3, 0], sizes = [1, 32], strides = [1, 1]} : vector<8x64xf32> to vector<1x32xf32>
    %172 = vector.extract_strided_slice %167 {offsets = [4, 0], sizes = [1, 32], strides = [1, 1]} : vector<8x64xf32> to vector<1x32xf32>
    %173 = vector.extract_strided_slice %167 {offsets = [5, 0], sizes = [1, 64], strides = [1, 1]} : vector<8x64xf32> to vector<1x64xf32>
    %174 = vector.extract_strided_slice %167 {offsets = [6, 0], sizes = [1, 32], strides = [1, 1]} : vector<8x64xf32> to vector<1x32xf32>
    %cst_49 = arith.constant dense<0.000000e+00> : vector<64xf32>
    %175 = vector.multi_reduction <add>, %163, %cst_49 [1] : vector<64x32xf32> to vector<64xf32>
    %176 = vector.shape_cast %175 : vector<64xf32> to vector<64x1xf32>
    %cst_50 = arith.constant 3.200000e+01 : f32
    %177 = vector.broadcast %cst_50 : f32 to vector<64x1xf32>
    %178 = arith.divf %176, %177 : vector<64x1xf32>
    %179 = vector.broadcast %178 : vector<64x1xf32> to vector<64x32xf32>
    %180 = arith.subf %163, %179 : vector<64x32xf32>
    %181 = arith.mulf %180, %180 : vector<64x32xf32>
    %cst_51 = arith.constant dense<0.000000e+00> : vector<64xf32>
    %182 = vector.multi_reduction <add>, %181, %cst_51 [1] : vector<64x32xf32> to vector<64xf32>
    %183 = vector.shape_cast %182 : vector<64xf32> to vector<64x1xf32>
    %cst_52 = arith.constant 3.200000e+01 : f32
    %184 = vector.broadcast %cst_52 : f32 to vector<64x1xf32>
    %185 = arith.divf %183, %184 : vector<64x1xf32>
    %186 = vector.broadcast %178 : vector<64x1xf32> to vector<64x32xf32>
    %187 = arith.subf %163, %186 : vector<64x32xf32>
    %cst_53 = arith.constant 9.99999974E-6 : f32
    %188 = vector.broadcast %cst_53 : f32 to vector<64x1xf32>
    %189 = arith.addf %185, %188 : vector<64x1xf32>
    %190 = math.rsqrt %189 : vector<64x1xf32>
    %191 = vector.broadcast %190 : vector<64x1xf32> to vector<64x32xf32>
    %192 = arith.mulf %187, %191 : vector<64x32xf32>
    %193 = vector.broadcast %168 : vector<1x32xf32> to vector<64x32xf32>
    %194 = arith.mulf %192, %193 : vector<64x32xf32>
    %195 = vector.broadcast %169 : vector<1x32xf32> to vector<64x32xf32>
    %196 = arith.addf %194, %195 : vector<64x32xf32>
    %197 = vector.extract_strided_slice %165 {offsets = [0, 0], sizes = [32, 192], strides = [1, 1]} : vector<64x384xf32> to vector<32x192xf32>
    %cst_54 = arith.constant dense<0.000000e+00> : vector<64x192xf32>
    %198 = tpu.matmul %196, %197, %cst_54 {dimension_numbers = #tpu.dot_dimension_numbers<[1], [0], [0], [1], [0, 0, 1, 1], [], []>} : vector<64x32xf32>, vector<32x192xf32>, vector<64x192xf32> -> vector<64x192xf32>
    %199 = vector.shape_cast %198 : vector<64x192xf32> to vector<4x16x192xf32>
    %cst_55 = arith.constant 0.000000e+00 : f32
    %200 = vector.broadcast %cst_55 : f32 to vector<4x16x32xf32>
    %201 = vector.extract_strided_slice %199 {offsets = [0, 0, 0], sizes = [4, 16, 8], strides = [1, 1, 1]} : vector<4x16x192xf32> to vector<4x16x8xf32>
    %202 = vector.extract_strided_slice %199 {offsets = [0, 0, 32], sizes = [4, 16, 8], strides = [1, 1, 1]} : vector<4x16x192xf32> to vector<4x16x8xf32>
    %203 = vector.extract_strided_slice %199 {offsets = [0, 0, 64], sizes = [4, 16, 32], strides = [1, 1, 1]} : vector<4x16x192xf32> to vector<4x16x32xf32>
    "tpu.trace_start"() <{level = 10 : i32, message = "bid,bjd->bij"}> : () -> ()
    %cst_56 = arith.constant dense<0.000000e+00> : vector<4x16x16xf32>
    %204 = tpu.matmul %201, %202, %cst_56 {dimension_numbers = #tpu.dot_dimension_numbers<[2], [2], [1], [1], [0, 0, 0, 1, 1, 1], [0], [0]>} : vector<4x16x8xf32>, vector<4x16x8xf32>, vector<4x16x16xf32> -> vector<4x16x16xf32>
    "tpu.trace_stop"() : () -> ()
    %205 = vector.broadcast %11 : vector<1x16x16xf32> to vector<4x16x16xf32>
    %206 = arith.addf %204, %205 : vector<4x16x16xf32>
    %cst_57 = arith.constant dense<0xFF800000> : vector<4x16xf32>
    %207 = vector.multi_reduction <maximumf>, %206, %cst_57 [2] : vector<4x16x16xf32> to vector<4x16xf32>
    %208 = vector.shape_cast %207 : vector<4x16xf32> to vector<4x16x1xf32>
    %209 = vector.broadcast %208 : vector<4x16x1xf32> to vector<4x16x16xf32>
    %210 = arith.subf %206, %209 : vector<4x16x16xf32>
    %211 = math.exp %210 : vector<4x16x16xf32>
    %cst_58 = arith.constant dense<0.000000e+00> : vector<4x16xf32>
    %212 = vector.multi_reduction <add>, %211, %cst_58 [2] : vector<4x16x16xf32> to vector<4x16xf32>
    %213 = vector.shape_cast %212 : vector<4x16xf32> to vector<4x16x1xf32>
    %214 = tpu.reciprocal %213 : vector<4x16x1xf32> -> vector<4x16x1xf32>
    %215 = vector.broadcast %214 : vector<4x16x1xf32> to vector<4x16x16xf32>
    %216 = arith.mulf %211, %215 : vector<4x16x16xf32>
    "tpu.trace_start"() <{level = 10 : i32, message = "bij,bjd->bid"}> : () -> ()
    %cst_59 = arith.constant dense<0.000000e+00> : vector<4x16x32xf32>
    %217 = tpu.matmul %216, %203, %cst_59 {dimension_numbers = #tpu.dot_dimension_numbers<[2], [1], [1], [2], [0, 0, 0, 1, 1, 2], [0], [0]>} : vector<4x16x16xf32>, vector<4x16x32xf32>, vector<4x16x32xf32> -> vector<4x16x32xf32>
    "tpu.trace_stop"() : () -> ()
    %218 = arith.addf %200, %217 : vector<4x16x32xf32>
    %219 = vector.extract_strided_slice %199 {offsets = [0, 0, 8], sizes = [4, 16, 8], strides = [1, 1, 1]} : vector<4x16x192xf32> to vector<4x16x8xf32>
    %220 = vector.extract_strided_slice %199 {offsets = [0, 0, 40], sizes = [4, 16, 8], strides = [1, 1, 1]} : vector<4x16x192xf32> to vector<4x16x8xf32>
    %221 = vector.extract_strided_slice %199 {offsets = [0, 0, 96], sizes = [4, 16, 32], strides = [1, 1, 1]} : vector<4x16x192xf32> to vector<4x16x32xf32>
    "tpu.trace_start"() <{level = 10 : i32, message = "bid,bjd->bij"}> : () -> ()
    %cst_60 = arith.constant dense<0.000000e+00> : vector<4x16x16xf32>
    %222 = tpu.matmul %219, %220, %cst_60 {dimension_numbers = #tpu.dot_dimension_numbers<[2], [2], [1], [1], [0, 0, 0, 1, 1, 1], [0], [0]>} : vector<4x16x8xf32>, vector<4x16x8xf32>, vector<4x16x16xf32> -> vector<4x16x16xf32>
    "tpu.trace_stop"() : () -> ()
    %223 = vector.broadcast %11 : vector<1x16x16xf32> to vector<4x16x16xf32>
    %224 = arith.addf %222, %223 : vector<4x16x16xf32>
    %cst_61 = arith.constant dense<0xFF800000> : vector<4x16xf32>
    %225 = vector.multi_reduction <maximumf>, %224, %cst_61 [2] : vector<4x16x16xf32> to vector<4x16xf32>
    %226 = vector.shape_cast %225 : vector<4x16xf32> to vector<4x16x1xf32>
    %227 = vector.broadcast %226 : vector<4x16x1xf32> to vector<4x16x16xf32>
    %228 = arith.subf %224, %227 : vector<4x16x16xf32>
    %229 = math.exp %228 : vector<4x16x16xf32>
    %cst_62 = arith.constant dense<0.000000e+00> : vector<4x16xf32>
    %230 = vector.multi_reduction <add>, %229, %cst_62 [2] : vector<4x16x16xf32> to vector<4x16xf32>
    %231 = vector.shape_cast %230 : vector<4x16xf32> to vector<4x16x1xf32>
    %232 = tpu.reciprocal %231 : vector<4x16x1xf32> -> vector<4x16x1xf32>
    %233 = vector.broadcast %232 : vector<4x16x1xf32> to vector<4x16x16xf32>
    %234 = arith.mulf %229, %233 : vector<4x16x16xf32>
    "tpu.trace_start"() <{level = 10 : i32, message = "bij,bjd->bid"}> : () -> ()
    %cst_63 = arith.constant dense<0.000000e+00> : vector<4x16x32xf32>
    %235 = tpu.matmul %234, %221, %cst_63 {dimension_numbers = #tpu.dot_dimension_numbers<[2], [1], [1], [2], [0, 0, 0, 1, 1, 2], [0], [0]>} : vector<4x16x16xf32>, vector<4x16x32xf32>, vector<4x16x32xf32> -> vector<4x16x32xf32>
    "tpu.trace_stop"() : () -> ()
    %236 = arith.addf %218, %235 : vector<4x16x32xf32>
    %237 = vector.extract_strided_slice %199 {offsets = [0, 0, 16], sizes = [4, 16, 8], strides = [1, 1, 1]} : vector<4x16x192xf32> to vector<4x16x8xf32>
    %238 = vector.extract_strided_slice %199 {offsets = [0, 0, 48], sizes = [4, 16, 8], strides = [1, 1, 1]} : vector<4x16x192xf32> to vector<4x16x8xf32>
    %239 = vector.extract_strided_slice %199 {offsets = [0, 0, 128], sizes = [4, 16, 32], strides = [1, 1, 1]} : vector<4x16x192xf32> to vector<4x16x32xf32>
    "tpu.trace_start"() <{level = 10 : i32, message = "bid,bjd->bij"}> : () -> ()
    %cst_64 = arith.constant dense<0.000000e+00> : vector<4x16x16xf32>
    %240 = tpu.matmul %237, %238, %cst_64 {dimension_numbers = #tpu.dot_dimension_numbers<[2], [2], [1], [1], [0, 0, 0, 1, 1, 1], [0], [0]>} : vector<4x16x8xf32>, vector<4x16x8xf32>, vector<4x16x16xf32> -> vector<4x16x16xf32>
    "tpu.trace_stop"() : () -> ()
    %241 = vector.broadcast %11 : vector<1x16x16xf32> to vector<4x16x16xf32>
    %242 = arith.addf %240, %241 : vector<4x16x16xf32>
    %cst_65 = arith.constant dense<0xFF800000> : vector<4x16xf32>
    %243 = vector.multi_reduction <maximumf>, %242, %cst_65 [2] : vector<4x16x16xf32> to vector<4x16xf32>
    %244 = vector.shape_cast %243 : vector<4x16xf32> to vector<4x16x1xf32>
    %245 = vector.broadcast %244 : vector<4x16x1xf32> to vector<4x16x16xf32>
    %246 = arith.subf %242, %245 : vector<4x16x16xf32>
    %247 = math.exp %246 : vector<4x16x16xf32>
    %cst_66 = arith.constant dense<0.000000e+00> : vector<4x16xf32>
    %248 = vector.multi_reduction <add>, %247, %cst_66 [2] : vector<4x16x16xf32> to vector<4x16xf32>
    %249 = vector.shape_cast %248 : vector<4x16xf32> to vector<4x16x1xf32>
    %250 = tpu.reciprocal %249 : vector<4x16x1xf32> -> vector<4x16x1xf32>
    %251 = vector.broadcast %250 : vector<4x16x1xf32> to vector<4x16x16xf32>
    %252 = arith.mulf %247, %251 : vector<4x16x16xf32>
    "tpu.trace_start"() <{level = 10 : i32, message = "bij,bjd->bid"}> : () -> ()
    %cst_67 = arith.constant dense<0.000000e+00> : vector<4x16x32xf32>
    %253 = tpu.matmul %252, %239, %cst_67 {dimension_numbers = #tpu.dot_dimension_numbers<[2], [1], [1], [2], [0, 0, 0, 1, 1, 2], [0], [0]>} : vector<4x16x16xf32>, vector<4x16x32xf32>, vector<4x16x32xf32> -> vector<4x16x32xf32>
    "tpu.trace_stop"() : () -> ()
    %254 = arith.addf %236, %253 : vector<4x16x32xf32>
    %255 = vector.extract_strided_slice %199 {offsets = [0, 0, 24], sizes = [4, 16, 8], strides = [1, 1, 1]} : vector<4x16x192xf32> to vector<4x16x8xf32>
    %256 = vector.extract_strided_slice %199 {offsets = [0, 0, 56], sizes = [4, 16, 8], strides = [1, 1, 1]} : vector<4x16x192xf32> to vector<4x16x8xf32>
    %257 = vector.extract_strided_slice %199 {offsets = [0, 0, 160], sizes = [4, 16, 32], strides = [1, 1, 1]} : vector<4x16x192xf32> to vector<4x16x32xf32>
    "tpu.trace_start"() <{level = 10 : i32, message = "bid,bjd->bij"}> : () -> ()
    %cst_68 = arith.constant dense<0.000000e+00> : vector<4x16x16xf32>
    %258 = tpu.matmul %255, %256, %cst_68 {dimension_numbers = #tpu.dot_dimension_numbers<[2], [2], [1], [1], [0, 0, 0, 1, 1, 1], [0], [0]>} : vector<4x16x8xf32>, vector<4x16x8xf32>, vector<4x16x16xf32> -> vector<4x16x16xf32>
    "tpu.trace_stop"() : () -> ()
    %259 = vector.broadcast %11 : vector<1x16x16xf32> to vector<4x16x16xf32>
    %260 = arith.addf %258, %259 : vector<4x16x16xf32>
    %cst_69 = arith.constant dense<0xFF800000> : vector<4x16xf32>
    %261 = vector.multi_reduction <maximumf>, %260, %cst_69 [2] : vector<4x16x16xf32> to vector<4x16xf32>
    %262 = vector.shape_cast %261 : vector<4x16xf32> to vector<4x16x1xf32>
    %263 = vector.broadcast %262 : vector<4x16x1xf32> to vector<4x16x16xf32>
    %264 = arith.subf %260, %263 : vector<4x16x16xf32>
    %265 = math.exp %264 : vector<4x16x16xf32>
    %cst_70 = arith.constant dense<0.000000e+00> : vector<4x16xf32>
    %266 = vector.multi_reduction <add>, %265, %cst_70 [2] : vector<4x16x16xf32> to vector<4x16xf32>
    %267 = vector.shape_cast %266 : vector<4x16xf32> to vector<4x16x1xf32>
    %268 = tpu.reciprocal %267 : vector<4x16x1xf32> -> vector<4x16x1xf32>
    %269 = vector.broadcast %268 : vector<4x16x1xf32> to vector<4x16x16xf32>
    %270 = arith.mulf %265, %269 : vector<4x16x16xf32>
    "tpu.trace_start"() <{level = 10 : i32, message = "bij,bjd->bid"}> : () -> ()
    %cst_71 = arith.constant dense<0.000000e+00> : vector<4x16x32xf32>
    %271 = tpu.matmul %270, %257, %cst_71 {dimension_numbers = #tpu.dot_dimension_numbers<[2], [1], [1], [2], [0, 0, 0, 1, 1, 2], [0], [0]>} : vector<4x16x16xf32>, vector<4x16x32xf32>, vector<4x16x32xf32> -> vector<4x16x32xf32>
    "tpu.trace_stop"() : () -> ()
    %272 = arith.addf %254, %271 : vector<4x16x32xf32>
    %273 = vector.shape_cast %272 : vector<4x16x32xf32> to vector<64x32xf32>
    %274 = arith.addf %163, %273 : vector<64x32xf32>
    %275 = vector.broadcast %170 : vector<1x32xf32> to vector<64x32xf32>
    %276 = arith.addf %274, %275 : vector<64x32xf32>
    %cst_72 = arith.constant dense<0.000000e+00> : vector<64xf32>
    %277 = vector.multi_reduction <add>, %276, %cst_72 [1] : vector<64x32xf32> to vector<64xf32>
    %278 = vector.shape_cast %277 : vector<64xf32> to vector<64x1xf32>
    %cst_73 = arith.constant 3.200000e+01 : f32
    %279 = vector.broadcast %cst_73 : f32 to vector<64x1xf32>
    %280 = arith.divf %278, %279 : vector<64x1xf32>
    %281 = vector.broadcast %280 : vector<64x1xf32> to vector<64x32xf32>
    %282 = arith.subf %276, %281 : vector<64x32xf32>
    %283 = arith.mulf %282, %282 : vector<64x32xf32>
    %cst_74 = arith.constant dense<0.000000e+00> : vector<64xf32>
    %284 = vector.multi_reduction <add>, %283, %cst_74 [1] : vector<64x32xf32> to vector<64xf32>
    %285 = vector.shape_cast %284 : vector<64xf32> to vector<64x1xf32>
    %cst_75 = arith.constant 3.200000e+01 : f32
    %286 = vector.broadcast %cst_75 : f32 to vector<64x1xf32>
    %287 = arith.divf %285, %286 : vector<64x1xf32>
    %288 = vector.broadcast %280 : vector<64x1xf32> to vector<64x32xf32>
    %289 = arith.subf %276, %288 : vector<64x32xf32>
    %cst_76 = arith.constant 9.99999974E-6 : f32
    %290 = vector.broadcast %cst_76 : f32 to vector<64x1xf32>
    %291 = arith.addf %287, %290 : vector<64x1xf32>
    %292 = math.rsqrt %291 : vector<64x1xf32>
    %293 = vector.broadcast %292 : vector<64x1xf32> to vector<64x32xf32>
    %294 = arith.mulf %289, %293 : vector<64x32xf32>
    %295 = vector.broadcast %171 : vector<1x32xf32> to vector<64x32xf32>
    %296 = arith.mulf %294, %295 : vector<64x32xf32>
    %297 = vector.broadcast %172 : vector<1x32xf32> to vector<64x32xf32>
    %298 = arith.addf %296, %297 : vector<64x32xf32>
    %299 = vector.extract_strided_slice %165 {offsets = [0, 192], sizes = [32, 64], strides = [1, 1]} : vector<64x384xf32> to vector<32x64xf32>
    %cst_77 = arith.constant dense<0.000000e+00> : vector<64x64xf32>
    %300 = tpu.matmul %298, %299, %cst_77 {dimension_numbers = #tpu.dot_dimension_numbers<[1], [0], [0], [1], [0, 0, 1, 1], [], []>} : vector<64x32xf32>, vector<32x64xf32>, vector<64x64xf32> -> vector<64x64xf32>
    %301 = vector.broadcast %173 : vector<1x64xf32> to vector<64x64xf32>
    %302 = arith.addf %300, %301 : vector<64x64xf32>
    %cst_78 = arith.constant 5.000000e-01 : f32
    %303 = vector.broadcast %cst_78 : f32 to vector<64x64xf32>
    %304 = arith.mulf %303, %302 : vector<64x64xf32>
    %cst_79 = arith.constant 0.707106769 : f32
    %305 = vector.broadcast %cst_79 : f32 to vector<64x64xf32>
    %306 = arith.mulf %302, %305 : vector<64x64xf32>
    %307 = math.erf %306 : vector<64x64xf32>
    %cst_80 = arith.constant 1.000000e+00 : f32
    %308 = vector.broadcast %cst_80 : f32 to vector<64x64xf32>
    %309 = arith.addf %308, %307 : vector<64x64xf32>
    %310 = arith.mulf %304, %309 : vector<64x64xf32>
    %311 = vector.extract_strided_slice %165 {offsets = [0, 256], sizes = [64, 32], strides = [1, 1]} : vector<64x384xf32> to vector<64x32xf32>
    %cst_81 = arith.constant dense<0.000000e+00> : vector<64x32xf32>
    %312 = tpu.matmul %310, %311, %cst_81 {dimension_numbers = #tpu.dot_dimension_numbers<[1], [0], [0], [1], [0, 0, 1, 1], [], []>} : vector<64x64xf32>, vector<64x32xf32>, vector<64x32xf32> -> vector<64x32xf32>
    %313 = arith.addf %276, %312 : vector<64x32xf32>
    %314 = vector.broadcast %174 : vector<1x32xf32> to vector<64x32xf32>
    %315 = arith.addf %313, %314 : vector<64x32xf32>
    %c16 = arith.constant 16 : index
    %c0_82 = arith.constant 0 : index
    %316 = vector.load %arg4[%c16, %c0_82] : memref<24x32xf32, #tpu.memory_space<vmem>>, vector<1x32xf32>
    %c17 = arith.constant 17 : index
    %c0_83 = arith.constant 0 : index
    %317 = vector.load %arg4[%c17, %c0_83] : memref<24x32xf32, #tpu.memory_space<vmem>>, vector<1x32xf32>
    %cst_84 = arith.constant dense<0.000000e+00> : vector<64xf32>
    %318 = vector.multi_reduction <add>, %315, %cst_84 [1] : vector<64x32xf32> to vector<64xf32>
    %319 = vector.shape_cast %318 : vector<64xf32> to vector<64x1xf32>
    %cst_85 = arith.constant 3.200000e+01 : f32
    %320 = vector.broadcast %cst_85 : f32 to vector<64x1xf32>
    %321 = arith.divf %319, %320 : vector<64x1xf32>
    %322 = vector.broadcast %321 : vector<64x1xf32> to vector<64x32xf32>
    %323 = arith.subf %315, %322 : vector<64x32xf32>
    %324 = arith.mulf %323, %323 : vector<64x32xf32>
    %cst_86 = arith.constant dense<0.000000e+00> : vector<64xf32>
    %325 = vector.multi_reduction <add>, %324, %cst_86 [1] : vector<64x32xf32> to vector<64xf32>
    %326 = vector.shape_cast %325 : vector<64xf32> to vector<64x1xf32>
    %cst_87 = arith.constant 3.200000e+01 : f32
    %327 = vector.broadcast %cst_87 : f32 to vector<64x1xf32>
    %328 = arith.divf %326, %327 : vector<64x1xf32>
    %329 = vector.broadcast %321 : vector<64x1xf32> to vector<64x32xf32>
    %330 = arith.subf %315, %329 : vector<64x32xf32>
    %cst_88 = arith.constant 9.99999974E-6 : f32
    %331 = vector.broadcast %cst_88 : f32 to vector<64x1xf32>
    %332 = arith.addf %328, %331 : vector<64x1xf32>
    %333 = math.rsqrt %332 : vector<64x1xf32>
    %334 = vector.broadcast %333 : vector<64x1xf32> to vector<64x32xf32>
    %335 = arith.mulf %330, %334 : vector<64x32xf32>
    %336 = vector.broadcast %316 : vector<1x32xf32> to vector<64x32xf32>
    %337 = arith.mulf %335, %336 : vector<64x32xf32>
    %338 = vector.broadcast %317 : vector<1x32xf32> to vector<64x32xf32>
    %339 = arith.addf %337, %338 : vector<64x32xf32>
    %340 = vector.shape_cast %339 : vector<64x32xf32> to vector<4x16x32xf32>
    %c0_89 = arith.constant 0 : index
    %c0_90 = arith.constant 0 : index
    %c0_91 = arith.constant 0 : index
    %341 = vector.load %arg5[%c0_89, %c0_90, %c0_91] : memref<4x16x32xf32, #tpu.memory_space<vmem>>, vector<4x16x32xf32>
    tpu.vector_store %arg5[%c0_89, %c0_90, %c0_91], %340 {strides = array<i32>} : memref<4x16x32xf32, #tpu.memory_space<vmem>>, vector<4x16x32xf32>,
    return
  }
  func.func @transform_0(%arg0: i32) -> (i32, i32, i32) {
    %c0_i32 = arith.constant 0 : i32
    %c0_i32_0 = arith.constant 0 : i32
    %c0_i32_1 = arith.constant 0 : i32
    return %arg0, %c0_i32, %c0_i32_0 : i32, i32, i32
  }
  func.func @transform_1(%arg0: i32) -> (i32, i32, i32) {
    %c0_i32 = arith.constant 0 : i32
    %c0_i32_0 = arith.constant 0 : i32
    %c0_i32_1 = arith.constant 0 : i32
    %c0_i32_2 = arith.constant 0 : i32
    return %c0_i32, %c0_i32_0, %c0_i32_1 : i32, i32, i32
  }
  func.func @transform_2(%arg0: i32) -> (i32, i32, i32) {
    %c0_i32 = arith.constant 0 : i32
    %c0_i32_0 = arith.constant 0 : i32
    %c0_i32_1 = arith.constant 0 : i32
    %c0_i32_2 = arith.constant 0 : i32
    return %c0_i32, %c0_i32_0, %c0_i32_1 : i32, i32, i32
  }
  func.func @transform_3(%arg0: i32) -> (i32, i32) {
    %c0_i32 = arith.constant 0 : i32
    %c0_i32_0 = arith.constant 0 : i32
    %c0_i32_1 = arith.constant 0 : i32
    return %c0_i32, %c0_i32_0 : i32, i32
  }
  func.func @transform_4(%arg0: i32) -> (i32, i32, i32) {
    %c0_i32 = arith.constant 0 : i32
    %c0_i32_0 = arith.constant 0 : i32
    %c0_i32_1 = arith.constant 0 : i32
    return %arg0, %c0_i32, %c0_i32_0 : i32, i32, i32
  }
}

</mosaic_0001>

<llo_original>
// kernel: tpu_custom_call.1
$region0: #{tpu_custom_call.1}
  #allocation0 [shape = 'u32[]', space=smem, size = 0x4, offset = 0x4, fixed_abs, tag = 'smem constant byte address 0x4 - core index']
  #allocation1 [shape = 'u32[144,128]{1,0:T(1,128)}', space=vmem, size = 0x12000, scoped, tag = 'internal scratch']
  %s0 = inlined_call_operand.hbm [shape: f32[4,16,32], index: 0, kind: input, shape index: {}]
  %s1 = inlined_call_operand.hbm [shape: f32[2,64,384], index: 1, kind: input, shape index: {}]
  %s2 = inlined_call_operand.hbm [shape: f32[2,8,64], index: 2, kind: input, shape index: {}]
  %s3 = inlined_call_operand.hbm [shape: f32[24,32], index: 3, kind: input, shape index: {}]
  %s4 = inlined_call_operand.hbm [shape: f32[4,16,32], index: 4, kind: output, shape index: {}]
  %s5 = sld [smem:[#allocation0]]
  $region42: #{tpu_custom_call.1} parent=0
    _
  %s7 = ssub.s32 1, %s5
  %s8 = scalar_select 0, %s7, %s5
  $region1: #{tpu_custom_call.1} parent=0
    #allocation2 [shape = 'u8[32768]{0}', space=vmem, size = 0x8000, scoped, tag = 'input window, operand 0, single buffered']
    #allocation3 [shape = 's32[1]{0}', space=sflag, size = 0x4, scoped, tag = 'scoped memory for tpu_custom_call.1']
    #allocation4 [shape = 's32[1]{0}', space=sflag, size = 0x4, scoped, tag = 'scoped memory for tpu_custom_call.1']
    #allocation5 [shape = 'u8[196608]{0}', space=vmem, size = 0x30000, scoped, tag = 'input window, operand 1, single buffered']
    #allocation6 [shape = 's32[1]{0}', space=sflag, size = 0x4, scoped, tag = 'scoped memory for tpu_custom_call.1']
    #allocation7 [shape = 'u8[8192]{0}', space=vmem, size = 0x2000, scoped, tag = 'input window, operand 2, single buffered']
    #allocation8 [shape = 'u8[12288]{0}', space=vmem, size = 0x3000, scoped, tag = 'input window, operand 3, single buffered']
    #allocation9 [shape = 's32[1]{0}', space=sflag, size = 0x4, scoped, tag = 'scoped memory for tpu_custom_call.1']
    #allocation10 [shape = 'u8[32768]{0}', space=vmem, size = 0x8000, scoped, tag = 'output window, operand 0, single buffered']
    %9 = vsyncpa [#allocation3], 0
    %10 = vsyncpa [#allocation6], 0
    %11 = vsyncpa [#allocation9], 0
    %12 = vsyncpa [#allocation4], 0
    // Predicated region
    $region2: #{tpu_custom_call.1} parent=1 // pred_check
      _
    $region3: #{tpu_custom_call.1} parent=1 // pred_check_branch
      %14 = sbr.rel (0) target = $region5
    $region4: #{tpu_custom_call.1} parent=1 // pred_region
      %s16 = ssub.s32 1024, 1024
      %17 = vsyncadd [#allocation3], %s16
      %s18 = sshll.u32 [#allocation2], 4
      %s19 = int_to_ptr.vmem [resolvable:$true] %s18
      %24 = dma.hbm_to_vmem [thread:$0]  %s0, 1024, %s19, [#allocation3], 128, 128, 8
    $region5: #{tpu_custom_call.1} parent=1 // pred_fallthru
      _
    // Predicated region
    $region6: #{tpu_custom_call.1} parent=1 // pred_check
      _
    $region7: #{tpu_custom_call.1} parent=1 // pred_check_branch
      %26 = sbr.rel (0) target = $region9
    $region8: #{tpu_custom_call.1} parent=1 // pred_region
      %s28 = ssub.s32 6144, 6144
      %29 = vsyncadd [#allocation6], %s28
      %s30 = sshll.u32 [#allocation5], 4
      %s31 = int_to_ptr.vmem [resolvable:$true] %s30
      %36 = dma.hbm_to_vmem [thread:$0]  %s1, 6144, %s31, [#allocation6], 384, 384, 24
    $region9: #{tpu_custom_call.1} parent=1 // pred_fallthru
      _
    // Predicated region
    $region10: #{tpu_custom_call.1} parent=1 // pred_check
      _
    $region11: #{tpu_custom_call.1} parent=1 // pred_check_branch
      %38 = sbr.rel (0) target = $region13
    $region12: #{tpu_custom_call.1} parent=1 // pred_region
      %s40 = ssub.s32 256, 256
      %41 = vsyncadd [#allocation6], %s40
      %s42 = sshll.u32 [#allocation7], 4
      %s43 = int_to_ptr.vmem [resolvable:$true] %s42
      %48 = dma.hbm_to_vmem [thread:$0]  %s2, 256, %s43, [#allocation6], 128, 128, 8
    $region13: #{tpu_custom_call.1} parent=1 // pred_fallthru
      _
    // Predicated region
    $region14: #{tpu_custom_call.1} parent=1 // pred_check
      _
    $region15: #{tpu_custom_call.1} parent=1 // pred_check_branch
      %50 = sbr.rel (0) target = $region17
    $region16: #{tpu_custom_call.1} parent=1 // pred_region
      %s52 = ssub.s32 384, 384
      %53 = vsyncadd [#allocation9], %s52
      %s54 = sshll.u32 [#allocation8], 4
      %s55 = int_to_ptr.vmem [resolvable:$true] %s54
      %60 = dma.hbm_to_vmem [thread:$0]  %s3, 384, %s55, [#allocation9], 128, 128, 8
    $region17: #{tpu_custom_call.1} parent=1 // pred_fallthru
      _
    // Predicated region
    $region18: #{tpu_custom_call.1} parent=1 // pred_check
      _
    $region19: #{tpu_custom_call.1} parent=1 // pred_check_branch
      %62 = sbr.rel (0) target = $region21
    $region20: #{tpu_custom_call.1} parent=1 // pred_region
      %63 = dma.done [#allocation3], 1024
    $region21: #{tpu_custom_call.1} parent=1 // pred_fallthru
      _
    // Predicated region
    $region22: #{tpu_custom_call.1} parent=1 // pred_check
      _
    $region23: #{tpu_custom_call.1} parent=1 // pred_check_branch
      %65 = sbr.rel (0) target = $region25
    $region24: #{tpu_custom_call.1} parent=1 // pred_region
      %66 = dma.done [#allocation6], 6144
    $region25: #{tpu_custom_call.1} parent=1 // pred_fallthru
      _
    // Predicated region
    $region26: #{tpu_custom_call.1} parent=1 // pred_check
      _
    $region27: #{tpu_custom_call.1} parent=1 // pred_check_branch
      %68 = sbr.rel (0) target = $region29
    $region28: #{tpu_custom_call.1} parent=1 // pred_region
      %69 = dma.done [#allocation6], 256
    $region29: #{tpu_custom_call.1} parent=1 // pred_fallthru
      _
    // Predicated region
    $region30: #{tpu_custom_call.1} parent=1 // pred_check
      _
    $region31: #{tpu_custom_call.1} parent=1 // pred_check_branch
      %71 = sbr.rel (0) target = $region33
    $region32: #{tpu_custom_call.1} parent=1 // pred_region
      %72 = dma.done [#allocation9], 384
    $region33: #{tpu_custom_call.1} parent=1 // pred_fallthru
      _
    %v73 = vld [vmem:[#allocation2] sm:$0xff]
    %v74 = vld [vmem:[#allocation2 + $0x8] sm:$0xff]
    %v75 = vld [vmem:[#allocation2 + $0x10] sm:$0xff]
    %v76 = vld [vmem:[#allocation2 + $0x18] sm:$0xff]
    %v77 = vld [vmem:[#allocation2 + $0x20] sm:$0xff]
    %v78 = vld [vmem:[#allocation2 + $0x28] sm:$0xff]
    %v79 = vld [vmem:[#allocation2 + $0x30] sm:$0xff]
    %v80 = vld [vmem:[#allocation2 + $0x38] sm:$0xff]
    %v81 = vld [vmem:[#allocation8] sm:$0xff]
    %v82 = vld [vmem:[#allocation8 + $0x8] sm:$0xff]
    %v83 = vadd.f32 %v73, %v81
    %v84 = vadd.f32 %v74, %v82
    %v85 = vadd.f32 %v75, %v81
    %v86 = vadd.f32 %v76, %v82
    %v87 = vadd.f32 %v77, %v81
    %v88 = vadd.f32 %v78, %v82
    %v89 = vadd.f32 %v79, %v81
    %v90 = vadd.f32 %v80, %v82
    %v91 = vlaneseq
    %v92 = vand.u32 %v91, 127
    %vm93 = vcmp.ge.s32.totalorder %v92, 9
    %v94 = vsel %vm93, -1e+30, 0.0
    %v95 = vld [vmem:[#allocation5] sm:$0xff]
    %v96 = vld [vmem:[#allocation5 + $0x8] sm:$0xff]
    %v97 = vld [vmem:[#allocation5 + $0x10] sm:$0xff]
    %v98 = vld [vmem:[#allocation5 + $0x18] sm:$0xff]
    %v99 = vld [vmem:[#allocation5 + $0x20] sm:$0xff]
    %v100 = vld [vmem:[#allocation5 + $0x28] sm:$0xff]
    %v101 = vld [vmem:[#allocation5 + $0x30] sm:$0xff]
    %v102 = vld [vmem:[#allocation5 + $0x38] sm:$0xff]
    %v103 = vld [vmem:[#allocation5 + $0x40] sm:$0xff]
    %v104 = vld [vmem:[#allocation5 + $0x48] sm:$0xff]
    %v105 = vld [vmem:[#allocation5 + $0x50] sm:$0xff]
    %v106 = vld [vmem:[#allocation5 + $0x58] sm:$0xff]
    %v107 = vld [vmem:[#allocation5 + $0x70] sm:$0xff]
    %v108 = vld [vmem:[#allocation5 + $0x88] sm:$0xff]
    %v109 = vld [vmem:[#allocation5 + $0xa0] sm:$0xff]
    %v110 = vld [vmem:[#allocation5 + $0xb8] sm:$0xff]
    %v111 = vld [vmem:[#allocation7] sm:$0xff]
    %vm112 = vcmask 261120
    %v113 = vsel %vm112, %v83, 0.0
    %114 = vadd.xlane.f32.xlu0 %v113
    %v115 = vpop.xlane.xlu0 %114
    %v116 = vsel %vm112, %v84, 0.0
    %117 = vadd.xlane.f32.xlu0 %v116
    %v118 = vpop.xlane.xlu0 %117
    %v119 = vsel %vm112, %v85, 0.0
    %120 = vadd.xlane.f32.xlu0 %v119
    %v121 = vpop.xlane.xlu0 %120
    %v122 = vsel %vm112, %v86, 0.0
    %123 = vadd.xlane.f32.xlu0 %v122
    %v124 = vpop.xlane.xlu0 %123
    %v125 = vsel %vm112, %v87, 0.0
    %126 = vadd.xlane.f32.xlu0 %v125
    %v127 = vpop.xlane.xlu0 %126
    %v128 = vsel %vm112, %v88, 0.0
    %129 = vadd.xlane.f32.xlu0 %v128
    %v130 = vpop.xlane.xlu0 %129
    %v131 = vsel %vm112, %v89, 0.0
    %132 = vadd.xlane.f32.xlu0 %v131
    %v133 = vpop.xlane.xlu0 %132
    %v134 = vsel %vm112, %v90, 0.0
    %135 = vadd.xlane.f32.xlu0 %v134
    %v136 = vpop.xlane.xlu0 %135
    %v137 = vrcp.pop 32.0
    %v138 = vmul.f32 %v115, %v137
    %v139 = vmul.f32 %v118, %v137
    %v140 = vmul.f32 %v121, %v137
    %v141 = vmul.f32 %v124, %v137
    %v142 = vmul.f32 %v127, %v137
    %v143 = vmul.f32 %v130, %v137
    %v144 = vmul.f32 %v133, %v137
    %v145 = vmul.f32 %v136, %v137
    %v146 = vsub.f32 %v83, %v138
    %v147 = vsub.f32 %v84, %v139
    %v148 = vsub.f32 %v85, %v140
    %v149 = vsub.f32 %v86, %v141
    %v150 = vsub.f32 %v87, %v142
    %v151 = vsub.f32 %v88, %v143
    %v152 = vsub.f32 %v89, %v144
    %v153 = vsub.f32 %v90, %v145
    %v154 = vmul.f32 %v146, %v146
    %v155 = vmul.f32 %v147, %v147
    %v156 = vmul.f32 %v148, %v148
    %v157 = vmul.f32 %v149, %v149
    %v158 = vmul.f32 %v150, %v150
    %v159 = vmul.f32 %v151, %v151
    %v160 = vmul.f32 %v152, %v152
    %v161 = vmul.f32 %v153, %v153
    %v162 = vsel %vm112, %v154, 0.0
    %163 = vadd.xlane.f32.xlu0 %v162
    %v164 = vpop.xlane.xlu0 %163
    %v165 = vsel %vm112, %v155, 0.0
    %166 = vadd.xlane.f32.xlu0 %v165
    %v167 = vpop.xlane.xlu0 %166
    %v168 = vsel %vm112, %v156, 0.0
    %169 = vadd.xlane.f32.xlu0 %v168
    %v170 = vpop.xlane.xlu0 %169
    %v171 = vsel %vm112, %v157, 0.0
    %172 = vadd.xlane.f32.xlu0 %v171
    %v173 = vpop.xlane.xlu0 %172
    %v174 = vsel %vm112, %v158, 0.0
    %175 = vadd.xlane.f32.xlu0 %v174
    %v176 = vpop.xlane.xlu0 %175
    %v177 = vsel %vm112, %v159, 0.0
    %178 = vadd.xlane.f32.xlu0 %v177
    %v179 = vpop.xlane.xlu0 %178
    %v180 = vsel %vm112, %v160, 0.0
    %181 = vadd.xlane.f32.xlu0 %v180
    %v182 = vpop.xlane.xlu0 %181
    %v183 = vsel %vm112, %v161, 0.0
    %184 = vadd.xlane.f32.xlu0 %v183
    %v185 = vpop.xlane.xlu0 %184
    %v186 = vmul.f32 %v164, %v137
    %v187 = vmul.f32 %v167, %v137
    %v188 = vmul.f32 %v170, %v137
    %v189 = vmul.f32 %v173, %v137
    %v190 = vmul.f32 %v176, %v137
    %v191 = vmul.f32 %v179, %v137
    %v192 = vmul.f32 %v182, %v137
    %v193 = vmul.f32 %v185, %v137
    %v194 = vadd.f32 %v186, 1e-05
    %v195 = vadd.f32 %v187, 1e-05
    %v196 = vadd.f32 %v188, 1e-05
    %v197 = vadd.f32 %v189, 1e-05
    %v198 = vadd.f32 %v190, 1e-05
    %v199 = vadd.f32 %v191, 1e-05
    %v200 = vadd.f32 %v192, 1e-05
    %v201 = vadd.f32 %v193, 1e-05
    %v202 = vrsqrt.pop %v194
    %v203 = vrsqrt.pop %v195
    %v204 = vrsqrt.pop %v196
    %v205 = vrsqrt.pop %v197
    %v206 = vrsqrt.pop %v198
    %v207 = vrsqrt.pop %v199
    %v208 = vrsqrt.pop %v200
    %v209 = vrsqrt.pop %v201
    %v210 = vmul.f32 %v146, %v202
    %v211 = vmul.f32 %v147, %v203
    %v212 = vmul.f32 %v148, %v204
    %v213 = vmul.f32 %v149, %v205
    %v214 = vmul.f32 %v150, %v206
    %v215 = vmul.f32 %v151, %v207
    %v216 = vmul.f32 %v152, %v208
    %v217 = vmul.f32 %v153, %v209
    %v218 = vlaneseq
    %v219 = vshrl.u32 %v218, 7
    %v220 = vsub.s32 0, %v219
    %v221 = vrot.slane %v111, %v220
    %v222 = vmul.f32 %v210, %v221
    %v223 = vmul.f32 %v211, %v221
    %v224 = vmul.f32 %v212, %v221
    %v225 = vmul.f32 %v213, %v221
    %v226 = vmul.f32 %v214, %v221
    %v227 = vmul.f32 %v215, %v221
    %v228 = vmul.f32 %v216, %v221
    %v229 = vmul.f32 %v217, %v221
    %v230 = vlaneseq
    %v231 = vshrl.u32 %v230, 7
    %v232 = vsub.s32 1, %v231
    %v233 = vrot.slane %v111, %v232
    %v234 = vadd.f32 %v222, %v233
    %v235 = vadd.f32 %v223, %v233
    %v236 = vadd.f32 %v224, %v233
    %v237 = vadd.f32 %v225, %v233
    %v238 = vadd.f32 %v226, %v233
    %v239 = vadd.f32 %v227, %v233
    %v240 = vadd.f32 %v228, %v233
    %v241 = vadd.f32 %v229, %v233
    %v243 = vsel %vm112, %v234, 0
    %v246 = vsel %vm112, %v235, 0
    %v249 = vsel %vm112, %v236, 0
    %v252 = vsel %vm112, %v237, 0
    %v255 = vsel %vm112, %v238, 0
    %v258 = vsel %vm112, %v239, 0
    %v261 = vsel %vm112, %v240, 0
    %v264 = vsel %vm112, %v241, 0
    %266 = vmatprep.subr.mxu0 0.0
    %267 = vmatpush1.msra.mxu0 0.0
    %268 = vmatprep.subr.mxu0 0.0
    %269 = vmatpush1.msra.mxu0 0.0
    %270 = vmatprep.subr.mxu0 0.0
    %271 = vmatpush1.msra.mxu0 0.0
    %272 = vmatprep.subr.mxu0 0.0
    %273 = vmatpush1.msra.mxu0 0.0
    %274 = vmatprep.subr.mxu0 0.0
    %275 = vmatpush1.msra.mxu0 0.0
    %276 = vmatprep.subr.mxu0 0.0
    %277 = vmatpush1.msra.mxu0 0.0
    %278 = vmatprep.subr.mxu0 0.0
    %279 = vmatpush1.msra.mxu0 0.0
    %280 = vmatprep.subr.mxu0 0.0
    %281 = vmatpush1.msra.mxu0 0.0
    %282 = vmatprep.subr.mxu0 0.0
    %283 = vmatpush1.msra.mxu0 0.0
    %284 = vmatprep.subr.mxu0 0.0
    %285 = vmatpush1.msra.mxu0 0.0
    %286 = vmatprep.subr.mxu0 0.0
    %287 = vmatpush1.msra.mxu0 0.0
    %288 = vmatprep.subr.mxu0 0.0
    %289 = vmatpush1.msra.mxu0 0.0
    %290 = vmatprep.subr.mxu0 %v105
    %291 = vmatpush1.msra.mxu0 %v104
    %292 = vmatprep.subr.mxu0 %v102
    %293 = vmatpush1.msra.mxu0 %v101
    %294 = vmatprep.subr.mxu0 %v99
    %295 = vmatpush1.msra.mxu0 %v98
    %296 = vmatprep.subr.mxu0 %v96
    %297 = vmatpush1.msra.mxu0 %v95
    %298 = vmatprep.subr.mxu0 0.0
    %299 = vmatpush2.msra.mxu0 0.0
    %300 = vmatprep.subr.mxu0 0.0
    %301 = vmatpush2.msra.mxu0 0.0
    %302 = vmatprep.subr.mxu0 0.0
    %303 = vmatpush2.msra.mxu0 0.0
    %304 = vmatprep.subr.mxu0 0.0
    %305 = vmatpush2.msra.mxu0 0.0
    %306 = vmatprep.subr.mxu0 0.0
    %307 = vmatpush2.msra.mxu0 0.0
    %308 = vmatprep.subr.mxu0 0.0
    %309 = vmatpush2.msra.mxu0 0.0
    %310 = vmatprep.subr.mxu0 0.0
    %311 = vmatpush2.msra.mxu0 0.0
    %312 = vmatprep.subr.mxu0 0.0
    %313 = vmatpush2.msra.mxu0 0.0
    %314 = vmatprep.subr.mxu0 0.0
    %315 = vmatpush2.msra.mxu0 0.0
    %316 = vmatprep.subr.mxu0 0.0
    %317 = vmatpush2.msra.mxu0 0.0
    %318 = vmatprep.subr.mxu0 0.0
    %319 = vmatpush2.msra.mxu0 0.0
    %320 = vmatprep.subr.mxu0 0.0
    %321 = vmatpush2.msra.mxu0 0.0
    %322 = vmatprep.subr.mxu0 0.0
    %323 = vmatpush2.msra.mxu0 0.0
    %324 = vmatprep.subr.mxu0 0.0
    %325 = vmatpush2.msra.mxu0 0.0
    %326 = vmatprep.subr.mxu0 0.0
    %327 = vmatpush2.msra.mxu0 0.0
    %328 = vmatprep.subr.mxu0 0.0
    %329 = vmatpush2.msra.mxu0 0.0
    %330 = vmatprep.mubr.f32.mxu0 0.0
    %331 = vmatmul.mubr.f32.gmra.mxu0 %v243
    %v332 = vpop.f32.mrf.mxu0
    %v333 = vadd.f32 0.0, %v332
    %v334 = vpop.f32.mrf.mxu0
    %v335 = vadd.f32 0.0, %v334
    %336 = vmatprep.mubr.f32.mxu0 0.0
    %337 = vmatmul.mubr.f32.gmra.mxu0 %v246
    %v338 = vpop.f32.mrf.mxu0
    %v339 = vadd.f32 0.0, %v338
    %v340 = vpop.f32.mrf.mxu0
    %v341 = vadd.f32 0.0, %v340
    %342 = vmatprep.mubr.f32.mxu0 0.0
    %343 = vmatmul.mubr.f32.gmra.mxu0 %v249
    %v344 = vpop.f32.mrf.mxu0
    %v345 = vadd.f32 0.0, %v344
    %v346 = vpop.f32.mrf.mxu0
    %v347 = vadd.f32 0.0, %v346
    %348 = vmatprep.mubr.f32.mxu0 0.0
    %349 = vmatmul.mubr.f32.gmra.mxu0 %v252
    %v350 = vpop.f32.mrf.mxu0
    %v351 = vadd.f32 0.0, %v350
    %v352 = vpop.f32.mrf.mxu0
    %v353 = vadd.f32 0.0, %v352
    %354 = vmatprep.mubr.f32.mxu0 0.0
    %355 = vmatmul.mubr.f32.gmra.mxu0 %v255
    %v356 = vpop.f32.mrf.mxu0
    %v357 = vadd.f32 0.0, %v356
    %v358 = vpop.f32.mrf.mxu0
    %v359 = vadd.f32 0.0, %v358
    %360 = vmatprep.mubr.f32.mxu0 0.0
    %361 = vmatmul.mubr.f32.gmra.mxu0 %v258
    %v362 = vpop.f32.mrf.mxu0
    %v363 = vadd.f32 0.0, %v362
    %v364 = vpop.f32.mrf.mxu0
    %v365 = vadd.f32 0.0, %v364
    %366 = vmatprep.mubr.f32.mxu0 0.0
    %367 = vmatmul.mubr.f32.gmra.mxu0 %v261
    %v368 = vpop.f32.mrf.mxu0
    %v369 = vadd.f32 0.0, %v368
    %v370 = vpop.f32.mrf.mxu0
    %v371 = vadd.f32 0.0, %v370
    %372 = vmatprep.mubr.f32.mxu0 0.0
    %373 = vmatmul.mubr.f32.gmra.mxu0 %v264
    %v374 = vpop.f32.mrf.mxu0
    %v375 = vadd.f32 0.0, %v374
    %v376 = vpop.f32.mrf.mxu0
    %v377 = vadd.f32 0.0, %v376
    %378 = vdwg.mxu0
    %381 = vrot.lane.b32.xlu0 %v333, 96
    %v382 = vpop.permute.xlu0 %381
    %383 = vrot.lane.b32.xlu0 %v339, 96
    %v384 = vpop.permute.xlu0 %383
    %vm385 = vcmask 64512
    %v386 = vsel %vm385, %v333, 0
    %v388 = vsel %vm385, %v339, 0
    %v390 = vsel %vm385, %v382, 0
    %v392 = vsel %vm385, %v384, 0
    %394 = vmatprep.subr.mxu0 0.0
    %395 = vmatpush1.xpose.msra.mxu0 0.0
    %396 = vmatprep.subr.mxu0 0.0
    %397 = vmatpush1.xpose.msra.mxu0 0.0
    %398 = vmatprep.subr.mxu0 0.0
    %399 = vmatpush1.xpose.msra.mxu0 0.0
    %400 = vmatprep.subr.mxu0 0.0
    %401 = vmatpush1.xpose.msra.mxu0 0.0
    %402 = vmatprep.subr.mxu0 0.0
    %403 = vmatpush1.xpose.msra.mxu0 0.0
    %404 = vmatprep.subr.mxu0 0.0
    %405 = vmatpush1.xpose.msra.mxu0 0.0
    %406 = vmatprep.subr.mxu0 0.0
    %407 = vmatpush1.xpose.msra.mxu0 0.0
    %408 = vmatprep.subr.mxu0 0.0
    %409 = vmatpush1.xpose.msra.mxu0 0.0
    %410 = vmatprep.subr.mxu0 0.0
    %411 = vmatpush1.xpose.msra.mxu0 0.0
    %412 = vmatprep.subr.mxu0 0.0
    %413 = vmatpush1.xpose.msra.mxu0 0.0
    %414 = vmatprep.subr.mxu0 0.0
    %415 = vmatpush1.xpose.msra.mxu0 0.0
    %416 = vmatprep.subr.mxu0 0.0
    %417 = vmatpush1.xpose.msra.mxu0 0.0
    %418 = vmatprep.subr.mxu0 0.0
    %419 = vmatpush1.xpose.msra.mxu0 0.0
    %420 = vmatprep.subr.mxu0 0.0
    %421 = vmatpush1.xpose.msra.mxu0 0.0
    %422 = vmatprep.subr.mxu0 0.0
    %423 = vmatpush1.xpose.msra.mxu0 %v392
    %424 = vmatprep.subr.mxu0 0.0
    %425 = vmatpush1.xpose.msra.mxu0 %v390
    %426 = vmatprep.subr.mxu0 0.0
    %427 = vmatpush2.xpose.msra.mxu0 0.0
    %428 = vmatprep.subr.mxu0 0.0
    %429 = vmatpush2.xpose.msra.mxu0 0.0
    %430 = vmatprep.subr.mxu0 0.0
    %431 = vmatpush2.xpose.msra.mxu0 0.0
    %432 = vmatprep.subr.mxu0 0.0
    %433 = vmatpush2.xpose.msra.mxu0 0.0
    %434 = vmatprep.subr.mxu0 0.0
    %435 = vmatpush2.xpose.msra.mxu0 0.0
    %436 = vmatprep.subr.mxu0 0.0
    %437 = vmatpush2.xpose.msra.mxu0 0.0
    %438 = vmatprep.subr.mxu0 0.0
    %439 = vmatpush2.xpose.msra.mxu0 0.0
    %440 = vmatprep.subr.mxu0 0.0
    %441 = vmatpush2.xpose.msra.mxu0 0.0
    %442 = vmatprep.subr.mxu0 0.0
    %443 = vmatpush2.xpose.msra.mxu0 0.0
    %444 = vmatprep.subr.mxu0 0.0
    %445 = vmatpush2.xpose.msra.mxu0 0.0
    %446 = vmatprep.subr.mxu0 0.0
    %447 = vmatpush2.xpose.msra.mxu0 0.0
    %448 = vmatprep.subr.mxu0 0.0
    %449 = vmatpush2.xpose.msra.mxu0 0.0
    %450 = vmatprep.subr.mxu0 0.0
    %451 = vmatpush2.xpose.msra.mxu0 0.0
    %452 = vmatprep.subr.mxu0 0.0
    %453 = vmatpush2.xpose.msra.mxu0 0.0
    %454 = vmatprep.subr.mxu0 0.0
    %455 = vmatpush2.xpose.msra.mxu0 0.0
    %456 = vmatprep.subr.mxu0 0.0
    %457 = vmatpush2.xpose.msra.mxu0 0.0
    %458 = vmatprep.mubr.f32.mxu0 0.0
    %459 = vmatmul.mubr.f32.gmra.mxu0 %v386
    %v460 = vpop.f32.mrf.mxu0
    %v461 = vadd.f32 %v94, %v460
    %v462 = vpop.f32.mrf.mxu0
    %463 = vmatprep.mubr.f32.mxu0 0.0
    %464 = vmatmul.mubr.f32.gmra.mxu0 %v388
    %v465 = vpop.f32.mrf.mxu0
    %v466 = vadd.f32 %v94, %v465
    %v467 = vpop.f32.mrf.mxu0
    %468 = vdwg.mxu0
    %471 = vrot.lane.b32.xlu0 %v345, 96
    %v472 = vpop.permute.xlu0 %471
    %473 = vrot.lane.b32.xlu0 %v351, 96
    %v474 = vpop.permute.xlu0 %473
    %v475 = vsel %vm385, %v345, 0
    %v477 = vsel %vm385, %v351, 0
    %v479 = vsel %vm385, %v472, 0
    %v481 = vsel %vm385, %v474, 0
    %483 = vmatprep.subr.mxu0 0.0
    %484 = vmatpush1.xpose.msra.mxu0 0.0
    %485 = vmatprep.subr.mxu0 0.0
    %486 = vmatpush1.xpose.msra.mxu0 0.0
    %487 = vmatprep.subr.mxu0 0.0
    %488 = vmatpush1.xpose.msra.mxu0 0.0
    %489 = vmatprep.subr.mxu0 0.0
    %490 = vmatpush1.xpose.msra.mxu0 0.0
    %491 = vmatprep.subr.mxu0 0.0
    %492 = vmatpush1.xpose.msra.mxu0 0.0
    %493 = vmatprep.subr.mxu0 0.0
    %494 = vmatpush1.xpose.msra.mxu0 0.0
    %495 = vmatprep.subr.mxu0 0.0
    %496 = vmatpush1.xpose.msra.mxu0 0.0
    %497 = vmatprep.subr.mxu0 0.0
    %498 = vmatpush1.xpose.msra.mxu0 0.0
    %499 = vmatprep.subr.mxu0 0.0
    %500 = vmatpush1.xpose.msra.mxu0 0.0
    %501 = vmatprep.subr.mxu0 0.0
    %502 = vmatpush1.xpose.msra.mxu0 0.0
    %503 = vmatprep.subr.mxu0 0.0
    %504 = vmatpush1.xpose.msra.mxu0 0.0
    %505 = vmatprep.subr.mxu0 0.0
    %506 = vmatpush1.xpose.msra.mxu0 0.0
    %507 = vmatprep.subr.mxu0 0.0
    %508 = vmatpush1.xpose.msra.mxu0 0.0
    %509 = vmatprep.subr.mxu0 0.0
    %510 = vmatpush1.xpose.msra.mxu0 0.0
    %511 = vmatprep.subr.mxu0 0.0
    %512 = vmatpush1.xpose.msra.mxu0 %v481
    %513 = vmatprep.subr.mxu0 0.0
    %514 = vmatpush1.xpose.msra.mxu0 %v479
    %515 = vmatprep.subr.mxu0 0.0
    %516 = vmatpush2.xpose.msra.mxu0 0.0
    %517 = vmatprep.subr.mxu0 0.0
    %518 = vmatpush2.xpose.msra.mxu0 0.0
    %519 = vmatprep.subr.mxu0 0.0
    %520 = vmatpush2.xpose.msra.mxu0 0.0
    %521 = vmatprep.subr.mxu0 0.0
    %522 = vmatpush2.xpose.msra.mxu0 0.0
    %523 = vmatprep.subr.mxu0 0.0
    %524 = vmatpush2.xpose.msra.mxu0 0.0
    %525 = vmatprep.subr.mxu0 0.0
    %526 = vmatpush2.xpose.msra.mxu0 0.0
    %527 = vmatprep.subr.mxu0 0.0
    %528 = vmatpush2.xpose.msra.mxu0 0.0
    %529 = vmatprep.subr.mxu0 0.0
    %530 = vmatpush2.xpose.msra.mxu0 0.0
    %531 = vmatprep.subr.mxu0 0.0
    %532 = vmatpush2.xpose.msra.mxu0 0.0
    %533 = vmatprep.subr.mxu0 0.0
    %534 = vmatpush2.xpose.msra.mxu0 0.0
    %535 = vmatprep.subr.mxu0 0.0
    %536 = vmatpush2.xpose.msra.mxu0 0.0
    %537 = vmatprep.subr.mxu0 0.0
    %538 = vmatpush2.xpose.msra.mxu0 0.0
    %539 = vmatprep.subr.mxu0 0.0
    %540 = vmatpush2.xpose.msra.mxu0 0.0
    %541 = vmatprep.subr.mxu0 0.0
    %542 = vmatpush2.xpose.msra.mxu0 0.0
    %543 = vmatprep.subr.mxu0 0.0
    %544 = vmatpush2.xpose.msra.mxu0 0.0
    %545 = vmatprep.subr.mxu0 0.0
    %546 = vmatpush2.xpose.msra.mxu0 0.0
    %547 = vmatprep.mubr.f32.mxu0 0.0
    %548 = vmatmul.mubr.f32.gmra.mxu0 %v475
    %v549 = vpop.f32.mrf.mxu0
    %v550 = vadd.f32 %v94, %v549
    %v551 = vpop.f32.mrf.mxu0
    %552 = vmatprep.mubr.f32.mxu0 0.0
    %553 = vmatmul.mubr.f32.gmra.mxu0 %v477
    %v554 = vpop.f32.mrf.mxu0
    %v555 = vadd.f32 %v94, %v554
    %v556 = vpop.f32.mrf.mxu0
    %557 = vdwg.mxu0
    %560 = vrot.lane.b32.xlu0 %v357, 96
    %v561 = vpop.permute.xlu0 %560
    %562 = vrot.lane.b32.xlu0 %v363, 96
    %v563 = vpop.permute.xlu0 %562
    %v564 = vsel %vm385, %v357, 0
    %v566 = vsel %vm385, %v363, 0
    %v568 = vsel %vm385, %v561, 0
    %v570 = vsel %vm385, %v563, 0
    %572 = vmatprep.subr.mxu0 0.0
    %573 = vmatpush1.xpose.msra.mxu0 0.0
    %574 = vmatprep.subr.mxu0 0.0
    %575 = vmatpush1.xpose.msra.mxu0 0.0
    %576 = vmatprep.subr.mxu0 0.0
    %577 = vmatpush1.xpose.msra.mxu0 0.0
    %578 = vmatprep.subr.mxu0 0.0
    %579 = vmatpush1.xpose.msra.mxu0 0.0
    %580 = vmatprep.subr.mxu0 0.0
    %581 = vmatpush1.xpose.msra.mxu0 0.0
    %582 = vmatprep.subr.mxu0 0.0
    %583 = vmatpush1.xpose.msra.mxu0 0.0
    %584 = vmatprep.subr.mxu0 0.0
    %585 = vmatpush1.xpose.msra.mxu0 0.0
    %586 = vmatprep.subr.mxu0 0.0
    %587 = vmatpush1.xpose.msra.mxu0 0.0
    %588 = vmatprep.subr.mxu0 0.0
    %589 = vmatpush1.xpose.msra.mxu0 0.0
    %590 = vmatprep.subr.mxu0 0.0
    %591 = vmatpush1.xpose.msra.mxu0 0.0
    %592 = vmatprep.subr.mxu0 0.0
    %593 = vmatpush1.xpose.msra.mxu0 0.0
    %594 = vmatprep.subr.mxu0 0.0
    %595 = vmatpush1.xpose.msra.mxu0 0.0
    %596 = vmatprep.subr.mxu0 0.0
    %597 = vmatpush1.xpose.msra.mxu0 0.0
    %598 = vmatprep.subr.mxu0 0.0
    %599 = vmatpush1.xpose.msra.mxu0 0.0
    %600 = vmatprep.subr.mxu0 0.0
    %601 = vmatpush1.xpose.msra.mxu0 %v570
    %602 = vmatprep.subr.mxu0 0.0
    %603 = vmatpush1.xpose.msra.mxu0 %v568
    %604 = vmatprep.subr.mxu0 0.0
    %605 = vmatpush2.xpose.msra.mxu0 0.0
    %606 = vmatprep.subr.mxu0 0.0
    %607 = vmatpush2.xpose.msra.mxu0 0.0
    %608 = vmatprep.subr.mxu0 0.0
    %609 = vmatpush2.xpose.msra.mxu0 0.0
    %610 = vmatprep.subr.mxu0 0.0
    %611 = vmatpush2.xpose.msra.mxu0 0.0
    %612 = vmatprep.subr.mxu0 0.0
    %613 = vmatpush2.xpose.msra.mxu0 0.0
    %614 = vmatprep.subr.mxu0 0.0
    %615 = vmatpush2.xpose.msra.mxu0 0.0
    %616 = vmatprep.subr.mxu0 0.0
    %617 = vmatpush2.xpose.msra.mxu0 0.0
    %618 = vmatprep.subr.mxu0 0.0
    %619 = vmatpush2.xpose.msra.mxu0 0.0
    %620 = vmatprep.subr.mxu0 0.0
    %621 = vmatpush2.xpose.msra.mxu0 0.0
    %622 = vmatprep.subr.mxu0 0.0
    %623 = vmatpush2.xpose.msra.mxu0 0.0
    %624 = vmatprep.subr.mxu0 0.0
    %625 = vmatpush2.xpose.msra.mxu0 0.0
    %626 = vmatprep.subr.mxu0 0.0
    %627 = vmatpush2.xpose.msra.mxu0 0.0
    %628 = vmatprep.subr.mxu0 0.0
    %629 = vmatpush2.xpose.msra.mxu0 0.0
    %630 = vmatprep.subr.mxu0 0.0
    %631 = vmatpush2.xpose.msra.mxu0 0.0
    %632 = vmatprep.subr.mxu0 0.0
    %633 = vmatpush2.xpose.msra.mxu0 0.0
    %634 = vmatprep.subr.mxu0 0.0
    %635 = vmatpush2.xpose.msra.mxu0 0.0
    %636 = vmatprep.mubr.f32.mxu0 0.0
    %637 = vmatmul.mubr.f32.gmra.mxu0 %v564
    %v638 = vpop.f32.mrf.mxu0
    %v639 = vadd.f32 %v94, %v638
    %v640 = vpop.f32.mrf.mxu0
    %641 = vmatprep.mubr.f32.mxu0 0.0
    %642 = vmatmul.mubr.f32.gmra.mxu0 %v566
    %v643 = vpop.f32.mrf.mxu0
    %v644 = vadd.f32 %v94, %v643
    %v645 = vpop.f32.mrf.mxu0
    %646 = vdwg.mxu0
    %649 = vrot.lane.b32.xlu0 %v369, 96
    %v650 = vpop.permute.xlu0 %649
    %651 = vrot.lane.b32.xlu0 %v375, 96
    %v652 = vpop.permute.xlu0 %651
    %v653 = vsel %vm385, %v369, 0
    %v655 = vsel %vm385, %v375, 0
    %v657 = vsel %vm385, %v650, 0
    %v659 = vsel %vm385, %v652, 0
    %661 = vmatprep.subr.mxu0 0.0
    %662 = vmatpush1.xpose.msra.mxu0 0.0
    %663 = vmatprep.subr.mxu0 0.0
    %664 = vmatpush1.xpose.msra.mxu0 0.0
    %665 = vmatprep.subr.mxu0 0.0
    %666 = vmatpush1.xpose.msra.mxu0 0.0
    %667 = vmatprep.subr.mxu0 0.0
    %668 = vmatpush1.xpose.msra.mxu0 0.0
    %669 = vmatprep.subr.mxu0 0.0
    %670 = vmatpush1.xpose.msra.mxu0 0.0
    %671 = vmatprep.subr.mxu0 0.0
    %672 = vmatpush1.xpose.msra.mxu0 0.0
    %673 = vmatprep.subr.mxu0 0.0
    %674 = vmatpush1.xpose.msra.mxu0 0.0
    %675 = vmatprep.subr.mxu0 0.0
    %676 = vmatpush1.xpose.msra.mxu0 0.0
    %677 = vmatprep.subr.mxu0 0.0
    %678 = vmatpush1.xpose.msra.mxu0 0.0
    %679 = vmatprep.subr.mxu0 0.0
    %680 = vmatpush1.xpose.msra.mxu0 0.0
    %681 = vmatprep.subr.mxu0 0.0
    %682 = vmatpush1.xpose.msra.mxu0 0.0
    %683 = vmatprep.subr.mxu0 0.0
    %684 = vmatpush1.xpose.msra.mxu0 0.0
    %685 = vmatprep.subr.mxu0 0.0
    %686 = vmatpush1.xpose.msra.mxu0 0.0
    %687 = vmatprep.subr.mxu0 0.0
    %688 = vmatpush1.xpose.msra.mxu0 0.0
    %689 = vmatprep.subr.mxu0 0.0
    %690 = vmatpush1.xpose.msra.mxu0 %v659
    %691 = vmatprep.subr.mxu0 0.0
    %692 = vmatpush1.xpose.msra.mxu0 %v657
    %693 = vmatprep.subr.mxu0 0.0
    %694 = vmatpush2.xpose.msra.mxu0 0.0
    %695 = vmatprep.subr.mxu0 0.0
    %696 = vmatpush2.xpose.msra.mxu0 0.0
    %697 = vmatprep.subr.mxu0 0.0
    %698 = vmatpush2.xpose.msra.mxu0 0.0
    %699 = vmatprep.subr.mxu0 0.0
    %700 = vmatpush2.xpose.msra.mxu0 0.0
    %701 = vmatprep.subr.mxu0 0.0
    %702 = vmatpush2.xpose.msra.mxu0 0.0
    %703 = vmatprep.subr.mxu0 0.0
    %704 = vmatpush2.xpose.msra.mxu0 0.0
    %705 = vmatprep.subr.mxu0 0.0
    %706 = vmatpush2.xpose.msra.mxu0 0.0
    %707 = vmatprep.subr.mxu0 0.0
    %708 = vmatpush2.xpose.msra.mxu0 0.0
    %709 = vmatprep.subr.mxu0 0.0
    %710 = vmatpush2.xpose.msra.mxu0 0.0
    %711 = vmatprep.subr.mxu0 0.0
    %712 = vmatpush2.xpose.msra.mxu0 0.0
    %713 = vmatprep.subr.mxu0 0.0
    %714 = vmatpush2.xpose.msra.mxu0 0.0
    %715 = vmatprep.subr.mxu0 0.0
    %716 = vmatpush2.xpose.msra.mxu0 0.0
    %717 = vmatprep.subr.mxu0 0.0
    %718 = vmatpush2.xpose.msra.mxu0 0.0
    %719 = vmatprep.subr.mxu0 0.0
    %720 = vmatpush2.xpose.msra.mxu0 0.0
    %721 = vmatprep.subr.mxu0 0.0
    %722 = vmatpush2.xpose.msra.mxu0 0.0
    %723 = vmatprep.subr.mxu0 0.0
    %724 = vmatpush2.xpose.msra.mxu0 0.0
    %725 = vmatprep.mubr.f32.mxu0 0.0
    %726 = vmatmul.mubr.f32.gmra.mxu0 %v653
    %v727 = vpop.f32.mrf.mxu0
    %v728 = vadd.f32 %v94, %v727
    %v729 = vpop.f32.mrf.mxu0
    %730 = vmatprep.mubr.f32.mxu0 0.0
    %731 = vmatmul.mubr.f32.gmra.mxu0 %v655
    %v732 = vpop.f32.mrf.mxu0
    %v733 = vadd.f32 %v94, %v732
    %v734 = vpop.f32.mrf.mxu0
    %735 = vdwg.mxu0
    %vm736 = vcmask 130048
    %v737 = vsel %vm736, %v461, -inf
    %738 = vmax.xlane.f32.xlu0 %v737
    %v739 = vpop.xlane.xlu0 %738
    %v740 = vsel %vm736, %v466, -inf
    %741 = vmax.xlane.f32.xlu0 %v740
    %v742 = vpop.xlane.xlu0 %741
    %v743 = vsel %vm736, %v550, -inf
    %744 = vmax.xlane.f32.xlu0 %v743
    %v745 = vpop.xlane.xlu0 %744
    %v746 = vsel %vm736, %v555, -inf
    %747 = vmax.xlane.f32.xlu0 %v746
    %v748 = vpop.xlane.xlu0 %747
    %v749 = vsel %vm736, %v639, -inf
    %750 = vmax.xlane.f32.xlu0 %v749
    %v751 = vpop.xlane.xlu0 %750
    %v752 = vsel %vm736, %v644, -inf
    %753 = vmax.xlane.f32.xlu0 %v752
    %v754 = vpop.xlane.xlu0 %753
    %v755 = vsel %vm736, %v728, -inf
    %756 = vmax.xlane.f32.xlu0 %v755
    %v757 = vpop.xlane.xlu0 %756
    %v758 = vsel %vm736, %v733, -inf
    %759 = vmax.xlane.f32.xlu0 %v758
    %v760 = vpop.xlane.xlu0 %759
    %v761 = vsub.f32 %v461, %v739
    %v762 = vsub.f32 %v466, %v742
    %v763 = vsub.f32 %v550, %v745
    %v764 = vsub.f32 %v555, %v748
    %v765 = vsub.f32 %v639, %v751
    %v766 = vsub.f32 %v644, %v754
    %v767 = vsub.f32 %v728, %v757
    %v768 = vsub.f32 %v733, %v760
    %v769 = vmul.f32 %v761, 1.442695
    %v770 = vpow.pop %v769
    %v771 = vmul.f32 %v762, 1.442695
    %v772 = vpow.pop %v771
    %v773 = vmul.f32 %v763, 1.442695
    %v774 = vpow.pop %v773
    %v775 = vmul.f32 %v764, 1.442695
    %v776 = vpow.pop %v775
    %v777 = vmul.f32 %v765, 1.442695
    %v778 = vpow.pop %v777
    %v779 = vmul.f32 %v766, 1.442695
    %v780 = vpow.pop %v779
    %v781 = vmul.f32 %v767, 1.442695
    %v782 = vpow.pop %v781
    %v783 = vmul.f32 %v768, 1.442695
    %v784 = vpow.pop %v783
    %v785 = vsel %vm736, %v770, 0.0
    %786 = vadd.xlane.f32.xlu0 %v785
    %v787 = vpop.xlane.xlu0 %786
    %v788 = vsel %vm736, %v772, 0.0
    %789 = vadd.xlane.f32.xlu0 %v788
    %v790 = vpop.xlane.xlu0 %789
    %v791 = vsel %vm736, %v774, 0.0
    %792 = vadd.xlane.f32.xlu0 %v791
    %v793 = vpop.xlane.xlu0 %792
    %v794 = vsel %vm736, %v776, 0.0
    %795 = vadd.xlane.f32.xlu0 %v794
    %v796 = vpop.xlane.xlu0 %795
    %v797 = vsel %vm736, %v778, 0.0
    %798 = vadd.xlane.f32.xlu0 %v797
    %v799 = vpop.xlane.xlu0 %798
    %v800 = vsel %vm736, %v780, 0.0
    %801 = vadd.xlane.f32.xlu0 %v800
    %v802 = vpop.xlane.xlu0 %801
    %v803 = vsel %vm736, %v782, 0.0
    %804 = vadd.xlane.f32.xlu0 %v803
    %v805 = vpop.xlane.xlu0 %804
    %v806 = vsel %vm736, %v784, 0.0
    %807 = vadd.xlane.f32.xlu0 %v806
    %v808 = vpop.xlane.xlu0 %807
    %v809 = vrcp.pop %v787
    %v810 = vrcp.pop %v790
    %v811 = vrcp.pop %v793
    %v812 = vrcp.pop %v796
    %v813 = vrcp.pop %v799
    %v814 = vrcp.pop %v802
    %v815 = vrcp.pop %v805
    %v816 = vrcp.pop %v808
    %v817 = vmul.f32 %v770, %v809
    %v818 = vmul.f32 %v772, %v810
    %v819 = vmul.f32 %v774, %v811
    %v820 = vmul.f32 %v776, %v812
    %v821 = vmul.f32 %v778, %v813
    %v822 = vmul.f32 %v780, %v814
    %v823 = vmul.f32 %v782, %v815
    %v824 = vmul.f32 %v784, %v816
    %825 = vrot.lane.b32.xlu0 %v333, 120
    %v826 = vpop.permute.xlu0 %825
    %827 = vrot.lane.b32.xlu0 %v339, 120
    %v828 = vpop.permute.xlu0 %827
    %829 = vrot.lane.b32.xlu0 %v333, 88
    %v830 = vpop.permute.xlu0 %829
    %831 = vrot.lane.b32.xlu0 %v339, 88
    %v832 = vpop.permute.xlu0 %831
    %v833 = vsel %vm385, %v826, 0
    %v835 = vsel %vm385, %v828, 0
    %v837 = vsel %vm385, %v830, 0
    %v839 = vsel %vm385, %v832, 0
    %841 = vmatprep.subr.mxu0 0.0
    %842 = vmatpush1.xpose.msra.mxu0 0.0
    %843 = vmatprep.subr.mxu0 0.0
    %844 = vmatpush1.xpose.msra.mxu0 0.0
    %845 = vmatprep.subr.mxu0 0.0
    %846 = vmatpush1.xpose.msra.mxu0 0.0
    %847 = vmatprep.subr.mxu0 0.0
    %848 = vmatpush1.xpose.msra.mxu0 0.0
    %849 = vmatprep.subr.mxu0 0.0
    %850 = vmatpush1.xpose.msra.mxu0 0.0
    %851 = vmatprep.subr.mxu0 0.0
    %852 = vmatpush1.xpose.msra.mxu0 0.0
    %853 = vmatprep.subr.mxu0 0.0
    %854 = vmatpush1.xpose.msra.mxu0 0.0
    %855 = vmatprep.subr.mxu0 0.0
    %856 = vmatpush1.xpose.msra.mxu0 0.0
    %857 = vmatprep.subr.mxu0 0.0
    %858 = vmatpush1.xpose.msra.mxu0 0.0
    %859 = vmatprep.subr.mxu0 0.0
    %860 = vmatpush1.xpose.msra.mxu0 0.0
    %861 = vmatprep.subr.mxu0 0.0
    %862 = vmatpush1.xpose.msra.mxu0 0.0
    %863 = vmatprep.subr.mxu0 0.0
    %864 = vmatpush1.xpose.msra.mxu0 0.0
    %865 = vmatprep.subr.mxu0 0.0
    %866 = vmatpush1.xpose.msra.mxu0 0.0
    %867 = vmatprep.subr.mxu0 0.0
    %868 = vmatpush1.xpose.msra.mxu0 0.0
    %869 = vmatprep.subr.mxu0 0.0
    %870 = vmatpush1.xpose.msra.mxu0 %v839
    %871 = vmatprep.subr.mxu0 0.0
    %872 = vmatpush1.xpose.msra.mxu0 %v837
    %873 = vmatprep.subr.mxu0 0.0
    %874 = vmatpush2.xpose.msra.mxu0 0.0
    %875 = vmatprep.subr.mxu0 0.0
    %876 = vmatpush2.xpose.msra.mxu0 0.0
    %877 = vmatprep.subr.mxu0 0.0
    %878 = vmatpush2.xpose.msra.mxu0 0.0
    %879 = vmatprep.subr.mxu0 0.0
    %880 = vmatpush2.xpose.msra.mxu0 0.0
    %881 = vmatprep.subr.mxu0 0.0
    %882 = vmatpush2.xpose.msra.mxu0 0.0
    %883 = vmatprep.subr.mxu0 0.0
    %884 = vmatpush2.xpose.msra.mxu0 0.0
    %885 = vmatprep.subr.mxu0 0.0
    %886 = vmatpush2.xpose.msra.mxu0 0.0
    %887 = vmatprep.subr.mxu0 0.0
    %888 = vmatpush2.xpose.msra.mxu0 0.0
    %889 = vmatprep.subr.mxu0 0.0
    %890 = vmatpush2.xpose.msra.mxu0 0.0
    %891 = vmatprep.subr.mxu0 0.0
    %892 = vmatpush2.xpose.msra.mxu0 0.0
    %893 = vmatprep.subr.mxu0 0.0
    %894 = vmatpush2.xpose.msra.mxu0 0.0
    %895 = vmatprep.subr.mxu0 0.0
    %896 = vmatpush2.xpose.msra.mxu0 0.0
    %897 = vmatprep.subr.mxu0 0.0
    %898 = vmatpush2.xpose.msra.mxu0 0.0
    %899 = vmatprep.subr.mxu0 0.0
    %900 = vmatpush2.xpose.msra.mxu0 0.0
    %901 = vmatprep.subr.mxu0 0.0
    %902 = vmatpush2.xpose.msra.mxu0 0.0
    %903 = vmatprep.subr.mxu0 0.0
    %904 = vmatpush2.xpose.msra.mxu0 0.0
    %905 = vmatprep.mubr.f32.mxu0 0.0
    %906 = vmatmul.mubr.f32.gmra.mxu0 %v833
    %v907 = vpop.f32.mrf.mxu0
    %v908 = vadd.f32 %v94, %v907
    %v909 = vpop.f32.mrf.mxu0
    %910 = vmatprep.mubr.f32.mxu0 0.0
    %911 = vmatmul.mubr.f32.gmra.mxu0 %v835
    %v912 = vpop.f32.mrf.mxu0
    %v913 = vadd.f32 %v94, %v912
    %v914 = vpop.f32.mrf.mxu0
    %915 = vdwg.mxu0
    %916 = vrot.lane.b32.xlu0 %v345, 120
    %v917 = vpop.permute.xlu0 %916
    %918 = vrot.lane.b32.xlu0 %v351, 120
    %v919 = vpop.permute.xlu0 %918
    %920 = vrot.lane.b32.xlu0 %v345, 88
    %v921 = vpop.permute.xlu0 %920
    %922 = vrot.lane.b32.xlu0 %v351, 88
    %v923 = vpop.permute.xlu0 %922
    %v924 = vsel %vm385, %v917, 0
    %v926 = vsel %vm385, %v919, 0
    %v928 = vsel %vm385, %v921, 0
    %v930 = vsel %vm385, %v923, 0
    %932 = vmatprep.subr.mxu0 0.0
    %933 = vmatpush1.xpose.msra.mxu0 0.0
    %934 = vmatprep.subr.mxu0 0.0
    %935 = vmatpush1.xpose.msra.mxu0 0.0
    %936 = vmatprep.subr.mxu0 0.0
    %937 = vmatpush1.xpose.msra.mxu0 0.0
    %938 = vmatprep.subr.mxu0 0.0
    %939 = vmatpush1.xpose.msra.mxu0 0.0
    %940 = vmatprep.subr.mxu0 0.0
    %941 = vmatpush1.xpose.msra.mxu0 0.0
    %942 = vmatprep.subr.mxu0 0.0
    %943 = vmatpush1.xpose.msra.mxu0 0.0
    %944 = vmatprep.subr.mxu0 0.0
    %945 = vmatpush1.xpose.msra.mxu0 0.0
    %946 = vmatprep.subr.mxu0 0.0
    %947 = vmatpush1.xpose.msra.mxu0 0.0
    %948 = vmatprep.subr.mxu0 0.0
    %949 = vmatpush1.xpose.msra.mxu0 0.0
    %950 = vmatprep.subr.mxu0 0.0
    %951 = vmatpush1.xpose.msra.mxu0 0.0
    %952 = vmatprep.subr.mxu0 0.0
    %953 = vmatpush1.xpose.msra.mxu0 0.0
    %954 = vmatprep.subr.mxu0 0.0
    %955 = vmatpush1.xpose.msra.mxu0 0.0
    %956 = vmatprep.subr.mxu0 0.0
    %957 = vmatpush1.xpose.msra.mxu0 0.0
    %958 = vmatprep.subr.mxu0 0.0
    %959 = vmatpush1.xpose.msra.mxu0 0.0
    %960 = vmatprep.subr.mxu0 0.0
    %961 = vmatpush1.xpose.msra.mxu0 %v930
    %962 = vmatprep.subr.mxu0 0.0
    %963 = vmatpush1.xpose.msra.mxu0 %v928
    %964 = vmatprep.subr.mxu0 0.0
    %965 = vmatpush2.xpose.msra.mxu0 0.0
    %966 = vmatprep.subr.mxu0 0.0
    %967 = vmatpush2.xpose.msra.mxu0 0.0
    %968 = vmatprep.subr.mxu0 0.0
    %969 = vmatpush2.xpose.msra.mxu0 0.0
    %970 = vmatprep.subr.mxu0 0.0
    %971 = vmatpush2.xpose.msra.mxu0 0.0
    %972 = vmatprep.subr.mxu0 0.0
    %973 = vmatpush2.xpose.msra.mxu0 0.0
    %974 = vmatprep.subr.mxu0 0.0
    %975 = vmatpush2.xpose.msra.mxu0 0.0
    %976 = vmatprep.subr.mxu0 0.0
    %977 = vmatpush2.xpose.msra.mxu0 0.0
    %978 = vmatprep.subr.mxu0 0.0
    %979 = vmatpush2.xpose.msra.mxu0 0.0
    %980 = vmatprep.subr.mxu0 0.0
    %981 = vmatpush2.xpose.msra.mxu0 0.0
    %982 = vmatprep.subr.mxu0 0.0
    %983 = vmatpush2.xpose.msra.mxu0 0.0
    %984 = vmatprep.subr.mxu0 0.0
    %985 = vmatpush2.xpose.msra.mxu0 0.0
    %986 = vmatprep.subr.mxu0 0.0
    %987 = vmatpush2.xpose.msra.mxu0 0.0
    %988 = vmatprep.subr.mxu0 0.0
    %989 = vmatpush2.xpose.msra.mxu0 0.0
    %990 = vmatprep.subr.mxu0 0.0
    %991 = vmatpush2.xpose.msra.mxu0 0.0
    %992 = vmatprep.subr.mxu0 0.0
    %993 = vmatpush2.xpose.msra.mxu0 0.0
    %994 = vmatprep.subr.mxu0 0.0
    %995 = vmatpush2.xpose.msra.mxu0 0.0
    %996 = vmatprep.mubr.f32.mxu0 0.0
    %997 = vmatmul.mubr.f32.gmra.mxu0 %v924
    %v998 = vpop.f32.mrf.mxu0
    %v999 = vadd.f32 %v94, %v998
    %v1000 = vpop.f32.mrf.mxu0
    %1001 = vmatprep.mubr.f32.mxu0 0.0
    %1002 = vmatmul.mubr.f32.gmra.mxu0 %v926
    %v1003 = vpop.f32.mrf.mxu0
    %v1004 = vadd.f32 %v94, %v1003
    %v1005 = vpop.f32.mrf.mxu0
    %1006 = vdwg.mxu0
    %1007 = vrot.lane.b32.xlu0 %v357, 120
    %v1008 = vpop.permute.xlu0 %1007
    %1009 = vrot.lane.b32.xlu0 %v363, 120
    %v1010 = vpop.permute.xlu0 %1009
    %1011 = vrot.lane.b32.xlu0 %v357, 88
    %v1012 = vpop.permute.xlu0 %1011
    %1013 = vrot.lane.b32.xlu0 %v363, 88
    %v1014 = vpop.permute.xlu0 %1013
    %v1015 = vsel %vm385, %v1008, 0
    %v1017 = vsel %vm385, %v1010, 0
    %v1019 = vsel %vm385, %v1012, 0
    %v1021 = vsel %vm385, %v1014, 0
    %1023 = vmatprep.subr.mxu0 0.0
    %1024 = vmatpush1.xpose.msra.mxu0 0.0
    %1025 = vmatprep.subr.mxu0 0.0
    %1026 = vmatpush1.xpose.msra.mxu0 0.0
    %1027 = vmatprep.subr.mxu0 0.0
    %1028 = vmatpush1.xpose.msra.mxu0 0.0
    %1029 = vmatprep.subr.mxu0 0.0
    %1030 = vmatpush1.xpose.msra.mxu0 0.0
    %1031 = vmatprep.subr.mxu0 0.0
    %1032 = vmatpush1.xpose.msra.mxu0 0.0
    %1033 = vmatprep.subr.mxu0 0.0
    %1034 = vmatpush1.xpose.msra.mxu0 0.0
    %1035 = vmatprep.subr.mxu0 0.0
    %1036 = vmatpush1.xpose.msra.mxu0 0.0
    %1037 = vmatprep.subr.mxu0 0.0
    %1038 = vmatpush1.xpose.msra.mxu0 0.0
    %1039 = vmatprep.subr.mxu0 0.0
    %1040 = vmatpush1.xpose.msra.mxu0 0.0
    %1041 = vmatprep.subr.mxu0 0.0
    %1042 = vmatpush1.xpose.msra.mxu0 0.0
    %1043 = vmatprep.subr.mxu0 0.0
    %1044 = vmatpush1.xpose.msra.mxu0 0.0
    %1045 = vmatprep.subr.mxu0 0.0
    %1046 = vmatpush1.xpose.msra.mxu0 0.0
    %1047 = vmatprep.subr.mxu0 0.0
    %1048 = vmatpush1.xpose.msra.mxu0 0.0
    %1049 = vmatprep.subr.mxu0 0.0
    %1050 = vmatpush1.xpose.msra.mxu0 0.0
    %1051 = vmatprep.subr.mxu0 0.0
    %1052 = vmatpush1.xpose.msra.mxu0 %v1021
    %1053 = vmatprep.subr.mxu0 0.0
    %1054 = vmatpush1.xpose.msra.mxu0 %v1019
    %1055 = vmatprep.subr.mxu0 0.0
    %1056 = vmatpush2.xpose.msra.mxu0 0.0
    %1057 = vmatprep.subr.mxu0 0.0
    %1058 = vmatpush2.xpose.msra.mxu0 0.0
    %1059 = vmatprep.subr.mxu0 0.0
    %1060 = vmatpush2.xpose.msra.mxu0 0.0
    %1061 = vmatprep.subr.mxu0 0.0
    %1062 = vmatpush2.xpose.msra.mxu0 0.0
    %1063 = vmatprep.subr.mxu0 0.0
    %1064 = vmatpush2.xpose.msra.mxu0 0.0
    %1065 = vmatprep.subr.mxu0 0.0
    %1066 = vmatpush2.xpose.msra.mxu0 0.0
    %1067 = vmatprep.subr.mxu0 0.0
    %1068 = vmatpush2.xpose.msra.mxu0 0.0
    %1069 = vmatprep.subr.mxu0 0.0
    %1070 = vmatpush2.xpose.msra.mxu0 0.0
    %1071 = vmatprep.subr.mxu0 0.0
    %1072 = vmatpush2.xpose.msra.mxu0 0.0
    %1073 = vmatprep.subr.mxu0 0.0
    %1074 = vmatpush2.xpose.msra.mxu0 0.0
    %1075 = vmatprep.subr.mxu0 0.0
    %1076 = vmatpush2.xpose.msra.mxu0 0.0
    %1077 = vmatprep.subr.mxu0 0.0
    %1078 = vmatpush2.xpose.msra.mxu0 0.0
    %1079 = vmatprep.subr.mxu0 0.0
    %1080 = vmatpush2.xpose.msra.mxu0 0.0
    %1081 = vmatprep.subr.mxu0 0.0
    %1082 = vmatpush2.xpose.msra.mxu0 0.0
    %1083 = vmatprep.subr.mxu0 0.0
    %1084 = vmatpush2.xpose.msra.mxu0 0.0
    %1085 = vmatprep.subr.mxu0 0.0
    %1086 = vmatpush2.xpose.msra.mxu0 0.0
    %1087 = vmatprep.mubr.f32.mxu0 0.0
    %1088 = vmatmul.mubr.f32.gmra.mxu0 %v1015
    %v1089 = vpop.f32.mrf.mxu0
    %v1090 = vadd.f32 %v94, %v1089
    %v1091 = vpop.f32.mrf.mxu0
    %1092 = vmatprep.mubr.f32.mxu0 0.0
    %1093 = vmatmul.mubr.f32.gmra.mxu0 %v1017
    %v1094 = vpop.f32.mrf.mxu0
    %v1095 = vadd.f32 %v94, %v1094
    %v1096 = vpop.f32.mrf.mxu0
    %1097 = vdwg.mxu0
    %1098 = vrot.lane.b32.xlu0 %v369, 120
    %v1099 = vpop.permute.xlu0 %1098
    %1100 = vrot.lane.b32.xlu0 %v375, 120
    %v1101 = vpop.permute.xlu0 %1100
    %1102 = vrot.lane.b32.xlu0 %v369, 88
    %v1103 = vpop.permute.xlu0 %1102
    %1104 = vrot.lane.b32.xlu0 %v375, 88
    %v1105 = vpop.permute.xlu0 %1104
    %v1106 = vsel %vm385, %v1099, 0
    %v1108 = vsel %vm385, %v1101, 0
    %v1110 = vsel %vm385, %v1103, 0
    %v1112 = vsel %vm385, %v1105, 0
    %1114 = vmatprep.subr.mxu0 0.0
    %1115 = vmatpush1.xpose.msra.mxu0 0.0
    %1116 = vmatprep.subr.mxu0 0.0
    %1117 = vmatpush1.xpose.msra.mxu0 0.0
    %1118 = vmatprep.subr.mxu0 0.0
    %1119 = vmatpush1.xpose.msra.mxu0 0.0
    %1120 = vmatprep.subr.mxu0 0.0
    %1121 = vmatpush1.xpose.msra.mxu0 0.0
    %1122 = vmatprep.subr.mxu0 0.0
    %1123 = vmatpush1.xpose.msra.mxu0 0.0
    %1124 = vmatprep.subr.mxu0 0.0
    %1125 = vmatpush1.xpose.msra.mxu0 0.0
    %1126 = vmatprep.subr.mxu0 0.0
    %1127 = vmatpush1.xpose.msra.mxu0 0.0
    %1128 = vmatprep.subr.mxu0 0.0
    %1129 = vmatpush1.xpose.msra.mxu0 0.0
    %1130 = vmatprep.subr.mxu0 0.0
    %1131 = vmatpush1.xpose.msra.mxu0 0.0
    %1132 = vmatprep.subr.mxu0 0.0
    %1133 = vmatpush1.xpose.msra.mxu0 0.0
    %1134 = vmatprep.subr.mxu0 0.0
    %1135 = vmatpush1.xpose.msra.mxu0 0.0
    %1136 = vmatprep.subr.mxu0 0.0
    %1137 = vmatpush1.xpose.msra.mxu0 0.0
    %1138 = vmatprep.subr.mxu0 0.0
    %1139 = vmatpush1.xpose.msra.mxu0 0.0
    %1140 = vmatprep.subr.mxu0 0.0
    %1141 = vmatpush1.xpose.msra.mxu0 0.0
    %1142 = vmatprep.subr.mxu0 0.0
    %1143 = vmatpush1.xpose.msra.mxu0 %v1112
    %1144 = vmatprep.subr.mxu0 0.0
    %1145 = vmatpush1.xpose.msra.mxu0 %v1110
    %1146 = vmatprep.subr.mxu0 0.0
    %1147 = vmatpush2.xpose.msra.mxu0 0.0
    %1148 = vmatprep.subr.mxu0 0.0
    %1149 = vmatpush2.xpose.msra.mxu0 0.0
    %1150 = vmatprep.subr.mxu0 0.0
    %1151 = vmatpush2.xpose.msra.mxu0 0.0
    %1152 = vmatprep.subr.mxu0 0.0
    %1153 = vmatpush2.xpose.msra.mxu0 0.0
    %1154 = vmatprep.subr.mxu0 0.0
    %1155 = vmatpush2.xpose.msra.mxu0 0.0
    %1156 = vmatprep.subr.mxu0 0.0
    %1157 = vmatpush2.xpose.msra.mxu0 0.0
    %1158 = vmatprep.subr.mxu0 0.0
    %1159 = vmatpush2.xpose.msra.mxu0 0.0
    %1160 = vmatprep.subr.mxu0 0.0
    %1161 = vmatpush2.xpose.msra.mxu0 0.0
    %1162 = vmatprep.subr.mxu0 0.0
    %1163 = vmatpush2.xpose.msra.mxu0 0.0
    %1164 = vmatprep.subr.mxu0 0.0
    %1165 = vmatpush2.xpose.msra.mxu0 0.0
    %1166 = vmatprep.subr.mxu0 0.0
    %1167 = vmatpush2.xpose.msra.mxu0 0.0
    %1168 = vmatprep.subr.mxu0 0.0
    %1169 = vmatpush2.xpose.msra.mxu0 0.0
    %1170 = vmatprep.subr.mxu0 0.0
    %1171 = vmatpush2.xpose.msra.mxu0 0.0
    %1172 = vmatprep.subr.mxu0 0.0
    %1173 = vmatpush2.xpose.msra.mxu0 0.0
    %1174 = vmatprep.subr.mxu0 0.0
    %1175 = vmatpush2.xpose.msra.mxu0 0.0
    %1176 = vmatprep.subr.mxu0 0.0
    %1177 = vmatpush2.xpose.msra.mxu0 0.0
    %1178 = vmatprep.mubr.f32.mxu0 0.0
    %1179 = vmatmul.mubr.f32.gmra.mxu0 %v1106
    %v1180 = vpop.f32.mrf.mxu0
    %v1181 = vadd.f32 %v94, %v1180
    %v1182 = vpop.f32.mrf.mxu0
    %1183 = vmatprep.mubr.f32.mxu0 0.0
    %1184 = vmatmul.mubr.f32.gmra.mxu0 %v1108
    %v1185 = vpop.f32.mrf.mxu0
    %v1186 = vadd.f32 %v94, %v1185
    %v1187 = vpop.f32.mrf.mxu0
    %1188 = vdwg.mxu0
    %v1189 = vsel %vm736, %v908, -inf
    %1190 = vmax.xlane.f32.xlu0 %v1189
    %v1191 = vpop.xlane.xlu0 %1190
    %v1192 = vsel %vm736, %v913, -inf
    %1193 = vmax.xlane.f32.xlu0 %v1192
    %v1194 = vpop.xlane.xlu0 %1193
    %v1195 = vsel %vm736, %v999, -inf
    %1196 = vmax.xlane.f32.xlu0 %v1195
    %v1197 = vpop.xlane.xlu0 %1196
    %v1198 = vsel %vm736, %v1004, -inf
    %1199 = vmax.xlane.f32.xlu0 %v1198
    %v1200 = vpop.xlane.xlu0 %1199
    %v1201 = vsel %vm736, %v1090, -inf
    %1202 = vmax.xlane.f32.xlu0 %v1201
    %v1203 = vpop.xlane.xlu0 %1202
    %v1204 = vsel %vm736, %v1095, -inf
    %1205 = vmax.xlane.f32.xlu0 %v1204
    %v1206 = vpop.xlane.xlu0 %1205
    %v1207 = vsel %vm736, %v1181, -inf
    %1208 = vmax.xlane.f32.xlu0 %v1207
    %v1209 = vpop.xlane.xlu0 %1208
    %v1210 = vsel %vm736, %v1186, -inf
    %1211 = vmax.xlane.f32.xlu0 %v1210
    %v1212 = vpop.xlane.xlu0 %1211
    %v1213 = vsub.f32 %v908, %v1191
    %v1214 = vsub.f32 %v913, %v1194
    %v1215 = vsub.f32 %v999, %v1197
    %v1216 = vsub.f32 %v1004, %v1200
    %v1217 = vsub.f32 %v1090, %v1203
    %v1218 = vsub.f32 %v1095, %v1206
    %v1219 = vsub.f32 %v1181, %v1209
    %v1220 = vsub.f32 %v1186, %v1212
    %v1221 = vmul.f32 %v1213, 1.442695
    %v1222 = vpow.pop %v1221
    %v1223 = vmul.f32 %v1214, 1.442695
    %v1224 = vpow.pop %v1223
    %v1225 = vmul.f32 %v1215, 1.442695
    %v1226 = vpow.pop %v1225
    %v1227 = vmul.f32 %v1216, 1.442695
    %v1228 = vpow.pop %v1227
    %v1229 = vmul.f32 %v1217, 1.442695
    %v1230 = vpow.pop %v1229
    %v1231 = vmul.f32 %v1218, 1.442695
    %v1232 = vpow.pop %v1231
    %v1233 = vmul.f32 %v1219, 1.442695
    %v1234 = vpow.pop %v1233
    %v1235 = vmul.f32 %v1220, 1.442695
    %v1236 = vpow.pop %v1235
    %v1237 = vsel %vm736, %v1222, 0.0
    %1238 = vadd.xlane.f32.xlu0 %v1237
    %v1239 = vpop.xlane.xlu0 %1238
    %v1240 = vsel %vm736, %v1224, 0.0
    %1241 = vadd.xlane.f32.xlu0 %v1240
    %v1242 = vpop.xlane.xlu0 %1241
    %v1243 = vsel %vm736, %v1226, 0.0
    %1244 = vadd.xlane.f32.xlu0 %v1243
    %v1245 = vpop.xlane.xlu0 %1244
    %v1246 = vsel %vm736, %v1228, 0.0
    %1247 = vadd.xlane.f32.xlu0 %v1246
    %v1248 = vpop.xlane.xlu0 %1247
    %v1249 = vsel %vm736, %v1230, 0.0
    %1250 = vadd.xlane.f32.xlu0 %v1249
    %v1251 = vpop.xlane.xlu0 %1250
    %v1252 = vsel %vm736, %v1232, 0.0
    %1253 = vadd.xlane.f32.xlu0 %v1252
    %v1254 = vpop.xlane.xlu0 %1253
    %v1255 = vsel %vm736, %v1234, 0.0
    %1256 = vadd.xlane.f32.xlu0 %v1255
    %v1257 = vpop.xlane.xlu0 %1256
    %v1258 = vsel %vm736, %v1236, 0.0
    %1259 = vadd.xlane.f32.xlu0 %v1258
    %v1260 = vpop.xlane.xlu0 %1259
    %v1261 = vrcp.pop %v1239
    %v1262 = vrcp.pop %v1242
    %v1263 = vrcp.pop %v1245
    %v1264 = vrcp.pop %v1248
    %v1265 = vrcp.pop %v1251
    %v1266 = vrcp.pop %v1254
    %v1267 = vrcp.pop %v1257
    %v1268 = vrcp.pop %v1260
    %v1269 = vmul.f32 %v1222, %v1261
    %v1270 = vmul.f32 %v1224, %v1262
    %v1271 = vmul.f32 %v1226, %v1263
    %v1272 = vmul.f32 %v1228, %v1264
    %v1273 = vmul.f32 %v1230, %v1265
    %v1274 = vmul.f32 %v1232, %v1266
    %v1275 = vmul.f32 %v1234, %v1267
    %v1276 = vmul.f32 %v1236, %v1268
    %1277 = vrot.lane.b32.xlu0 %v333, 32
    %v1278 = vpop.permute.xlu0 %1277
    %1279 = vrot.lane.b32.xlu0 %v339, 32
    %v1280 = vpop.permute.xlu0 %1279
    %v1284 = vsel %vm736, %v1269, 0
    %v1287 = vsel %vm736, %v1270, 0
    %1289 = vmatprep.subr.mxu0 0.0
    %1290 = vmatpush1.msra.mxu0 0.0
    %1291 = vmatprep.subr.mxu0 0.0
    %1292 = vmatpush1.msra.mxu0 0.0
    %1293 = vmatprep.subr.mxu0 0.0
    %1294 = vmatpush1.msra.mxu0 0.0
    %1295 = vmatprep.subr.mxu0 0.0
    %1296 = vmatpush1.msra.mxu0 0.0
    %1297 = vmatprep.subr.mxu0 0.0
    %1298 = vmatpush1.msra.mxu0 0.0
    %1299 = vmatprep.subr.mxu0 0.0
    %1300 = vmatpush1.msra.mxu0 0.0
    %1301 = vmatprep.subr.mxu0 0.0
    %1302 = vmatpush1.msra.mxu0 0.0
    %1303 = vmatprep.subr.mxu0 0.0
    %1304 = vmatpush1.msra.mxu0 0.0
    %1305 = vmatprep.subr.mxu0 0.0
    %1306 = vmatpush1.msra.mxu0 0.0
    %1307 = vmatprep.subr.mxu0 0.0
    %1308 = vmatpush1.msra.mxu0 0.0
    %1309 = vmatprep.subr.mxu0 0.0
    %1310 = vmatpush1.msra.mxu0 0.0
    %1311 = vmatprep.subr.mxu0 0.0
    %1312 = vmatpush1.msra.mxu0 0.0
    %1313 = vmatprep.subr.mxu0 0.0
    %1314 = vmatpush1.msra.mxu0 0.0
    %1315 = vmatprep.subr.mxu0 0.0
    %1316 = vmatpush1.msra.mxu0 0.0
    %1317 = vmatprep.subr.mxu0 0.0
    %1318 = vmatpush1.msra.mxu0 %v1280
    %1319 = vmatprep.subr.mxu0 0.0
    %1320 = vmatpush1.msra.mxu0 %v1278
    %1321 = vmatprep.subr.mxu0 0.0
    %1322 = vmatpush2.msra.mxu0 0.0
    %1323 = vmatprep.subr.mxu0 0.0
    %1324 = vmatpush2.msra.mxu0 0.0
    %1325 = vmatprep.subr.mxu0 0.0
    %1326 = vmatpush2.msra.mxu0 0.0
    %1327 = vmatprep.subr.mxu0 0.0
    %1328 = vmatpush2.msra.mxu0 0.0
    %1329 = vmatprep.subr.mxu0 0.0
    %1330 = vmatpush2.msra.mxu0 0.0
    %1331 = vmatprep.subr.mxu0 0.0
    %1332 = vmatpush2.msra.mxu0 0.0
    %1333 = vmatprep.subr.mxu0 0.0
    %1334 = vmatpush2.msra.mxu0 0.0
    %1335 = vmatprep.subr.mxu0 0.0
    %1336 = vmatpush2.msra.mxu0 0.0
    %1337 = vmatprep.subr.mxu0 0.0
    %1338 = vmatpush2.msra.mxu0 0.0
    %1339 = vmatprep.subr.mxu0 0.0
    %1340 = vmatpush2.msra.mxu0 0.0
    %1341 = vmatprep.subr.mxu0 0.0
    %1342 = vmatpush2.msra.mxu0 0.0
    %1343 = vmatprep.subr.mxu0 0.0
    %1344 = vmatpush2.msra.mxu0 0.0
    %1345 = vmatprep.subr.mxu0 0.0
    %1346 = vmatpush2.msra.mxu0 0.0
    %1347 = vmatprep.subr.mxu0 0.0
    %1348 = vmatpush2.msra.mxu0 0.0
    %1349 = vmatprep.subr.mxu0 0.0
    %1350 = vmatpush2.msra.mxu0 0.0
    %1351 = vmatprep.subr.mxu0 0.0
    %1352 = vmatpush2.msra.mxu0 0.0
    %1353 = vmatprep.mubr.f32.mxu0 0.0
    %1354 = vmatmul.mubr.f32.gmra.mxu0 %v1284
    %v1355 = vpop.f32.mrf.mxu0
    %v1356 = vadd.f32 0.0, %v1355
    %v1357 = vpop.f32.mrf.mxu0
    %1358 = vmatprep.mubr.f32.mxu0 0.0
    %1359 = vmatmul.mubr.f32.gmra.mxu0 %v1287
    %v1360 = vpop.f32.mrf.mxu0
    %v1361 = vadd.f32 0.0, %v1360
    %v1362 = vpop.f32.mrf.mxu0
    %1363 = vdwg.mxu0
    %1364 = vrot.lane.b32.xlu0 %v345, 32
    %v1365 = vpop.permute.xlu0 %1364
    %1366 = vrot.lane.b32.xlu0 %v351, 32
    %v1367 = vpop.permute.xlu0 %1366
    %v1371 = vsel %vm736, %v1271, 0
    %v1374 = vsel %vm736, %v1272, 0
    %1376 = vmatprep.subr.mxu0 0.0
    %1377 = vmatpush1.msra.mxu0 0.0
    %1378 = vmatprep.subr.mxu0 0.0
    %1379 = vmatpush1.msra.mxu0 0.0
    %1380 = vmatprep.subr.mxu0 0.0
    %1381 = vmatpush1.msra.mxu0 0.0
    %1382 = vmatprep.subr.mxu0 0.0
    %1383 = vmatpush1.msra.mxu0 0.0
    %1384 = vmatprep.subr.mxu0 0.0
    %1385 = vmatpush1.msra.mxu0 0.0
    %1386 = vmatprep.subr.mxu0 0.0
    %1387 = vmatpush1.msra.mxu0 0.0
    %1388 = vmatprep.subr.mxu0 0.0
    %1389 = vmatpush1.msra.mxu0 0.0
    %1390 = vmatprep.subr.mxu0 0.0
    %1391 = vmatpush1.msra.mxu0 0.0
    %1392 = vmatprep.subr.mxu0 0.0
    %1393 = vmatpush1.msra.mxu0 0.0
    %1394 = vmatprep.subr.mxu0 0.0
    %1395 = vmatpush1.msra.mxu0 0.0
    %1396 = vmatprep.subr.mxu0 0.0
    %1397 = vmatpush1.msra.mxu0 0.0
    %1398 = vmatprep.subr.mxu0 0.0
    %1399 = vmatpush1.msra.mxu0 0.0
    %1400 = vmatprep.subr.mxu0 0.0
    %1401 = vmatpush1.msra.mxu0 0.0
    %1402 = vmatprep.subr.mxu0 0.0
    %1403 = vmatpush1.msra.mxu0 0.0
    %1404 = vmatprep.subr.mxu0 0.0
    %1405 = vmatpush1.msra.mxu0 %v1367
    %1406 = vmatprep.subr.mxu0 0.0
    %1407 = vmatpush1.msra.mxu0 %v1365
    %1408 = vmatprep.subr.mxu0 0.0
    %1409 = vmatpush2.msra.mxu0 0.0
    %1410 = vmatprep.subr.mxu0 0.0
    %1411 = vmatpush2.msra.mxu0 0.0
    %1412 = vmatprep.subr.mxu0 0.0
    %1413 = vmatpush2.msra.mxu0 0.0
    %1414 = vmatprep.subr.mxu0 0.0
    %1415 = vmatpush2.msra.mxu0 0.0
    %1416 = vmatprep.subr.mxu0 0.0
    %1417 = vmatpush2.msra.mxu0 0.0
    %1418 = vmatprep.subr.mxu0 0.0
    %1419 = vmatpush2.msra.mxu0 0.0
    %1420 = vmatprep.subr.mxu0 0.0
    %1421 = vmatpush2.msra.mxu0 0.0
    %1422 = vmatprep.subr.mxu0 0.0
    %1423 = vmatpush2.msra.mxu0 0.0
    %1424 = vmatprep.subr.mxu0 0.0
    %1425 = vmatpush2.msra.mxu0 0.0
    %1426 = vmatprep.subr.mxu0 0.0
    %1427 = vmatpush2.msra.mxu0 0.0
    %1428 = vmatprep.subr.mxu0 0.0
    %1429 = vmatpush2.msra.mxu0 0.0
    %1430 = vmatprep.subr.mxu0 0.0
    %1431 = vmatpush2.msra.mxu0 0.0
    %1432 = vmatprep.subr.mxu0 0.0
    %1433 = vmatpush2.msra.mxu0 0.0
    %1434 = vmatprep.subr.mxu0 0.0
    %1435 = vmatpush2.msra.mxu0 0.0
    %1436 = vmatprep.subr.mxu0 0.0
    %1437 = vmatpush2.msra.mxu0 0.0
    %1438 = vmatprep.subr.mxu0 0.0
    %1439 = vmatpush2.msra.mxu0 0.0
    %1440 = vmatprep.mubr.f32.mxu0 0.0
    %1441 = vmatmul.mubr.f32.gmra.mxu0 %v1371
    %v1442 = vpop.f32.mrf.mxu0
    %v1443 = vadd.f32 0.0, %v1442
    %v1444 = vpop.f32.mrf.mxu0
    %1445 = vmatprep.mubr.f32.mxu0 0.0
    %1446 = vmatmul.mubr.f32.gmra.mxu0 %v1374
    %v1447 = vpop.f32.mrf.mxu0
    %v1448 = vadd.f32 0.0, %v1447
    %v1449 = vpop.f32.mrf.mxu0
    %1450 = vdwg.mxu0
    %1451 = vrot.lane.b32.xlu0 %v357, 32
    %v1452 = vpop.permute.xlu0 %1451
    %1453 = vrot.lane.b32.xlu0 %v363, 32
    %v1454 = vpop.permute.xlu0 %1453
    %v1458 = vsel %vm736, %v1273, 0
    %v1461 = vsel %vm736, %v1274, 0
    %1463 = vmatprep.subr.mxu0 0.0
    %1464 = vmatpush1.msra.mxu0 0.0
    %1465 = vmatprep.subr.mxu0 0.0
    %1466 = vmatpush1.msra.mxu0 0.0
    %1467 = vmatprep.subr.mxu0 0.0
    %1468 = vmatpush1.msra.mxu0 0.0
    %1469 = vmatprep.subr.mxu0 0.0
    %1470 = vmatpush1.msra.mxu0 0.0
    %1471 = vmatprep.subr.mxu0 0.0
    %1472 = vmatpush1.msra.mxu0 0.0
    %1473 = vmatprep.subr.mxu0 0.0
    %1474 = vmatpush1.msra.mxu0 0.0
    %1475 = vmatprep.subr.mxu0 0.0
    %1476 = vmatpush1.msra.mxu0 0.0
    %1477 = vmatprep.subr.mxu0 0.0
    %1478 = vmatpush1.msra.mxu0 0.0
    %1479 = vmatprep.subr.mxu0 0.0
    %1480 = vmatpush1.msra.mxu0 0.0
    %1481 = vmatprep.subr.mxu0 0.0
    %1482 = vmatpush1.msra.mxu0 0.0
    %1483 = vmatprep.subr.mxu0 0.0
    %1484 = vmatpush1.msra.mxu0 0.0
    %1485 = vmatprep.subr.mxu0 0.0
    %1486 = vmatpush1.msra.mxu0 0.0
    %1487 = vmatprep.subr.mxu0 0.0
    %1488 = vmatpush1.msra.mxu0 0.0
    %1489 = vmatprep.subr.mxu0 0.0
    %1490 = vmatpush1.msra.mxu0 0.0
    %1491 = vmatprep.subr.mxu0 0.0
    %1492 = vmatpush1.msra.mxu0 %v1454
    %1493 = vmatprep.subr.mxu0 0.0
    %1494 = vmatpush1.msra.mxu0 %v1452
    %1495 = vmatprep.subr.mxu0 0.0
    %1496 = vmatpush2.msra.mxu0 0.0
    %1497 = vmatprep.subr.mxu0 0.0
    %1498 = vmatpush2.msra.mxu0 0.0
    %1499 = vmatprep.subr.mxu0 0.0
    %1500 = vmatpush2.msra.mxu0 0.0
    %1501 = vmatprep.subr.mxu0 0.0
    %1502 = vmatpush2.msra.mxu0 0.0
    %1503 = vmatprep.subr.mxu0 0.0
    %1504 = vmatpush2.msra.mxu0 0.0
    %1505 = vmatprep.subr.mxu0 0.0
    %1506 = vmatpush2.msra.mxu0 0.0
    %1507 = vmatprep.subr.mxu0 0.0
    %1508 = vmatpush2.msra.mxu0 0.0
    %1509 = vmatprep.subr.mxu0 0.0
    %1510 = vmatpush2.msra.mxu0 0.0
    %1511 = vmatprep.subr.mxu0 0.0
    %1512 = vmatpush2.msra.mxu0 0.0
    %1513 = vmatprep.subr.mxu0 0.0
    %1514 = vmatpush2.msra.mxu0 0.0
    %1515 = vmatprep.subr.mxu0 0.0
    %1516 = vmatpush2.msra.mxu0 0.0
    %1517 = vmatprep.subr.mxu0 0.0
    %1518 = vmatpush2.msra.mxu0 0.0
    %1519 = vmatprep.subr.mxu0 0.0
    %1520 = vmatpush2.msra.mxu0 0.0
    %1521 = vmatprep.subr.mxu0 0.0
    %1522 = vmatpush2.msra.mxu0 0.0
    %1523 = vmatprep.subr.mxu0 0.0
    %1524 = vmatpush2.msra.mxu0 0.0
    %1525 = vmatprep.subr.mxu0 0.0
    %1526 = vmatpush2.msra.mxu0 0.0
    %1527 = vmatprep.mubr.f32.mxu0 0.0
    %1528 = vmatmul.mubr.f32.gmra.mxu0 %v1458
    %v1529 = vpop.f32.mrf.mxu0
    %v1530 = vadd.f32 0.0, %v1529
    %v1531 = vpop.f32.mrf.mxu0
    %1532 = vmatprep.mubr.f32.mxu0 0.0
    %1533 = vmatmul.mubr.f32.gmra.mxu0 %v1461
    %v1534 = vpop.f32.mrf.mxu0
    %v1535 = vadd.f32 0.0, %v1534
    %v1536 = vpop.f32.mrf.mxu0
    %1537 = vdwg.mxu0
    %1538 = vrot.lane.b32.xlu0 %v369, 32
    %v1539 = vpop.permute.xlu0 %1538
    %1540 = vrot.lane.b32.xlu0 %v375, 32
    %v1541 = vpop.permute.xlu0 %1540
    %v1545 = vsel %vm736, %v1275, 0
    %v1548 = vsel %vm736, %v1276, 0
    %1550 = vmatprep.subr.mxu0 0.0
    %1551 = vmatpush1.msra.mxu0 0.0
    %1552 = vmatprep.subr.mxu0 0.0
    %1553 = vmatpush1.msra.mxu0 0.0
    %1554 = vmatprep.subr.mxu0 0.0
    %1555 = vmatpush1.msra.mxu0 0.0
    %1556 = vmatprep.subr.mxu0 0.0
    %1557 = vmatpush1.msra.mxu0 0.0
    %1558 = vmatprep.subr.mxu0 0.0
    %1559 = vmatpush1.msra.mxu0 0.0
    %1560 = vmatprep.subr.mxu0 0.0
    %1561 = vmatpush1.msra.mxu0 0.0
    %1562 = vmatprep.subr.mxu0 0.0
    %1563 = vmatpush1.msra.mxu0 0.0
    %1564 = vmatprep.subr.mxu0 0.0
    %1565 = vmatpush1.msra.mxu0 0.0
    %1566 = vmatprep.subr.mxu0 0.0
    %1567 = vmatpush1.msra.mxu0 0.0
    %1568 = vmatprep.subr.mxu0 0.0
    %1569 = vmatpush1.msra.mxu0 0.0
    %1570 = vmatprep.subr.mxu0 0.0
    %1571 = vmatpush1.msra.mxu0 0.0
    %1572 = vmatprep.subr.mxu0 0.0
    %1573 = vmatpush1.msra.mxu0 0.0
    %1574 = vmatprep.subr.mxu0 0.0
    %1575 = vmatpush1.msra.mxu0 0.0
    %1576 = vmatprep.subr.mxu0 0.0
    %1577 = vmatpush1.msra.mxu0 0.0
    %1578 = vmatprep.subr.mxu0 0.0
    %1579 = vmatpush1.msra.mxu0 %v1541
    %1580 = vmatprep.subr.mxu0 0.0
    %1581 = vmatpush1.msra.mxu0 %v1539
    %1582 = vmatprep.subr.mxu0 0.0
    %1583 = vmatpush2.msra.mxu0 0.0
    %1584 = vmatprep.subr.mxu0 0.0
    %1585 = vmatpush2.msra.mxu0 0.0
    %1586 = vmatprep.subr.mxu0 0.0
    %1587 = vmatpush2.msra.mxu0 0.0
    %1588 = vmatprep.subr.mxu0 0.0
    %1589 = vmatpush2.msra.mxu0 0.0
    %1590 = vmatprep.subr.mxu0 0.0
    %1591 = vmatpush2.msra.mxu0 0.0
    %1592 = vmatprep.subr.mxu0 0.0
    %1593 = vmatpush2.msra.mxu0 0.0
    %1594 = vmatprep.subr.mxu0 0.0
    %1595 = vmatpush2.msra.mxu0 0.0
    %1596 = vmatprep.subr.mxu0 0.0
    %1597 = vmatpush2.msra.mxu0 0.0
    %1598 = vmatprep.subr.mxu0 0.0
    %1599 = vmatpush2.msra.mxu0 0.0
    %1600 = vmatprep.subr.mxu0 0.0
    %1601 = vmatpush2.msra.mxu0 0.0
    %1602 = vmatprep.subr.mxu0 0.0
    %1603 = vmatpush2.msra.mxu0 0.0
    %1604 = vmatprep.subr.mxu0 0.0
    %1605 = vmatpush2.msra.mxu0 0.0
    %1606 = vmatprep.subr.mxu0 0.0
    %1607 = vmatpush2.msra.mxu0 0.0
    %1608 = vmatprep.subr.mxu0 0.0
    %1609 = vmatpush2.msra.mxu0 0.0
    %1610 = vmatprep.subr.mxu0 0.0
    %1611 = vmatpush2.msra.mxu0 0.0
    %1612 = vmatprep.subr.mxu0 0.0
    %1613 = vmatpush2.msra.mxu0 0.0
    %1614 = vmatprep.mubr.f32.mxu0 0.0
    %1615 = vmatmul.mubr.f32.gmra.mxu0 %v1545
    %v1616 = vpop.f32.mrf.mxu0
    %v1617 = vadd.f32 0.0, %v1616
    %v1618 = vpop.f32.mrf.mxu0
    %1619 = vmatprep.mubr.f32.mxu0 0.0
    %1620 = vmatmul.mubr.f32.gmra.mxu0 %v1548
    %v1621 = vpop.f32.mrf.mxu0
    %v1622 = vadd.f32 0.0, %v1621
    %v1623 = vpop.f32.mrf.mxu0
    %1624 = vdwg.mxu0
    %1625 = vrot.lane.b32.xlu0 %v333, 64
    %v1626 = vpop.permute.xlu0 %1625
    %1627 = vrot.lane.b32.xlu0 %v339, 64
    %v1628 = vpop.permute.xlu0 %1627
    %v1632 = vsel %vm736, %v817, 0
    %v1635 = vsel %vm736, %v818, 0
    %1637 = vmatprep.subr.mxu0 0.0
    %1638 = vmatpush1.msra.mxu0 0.0
    %1639 = vmatprep.subr.mxu0 0.0
    %1640 = vmatpush1.msra.mxu0 0.0
    %1641 = vmatprep.subr.mxu0 0.0
    %1642 = vmatpush1.msra.mxu0 0.0
    %1643 = vmatprep.subr.mxu0 0.0
    %1644 = vmatpush1.msra.mxu0 0.0
    %1645 = vmatprep.subr.mxu0 0.0
    %1646 = vmatpush1.msra.mxu0 0.0
    %1647 = vmatprep.subr.mxu0 0.0
    %1648 = vmatpush1.msra.mxu0 0.0
    %1649 = vmatprep.subr.mxu0 0.0
    %1650 = vmatpush1.msra.mxu0 0.0
    %1651 = vmatprep.subr.mxu0 0.0
    %1652 = vmatpush1.msra.mxu0 0.0
    %1653 = vmatprep.subr.mxu0 0.0
    %1654 = vmatpush1.msra.mxu0 0.0
    %1655 = vmatprep.subr.mxu0 0.0
    %1656 = vmatpush1.msra.mxu0 0.0
    %1657 = vmatprep.subr.mxu0 0.0
    %1658 = vmatpush1.msra.mxu0 0.0
    %1659 = vmatprep.subr.mxu0 0.0
    %1660 = vmatpush1.msra.mxu0 0.0
    %1661 = vmatprep.subr.mxu0 0.0
    %1662 = vmatpush1.msra.mxu0 0.0
    %1663 = vmatprep.subr.mxu0 0.0
    %1664 = vmatpush1.msra.mxu0 0.0
    %1665 = vmatprep.subr.mxu0 0.0
    %1666 = vmatpush1.msra.mxu0 %v1628
    %1667 = vmatprep.subr.mxu0 0.0
    %1668 = vmatpush1.msra.mxu0 %v1626
    %1669 = vmatprep.subr.mxu0 0.0
    %1670 = vmatpush2.msra.mxu0 0.0
    %1671 = vmatprep.subr.mxu0 0.0
    %1672 = vmatpush2.msra.mxu0 0.0
    %1673 = vmatprep.subr.mxu0 0.0
    %1674 = vmatpush2.msra.mxu0 0.0
    %1675 = vmatprep.subr.mxu0 0.0
    %1676 = vmatpush2.msra.mxu0 0.0
    %1677 = vmatprep.subr.mxu0 0.0
    %1678 = vmatpush2.msra.mxu0 0.0
    %1679 = vmatprep.subr.mxu0 0.0
    %1680 = vmatpush2.msra.mxu0 0.0
    %1681 = vmatprep.subr.mxu0 0.0
    %1682 = vmatpush2.msra.mxu0 0.0
    %1683 = vmatprep.subr.mxu0 0.0
    %1684 = vmatpush2.msra.mxu0 0.0
    %1685 = vmatprep.subr.mxu0 0.0
    %1686 = vmatpush2.msra.mxu0 0.0
    %1687 = vmatprep.subr.mxu0 0.0
    %1688 = vmatpush2.msra.mxu0 0.0
    %1689 = vmatprep.subr.mxu0 0.0
    %1690 = vmatpush2.msra.mxu0 0.0
    %1691 = vmatprep.subr.mxu0 0.0
    %1692 = vmatpush2.msra.mxu0 0.0
    %1693 = vmatprep.subr.mxu0 0.0
    %1694 = vmatpush2.msra.mxu0 0.0
    %1695 = vmatprep.subr.mxu0 0.0
    %1696 = vmatpush2.msra.mxu0 0.0
    %1697 = vmatprep.subr.mxu0 0.0
    %1698 = vmatpush2.msra.mxu0 0.0
    %1699 = vmatprep.subr.mxu0 0.0
    %1700 = vmatpush2.msra.mxu0 0.0
    %1701 = vmatprep.mubr.f32.mxu0 0.0
    %1702 = vmatmul.mubr.f32.gmra.mxu0 %v1632
    %v1703 = vpop.f32.mrf.mxu0
    %v1704 = vadd.f32 %v1356, %v1703
    %v1705 = vpop.f32.mrf.mxu0
    %1706 = vmatprep.mubr.f32.mxu0 0.0
    %1707 = vmatmul.mubr.f32.gmra.mxu0 %v1635
    %v1708 = vpop.f32.mrf.mxu0
    %v1709 = vadd.f32 %v1361, %v1708
    %v1710 = vpop.f32.mrf.mxu0
    %1711 = vdwg.mxu0
    %1712 = vrot.lane.b32.xlu0 %v345, 64
    %v1713 = vpop.permute.xlu0 %1712
    %1714 = vrot.lane.b32.xlu0 %v351, 64
    %v1715 = vpop.permute.xlu0 %1714
    %v1719 = vsel %vm736, %v819, 0
    %v1722 = vsel %vm736, %v820, 0
    %1724 = vmatprep.subr.mxu0 0.0
    %1725 = vmatpush1.msra.mxu0 0.0
    %1726 = vmatprep.subr.mxu0 0.0
    %1727 = vmatpush1.msra.mxu0 0.0
    %1728 = vmatprep.subr.mxu0 0.0
    %1729 = vmatpush1.msra.mxu0 0.0
    %1730 = vmatprep.subr.mxu0 0.0
    %1731 = vmatpush1.msra.mxu0 0.0
    %1732 = vmatprep.subr.mxu0 0.0
    %1733 = vmatpush1.msra.mxu0 0.0
    %1734 = vmatprep.subr.mxu0 0.0
    %1735 = vmatpush1.msra.mxu0 0.0
    %1736 = vmatprep.subr.mxu0 0.0
    %1737 = vmatpush1.msra.mxu0 0.0
    %1738 = vmatprep.subr.mxu0 0.0
    %1739 = vmatpush1.msra.mxu0 0.0
    %1740 = vmatprep.subr.mxu0 0.0
    %1741 = vmatpush1.msra.mxu0 0.0
    %1742 = vmatprep.subr.mxu0 0.0
    %1743 = vmatpush1.msra.mxu0 0.0
    %1744 = vmatprep.subr.mxu0 0.0
    %1745 = vmatpush1.msra.mxu0 0.0
    %1746 = vmatprep.subr.mxu0 0.0
    %1747 = vmatpush1.msra.mxu0 0.0
    %1748 = vmatprep.subr.mxu0 0.0
    %1749 = vmatpush1.msra.mxu0 0.0
    %1750 = vmatprep.subr.mxu0 0.0
    %1751 = vmatpush1.msra.mxu0 0.0
    %1752 = vmatprep.subr.mxu0 0.0
    %1753 = vmatpush1.msra.mxu0 %v1715
    %1754 = vmatprep.subr.mxu0 0.0
    %1755 = vmatpush1.msra.mxu0 %v1713
    %1756 = vmatprep.subr.mxu0 0.0
    %1757 = vmatpush2.msra.mxu0 0.0
    %1758 = vmatprep.subr.mxu0 0.0
    %1759 = vmatpush2.msra.mxu0 0.0
    %1760 = vmatprep.subr.mxu0 0.0
    %1761 = vmatpush2.msra.mxu0 0.0
    %1762 = vmatprep.subr.mxu0 0.0
    %1763 = vmatpush2.msra.mxu0 0.0
    %1764 = vmatprep.subr.mxu0 0.0
    %1765 = vmatpush2.msra.mxu0 0.0
    %1766 = vmatprep.subr.mxu0 0.0
    %1767 = vmatpush2.msra.mxu0 0.0
    %1768 = vmatprep.subr.mxu0 0.0
    %1769 = vmatpush2.msra.mxu0 0.0
    %1770 = vmatprep.subr.mxu0 0.0
    %1771 = vmatpush2.msra.mxu0 0.0
    %1772 = vmatprep.subr.mxu0 0.0
    %1773 = vmatpush2.msra.mxu0 0.0
    %1774 = vmatprep.subr.mxu0 0.0
    %1775 = vmatpush2.msra.mxu0 0.0
    %1776 = vmatprep.subr.mxu0 0.0
    %1777 = vmatpush2.msra.mxu0 0.0
    %1778 = vmatprep.subr.mxu0 0.0
    %1779 = vmatpush2.msra.mxu0 0.0
    %1780 = vmatprep.subr.mxu0 0.0
    %1781 = vmatpush2.msra.mxu0 0.0
    %1782 = vmatprep.subr.mxu0 0.0
    %1783 = vmatpush2.msra.mxu0 0.0
    %1784 = vmatprep.subr.mxu0 0.0
    %1785 = vmatpush2.msra.mxu0 0.0
    %1786 = vmatprep.subr.mxu0 0.0
    %1787 = vmatpush2.msra.mxu0 0.0
    %1788 = vmatprep.mubr.f32.mxu0 0.0
    %1789 = vmatmul.mubr.f32.gmra.mxu0 %v1719
    %v1790 = vpop.f32.mrf.mxu0
    %v1791 = vadd.f32 %v1443, %v1790
    %v1792 = vpop.f32.mrf.mxu0
    %1793 = vmatprep.mubr.f32.mxu0 0.0
    %1794 = vmatmul.mubr.f32.gmra.mxu0 %v1722
    %v1795 = vpop.f32.mrf.mxu0
    %v1796 = vadd.f32 %v1448, %v1795
    %v1797 = vpop.f32.mrf.mxu0
    %1798 = vdwg.mxu0
    %1799 = vrot.lane.b32.xlu0 %v357, 64
    %v1800 = vpop.permute.xlu0 %1799
    %1801 = vrot.lane.b32.xlu0 %v363, 64
    %v1802 = vpop.permute.xlu0 %1801
    %v1806 = vsel %vm736, %v821, 0
    %v1809 = vsel %vm736, %v822, 0
    %1811 = vmatprep.subr.mxu0 0.0
    %1812 = vmatpush1.msra.mxu0 0.0
    %1813 = vmatprep.subr.mxu0 0.0
    %1814 = vmatpush1.msra.mxu0 0.0
    %1815 = vmatprep.subr.mxu0 0.0
    %1816 = vmatpush1.msra.mxu0 0.0
    %1817 = vmatprep.subr.mxu0 0.0
    %1818 = vmatpush1.msra.mxu0 0.0
    %1819 = vmatprep.subr.mxu0 0.0
    %1820 = vmatpush1.msra.mxu0 0.0
    %1821 = vmatprep.subr.mxu0 0.0
    %1822 = vmatpush1.msra.mxu0 0.0
    %1823 = vmatprep.subr.mxu0 0.0
    %1824 = vmatpush1.msra.mxu0 0.0
    %1825 = vmatprep.subr.mxu0 0.0
    %1826 = vmatpush1.msra.mxu0 0.0
    %1827 = vmatprep.subr.mxu0 0.0
    %1828 = vmatpush1.msra.mxu0 0.0
    %1829 = vmatprep.subr.mxu0 0.0
    %1830 = vmatpush1.msra.mxu0 0.0
    %1831 = vmatprep.subr.mxu0 0.0
    %1832 = vmatpush1.msra.mxu0 0.0
    %1833 = vmatprep.subr.mxu0 0.0
    %1834 = vmatpush1.msra.mxu0 0.0
    %1835 = vmatprep.subr.mxu0 0.0
    %1836 = vmatpush1.msra.mxu0 0.0
    %1837 = vmatprep.subr.mxu0 0.0
    %1838 = vmatpush1.msra.mxu0 0.0
    %1839 = vmatprep.subr.mxu0 0.0
    %1840 = vmatpush1.msra.mxu0 %v1802
    %1841 = vmatprep.subr.mxu0 0.0
    %1842 = vmatpush1.msra.mxu0 %v1800
    %1843 = vmatprep.subr.mxu0 0.0
    %1844 = vmatpush2.msra.mxu0 0.0
    %1845 = vmatprep.subr.mxu0 0.0
    %1846 = vmatpush2.msra.mxu0 0.0
    %1847 = vmatprep.subr.mxu0 0.0
    %1848 = vmatpush2.msra.mxu0 0.0
    %1849 = vmatprep.subr.mxu0 0.0
    %1850 = vmatpush2.msra.mxu0 0.0
    %1851 = vmatprep.subr.mxu0 0.0
    %1852 = vmatpush2.msra.mxu0 0.0
    %1853 = vmatprep.subr.mxu0 0.0
    %1854 = vmatpush2.msra.mxu0 0.0
    %1855 = vmatprep.subr.mxu0 0.0
    %1856 = vmatpush2.msra.mxu0 0.0
    %1857 = vmatprep.subr.mxu0 0.0
    %1858 = vmatpush2.msra.mxu0 0.0
    %1859 = vmatprep.subr.mxu0 0.0
    %1860 = vmatpush2.msra.mxu0 0.0
    %1861 = vmatprep.subr.mxu0 0.0
    %1862 = vmatpush2.msra.mxu0 0.0
    %1863 = vmatprep.subr.mxu0 0.0
    %1864 = vmatpush2.msra.mxu0 0.0
    %1865 = vmatprep.subr.mxu0 0.0
    %1866 = vmatpush2.msra.mxu0 0.0
    %1867 = vmatprep.subr.mxu0 0.0
    %1868 = vmatpush2.msra.mxu0 0.0
    %1869 = vmatprep.subr.mxu0 0.0
    %1870 = vmatpush2.msra.mxu0 0.0
    %1871 = vmatprep.subr.mxu0 0.0
    %1872 = vmatpush2.msra.mxu0 0.0
    %1873 = vmatprep.subr.mxu0 0.0
    %1874 = vmatpush2.msra.mxu0 0.0
    %1875 = vmatprep.mubr.f32.mxu0 0.0
    %1876 = vmatmul.mubr.f32.gmra.mxu0 %v1806
    %v1877 = vpop.f32.mrf.mxu0
    %v1878 = vadd.f32 %v1530, %v1877
    %v1879 = vpop.f32.mrf.mxu0
    %1880 = vmatprep.mubr.f32.mxu0 0.0
    %1881 = vmatmul.mubr.f32.gmra.mxu0 %v1809
    %v1882 = vpop.f32.mrf.mxu0
    %v1883 = vadd.f32 %v1535, %v1882
    %v1884 = vpop.f32.mrf.mxu0
    %1885 = vdwg.mxu0
    %1886 = vrot.lane.b32.xlu0 %v369, 64
    %v1887 = vpop.permute.xlu0 %1886
    %1888 = vrot.lane.b32.xlu0 %v375, 64
    %v1889 = vpop.permute.xlu0 %1888
    %v1893 = vsel %vm736, %v823, 0
    %v1896 = vsel %vm736, %v824, 0
    %1898 = vmatprep.subr.mxu0 0.0
    %1899 = vmatpush1.msra.mxu0 0.0
    %1900 = vmatprep.subr.mxu0 0.0
    %1901 = vmatpush1.msra.mxu0 0.0
    %1902 = vmatprep.subr.mxu0 0.0
    %1903 = vmatpush1.msra.mxu0 0.0
    %1904 = vmatprep.subr.mxu0 0.0
    %1905 = vmatpush1.msra.mxu0 0.0
    %1906 = vmatprep.subr.mxu0 0.0
    %1907 = vmatpush1.msra.mxu0 0.0
    %1908 = vmatprep.subr.mxu0 0.0
    %1909 = vmatpush1.msra.mxu0 0.0
    %1910 = vmatprep.subr.mxu0 0.0
    %1911 = vmatpush1.msra.mxu0 0.0
    %1912 = vmatprep.subr.mxu0 0.0
    %1913 = vmatpush1.msra.mxu0 0.0
    %1914 = vmatprep.subr.mxu0 0.0
    %1915 = vmatpush1.msra.mxu0 0.0
    %1916 = vmatprep.subr.mxu0 0.0
    %1917 = vmatpush1.msra.mxu0 0.0
    %1918 = vmatprep.subr.mxu0 0.0
    %1919 = vmatpush1.msra.mxu0 0.0
    %1920 = vmatprep.subr.mxu0 0.0
    %1921 = vmatpush1.msra.mxu0 0.0
    %1922 = vmatprep.subr.mxu0 0.0
    %1923 = vmatpush1.msra.mxu0 0.0
    %1924 = vmatprep.subr.mxu0 0.0
    %1925 = vmatpush1.msra.mxu0 0.0
    %1926 = vmatprep.subr.mxu0 0.0
    %1927 = vmatpush1.msra.mxu0 %v1889
    %1928 = vmatprep.subr.mxu0 0.0
    %1929 = vmatpush1.msra.mxu0 %v1887
    %1930 = vmatprep.subr.mxu0 0.0
    %1931 = vmatpush2.msra.mxu0 0.0
    %1932 = vmatprep.subr.mxu0 0.0
    %1933 = vmatpush2.msra.mxu0 0.0
    %1934 = vmatprep.subr.mxu0 0.0
    %1935 = vmatpush2.msra.mxu0 0.0
    %1936 = vmatprep.subr.mxu0 0.0
    %1937 = vmatpush2.msra.mxu0 0.0
    %1938 = vmatprep.subr.mxu0 0.0
    %1939 = vmatpush2.msra.mxu0 0.0
    %1940 = vmatprep.subr.mxu0 0.0
    %1941 = vmatpush2.msra.mxu0 0.0
    %1942 = vmatprep.subr.mxu0 0.0
    %1943 = vmatpush2.msra.mxu0 0.0
    %1944 = vmatprep.subr.mxu0 0.0
    %1945 = vmatpush2.msra.mxu0 0.0
    %1946 = vmatprep.subr.mxu0 0.0
    %1947 = vmatpush2.msra.mxu0 0.0
    %1948 = vmatprep.subr.mxu0 0.0
    %1949 = vmatpush2.msra.mxu0 0.0
    %1950 = vmatprep.subr.mxu0 0.0
    %1951 = vmatpush2.msra.mxu0 0.0
    %1952 = vmatprep.subr.mxu0 0.0
    %1953 = vmatpush2.msra.mxu0 0.0
    %1954 = vmatprep.subr.mxu0 0.0
    %1955 = vmatpush2.msra.mxu0 0.0
    %1956 = vmatprep.subr.mxu0 0.0
    %1957 = vmatpush2.msra.mxu0 0.0
    %1958 = vmatprep.subr.mxu0 0.0
    %1959 = vmatpush2.msra.mxu0 0.0
    %1960 = vmatprep.subr.mxu0 0.0
    %1961 = vmatpush2.msra.mxu0 0.0
    %1962 = vmatprep.mubr.f32.mxu0 0.0
    %1963 = vmatmul.mubr.f32.gmra.mxu0 %v1893
    %v1964 = vpop.f32.mrf.mxu0
    %v1965 = vadd.f32 %v1617, %v1964
    %v1966 = vpop.f32.mrf.mxu0
    %1967 = vmatprep.mubr.f32.mxu0 0.0
    %1968 = vmatmul.mubr.f32.gmra.mxu0 %v1896
    %v1969 = vpop.f32.mrf.mxu0
    %v1970 = vadd.f32 %v1622, %v1969
    %v1971 = vpop.f32.mrf.mxu0
    %1972 = vdwg.mxu0
    %1973 = vrot.lane.b32.xlu0 %v333, 112
    %v1974 = vpop.permute.xlu0 %1973
    %1975 = vrot.lane.b32.xlu0 %v339, 112
    %v1976 = vpop.permute.xlu0 %1975
    %1977 = vrot.lane.b32.xlu0 %v333, 80
    %v1978 = vpop.permute.xlu0 %1977
    %1979 = vrot.lane.b32.xlu0 %v339, 80
    %v1980 = vpop.permute.xlu0 %1979
    %v1981 = vsel %vm385, %v1974, 0
    %v1983 = vsel %vm385, %v1976, 0
    %v1985 = vsel %vm385, %v1978, 0
    %v1987 = vsel %vm385, %v1980, 0
    %1989 = vmatprep.subr.mxu0 0.0
    %1990 = vmatpush1.xpose.msra.mxu0 0.0
    %1991 = vmatprep.subr.mxu0 0.0
    %1992 = vmatpush1.xpose.msra.mxu0 0.0
    %1993 = vmatprep.subr.mxu0 0.0
    %1994 = vmatpush1.xpose.msra.mxu0 0.0
    %1995 = vmatprep.subr.mxu0 0.0
    %1996 = vmatpush1.xpose.msra.mxu0 0.0
    %1997 = vmatprep.subr.mxu0 0.0
    %1998 = vmatpush1.xpose.msra.mxu0 0.0
    %1999 = vmatprep.subr.mxu0 0.0
    %2000 = vmatpush1.xpose.msra.mxu0 0.0
    %2001 = vmatprep.subr.mxu0 0.0
    %2002 = vmatpush1.xpose.msra.mxu0 0.0
    %2003 = vmatprep.subr.mxu0 0.0
    %2004 = vmatpush1.xpose.msra.mxu0 0.0
    %2005 = vmatprep.subr.mxu0 0.0
    %2006 = vmatpush1.xpose.msra.mxu0 0.0
    %2007 = vmatprep.subr.mxu0 0.0
    %2008 = vmatpush1.xpose.msra.mxu0 0.0
    %2009 = vmatprep.subr.mxu0 0.0
    %2010 = vmatpush1.xpose.msra.mxu0 0.0
    %2011 = vmatprep.subr.mxu0 0.0
    %2012 = vmatpush1.xpose.msra.mxu0 0.0
    %2013 = vmatprep.subr.mxu0 0.0
    %2014 = vmatpush1.xpose.msra.mxu0 0.0
    %2015 = vmatprep.subr.mxu0 0.0
    %2016 = vmatpush1.xpose.msra.mxu0 0.0
    %2017 = vmatprep.subr.mxu0 0.0
    %2018 = vmatpush1.xpose.msra.mxu0 %v1987
    %2019 = vmatprep.subr.mxu0 0.0
    %2020 = vmatpush1.xpose.msra.mxu0 %v1985
    %2021 = vmatprep.subr.mxu0 0.0
    %2022 = vmatpush2.xpose.msra.mxu0 0.0
    %2023 = vmatprep.subr.mxu0 0.0
    %2024 = vmatpush2.xpose.msra.mxu0 0.0
    %2025 = vmatprep.subr.mxu0 0.0
    %2026 = vmatpush2.xpose.msra.mxu0 0.0
    %2027 = vmatprep.subr.mxu0 0.0
    %2028 = vmatpush2.xpose.msra.mxu0 0.0
    %2029 = vmatprep.subr.mxu0 0.0
    %2030 = vmatpush2.xpose.msra.mxu0 0.0
    %2031 = vmatprep.subr.mxu0 0.0
    %2032 = vmatpush2.xpose.msra.mxu0 0.0
    %2033 = vmatprep.subr.mxu0 0.0
    %2034 = vmatpush2.xpose.msra.mxu0 0.0
    %2035 = vmatprep.subr.mxu0 0.0
    %2036 = vmatpush2.xpose.msra.mxu0 0.0
    %2037 = vmatprep.subr.mxu0 0.0
    %2038 = vmatpush2.xpose.msra.mxu0 0.0
    %2039 = vmatprep.subr.mxu0 0.0
    %2040 = vmatpush2.xpose.msra.mxu0 0.0
    %2041 = vmatprep.subr.mxu0 0.0
    %2042 = vmatpush2.xpose.msra.mxu0 0.0
    %2043 = vmatprep.subr.mxu0 0.0
    %2044 = vmatpush2.xpose.msra.mxu0 0.0
    %2045 = vmatprep.subr.mxu0 0.0
    %2046 = vmatpush2.xpose.msra.mxu0 0.0
    %2047 = vmatprep.subr.mxu0 0.0
    %2048 = vmatpush2.xpose.msra.mxu0 0.0
    %2049 = vmatprep.subr.mxu0 0.0
    %2050 = vmatpush2.xpose.msra.mxu0 0.0
    %2051 = vmatprep.subr.mxu0 0.0
    %2052 = vmatpush2.xpose.msra.mxu0 0.0
    %2053 = vmatprep.mubr.f32.mxu0 0.0
    %2054 = vmatmul.mubr.f32.gmra.mxu0 %v1981
    %v2055 = vpop.f32.mrf.mxu0
    %v2056 = vadd.f32 %v94, %v2055
    %v2057 = vpop.f32.mrf.mxu0
    %2058 = vmatprep.mubr.f32.mxu0 0.0
    %2059 = vmatmul.mubr.f32.gmra.mxu0 %v1983
    %v2060 = vpop.f32.mrf.mxu0
    %v2061 = vadd.f32 %v94, %v2060
    %v2062 = vpop.f32.mrf.mxu0
    %2063 = vdwg.mxu0
    %2064 = vrot.lane.b32.xlu0 %v345, 112
    %v2065 = vpop.permute.xlu0 %2064
    %2066 = vrot.lane.b32.xlu0 %v351, 112
    %v2067 = vpop.permute.xlu0 %2066
    %2068 = vrot.lane.b32.xlu0 %v345, 80
    %v2069 = vpop.permute.xlu0 %2068
    %2070 = vrot.lane.b32.xlu0 %v351, 80
    %v2071 = vpop.permute.xlu0 %2070
    %v2072 = vsel %vm385, %v2065, 0
    %v2074 = vsel %vm385, %v2067, 0
    %v2076 = vsel %vm385, %v2069, 0
    %v2078 = vsel %vm385, %v2071, 0
    %2080 = vmatprep.subr.mxu0 0.0
    %2081 = vmatpush1.xpose.msra.mxu0 0.0
    %2082 = vmatprep.subr.mxu0 0.0
    %2083 = vmatpush1.xpose.msra.mxu0 0.0
    %2084 = vmatprep.subr.mxu0 0.0
    %2085 = vmatpush1.xpose.msra.mxu0 0.0
    %2086 = vmatprep.subr.mxu0 0.0
    %2087 = vmatpush1.xpose.msra.mxu0 0.0
    %2088 = vmatprep.subr.mxu0 0.0
    %2089 = vmatpush1.xpose.msra.mxu0 0.0
    %2090 = vmatprep.subr.mxu0 0.0
    %2091 = vmatpush1.xpose.msra.mxu0 0.0
    %2092 = vmatprep.subr.mxu0 0.0
    %2093 = vmatpush1.xpose.msra.mxu0 0.0
    %2094 = vmatprep.subr.mxu0 0.0
    %2095 = vmatpush1.xpose.msra.mxu0 0.0
    %2096 = vmatprep.subr.mxu0 0.0
    %2097 = vmatpush1.xpose.msra.mxu0 0.0
    %2098 = vmatprep.subr.mxu0 0.0
    %2099 = vmatpush1.xpose.msra.mxu0 0.0
    %2100 = vmatprep.subr.mxu0 0.0
    %2101 = vmatpush1.xpose.msra.mxu0 0.0
    %2102 = vmatprep.subr.mxu0 0.0
    %2103 = vmatpush1.xpose.msra.mxu0 0.0
    %2104 = vmatprep.subr.mxu0 0.0
    %2105 = vmatpush1.xpose.msra.mxu0 0.0
    %2106 = vmatprep.subr.mxu0 0.0
    %2107 = vmatpush1.xpose.msra.mxu0 0.0
    %2108 = vmatprep.subr.mxu0 0.0
    %2109 = vmatpush1.xpose.msra.mxu0 %v2078
    %2110 = vmatprep.subr.mxu0 0.0
    %2111 = vmatpush1.xpose.msra.mxu0 %v2076
    %2112 = vmatprep.subr.mxu0 0.0
    %2113 = vmatpush2.xpose.msra.mxu0 0.0
    %2114 = vmatprep.subr.mxu0 0.0
    %2115 = vmatpush2.xpose.msra.mxu0 0.0
    %2116 = vmatprep.subr.mxu0 0.0
    %2117 = vmatpush2.xpose.msra.mxu0 0.0
    %2118 = vmatprep.subr.mxu0 0.0
    %2119 = vmatpush2.xpose.msra.mxu0 0.0
    %2120 = vmatprep.subr.mxu0 0.0
    %2121 = vmatpush2.xpose.msra.mxu0 0.0
    %2122 = vmatprep.subr.mxu0 0.0
    %2123 = vmatpush2.xpose.msra.mxu0 0.0
    %2124 = vmatprep.subr.mxu0 0.0
    %2125 = vmatpush2.xpose.msra.mxu0 0.0
    %2126 = vmatprep.subr.mxu0 0.0
    %2127 = vmatpush2.xpose.msra.mxu0 0.0
    %2128 = vmatprep.subr.mxu0 0.0
    %2129 = vmatpush2.xpose.msra.mxu0 0.0
    %2130 = vmatprep.subr.mxu0 0.0
    %2131 = vmatpush2.xpose.msra.mxu0 0.0
    %2132 = vmatprep.subr.mxu0 0.0
    %2133 = vmatpush2.xpose.msra.mxu0 0.0
    %2134 = vmatprep.subr.mxu0 0.0
    %2135 = vmatpush2.xpose.msra.mxu0 0.0
    %2136 = vmatprep.subr.mxu0 0.0
    %2137 = vmatpush2.xpose.msra.mxu0 0.0
    %2138 = vmatprep.subr.mxu0 0.0
    %2139 = vmatpush2.xpose.msra.mxu0 0.0
    %2140 = vmatprep.subr.mxu0 0.0
    %2141 = vmatpush2.xpose.msra.mxu0 0.0
    %2142 = vmatprep.subr.mxu0 0.0
    %2143 = vmatpush2.xpose.msra.mxu0 0.0
    %2144 = vmatprep.mubr.f32.mxu0 0.0
    %2145 = vmatmul.mubr.f32.gmra.mxu0 %v2072
    %v2146 = vpop.f32.mrf.mxu0
    %v2147 = vadd.f32 %v94, %v2146
    %v2148 = vpop.f32.mrf.mxu0
    %2149 = vmatprep.mubr.f32.mxu0 0.0
    %2150 = vmatmul.mubr.f32.gmra.mxu0 %v2074
    %v2151 = vpop.f32.mrf.mxu0
    %v2152 = vadd.f32 %v94, %v2151
    %v2153 = vpop.f32.mrf.mxu0
    %2154 = vdwg.mxu0
    %2155 = vrot.lane.b32.xlu0 %v357, 112
    %v2156 = vpop.permute.xlu0 %2155
    %2157 = vrot.lane.b32.xlu0 %v363, 112
    %v2158 = vpop.permute.xlu0 %2157
    %2159 = vrot.lane.b32.xlu0 %v357, 80
    %v2160 = vpop.permute.xlu0 %2159
    %2161 = vrot.lane.b32.xlu0 %v363, 80
    %v2162 = vpop.permute.xlu0 %2161
    %v2163 = vsel %vm385, %v2156, 0
    %v2165 = vsel %vm385, %v2158, 0
    %v2167 = vsel %vm385, %v2160, 0
    %v2169 = vsel %vm385, %v2162, 0
    %2171 = vmatprep.subr.mxu0 0.0
    %2172 = vmatpush1.xpose.msra.mxu0 0.0
    %2173 = vmatprep.subr.mxu0 0.0
    %2174 = vmatpush1.xpose.msra.mxu0 0.0
    %2175 = vmatprep.subr.mxu0 0.0
    %2176 = vmatpush1.xpose.msra.mxu0 0.0
    %2177 = vmatprep.subr.mxu0 0.0
    %2178 = vmatpush1.xpose.msra.mxu0 0.0
    %2179 = vmatprep.subr.mxu0 0.0
    %2180 = vmatpush1.xpose.msra.mxu0 0.0
    %2181 = vmatprep.subr.mxu0 0.0
    %2182 = vmatpush1.xpose.msra.mxu0 0.0
    %2183 = vmatprep.subr.mxu0 0.0
    %2184 = vmatpush1.xpose.msra.mxu0 0.0
    %2185 = vmatprep.subr.mxu0 0.0
    %2186 = vmatpush1.xpose.msra.mxu0 0.0
    %2187 = vmatprep.subr.mxu0 0.0
    %2188 = vmatpush1.xpose.msra.mxu0 0.0
    %2189 = vmatprep.subr.mxu0 0.0
    %2190 = vmatpush1.xpose.msra.mxu0 0.0
    %2191 = vmatprep.subr.mxu0 0.0
    %2192 = vmatpush1.xpose.msra.mxu0 0.0
    %2193 = vmatprep.subr.mxu0 0.0
    %2194 = vmatpush1.xpose.msra.mxu0 0.0
    %2195 = vmatprep.subr.mxu0 0.0
    %2196 = vmatpush1.xpose.msra.mxu0 0.0
    %2197 = vmatprep.subr.mxu0 0.0
    %2198 = vmatpush1.xpose.msra.mxu0 0.0
    %2199 = vmatprep.subr.mxu0 0.0
    %2200 = vmatpush1.xpose.msra.mxu0 %v2169
    %2201 = vmatprep.subr.mxu0 0.0
    %2202 = vmatpush1.xpose.msra.mxu0 %v2167
    %2203 = vmatprep.subr.mxu0 0.0
    %2204 = vmatpush2.xpose.msra.mxu0 0.0
    %2205 = vmatprep.subr.mxu0 0.0
    %2206 = vmatpush2.xpose.msra.mxu0 0.0
    %2207 = vmatprep.subr.mxu0 0.0
    %2208 = vmatpush2.xpose.msra.mxu0 0.0
    %2209 = vmatprep.subr.mxu0 0.0
    %2210 = vmatpush2.xpose.msra.mxu0 0.0
    %2211 = vmatprep.subr.mxu0 0.0
    %2212 = vmatpush2.xpose.msra.mxu0 0.0
    %2213 = vmatprep.subr.mxu0 0.0
    %2214 = vmatpush2.xpose.msra.mxu0 0.0
    %2215 = vmatprep.subr.mxu0 0.0
    %2216 = vmatpush2.xpose.msra.mxu0 0.0
    %2217 = vmatprep.subr.mxu0 0.0
    %2218 = vmatpush2.xpose.msra.mxu0 0.0
    %2219 = vmatprep.subr.mxu0 0.0
    %2220 = vmatpush2.xpose.msra.mxu0 0.0
    %2221 = vmatprep.subr.mxu0 0.0
    %2222 = vmatpush2.xpose.msra.mxu0 0.0
    %2223 = vmatprep.subr.mxu0 0.0
    %2224 = vmatpush2.xpose.msra.mxu0 0.0
    %2225 = vmatprep.subr.mxu0 0.0
    %2226 = vmatpush2.xpose.msra.mxu0 0.0
    %2227 = vmatprep.subr.mxu0 0.0
    %2228 = vmatpush2.xpose.msra.mxu0 0.0
    %2229 = vmatprep.subr.mxu0 0.0
    %2230 = vmatpush2.xpose.msra.mxu0 0.0
    %2231 = vmatprep.subr.mxu0 0.0
    %2232 = vmatpush2.xpose.msra.mxu0 0.0
    %2233 = vmatprep.subr.mxu0 0.0
    %2234 = vmatpush2.xpose.msra.mxu0 0.0
    %2235 = vmatprep.mubr.f32.mxu0 0.0
    %2236 = vmatmul.mubr.f32.gmra.mxu0 %v2163
    %v2237 = vpop.f32.mrf.mxu0
    %v2238 = vadd.f32 %v94, %v2237
    %v2239 = vpop.f32.mrf.mxu0
    %2240 = vmatprep.mubr.f32.mxu0 0.0
    %2241 = vmatmul.mubr.f32.gmra.mxu0 %v2165
    %v2242 = vpop.f32.mrf.mxu0
    %v2243 = vadd.f32 %v94, %v2242
    %v2244 = vpop.f32.mrf.mxu0
    %2245 = vdwg.mxu0
    %2246 = vrot.lane.b32.xlu0 %v369, 112
    %v2247 = vpop.permute.xlu0 %2246
    %2248 = vrot.lane.b32.xlu0 %v375, 112
    %v2249 = vpop.permute.xlu0 %2248
    %2250 = vrot.lane.b32.xlu0 %v369, 80
    %v2251 = vpop.permute.xlu0 %2250
    %2252 = vrot.lane.b32.xlu0 %v375, 80
    %v2253 = vpop.permute.xlu0 %2252
    %v2254 = vsel %vm385, %v2247, 0
    %v2256 = vsel %vm385, %v2249, 0
    %v2258 = vsel %vm385, %v2251, 0
    %v2260 = vsel %vm385, %v2253, 0
    %2262 = vmatprep.subr.mxu0 0.0
    %2263 = vmatpush1.xpose.msra.mxu0 0.0
    %2264 = vmatprep.subr.mxu0 0.0
    %2265 = vmatpush1.xpose.msra.mxu0 0.0
    %2266 = vmatprep.subr.mxu0 0.0
    %2267 = vmatpush1.xpose.msra.mxu0 0.0
    %2268 = vmatprep.subr.mxu0 0.0
    %2269 = vmatpush1.xpose.msra.mxu0 0.0
    %2270 = vmatprep.subr.mxu0 0.0
    %2271 = vmatpush1.xpose.msra.mxu0 0.0
    %2272 = vmatprep.subr.mxu0 0.0
    %2273 = vmatpush1.xpose.msra.mxu0 0.0
    %2274 = vmatprep.subr.mxu0 0.0
    %2275 = vmatpush1.xpose.msra.mxu0 0.0
    %2276 = vmatprep.subr.mxu0 0.0
    %2277 = vmatpush1.xpose.msra.mxu0 0.0
    %2278 = vmatprep.subr.mxu0 0.0
    %2279 = vmatpush1.xpose.msra.mxu0 0.0
    %2280 = vmatprep.subr.mxu0 0.0
    %2281 = vmatpush1.xpose.msra.mxu0 0.0
    %2282 = vmatprep.subr.mxu0 0.0
    %2283 = vmatpush1.xpose.msra.mxu0 0.0
    %2284 = vmatprep.subr.mxu0 0.0
    %2285 = vmatpush1.xpose.msra.mxu0 0.0
    %2286 = vmatprep.subr.mxu0 0.0
    %2287 = vmatpush1.xpose.msra.mxu0 0.0
    %2288 = vmatprep.subr.mxu0 0.0
    %2289 = vmatpush1.xpose.msra.mxu0 0.0
    %2290 = vmatprep.subr.mxu0 0.0
    %2291 = vmatpush1.xpose.msra.mxu0 %v2260
    %2292 = vmatprep.subr.mxu0 0.0
    %2293 = vmatpush1.xpose.msra.mxu0 %v2258
    %2294 = vmatprep.subr.mxu0 0.0
    %2295 = vmatpush2.xpose.msra.mxu0 0.0
    %2296 = vmatprep.subr.mxu0 0.0
    %2297 = vmatpush2.xpose.msra.mxu0 0.0
    %2298 = vmatprep.subr.mxu0 0.0
    %2299 = vmatpush2.xpose.msra.mxu0 0.0
    %2300 = vmatprep.subr.mxu0 0.0
    %2301 = vmatpush2.xpose.msra.mxu0 0.0
    %2302 = vmatprep.subr.mxu0 0.0
    %2303 = vmatpush2.xpose.msra.mxu0 0.0
    %2304 = vmatprep.subr.mxu0 0.0
    %2305 = vmatpush2.xpose.msra.mxu0 0.0
    %2306 = vmatprep.subr.mxu0 0.0
    %2307 = vmatpush2.xpose.msra.mxu0 0.0
    %2308 = vmatprep.subr.mxu0 0.0
    %2309 = vmatpush2.xpose.msra.mxu0 0.0
    %2310 = vmatprep.subr.mxu0 0.0
    %2311 = vmatpush2.xpose.msra.mxu0 0.0
    %2312 = vmatprep.subr.mxu0 0.0
    %2313 = vmatpush2.xpose.msra.mxu0 0.0
    %2314 = vmatprep.subr.mxu0 0.0
    %2315 = vmatpush2.xpose.msra.mxu0 0.0
    %2316 = vmatprep.subr.mxu0 0.0
    %2317 = vmatpush2.xpose.msra.mxu0 0.0
    %2318 = vmatprep.subr.mxu0 0.0
    %2319 = vmatpush2.xpose.msra.mxu0 0.0
    %2320 = vmatprep.subr.mxu0 0.0
    %2321 = vmatpush2.xpose.msra.mxu0 0.0
    %2322 = vmatprep.subr.mxu0 0.0
    %2323 = vmatpush2.xpose.msra.mxu0 0.0
    %2324 = vmatprep.subr.mxu0 0.0
    %2325 = vmatpush2.xpose.msra.mxu0 0.0
    %2326 = vmatprep.mubr.f32.mxu0 0.0
    %2327 = vmatmul.mubr.f32.gmra.mxu0 %v2254
    %v2328 = vpop.f32.mrf.mxu0
    %v2329 = vadd.f32 %v94, %v2328
    %v2330 = vpop.f32.mrf.mxu0
    %2331 = vmatprep.mubr.f32.mxu0 0.0
    %2332 = vmatmul.mubr.f32.gmra.mxu0 %v2256
    %v2333 = vpop.f32.mrf.mxu0
    %v2334 = vadd.f32 %v94, %v2333
    %v2335 = vpop.f32.mrf.mxu0
    %2336 = vdwg.mxu0
    %v2337 = vsel %vm736, %v2056, -inf
    %2338 = vmax.xlane.f32.xlu0 %v2337
    %v2339 = vpop.xlane.xlu0 %2338
    %v2340 = vsel %vm736, %v2061, -inf
    %2341 = vmax.xlane.f32.xlu0 %v2340
    %v2342 = vpop.xlane.xlu0 %2341
    %v2343 = vsel %vm736, %v2147, -inf
    %2344 = vmax.xlane.f32.xlu0 %v2343
    %v2345 = vpop.xlane.xlu0 %2344
    %v2346 = vsel %vm736, %v2152, -inf
    %2347 = vmax.xlane.f32.xlu0 %v2346
    %v2348 = vpop.xlane.xlu0 %2347
    %v2349 = vsel %vm736, %v2238, -inf
    %2350 = vmax.xlane.f32.xlu0 %v2349
    %v2351 = vpop.xlane.xlu0 %2350
    %v2352 = vsel %vm736, %v2243, -inf
    %2353 = vmax.xlane.f32.xlu0 %v2352
    %v2354 = vpop.xlane.xlu0 %2353
    %v2355 = vsel %vm736, %v2329, -inf
    %2356 = vmax.xlane.f32.xlu0 %v2355
    %v2357 = vpop.xlane.xlu0 %2356
    %v2358 = vsel %vm736, %v2334, -inf
    %2359 = vmax.xlane.f32.xlu0 %v2358
    %v2360 = vpop.xlane.xlu0 %2359
    %v2361 = vsub.f32 %v2056, %v2339
    %v2362 = vsub.f32 %v2061, %v2342
    %v2363 = vsub.f32 %v2147, %v2345
    %v2364 = vsub.f32 %v2152, %v2348
    %v2365 = vsub.f32 %v2238, %v2351
    %v2366 = vsub.f32 %v2243, %v2354
    %v2367 = vsub.f32 %v2329, %v2357
    %v2368 = vsub.f32 %v2334, %v2360
    %v2369 = vmul.f32 %v2361, 1.442695
    %v2370 = vpow.pop %v2369
    %v2371 = vmul.f32 %v2362, 1.442695
    %v2372 = vpow.pop %v2371
    %v2373 = vmul.f32 %v2363, 1.442695
    %v2374 = vpow.pop %v2373
    %v2375 = vmul.f32 %v2364, 1.442695
    %v2376 = vpow.pop %v2375
    %v2377 = vmul.f32 %v2365, 1.442695
    %v2378 = vpow.pop %v2377
    %v2379 = vmul.f32 %v2366, 1.442695
    %v2380 = vpow.pop %v2379
    %v2381 = vmul.f32 %v2367, 1.442695
    %v2382 = vpow.pop %v2381
    %v2383 = vmul.f32 %v2368, 1.442695
    %v2384 = vpow.pop %v2383
    %v2385 = vsel %vm736, %v2370, 0.0
    %2386 = vadd.xlane.f32.xlu0 %v2385
    %v2387 = vpop.xlane.xlu0 %2386
    %v2388 = vsel %vm736, %v2372, 0.0
    %2389 = vadd.xlane.f32.xlu0 %v2388
    %v2390 = vpop.xlane.xlu0 %2389
    %v2391 = vsel %vm736, %v2374, 0.0
    %2392 = vadd.xlane.f32.xlu0 %v2391
    %v2393 = vpop.xlane.xlu0 %2392
    %v2394 = vsel %vm736, %v2376, 0.0
    %2395 = vadd.xlane.f32.xlu0 %v2394
    %v2396 = vpop.xlane.xlu0 %2395
    %v2397 = vsel %vm736, %v2378, 0.0
    %2398 = vadd.xlane.f32.xlu0 %v2397
    %v2399 = vpop.xlane.xlu0 %2398
    %v2400 = vsel %vm736, %v2380, 0.0
    %2401 = vadd.xlane.f32.xlu0 %v2400
    %v2402 = vpop.xlane.xlu0 %2401
    %v2403 = vsel %vm736, %v2382, 0.0
    %2404 = vadd.xlane.f32.xlu0 %v2403
    %v2405 = vpop.xlane.xlu0 %2404
    %v2406 = vsel %vm736, %v2384, 0.0
    %2407 = vadd.xlane.f32.xlu0 %v2406
    %v2408 = vpop.xlane.xlu0 %2407
    %v2409 = vrcp.pop %v2387
    %v2410 = vrcp.pop %v2390
    %v2411 = vrcp.pop %v2393
    %v2412 = vrcp.pop %v2396
    %v2413 = vrcp.pop %v2399
    %v2414 = vrcp.pop %v2402
    %v2415 = vrcp.pop %v2405
    %v2416 = vrcp.pop %v2408
    %v2417 = vmul.f32 %v2370, %v2409
    %v2418 = vmul.f32 %v2372, %v2410
    %v2419 = vmul.f32 %v2374, %v2411
    %v2420 = vmul.f32 %v2376, %v2412
    %v2421 = vmul.f32 %v2378, %v2413
    %v2422 = vmul.f32 %v2380, %v2414
    %v2423 = vmul.f32 %v2382, %v2415
    %v2424 = vmul.f32 %v2384, %v2416
    %v2426 = vsel %vm736, %v2417, 0
    %v2429 = vsel %vm736, %v2418, 0
    %2431 = vmatprep.subr.mxu0 0.0
    %2432 = vmatpush1.msra.mxu0 0.0
    %2433 = vmatprep.subr.mxu0 0.0
    %2434 = vmatpush1.msra.mxu0 0.0
    %2435 = vmatprep.subr.mxu0 0.0
    %2436 = vmatpush1.msra.mxu0 0.0
    %2437 = vmatprep.subr.mxu0 0.0
    %2438 = vmatpush1.msra.mxu0 0.0
    %2439 = vmatprep.subr.mxu0 0.0
    %2440 = vmatpush1.msra.mxu0 0.0
    %2441 = vmatprep.subr.mxu0 0.0
    %2442 = vmatpush1.msra.mxu0 0.0
    %2443 = vmatprep.subr.mxu0 0.0
    %2444 = vmatpush1.msra.mxu0 0.0
    %2445 = vmatprep.subr.mxu0 0.0
    %2446 = vmatpush1.msra.mxu0 0.0
    %2447 = vmatprep.subr.mxu0 0.0
    %2448 = vmatpush1.msra.mxu0 0.0
    %2449 = vmatprep.subr.mxu0 0.0
    %2450 = vmatpush1.msra.mxu0 0.0
    %2451 = vmatprep.subr.mxu0 0.0
    %2452 = vmatpush1.msra.mxu0 0.0
    %2453 = vmatprep.subr.mxu0 0.0
    %2454 = vmatpush1.msra.mxu0 0.0
    %2455 = vmatprep.subr.mxu0 0.0
    %2456 = vmatpush1.msra.mxu0 0.0
    %2457 = vmatprep.subr.mxu0 0.0
    %2458 = vmatpush1.msra.mxu0 0.0
    %2459 = vmatprep.subr.mxu0 0.0
    %2460 = vmatpush1.msra.mxu0 %v341
    %2461 = vmatprep.subr.mxu0 0.0
    %2462 = vmatpush1.msra.mxu0 %v335
    %2463 = vmatprep.subr.mxu0 0.0
    %2464 = vmatpush2.msra.mxu0 0.0
    %2465 = vmatprep.subr.mxu0 0.0
    %2466 = vmatpush2.msra.mxu0 0.0
    %2467 = vmatprep.subr.mxu0 0.0
    %2468 = vmatpush2.msra.mxu0 0.0
    %2469 = vmatprep.subr.mxu0 0.0
    %2470 = vmatpush2.msra.mxu0 0.0
    %2471 = vmatprep.subr.mxu0 0.0
    %2472 = vmatpush2.msra.mxu0 0.0
    %2473 = vmatprep.subr.mxu0 0.0
    %2474 = vmatpush2.msra.mxu0 0.0
    %2475 = vmatprep.subr.mxu0 0.0
    %2476 = vmatpush2.msra.mxu0 0.0
    %2477 = vmatprep.subr.mxu0 0.0
    %2478 = vmatpush2.msra.mxu0 0.0
    %2479 = vmatprep.subr.mxu0 0.0
    %2480 = vmatpush2.msra.mxu0 0.0
    %2481 = vmatprep.subr.mxu0 0.0
    %2482 = vmatpush2.msra.mxu0 0.0
    %2483 = vmatprep.subr.mxu0 0.0
    %2484 = vmatpush2.msra.mxu0 0.0
    %2485 = vmatprep.subr.mxu0 0.0
    %2486 = vmatpush2.msra.mxu0 0.0
    %2487 = vmatprep.subr.mxu0 0.0
    %2488 = vmatpush2.msra.mxu0 0.0
    %2489 = vmatprep.subr.mxu0 0.0
    %2490 = vmatpush2.msra.mxu0 0.0
    %2491 = vmatprep.subr.mxu0 0.0
    %2492 = vmatpush2.msra.mxu0 0.0
    %2493 = vmatprep.subr.mxu0 0.0
    %2494 = vmatpush2.msra.mxu0 0.0
    %2495 = vmatprep.mubr.f32.mxu0 0.0
    %2496 = vmatmul.mubr.f32.gmra.mxu0 %v2426
    %v2497 = vpop.f32.mrf.mxu0
    %v2498 = vadd.f32 0.0, %v2497
    %v2499 = vpop.f32.mrf.mxu0
    %2500 = vmatprep.mubr.f32.mxu0 0.0
    %2501 = vmatmul.mubr.f32.gmra.mxu0 %v2429
    %v2502 = vpop.f32.mrf.mxu0
    %v2503 = vadd.f32 0.0, %v2502
    %v2504 = vpop.f32.mrf.mxu0
    %2505 = vdwg.mxu0
    %v2507 = vsel %vm736, %v2419, 0
    %v2510 = vsel %vm736, %v2420, 0
    %2512 = vmatprep.subr.mxu0 0.0
    %2513 = vmatpush1.msra.mxu0 0.0
    %2514 = vmatprep.subr.mxu0 0.0
    %2515 = vmatpush1.msra.mxu0 0.0
    %2516 = vmatprep.subr.mxu0 0.0
    %2517 = vmatpush1.msra.mxu0 0.0
    %2518 = vmatprep.subr.mxu0 0.0
    %2519 = vmatpush1.msra.mxu0 0.0
    %2520 = vmatprep.subr.mxu0 0.0
    %2521 = vmatpush1.msra.mxu0 0.0
    %2522 = vmatprep.subr.mxu0 0.0
    %2523 = vmatpush1.msra.mxu0 0.0
    %2524 = vmatprep.subr.mxu0 0.0
    %2525 = vmatpush1.msra.mxu0 0.0
    %2526 = vmatprep.subr.mxu0 0.0
    %2527 = vmatpush1.msra.mxu0 0.0
    %2528 = vmatprep.subr.mxu0 0.0
    %2529 = vmatpush1.msra.mxu0 0.0
    %2530 = vmatprep.subr.mxu0 0.0
    %2531 = vmatpush1.msra.mxu0 0.0
    %2532 = vmatprep.subr.mxu0 0.0
    %2533 = vmatpush1.msra.mxu0 0.0
    %2534 = vmatprep.subr.mxu0 0.0
    %2535 = vmatpush1.msra.mxu0 0.0
    %2536 = vmatprep.subr.mxu0 0.0
    %2537 = vmatpush1.msra.mxu0 0.0
    %2538 = vmatprep.subr.mxu0 0.0
    %2539 = vmatpush1.msra.mxu0 0.0
    %2540 = vmatprep.subr.mxu0 0.0
    %2541 = vmatpush1.msra.mxu0 %v353
    %2542 = vmatprep.subr.mxu0 0.0
    %2543 = vmatpush1.msra.mxu0 %v347
    %2544 = vmatprep.subr.mxu0 0.0
    %2545 = vmatpush2.msra.mxu0 0.0
    %2546 = vmatprep.subr.mxu0 0.0
    %2547 = vmatpush2.msra.mxu0 0.0
    %2548 = vmatprep.subr.mxu0 0.0
    %2549 = vmatpush2.msra.mxu0 0.0
    %2550 = vmatprep.subr.mxu0 0.0
    %2551 = vmatpush2.msra.mxu0 0.0
    %2552 = vmatprep.subr.mxu0 0.0
    %2553 = vmatpush2.msra.mxu0 0.0
    %2554 = vmatprep.subr.mxu0 0.0
    %2555 = vmatpush2.msra.mxu0 0.0
    %2556 = vmatprep.subr.mxu0 0.0
    %2557 = vmatpush2.msra.mxu0 0.0
    %2558 = vmatprep.subr.mxu0 0.0
    %2559 = vmatpush2.msra.mxu0 0.0
    %2560 = vmatprep.subr.mxu0 0.0
    %2561 = vmatpush2.msra.mxu0 0.0
    %2562 = vmatprep.subr.mxu0 0.0
    %2563 = vmatpush2.msra.mxu0 0.0
    %2564 = vmatprep.subr.mxu0 0.0
    %2565 = vmatpush2.msra.mxu0 0.0
    %2566 = vmatprep.subr.mxu0 0.0
    %2567 = vmatpush2.msra.mxu0 0.0
    %2568 = vmatprep.subr.mxu0 0.0
    %2569 = vmatpush2.msra.mxu0 0.0
    %2570 = vmatprep.subr.mxu0 0.0
    %2571 = vmatpush2.msra.mxu0 0.0
    %2572 = vmatprep.subr.mxu0 0.0
    %2573 = vmatpush2.msra.mxu0 0.0
    %2574 = vmatprep.subr.mxu0 0.0
    %2575 = vmatpush2.msra.mxu0 0.0
    %2576 = vmatprep.mubr.f32.mxu0 0.0
    %2577 = vmatmul.mubr.f32.gmra.mxu0 %v2507
    %v2578 = vpop.f32.mrf.mxu0
    %v2579 = vadd.f32 0.0, %v2578
    %v2580 = vpop.f32.mrf.mxu0
    %2581 = vmatprep.mubr.f32.mxu0 0.0
    %2582 = vmatmul.mubr.f32.gmra.mxu0 %v2510
    %v2583 = vpop.f32.mrf.mxu0
    %v2584 = vadd.f32 0.0, %v2583
    %v2585 = vpop.f32.mrf.mxu0
    %2586 = vdwg.mxu0
    %v2588 = vsel %vm736, %v2421, 0
    %v2591 = vsel %vm736, %v2422, 0
    %2593 = vmatprep.subr.mxu0 0.0
    %2594 = vmatpush1.msra.mxu0 0.0
    %2595 = vmatprep.subr.mxu0 0.0
    %2596 = vmatpush1.msra.mxu0 0.0
    %2597 = vmatprep.subr.mxu0 0.0
    %2598 = vmatpush1.msra.mxu0 0.0
    %2599 = vmatprep.subr.mxu0 0.0
    %2600 = vmatpush1.msra.mxu0 0.0
    %2601 = vmatprep.subr.mxu0 0.0
    %2602 = vmatpush1.msra.mxu0 0.0
    %2603 = vmatprep.subr.mxu0 0.0
    %2604 = vmatpush1.msra.mxu0 0.0
    %2605 = vmatprep.subr.mxu0 0.0
    %2606 = vmatpush1.msra.mxu0 0.0
    %2607 = vmatprep.subr.mxu0 0.0
    %2608 = vmatpush1.msra.mxu0 0.0
    %2609 = vmatprep.subr.mxu0 0.0
    %2610 = vmatpush1.msra.mxu0 0.0
    %2611 = vmatprep.subr.mxu0 0.0
    %2612 = vmatpush1.msra.mxu0 0.0
    %2613 = vmatprep.subr.mxu0 0.0
    %2614 = vmatpush1.msra.mxu0 0.0
    %2615 = vmatprep.subr.mxu0 0.0
    %2616 = vmatpush1.msra.mxu0 0.0
    %2617 = vmatprep.subr.mxu0 0.0
    %2618 = vmatpush1.msra.mxu0 0.0
    %2619 = vmatprep.subr.mxu0 0.0
    %2620 = vmatpush1.msra.mxu0 0.0
    %2621 = vmatprep.subr.mxu0 0.0
    %2622 = vmatpush1.msra.mxu0 %v365
    %2623 = vmatprep.subr.mxu0 0.0
    %2624 = vmatpush1.msra.mxu0 %v359
    %2625 = vmatprep.subr.mxu0 0.0
    %2626 = vmatpush2.msra.mxu0 0.0
    %2627 = vmatprep.subr.mxu0 0.0
    %2628 = vmatpush2.msra.mxu0 0.0
    %2629 = vmatprep.subr.mxu0 0.0
    %2630 = vmatpush2.msra.mxu0 0.0
    %2631 = vmatprep.subr.mxu0 0.0
    %2632 = vmatpush2.msra.mxu0 0.0
    %2633 = vmatprep.subr.mxu0 0.0
    %2634 = vmatpush2.msra.mxu0 0.0
    %2635 = vmatprep.subr.mxu0 0.0
    %2636 = vmatpush2.msra.mxu0 0.0
    %2637 = vmatprep.subr.mxu0 0.0
    %2638 = vmatpush2.msra.mxu0 0.0
    %2639 = vmatprep.subr.mxu0 0.0
    %2640 = vmatpush2.msra.mxu0 0.0
    %2641 = vmatprep.subr.mxu0 0.0
    %2642 = vmatpush2.msra.mxu0 0.0
    %2643 = vmatprep.subr.mxu0 0.0
    %2644 = vmatpush2.msra.mxu0 0.0
    %2645 = vmatprep.subr.mxu0 0.0
    %2646 = vmatpush2.msra.mxu0 0.0
    %2647 = vmatprep.subr.mxu0 0.0
    %2648 = vmatpush2.msra.mxu0 0.0
    %2649 = vmatprep.subr.mxu0 0.0
    %2650 = vmatpush2.msra.mxu0 0.0
    %2651 = vmatprep.subr.mxu0 0.0
    %2652 = vmatpush2.msra.mxu0 0.0
    %2653 = vmatprep.subr.mxu0 0.0
    %2654 = vmatpush2.msra.mxu0 0.0
    %2655 = vmatprep.subr.mxu0 0.0
    %2656 = vmatpush2.msra.mxu0 0.0
    %2657 = vmatprep.mubr.f32.mxu0 0.0
    %2658 = vmatmul.mubr.f32.gmra.mxu0 %v2588
    %v2659 = vpop.f32.mrf.mxu0
    %v2660 = vadd.f32 0.0, %v2659
    %v2661 = vpop.f32.mrf.mxu0
    %2662 = vmatprep.mubr.f32.mxu0 0.0
    %2663 = vmatmul.mubr.f32.gmra.mxu0 %v2591
    %v2664 = vpop.f32.mrf.mxu0
    %v2665 = vadd.f32 0.0, %v2664
    %v2666 = vpop.f32.mrf.mxu0
    %2667 = vdwg.mxu0
    %v2669 = vsel %vm736, %v2423, 0
    %v2672 = vsel %vm736, %v2424, 0
    %2674 = vmatprep.subr.mxu0 0.0
    %2675 = vmatpush1.msra.mxu0 0.0
    %2676 = vmatprep.subr.mxu0 0.0
    %2677 = vmatpush1.msra.mxu0 0.0
    %2678 = vmatprep.subr.mxu0 0.0
    %2679 = vmatpush1.msra.mxu0 0.0
    %2680 = vmatprep.subr.mxu0 0.0
    %2681 = vmatpush1.msra.mxu0 0.0
    %2682 = vmatprep.subr.mxu0 0.0
    %2683 = vmatpush1.msra.mxu0 0.0
    %2684 = vmatprep.subr.mxu0 0.0
    %2685 = vmatpush1.msra.mxu0 0.0
    %2686 = vmatprep.subr.mxu0 0.0
    %2687 = vmatpush1.msra.mxu0 0.0
    %2688 = vmatprep.subr.mxu0 0.0
    %2689 = vmatpush1.msra.mxu0 0.0
    %2690 = vmatprep.subr.mxu0 0.0
    %2691 = vmatpush1.msra.mxu0 0.0
    %2692 = vmatprep.subr.mxu0 0.0
    %2693 = vmatpush1.msra.mxu0 0.0
    %2694 = vmatprep.subr.mxu0 0.0
    %2695 = vmatpush1.msra.mxu0 0.0
    %2696 = vmatprep.subr.mxu0 0.0
    %2697 = vmatpush1.msra.mxu0 0.0
    %2698 = vmatprep.subr.mxu0 0.0
    %2699 = vmatpush1.msra.mxu0 0.0
    %2700 = vmatprep.subr.mxu0 0.0
    %2701 = vmatpush1.msra.mxu0 0.0
    %2702 = vmatprep.subr.mxu0 0.0
    %2703 = vmatpush1.msra.mxu0 %v377
    %2704 = vmatprep.subr.mxu0 0.0
    %2705 = vmatpush1.msra.mxu0 %v371
    %2706 = vmatprep.subr.mxu0 0.0
    %2707 = vmatpush2.msra.mxu0 0.0
    %2708 = vmatprep.subr.mxu0 0.0
    %2709 = vmatpush2.msra.mxu0 0.0
    %2710 = vmatprep.subr.mxu0 0.0
    %2711 = vmatpush2.msra.mxu0 0.0
    %2712 = vmatprep.subr.mxu0 0.0
    %2713 = vmatpush2.msra.mxu0 0.0
    %2714 = vmatprep.subr.mxu0 0.0
    %2715 = vmatpush2.msra.mxu0 0.0
    %2716 = vmatprep.subr.mxu0 0.0
    %2717 = vmatpush2.msra.mxu0 0.0
    %2718 = vmatprep.subr.mxu0 0.0
    %2719 = vmatpush2.msra.mxu0 0.0
    %2720 = vmatprep.subr.mxu0 0.0
    %2721 = vmatpush2.msra.mxu0 0.0
    %2722 = vmatprep.subr.mxu0 0.0
    %2723 = vmatpush2.msra.mxu0 0.0
    %2724 = vmatprep.subr.mxu0 0.0
    %2725 = vmatpush2.msra.mxu0 0.0
    %2726 = vmatprep.subr.mxu0 0.0
    %2727 = vmatpush2.msra.mxu0 0.0
    %2728 = vmatprep.subr.mxu0 0.0
    %2729 = vmatpush2.msra.mxu0 0.0
    %2730 = vmatprep.subr.mxu0 0.0
    %2731 = vmatpush2.msra.mxu0 0.0
    %2732 = vmatprep.subr.mxu0 0.0
    %2733 = vmatpush2.msra.mxu0 0.0
    %2734 = vmatprep.subr.mxu0 0.0
    %2735 = vmatpush2.msra.mxu0 0.0
    %2736 = vmatprep.subr.mxu0 0.0
    %2737 = vmatpush2.msra.mxu0 0.0
    %2738 = vmatprep.mubr.f32.mxu0 0.0
    %2739 = vmatmul.mubr.f32.gmra.mxu0 %v2669
    %v2740 = vpop.f32.mrf.mxu0
    %v2741 = vadd.f32 0.0, %v2740
    %v2742 = vpop.f32.mrf.mxu0
    %2743 = vmatprep.mubr.f32.mxu0 0.0
    %2744 = vmatmul.mubr.f32.gmra.mxu0 %v2672
    %v2745 = vpop.f32.mrf.mxu0
    %v2746 = vadd.f32 0.0, %v2745
    %v2747 = vpop.f32.mrf.mxu0
    %2748 = vdwg.mxu0
    %v2749 = vadd.f32 %v1704, %v2498
    %v2750 = vadd.f32 %v1709, %v2503
    %v2751 = vadd.f32 %v1791, %v2579
    %v2752 = vadd.f32 %v1796, %v2584
    %v2753 = vadd.f32 %v1878, %v2660
    %v2754 = vadd.f32 %v1883, %v2665
    %v2755 = vadd.f32 %v1965, %v2741
    %v2756 = vadd.f32 %v1970, %v2746
    %2757 = vrot.lane.b32.xlu0 %v333, 104
    %v2758 = vpop.permute.xlu0 %2757
    %2759 = vrot.lane.b32.xlu0 %v339, 104
    %v2760 = vpop.permute.xlu0 %2759
    %2761 = vrot.lane.b32.xlu0 %v333, 72
    %v2762 = vpop.permute.xlu0 %2761
    %2763 = vrot.lane.b32.xlu0 %v339, 72
    %v2764 = vpop.permute.xlu0 %2763
    %v2765 = vsel %vm385, %v2758, 0
    %v2767 = vsel %vm385, %v2760, 0
    %v2769 = vsel %vm385, %v2762, 0
    %v2771 = vsel %vm385, %v2764, 0
    %2773 = vmatprep.subr.mxu0 0.0
    %2774 = vmatpush1.xpose.msra.mxu0 0.0
    %2775 = vmatprep.subr.mxu0 0.0
    %2776 = vmatpush1.xpose.msra.mxu0 0.0
    %2777 = vmatprep.subr.mxu0 0.0
    %2778 = vmatpush1.xpose.msra.mxu0 0.0
    %2779 = vmatprep.subr.mxu0 0.0
    %2780 = vmatpush1.xpose.msra.mxu0 0.0
    %2781 = vmatprep.subr.mxu0 0.0
    %2782 = vmatpush1.xpose.msra.mxu0 0.0
    %2783 = vmatprep.subr.mxu0 0.0
    %2784 = vmatpush1.xpose.msra.mxu0 0.0
    %2785 = vmatprep.subr.mxu0 0.0
    %2786 = vmatpush1.xpose.msra.mxu0 0.0
    %2787 = vmatprep.subr.mxu0 0.0
    %2788 = vmatpush1.xpose.msra.mxu0 0.0
    %2789 = vmatprep.subr.mxu0 0.0
    %2790 = vmatpush1.xpose.msra.mxu0 0.0
    %2791 = vmatprep.subr.mxu0 0.0
    %2792 = vmatpush1.xpose.msra.mxu0 0.0
    %2793 = vmatprep.subr.mxu0 0.0
    %2794 = vmatpush1.xpose.msra.mxu0 0.0
    %2795 = vmatprep.subr.mxu0 0.0
    %2796 = vmatpush1.xpose.msra.mxu0 0.0
    %2797 = vmatprep.subr.mxu0 0.0
    %2798 = vmatpush1.xpose.msra.mxu0 0.0
    %2799 = vmatprep.subr.mxu0 0.0
    %2800 = vmatpush1.xpose.msra.mxu0 0.0
    %2801 = vmatprep.subr.mxu0 0.0
    %2802 = vmatpush1.xpose.msra.mxu0 %v2771
    %2803 = vmatprep.subr.mxu0 0.0
    %2804 = vmatpush1.xpose.msra.mxu0 %v2769
    %2805 = vmatprep.subr.mxu0 0.0
    %2806 = vmatpush2.xpose.msra.mxu0 0.0
    %2807 = vmatprep.subr.mxu0 0.0
    %2808 = vmatpush2.xpose.msra.mxu0 0.0
    %2809 = vmatprep.subr.mxu0 0.0
    %2810 = vmatpush2.xpose.msra.mxu0 0.0
    %2811 = vmatprep.subr.mxu0 0.0
    %2812 = vmatpush2.xpose.msra.mxu0 0.0
    %2813 = vmatprep.subr.mxu0 0.0
    %2814 = vmatpush2.xpose.msra.mxu0 0.0
    %2815 = vmatprep.subr.mxu0 0.0
    %2816 = vmatpush2.xpose.msra.mxu0 0.0
    %2817 = vmatprep.subr.mxu0 0.0
    %2818 = vmatpush2.xpose.msra.mxu0 0.0
    %2819 = vmatprep.subr.mxu0 0.0
    %2820 = vmatpush2.xpose.msra.mxu0 0.0
    %2821 = vmatprep.subr.mxu0 0.0
    %2822 = vmatpush2.xpose.msra.mxu0 0.0
    %2823 = vmatprep.subr.mxu0 0.0
    %2824 = vmatpush2.xpose.msra.mxu0 0.0
    %2825 = vmatprep.subr.mxu0 0.0
    %2826 = vmatpush2.xpose.msra.mxu0 0.0
    %2827 = vmatprep.subr.mxu0 0.0
    %2828 = vmatpush2.xpose.msra.mxu0 0.0
    %2829 = vmatprep.subr.mxu0 0.0
    %2830 = vmatpush2.xpose.msra.mxu0 0.0
    %2831 = vmatprep.subr.mxu0 0.0
    %2832 = vmatpush2.xpose.msra.mxu0 0.0
    %2833 = vmatprep.subr.mxu0 0.0
    %2834 = vmatpush2.xpose.msra.mxu0 0.0
    %2835 = vmatprep.subr.mxu0 0.0
    %2836 = vmatpush2.xpose.msra.mxu0 0.0
    %2837 = vmatprep.mubr.f32.mxu0 0.0
    %2838 = vmatmul.mubr.f32.gmra.mxu0 %v2765
    %v2839 = vpop.f32.mrf.mxu0
    %v2840 = vadd.f32 %v94, %v2839
    %v2841 = vpop.f32.mrf.mxu0
    %2842 = vmatprep.mubr.f32.mxu0 0.0
    %2843 = vmatmul.mubr.f32.gmra.mxu0 %v2767
    %v2844 = vpop.f32.mrf.mxu0
    %v2845 = vadd.f32 %v94, %v2844
    %v2846 = vpop.f32.mrf.mxu0
    %2847 = vdwg.mxu0
    %2848 = vrot.lane.b32.xlu0 %v345, 104
    %v2849 = vpop.permute.xlu0 %2848
    %2850 = vrot.lane.b32.xlu0 %v351, 104
    %v2851 = vpop.permute.xlu0 %2850
    %2852 = vrot.lane.b32.xlu0 %v345, 72
    %v2853 = vpop.permute.xlu0 %2852
    %2854 = vrot.lane.b32.xlu0 %v351, 72
    %v2855 = vpop.permute.xlu0 %2854
    %v2856 = vsel %vm385, %v2849, 0
    %v2858 = vsel %vm385, %v2851, 0
    %v2860 = vsel %vm385, %v2853, 0
    %v2862 = vsel %vm385, %v2855, 0
    %2864 = vmatprep.subr.mxu0 0.0
    %2865 = vmatpush1.xpose.msra.mxu0 0.0
    %2866 = vmatprep.subr.mxu0 0.0
    %2867 = vmatpush1.xpose.msra.mxu0 0.0
    %2868 = vmatprep.subr.mxu0 0.0
    %2869 = vmatpush1.xpose.msra.mxu0 0.0
    %2870 = vmatprep.subr.mxu0 0.0
    %2871 = vmatpush1.xpose.msra.mxu0 0.0
    %2872 = vmatprep.subr.mxu0 0.0
    %2873 = vmatpush1.xpose.msra.mxu0 0.0
    %2874 = vmatprep.subr.mxu0 0.0
    %2875 = vmatpush1.xpose.msra.mxu0 0.0
    %2876 = vmatprep.subr.mxu0 0.0
    %2877 = vmatpush1.xpose.msra.mxu0 0.0
    %2878 = vmatprep.subr.mxu0 0.0
    %2879 = vmatpush1.xpose.msra.mxu0 0.0
    %2880 = vmatprep.subr.mxu0 0.0
    %2881 = vmatpush1.xpose.msra.mxu0 0.0
    %2882 = vmatprep.subr.mxu0 0.0
    %2883 = vmatpush1.xpose.msra.mxu0 0.0
    %2884 = vmatprep.subr.mxu0 0.0
    %2885 = vmatpush1.xpose.msra.mxu0 0.0
    %2886 = vmatprep.subr.mxu0 0.0
    %2887 = vmatpush1.xpose.msra.mxu0 0.0
    %2888 = vmatprep.subr.mxu0 0.0
    %2889 = vmatpush1.xpose.msra.mxu0 0.0
    %2890 = vmatprep.subr.mxu0 0.0
    %2891 = vmatpush1.xpose.msra.mxu0 0.0
    %2892 = vmatprep.subr.mxu0 0.0
    %2893 = vmatpush1.xpose.msra.mxu0 %v2862
    %2894 = vmatprep.subr.mxu0 0.0
    %2895 = vmatpush1.xpose.msra.mxu0 %v2860
    %2896 = vmatprep.subr.mxu0 0.0
    %2897 = vmatpush2.xpose.msra.mxu0 0.0
    %2898 = vmatprep.subr.mxu0 0.0
    %2899 = vmatpush2.xpose.msra.mxu0 0.0
    %2900 = vmatprep.subr.mxu0 0.0
    %2901 = vmatpush2.xpose.msra.mxu0 0.0
    %2902 = vmatprep.subr.mxu0 0.0
    %2903 = vmatpush2.xpose.msra.mxu0 0.0
    %2904 = vmatprep.subr.mxu0 0.0
    %2905 = vmatpush2.xpose.msra.mxu0 0.0
    %2906 = vmatprep.subr.mxu0 0.0
    %2907 = vmatpush2.xpose.msra.mxu0 0.0
    %2908 = vmatprep.subr.mxu0 0.0
    %2909 = vmatpush2.xpose.msra.mxu0 0.0
    %2910 = vmatprep.subr.mxu0 0.0
    %2911 = vmatpush2.xpose.msra.mxu0 0.0
    %2912 = vmatprep.subr.mxu0 0.0
    %2913 = vmatpush2.xpose.msra.mxu0 0.0
    %2914 = vmatprep.subr.mxu0 0.0
    %2915 = vmatpush2.xpose.msra.mxu0 0.0
    %2916 = vmatprep.subr.mxu0 0.0
    %2917 = vmatpush2.xpose.msra.mxu0 0.0
    %2918 = vmatprep.subr.mxu0 0.0
    %2919 = vmatpush2.xpose.msra.mxu0 0.0
    %2920 = vmatprep.subr.mxu0 0.0
    %2921 = vmatpush2.xpose.msra.mxu0 0.0
    %2922 = vmatprep.subr.mxu0 0.0
    %2923 = vmatpush2.xpose.msra.mxu0 0.0
    %2924 = vmatprep.subr.mxu0 0.0
    %2925 = vmatpush2.xpose.msra.mxu0 0.0
    %2926 = vmatprep.subr.mxu0 0.0
    %2927 = vmatpush2.xpose.msra.mxu0 0.0
    %2928 = vmatprep.mubr.f32.mxu0 0.0
    %2929 = vmatmul.mubr.f32.gmra.mxu0 %v2856
    %v2930 = vpop.f32.mrf.mxu0
    %v2931 = vadd.f32 %v94, %v2930
    %v2932 = vpop.f32.mrf.mxu0
    %2933 = vmatprep.mubr.f32.mxu0 0.0
    %2934 = vmatmul.mubr.f32.gmra.mxu0 %v2858
    %v2935 = vpop.f32.mrf.mxu0
    %v2936 = vadd.f32 %v94, %v2935
    %v2937 = vpop.f32.mrf.mxu0
    %2938 = vdwg.mxu0
    %2939 = vrot.lane.b32.xlu0 %v357, 104
    %v2940 = vpop.permute.xlu0 %2939
    %2941 = vrot.lane.b32.xlu0 %v363, 104
    %v2942 = vpop.permute.xlu0 %2941
    %2943 = vrot.lane.b32.xlu0 %v357, 72
    %v2944 = vpop.permute.xlu0 %2943
    %2945 = vrot.lane.b32.xlu0 %v363, 72
    %v2946 = vpop.permute.xlu0 %2945
    %v2947 = vsel %vm385, %v2940, 0
    %v2949 = vsel %vm385, %v2942, 0
    %v2951 = vsel %vm385, %v2944, 0
    %v2953 = vsel %vm385, %v2946, 0
    %2955 = vmatprep.subr.mxu0 0.0
    %2956 = vmatpush1.xpose.msra.mxu0 0.0
    %2957 = vmatprep.subr.mxu0 0.0
    %2958 = vmatpush1.xpose.msra.mxu0 0.0
    %2959 = vmatprep.subr.mxu0 0.0
    %2960 = vmatpush1.xpose.msra.mxu0 0.0
    %2961 = vmatprep.subr.mxu0 0.0
    %2962 = vmatpush1.xpose.msra.mxu0 0.0
    %2963 = vmatprep.subr.mxu0 0.0
    %2964 = vmatpush1.xpose.msra.mxu0 0.0
    %2965 = vmatprep.subr.mxu0 0.0
    %2966 = vmatpush1.xpose.msra.mxu0 0.0
    %2967 = vmatprep.subr.mxu0 0.0
    %2968 = vmatpush1.xpose.msra.mxu0 0.0
    %2969 = vmatprep.subr.mxu0 0.0
    %2970 = vmatpush1.xpose.msra.mxu0 0.0
    %2971 = vmatprep.subr.mxu0 0.0
    %2972 = vmatpush1.xpose.msra.mxu0 0.0
    %2973 = vmatprep.subr.mxu0 0.0
    %2974 = vmatpush1.xpose.msra.mxu0 0.0
    %2975 = vmatprep.subr.mxu0 0.0
    %2976 = vmatpush1.xpose.msra.mxu0 0.0
    %2977 = vmatprep.subr.mxu0 0.0
    %2978 = vmatpush1.xpose.msra.mxu0 0.0
    %2979 = vmatprep.subr.mxu0 0.0
    %2980 = vmatpush1.xpose.msra.mxu0 0.0
    %2981 = vmatprep.subr.mxu0 0.0
    %2982 = vmatpush1.xpose.msra.mxu0 0.0
    %2983 = vmatprep.subr.mxu0 0.0
    %2984 = vmatpush1.xpose.msra.mxu0 %v2953
    %2985 = vmatprep.subr.mxu0 0.0
    %2986 = vmatpush1.xpose.msra.mxu0 %v2951
    %2987 = vmatprep.subr.mxu0 0.0
    %2988 = vmatpush2.xpose.msra.mxu0 0.0
    %2989 = vmatprep.subr.mxu0 0.0
    %2990 = vmatpush2.xpose.msra.mxu0 0.0
    %2991 = vmatprep.subr.mxu0 0.0
    %2992 = vmatpush2.xpose.msra.mxu0 0.0
    %2993 = vmatprep.subr.mxu0 0.0
    %2994 = vmatpush2.xpose.msra.mxu0 0.0
    %2995 = vmatprep.subr.mxu0 0.0
    %2996 = vmatpush2.xpose.msra.mxu0 0.0
    %2997 = vmatprep.subr.mxu0 0.0
    %2998 = vmatpush2.xpose.msra.mxu0 0.0
    %2999 = vmatprep.subr.mxu0 0.0
    %3000 = vmatpush2.xpose.msra.mxu0 0.0
    %3001 = vmatprep.subr.mxu0 0.0
    %3002 = vmatpush2.xpose.msra.mxu0 0.0
    %3003 = vmatprep.subr.mxu0 0.0
    %3004 = vmatpush2.xpose.msra.mxu0 0.0
    %3005 = vmatprep.subr.mxu0 0.0
    %3006 = vmatpush2.xpose.msra.mxu0 0.0
    %3007 = vmatprep.subr.mxu0 0.0
    %3008 = vmatpush2.xpose.msra.mxu0 0.0
    %3009 = vmatprep.subr.mxu0 0.0
    %3010 = vmatpush2.xpose.msra.mxu0 0.0
    %3011 = vmatprep.subr.mxu0 0.0
    %3012 = vmatpush2.xpose.msra.mxu0 0.0
    %3013 = vmatprep.subr.mxu0 0.0
    %3014 = vmatpush2.xpose.msra.mxu0 0.0
    %3015 = vmatprep.subr.mxu0 0.0
    %3016 = vmatpush2.xpose.msra.mxu0 0.0
    %3017 = vmatprep.subr.mxu0 0.0
    %3018 = vmatpush2.xpose.msra.mxu0 0.0
    %3019 = vmatprep.mubr.f32.mxu0 0.0
    %3020 = vmatmul.mubr.f32.gmra.mxu0 %v2947
    %v3021 = vpop.f32.mrf.mxu0
    %v3022 = vadd.f32 %v94, %v3021
    %v3023 = vpop.f32.mrf.mxu0
    %3024 = vmatprep.mubr.f32.mxu0 0.0
    %3025 = vmatmul.mubr.f32.gmra.mxu0 %v2949
    %v3026 = vpop.f32.mrf.mxu0
    %v3027 = vadd.f32 %v94, %v3026
    %v3028 = vpop.f32.mrf.mxu0
    %3029 = vdwg.mxu0
    %3030 = vrot.lane.b32.xlu0 %v369, 104
    %v3031 = vpop.permute.xlu0 %3030
    %3032 = vrot.lane.b32.xlu0 %v375, 104
    %v3033 = vpop.permute.xlu0 %3032
    %3034 = vrot.lane.b32.xlu0 %v369, 72
    %v3035 = vpop.permute.xlu0 %3034
    %3036 = vrot.lane.b32.xlu0 %v375, 72
    %v3037 = vpop.permute.xlu0 %3036
    %v3038 = vsel %vm385, %v3031, 0
    %v3040 = vsel %vm385, %v3033, 0
    %v3042 = vsel %vm385, %v3035, 0
    %v3044 = vsel %vm385, %v3037, 0
    %3046 = vmatprep.subr.mxu0 0.0
    %3047 = vmatpush1.xpose.msra.mxu0 0.0
    %3048 = vmatprep.subr.mxu0 0.0
    %3049 = vmatpush1.xpose.msra.mxu0 0.0
    %3050 = vmatprep.subr.mxu0 0.0
    %3051 = vmatpush1.xpose.msra.mxu0 0.0
    %3052 = vmatprep.subr.mxu0 0.0
    %3053 = vmatpush1.xpose.msra.mxu0 0.0
    %3054 = vmatprep.subr.mxu0 0.0
    %3055 = vmatpush1.xpose.msra.mxu0 0.0
    %3056 = vmatprep.subr.mxu0 0.0
    %3057 = vmatpush1.xpose.msra.mxu0 0.0
    %3058 = vmatprep.subr.mxu0 0.0
    %3059 = vmatpush1.xpose.msra.mxu0 0.0
    %3060 = vmatprep.subr.mxu0 0.0
    %3061 = vmatpush1.xpose.msra.mxu0 0.0
    %3062 = vmatprep.subr.mxu0 0.0
    %3063 = vmatpush1.xpose.msra.mxu0 0.0
    %3064 = vmatprep.subr.mxu0 0.0
    %3065 = vmatpush1.xpose.msra.mxu0 0.0
    %3066 = vmatprep.subr.mxu0 0.0
    %3067 = vmatpush1.xpose.msra.mxu0 0.0
    %3068 = vmatprep.subr.mxu0 0.0
    %3069 = vmatpush1.xpose.msra.mxu0 0.0
    %3070 = vmatprep.subr.mxu0 0.0
    %3071 = vmatpush1.xpose.msra.mxu0 0.0
    %3072 = vmatprep.subr.mxu0 0.0
    %3073 = vmatpush1.xpose.msra.mxu0 0.0
    %3074 = vmatprep.subr.mxu0 0.0
    %3075 = vmatpush1.xpose.msra.mxu0 %v3044
    %3076 = vmatprep.subr.mxu0 0.0
    %3077 = vmatpush1.xpose.msra.mxu0 %v3042
    %3078 = vmatprep.subr.mxu0 0.0
    %3079 = vmatpush2.xpose.msra.mxu0 0.0
    %3080 = vmatprep.subr.mxu0 0.0
    %3081 = vmatpush2.xpose.msra.mxu0 0.0
    %3082 = vmatprep.subr.mxu0 0.0
    %3083 = vmatpush2.xpose.msra.mxu0 0.0
    %3084 = vmatprep.subr.mxu0 0.0
    %3085 = vmatpush2.xpose.msra.mxu0 0.0
    %3086 = vmatprep.subr.mxu0 0.0
    %3087 = vmatpush2.xpose.msra.mxu0 0.0
    %3088 = vmatprep.subr.mxu0 0.0
    %3089 = vmatpush2.xpose.msra.mxu0 0.0
    %3090 = vmatprep.subr.mxu0 0.0
    %3091 = vmatpush2.xpose.msra.mxu0 0.0
    %3092 = vmatprep.subr.mxu0 0.0
    %3093 = vmatpush2.xpose.msra.mxu0 0.0
    %3094 = vmatprep.subr.mxu0 0.0
    %3095 = vmatpush2.xpose.msra.mxu0 0.0
    %3096 = vmatprep.subr.mxu0 0.0
    %3097 = vmatpush2.xpose.msra.mxu0 0.0
    %3098 = vmatprep.subr.mxu0 0.0
    %3099 = vmatpush2.xpose.msra.mxu0 0.0
    %3100 = vmatprep.subr.mxu0 0.0
    %3101 = vmatpush2.xpose.msra.mxu0 0.0
    %3102 = vmatprep.subr.mxu0 0.0
    %3103 = vmatpush2.xpose.msra.mxu0 0.0
    %3104 = vmatprep.subr.mxu0 0.0
    %3105 = vmatpush2.xpose.msra.mxu0 0.0
    %3106 = vmatprep.subr.mxu0 0.0
    %3107 = vmatpush2.xpose.msra.mxu0 0.0
    %3108 = vmatprep.subr.mxu0 0.0
    %3109 = vmatpush2.xpose.msra.mxu0 0.0
    %3110 = vmatprep.mubr.f32.mxu0 0.0
    %3111 = vmatmul.mubr.f32.gmra.mxu0 %v3038
    %v3112 = vpop.f32.mrf.mxu0
    %v3113 = vadd.f32 %v94, %v3112
    %v3114 = vpop.f32.mrf.mxu0
    %3115 = vmatprep.mubr.f32.mxu0 0.0
    %3116 = vmatmul.mubr.f32.gmra.mxu0 %v3040
    %v3117 = vpop.f32.mrf.mxu0
    %v3118 = vadd.f32 %v94, %v3117
    %v3119 = vpop.f32.mrf.mxu0
    %3120 = vdwg.mxu0
    %v3121 = vsel %vm736, %v2840, -inf
    %3122 = vmax.xlane.f32.xlu0 %v3121
    %v3123 = vpop.xlane.xlu0 %3122
    %v3124 = vsel %vm736, %v2845, -inf
    %3125 = vmax.xlane.f32.xlu0 %v3124
    %v3126 = vpop.xlane.xlu0 %3125
    %v3127 = vsel %vm736, %v2931, -inf
    %3128 = vmax.xlane.f32.xlu0 %v3127
    %v3129 = vpop.xlane.xlu0 %3128
    %v3130 = vsel %vm736, %v2936, -inf
    %3131 = vmax.xlane.f32.xlu0 %v3130
    %v3132 = vpop.xlane.xlu0 %3131
    %v3133 = vsel %vm736, %v3022, -inf
    %3134 = vmax.xlane.f32.xlu0 %v3133
    %v3135 = vpop.xlane.xlu0 %3134
    %v3136 = vsel %vm736, %v3027, -inf
    %3137 = vmax.xlane.f32.xlu0 %v3136
    %v3138 = vpop.xlane.xlu0 %3137
    %v3139 = vsel %vm736, %v3113, -inf
    %3140 = vmax.xlane.f32.xlu0 %v3139
    %v3141 = vpop.xlane.xlu0 %3140
    %v3142 = vsel %vm736, %v3118, -inf
    %3143 = vmax.xlane.f32.xlu0 %v3142
    %v3144 = vpop.xlane.xlu0 %3143
    %v3145 = vsub.f32 %v2840, %v3123
    %v3146 = vsub.f32 %v2845, %v3126
    %v3147 = vsub.f32 %v2931, %v3129
    %v3148 = vsub.f32 %v2936, %v3132
    %v3149 = vsub.f32 %v3022, %v3135
    %v3150 = vsub.f32 %v3027, %v3138
    %v3151 = vsub.f32 %v3113, %v3141
    %v3152 = vsub.f32 %v3118, %v3144
    %v3153 = vmul.f32 %v3145, 1.442695
    %v3154 = vpow.pop %v3153
    %v3155 = vmul.f32 %v3146, 1.442695
    %v3156 = vpow.pop %v3155
    %v3157 = vmul.f32 %v3147, 1.442695
    %v3158 = vpow.pop %v3157
    %v3159 = vmul.f32 %v3148, 1.442695
    %v3160 = vpow.pop %v3159
    %v3161 = vmul.f32 %v3149, 1.442695
    %v3162 = vpow.pop %v3161
    %v3163 = vmul.f32 %v3150, 1.442695
    %v3164 = vpow.pop %v3163
    %v3165 = vmul.f32 %v3151, 1.442695
    %v3166 = vpow.pop %v3165
    %v3167 = vmul.f32 %v3152, 1.442695
    %v3168 = vpow.pop %v3167
    %v3169 = vsel %vm736, %v3154, 0.0
    %3170 = vadd.xlane.f32.xlu0 %v3169
    %v3171 = vpop.xlane.xlu0 %3170
    %v3172 = vsel %vm736, %v3156, 0.0
    %3173 = vadd.xlane.f32.xlu0 %v3172
    %v3174 = vpop.xlane.xlu0 %3173
    %v3175 = vsel %vm736, %v3158, 0.0
    %3176 = vadd.xlane.f32.xlu0 %v3175
    %v3177 = vpop.xlane.xlu0 %3176
    %v3178 = vsel %vm736, %v3160, 0.0
    %3179 = vadd.xlane.f32.xlu0 %v3178
    %v3180 = vpop.xlane.xlu0 %3179
    %v3181 = vsel %vm736, %v3162, 0.0
    %3182 = vadd.xlane.f32.xlu0 %v3181
    %v3183 = vpop.xlane.xlu0 %3182
    %v3184 = vsel %vm736, %v3164, 0.0
    %3185 = vadd.xlane.f32.xlu0 %v3184
    %v3186 = vpop.xlane.xlu0 %3185
    %v3187 = vsel %vm736, %v3166, 0.0
    %3188 = vadd.xlane.f32.xlu0 %v3187
    %v3189 = vpop.xlane.xlu0 %3188
    %v3190 = vsel %vm736, %v3168, 0.0
    %3191 = vadd.xlane.f32.xlu0 %v3190
    %v3192 = vpop.xlane.xlu0 %3191
    %v3193 = vrcp.pop %v3171
    %v3194 = vrcp.pop %v3174
    %v3195 = vrcp.pop %v3177
    %v3196 = vrcp.pop %v3180
    %v3197 = vrcp.pop %v3183
    %v3198 = vrcp.pop %v3186
    %v3199 = vrcp.pop %v3189
    %v3200 = vrcp.pop %v3192
    %v3201 = vmul.f32 %v3154, %v3193
    %v3202 = vmul.f32 %v3156, %v3194
    %v3203 = vmul.f32 %v3158, %v3195
    %v3204 = vmul.f32 %v3160, %v3196
    %v3205 = vmul.f32 %v3162, %v3197
    %v3206 = vmul.f32 %v3164, %v3198
    %v3207 = vmul.f32 %v3166, %v3199
    %v3208 = vmul.f32 %v3168, %v3200
    %3211 = vrot.lane.b32.xlu0 %v335, 96
    %v3212 = vpop.permute.xlu0 %3211
    %3213 = vrot.lane.b32.xlu0 %v341, 96
    %v3214 = vpop.permute.xlu0 %3213
    %v3218 = vsel %vm736, %v3201, 0
    %v3221 = vsel %vm736, %v3202, 0
    %3223 = vmatprep.subr.mxu0 0.0
    %3224 = vmatpush1.msra.mxu0 0.0
    %3225 = vmatprep.subr.mxu0 0.0
    %3226 = vmatpush1.msra.mxu0 0.0
    %3227 = vmatprep.subr.mxu0 0.0
    %3228 = vmatpush1.msra.mxu0 0.0
    %3229 = vmatprep.subr.mxu0 0.0
    %3230 = vmatpush1.msra.mxu0 0.0
    %3231 = vmatprep.subr.mxu0 0.0
    %3232 = vmatpush1.msra.mxu0 0.0
    %3233 = vmatprep.subr.mxu0 0.0
    %3234 = vmatpush1.msra.mxu0 0.0
    %3235 = vmatprep.subr.mxu0 0.0
    %3236 = vmatpush1.msra.mxu0 0.0
    %3237 = vmatprep.subr.mxu0 0.0
    %3238 = vmatpush1.msra.mxu0 0.0
    %3239 = vmatprep.subr.mxu0 0.0
    %3240 = vmatpush1.msra.mxu0 0.0
    %3241 = vmatprep.subr.mxu0 0.0
    %3242 = vmatpush1.msra.mxu0 0.0
    %3243 = vmatprep.subr.mxu0 0.0
    %3244 = vmatpush1.msra.mxu0 0.0
    %3245 = vmatprep.subr.mxu0 0.0
    %3246 = vmatpush1.msra.mxu0 0.0
    %3247 = vmatprep.subr.mxu0 0.0
    %3248 = vmatpush1.msra.mxu0 0.0
    %3249 = vmatprep.subr.mxu0 0.0
    %3250 = vmatpush1.msra.mxu0 0.0
    %3251 = vmatprep.subr.mxu0 0.0
    %3252 = vmatpush1.msra.mxu0 %v3214
    %3253 = vmatprep.subr.mxu0 0.0
    %3254 = vmatpush1.msra.mxu0 %v3212
    %3255 = vmatprep.subr.mxu0 0.0
    %3256 = vmatpush2.msra.mxu0 0.0
    %3257 = vmatprep.subr.mxu0 0.0
    %3258 = vmatpush2.msra.mxu0 0.0
    %3259 = vmatprep.subr.mxu0 0.0
    %3260 = vmatpush2.msra.mxu0 0.0
    %3261 = vmatprep.subr.mxu0 0.0
    %3262 = vmatpush2.msra.mxu0 0.0
    %3263 = vmatprep.subr.mxu0 0.0
    %3264 = vmatpush2.msra.mxu0 0.0
    %3265 = vmatprep.subr.mxu0 0.0
    %3266 = vmatpush2.msra.mxu0 0.0
    %3267 = vmatprep.subr.mxu0 0.0
    %3268 = vmatpush2.msra.mxu0 0.0
    %3269 = vmatprep.subr.mxu0 0.0
    %3270 = vmatpush2.msra.mxu0 0.0
    %3271 = vmatprep.subr.mxu0 0.0
    %3272 = vmatpush2.msra.mxu0 0.0
    %3273 = vmatprep.subr.mxu0 0.0
    %3274 = vmatpush2.msra.mxu0 0.0
    %3275 = vmatprep.subr.mxu0 0.0
    %3276 = vmatpush2.msra.mxu0 0.0
    %3277 = vmatprep.subr.mxu0 0.0
    %3278 = vmatpush2.msra.mxu0 0.0
    %3279 = vmatprep.subr.mxu0 0.0
    %3280 = vmatpush2.msra.mxu0 0.0
    %3281 = vmatprep.subr.mxu0 0.0
    %3282 = vmatpush2.msra.mxu0 0.0
    %3283 = vmatprep.subr.mxu0 0.0
    %3284 = vmatpush2.msra.mxu0 0.0
    %3285 = vmatprep.subr.mxu0 0.0
    %3286 = vmatpush2.msra.mxu0 0.0
    %3287 = vmatprep.mubr.f32.mxu0 0.0
    %3288 = vmatmul.mubr.f32.gmra.mxu0 %v3218
    %v3289 = vpop.f32.mrf.mxu0
    %v3290 = vadd.f32 0.0, %v3289
    %v3291 = vpop.f32.mrf.mxu0
    %3292 = vmatprep.mubr.f32.mxu0 0.0
    %3293 = vmatmul.mubr.f32.gmra.mxu0 %v3221
    %v3294 = vpop.f32.mrf.mxu0
    %v3295 = vadd.f32 0.0, %v3294
    %v3296 = vpop.f32.mrf.mxu0
    %3297 = vdwg.mxu0
    %3300 = vrot.lane.b32.xlu0 %v347, 96
    %v3301 = vpop.permute.xlu0 %3300
    %3302 = vrot.lane.b32.xlu0 %v353, 96
    %v3303 = vpop.permute.xlu0 %3302
    %v3307 = vsel %vm736, %v3203, 0
    %v3310 = vsel %vm736, %v3204, 0
    %3312 = vmatprep.subr.mxu0 0.0
    %3313 = vmatpush1.msra.mxu0 0.0
    %3314 = vmatprep.subr.mxu0 0.0
    %3315 = vmatpush1.msra.mxu0 0.0
    %3316 = vmatprep.subr.mxu0 0.0
    %3317 = vmatpush1.msra.mxu0 0.0
    %3318 = vmatprep.subr.mxu0 0.0
    %3319 = vmatpush1.msra.mxu0 0.0
    %3320 = vmatprep.subr.mxu0 0.0
    %3321 = vmatpush1.msra.mxu0 0.0
    %3322 = vmatprep.subr.mxu0 0.0
    %3323 = vmatpush1.msra.mxu0 0.0
    %3324 = vmatprep.subr.mxu0 0.0
    %3325 = vmatpush1.msra.mxu0 0.0
    %3326 = vmatprep.subr.mxu0 0.0
    %3327 = vmatpush1.msra.mxu0 0.0
    %3328 = vmatprep.subr.mxu0 0.0
    %3329 = vmatpush1.msra.mxu0 0.0
    %3330 = vmatprep.subr.mxu0 0.0
    %3331 = vmatpush1.msra.mxu0 0.0
    %3332 = vmatprep.subr.mxu0 0.0
    %3333 = vmatpush1.msra.mxu0 0.0
    %3334 = vmatprep.subr.mxu0 0.0
    %3335 = vmatpush1.msra.mxu0 0.0
    %3336 = vmatprep.subr.mxu0 0.0
    %3337 = vmatpush1.msra.mxu0 0.0
    %3338 = vmatprep.subr.mxu0 0.0
    %3339 = vmatpush1.msra.mxu0 0.0
    %3340 = vmatprep.subr.mxu0 0.0
    %3341 = vmatpush1.msra.mxu0 %v3303
    %3342 = vmatprep.subr.mxu0 0.0
    %3343 = vmatpush1.msra.mxu0 %v3301
    %3344 = vmatprep.subr.mxu0 0.0
    %3345 = vmatpush2.msra.mxu0 0.0
    %3346 = vmatprep.subr.mxu0 0.0
    %3347 = vmatpush2.msra.mxu0 0.0
    %3348 = vmatprep.subr.mxu0 0.0
    %3349 = vmatpush2.msra.mxu0 0.0
    %3350 = vmatprep.subr.mxu0 0.0
    %3351 = vmatpush2.msra.mxu0 0.0
    %3352 = vmatprep.subr.mxu0 0.0
    %3353 = vmatpush2.msra.mxu0 0.0
    %3354 = vmatprep.subr.mxu0 0.0
    %3355 = vmatpush2.msra.mxu0 0.0
    %3356 = vmatprep.subr.mxu0 0.0
    %3357 = vmatpush2.msra.mxu0 0.0
    %3358 = vmatprep.subr.mxu0 0.0
    %3359 = vmatpush2.msra.mxu0 0.0
    %3360 = vmatprep.subr.mxu0 0.0
    %3361 = vmatpush2.msra.mxu0 0.0
    %3362 = vmatprep.subr.mxu0 0.0
    %3363 = vmatpush2.msra.mxu0 0.0
    %3364 = vmatprep.subr.mxu0 0.0
    %3365 = vmatpush2.msra.mxu0 0.0
    %3366 = vmatprep.subr.mxu0 0.0
    %3367 = vmatpush2.msra.mxu0 0.0
    %3368 = vmatprep.subr.mxu0 0.0
    %3369 = vmatpush2.msra.mxu0 0.0
    %3370 = vmatprep.subr.mxu0 0.0
    %3371 = vmatpush2.msra.mxu0 0.0
    %3372 = vmatprep.subr.mxu0 0.0
    %3373 = vmatpush2.msra.mxu0 0.0
    %3374 = vmatprep.subr.mxu0 0.0
    %3375 = vmatpush2.msra.mxu0 0.0
    %3376 = vmatprep.mubr.f32.mxu0 0.0
    %3377 = vmatmul.mubr.f32.gmra.mxu0 %v3307
    %v3378 = vpop.f32.mrf.mxu0
    %v3379 = vadd.f32 0.0, %v3378
    %v3380 = vpop.f32.mrf.mxu0
    %3381 = vmatprep.mubr.f32.mxu0 0.0
    %3382 = vmatmul.mubr.f32.gmra.mxu0 %v3310
    %v3383 = vpop.f32.mrf.mxu0
    %v3384 = vadd.f32 0.0, %v3383
    %v3385 = vpop.f32.mrf.mxu0
    %3386 = vdwg.mxu0
    %3389 = vrot.lane.b32.xlu0 %v359, 96
    %v3390 = vpop.permute.xlu0 %3389
    %3391 = vrot.lane.b32.xlu0 %v365, 96
    %v3392 = vpop.permute.xlu0 %3391
    %v3396 = vsel %vm736, %v3205, 0
    %v3399 = vsel %vm736, %v3206, 0
    %3401 = vmatprep.subr.mxu0 0.0
    %3402 = vmatpush1.msra.mxu0 0.0
    %3403 = vmatprep.subr.mxu0 0.0
    %3404 = vmatpush1.msra.mxu0 0.0
    %3405 = vmatprep.subr.mxu0 0.0
    %3406 = vmatpush1.msra.mxu0 0.0
    %3407 = vmatprep.subr.mxu0 0.0
    %3408 = vmatpush1.msra.mxu0 0.0
    %3409 = vmatprep.subr.mxu0 0.0
    %3410 = vmatpush1.msra.mxu0 0.0
    %3411 = vmatprep.subr.mxu0 0.0
    %3412 = vmatpush1.msra.mxu0 0.0
    %3413 = vmatprep.subr.mxu0 0.0
    %3414 = vmatpush1.msra.mxu0 0.0
    %3415 = vmatprep.subr.mxu0 0.0
    %3416 = vmatpush1.msra.mxu0 0.0
    %3417 = vmatprep.subr.mxu0 0.0
    %3418 = vmatpush1.msra.mxu0 0.0
    %3419 = vmatprep.subr.mxu0 0.0
    %3420 = vmatpush1.msra.mxu0 0.0
    %3421 = vmatprep.subr.mxu0 0.0
    %3422 = vmatpush1.msra.mxu0 0.0
    %3423 = vmatprep.subr.mxu0 0.0
    %3424 = vmatpush1.msra.mxu0 0.0
    %3425 = vmatprep.subr.mxu0 0.0
    %3426 = vmatpush1.msra.mxu0 0.0
    %3427 = vmatprep.subr.mxu0 0.0
    %3428 = vmatpush1.msra.mxu0 0.0
    %3429 = vmatprep.subr.mxu0 0.0
    %3430 = vmatpush1.msra.mxu0 %v3392
    %3431 = vmatprep.subr.mxu0 0.0
    %3432 = vmatpush1.msra.mxu0 %v3390
    %3433 = vmatprep.subr.mxu0 0.0
    %3434 = vmatpush2.msra.mxu0 0.0
    %3435 = vmatprep.subr.mxu0 0.0
    %3436 = vmatpush2.msra.mxu0 0.0
    %3437 = vmatprep.subr.mxu0 0.0
    %3438 = vmatpush2.msra.mxu0 0.0
    %3439 = vmatprep.subr.mxu0 0.0
    %3440 = vmatpush2.msra.mxu0 0.0
    %3441 = vmatprep.subr.mxu0 0.0
    %3442 = vmatpush2.msra.mxu0 0.0
    %3443 = vmatprep.subr.mxu0 0.0
    %3444 = vmatpush2.msra.mxu0 0.0
    %3445 = vmatprep.subr.mxu0 0.0
    %3446 = vmatpush2.msra.mxu0 0.0
    %3447 = vmatprep.subr.mxu0 0.0
    %3448 = vmatpush2.msra.mxu0 0.0
    %3449 = vmatprep.subr.mxu0 0.0
    %3450 = vmatpush2.msra.mxu0 0.0
    %3451 = vmatprep.subr.mxu0 0.0
    %3452 = vmatpush2.msra.mxu0 0.0
    %3453 = vmatprep.subr.mxu0 0.0
    %3454 = vmatpush2.msra.mxu0 0.0
    %3455 = vmatprep.subr.mxu0 0.0
    %3456 = vmatpush2.msra.mxu0 0.0
    %3457 = vmatprep.subr.mxu0 0.0
    %3458 = vmatpush2.msra.mxu0 0.0
    %3459 = vmatprep.subr.mxu0 0.0
    %3460 = vmatpush2.msra.mxu0 0.0
    %3461 = vmatprep.subr.mxu0 0.0
    %3462 = vmatpush2.msra.mxu0 0.0
    %3463 = vmatprep.subr.mxu0 0.0
    %3464 = vmatpush2.msra.mxu0 0.0
    %3465 = vmatprep.mubr.f32.mxu0 0.0
    %3466 = vmatmul.mubr.f32.gmra.mxu0 %v3396
    %v3467 = vpop.f32.mrf.mxu0
    %v3468 = vadd.f32 0.0, %v3467
    %v3469 = vpop.f32.mrf.mxu0
    %3470 = vmatprep.mubr.f32.mxu0 0.0
    %3471 = vmatmul.mubr.f32.gmra.mxu0 %v3399
    %v3472 = vpop.f32.mrf.mxu0
    %v3473 = vadd.f32 0.0, %v3472
    %v3474 = vpop.f32.mrf.mxu0
    %3475 = vdwg.mxu0
    %3478 = vrot.lane.b32.xlu0 %v371, 96
    %v3479 = vpop.permute.xlu0 %3478
    %3480 = vrot.lane.b32.xlu0 %v377, 96
    %v3481 = vpop.permute.xlu0 %3480
    %v3485 = vsel %vm736, %v3207, 0
    %v3488 = vsel %vm736, %v3208, 0
    %3490 = vmatprep.subr.mxu0 0.0
    %3491 = vmatpush1.msra.mxu0 0.0
    %3492 = vmatprep.subr.mxu0 0.0
    %3493 = vmatpush1.msra.mxu0 0.0
    %3494 = vmatprep.subr.mxu0 0.0
    %3495 = vmatpush1.msra.mxu0 0.0
    %3496 = vmatprep.subr.mxu0 0.0
    %3497 = vmatpush1.msra.mxu0 0.0
    %3498 = vmatprep.subr.mxu0 0.0
    %3499 = vmatpush1.msra.mxu0 0.0
    %3500 = vmatprep.subr.mxu0 0.0
    %3501 = vmatpush1.msra.mxu0 0.0
    %3502 = vmatprep.subr.mxu0 0.0
    %3503 = vmatpush1.msra.mxu0 0.0
    %3504 = vmatprep.subr.mxu0 0.0
    %3505 = vmatpush1.msra.mxu0 0.0
    %3506 = vmatprep.subr.mxu0 0.0
    %3507 = vmatpush1.msra.mxu0 0.0
    %3508 = vmatprep.subr.mxu0 0.0
    %3509 = vmatpush1.msra.mxu0 0.0
    %3510 = vmatprep.subr.mxu0 0.0
    %3511 = vmatpush1.msra.mxu0 0.0
    %3512 = vmatprep.subr.mxu0 0.0
    %3513 = vmatpush1.msra.mxu0 0.0
    %3514 = vmatprep.subr.mxu0 0.0
    %3515 = vmatpush1.msra.mxu0 0.0
    %3516 = vmatprep.subr.mxu0 0.0
    %3517 = vmatpush1.msra.mxu0 0.0
    %3518 = vmatprep.subr.mxu0 0.0
    %3519 = vmatpush1.msra.mxu0 %v3481
    %3520 = vmatprep.subr.mxu0 0.0
    %3521 = vmatpush1.msra.mxu0 %v3479
    %3522 = vmatprep.subr.mxu0 0.0
    %3523 = vmatpush2.msra.mxu0 0.0
    %3524 = vmatprep.subr.mxu0 0.0
    %3525 = vmatpush2.msra.mxu0 0.0
    %3526 = vmatprep.subr.mxu0 0.0
    %3527 = vmatpush2.msra.mxu0 0.0
    %3528 = vmatprep.subr.mxu0 0.0
    %3529 = vmatpush2.msra.mxu0 0.0
    %3530 = vmatprep.subr.mxu0 0.0
    %3531 = vmatpush2.msra.mxu0 0.0
    %3532 = vmatprep.subr.mxu0 0.0
    %3533 = vmatpush2.msra.mxu0 0.0
    %3534 = vmatprep.subr.mxu0 0.0
    %3535 = vmatpush2.msra.mxu0 0.0
    %3536 = vmatprep.subr.mxu0 0.0
    %3537 = vmatpush2.msra.mxu0 0.0
    %3538 = vmatprep.subr.mxu0 0.0
    %3539 = vmatpush2.msra.mxu0 0.0
    %3540 = vmatprep.subr.mxu0 0.0
    %3541 = vmatpush2.msra.mxu0 0.0
    %3542 = vmatprep.subr.mxu0 0.0
    %3543 = vmatpush2.msra.mxu0 0.0
    %3544 = vmatprep.subr.mxu0 0.0
    %3545 = vmatpush2.msra.mxu0 0.0
    %3546 = vmatprep.subr.mxu0 0.0
    %3547 = vmatpush2.msra.mxu0 0.0
    %3548 = vmatprep.subr.mxu0 0.0
    %3549 = vmatpush2.msra.mxu0 0.0
    %3550 = vmatprep.subr.mxu0 0.0
    %3551 = vmatpush2.msra.mxu0 0.0
    %3552 = vmatprep.subr.mxu0 0.0
    %3553 = vmatpush2.msra.mxu0 0.0
    %3554 = vmatprep.mubr.f32.mxu0 0.0
    %3555 = vmatmul.mubr.f32.gmra.mxu0 %v3485
    %v3556 = vpop.f32.mrf.mxu0
    %v3557 = vadd.f32 0.0, %v3556
    %v3558 = vpop.f32.mrf.mxu0
    %3559 = vmatprep.mubr.f32.mxu0 0.0
    %3560 = vmatmul.mubr.f32.gmra.mxu0 %v3488
    %v3561 = vpop.f32.mrf.mxu0
    %v3562 = vadd.f32 0.0, %v3561
    %v3563 = vpop.f32.mrf.mxu0
    %3564 = vdwg.mxu0
    %v3565 = vadd.f32 %v2749, %v3290
    %v3566 = vadd.f32 %v2750, %v3295
    %v3567 = vadd.f32 %v2751, %v3379
    %v3568 = vadd.f32 %v2752, %v3384
    %v3569 = vadd.f32 %v2753, %v3468
    %v3570 = vadd.f32 %v2754, %v3473
    %v3571 = vadd.f32 %v2755, %v3557
    %v3572 = vadd.f32 %v2756, %v3562
    %v3573 = vadd.f32 %v83, %v3565
    %v3574 = vadd.f32 %v84, %v3566
    %v3575 = vadd.f32 %v85, %v3567
    %v3576 = vadd.f32 %v86, %v3568
    %v3577 = vadd.f32 %v87, %v3569
    %v3578 = vadd.f32 %v88, %v3570
    %v3579 = vadd.f32 %v89, %v3571
    %v3580 = vadd.f32 %v90, %v3572
    %v3581 = vlaneseq
    %v3582 = vshrl.u32 %v3581, 7
    %v3583 = vsub.s32 2, %v3582
    %v3584 = vrot.slane %v111, %v3583
    %v3585 = vadd.f32 %v3573, %v3584
    %v3586 = vadd.f32 %v3574, %v3584
    %v3587 = vadd.f32 %v3575, %v3584
    %v3588 = vadd.f32 %v3576, %v3584
    %v3589 = vadd.f32 %v3577, %v3584
    %v3590 = vadd.f32 %v3578, %v3584
    %v3591 = vadd.f32 %v3579, %v3584
    %v3592 = vadd.f32 %v3580, %v3584
    %v3593 = vsel %vm112, %v3585, 0.0
    %3594 = vadd.xlane.f32.xlu0 %v3593
    %v3595 = vpop.xlane.xlu0 %3594
    %v3596 = vsel %vm112, %v3586, 0.0
    %3597 = vadd.xlane.f32.xlu0 %v3596
    %v3598 = vpop.xlane.xlu0 %3597
    %v3599 = vsel %vm112, %v3587, 0.0
    %3600 = vadd.xlane.f32.xlu0 %v3599
    %v3601 = vpop.xlane.xlu0 %3600
    %v3602 = vsel %vm112, %v3588, 0.0
    %3603 = vadd.xlane.f32.xlu0 %v3602
    %v3604 = vpop.xlane.xlu0 %3603
    %v3605 = vsel %vm112, %v3589, 0.0
    %3606 = vadd.xlane.f32.xlu0 %v3605
    %v3607 = vpop.xlane.xlu0 %3606
    %v3608 = vsel %vm112, %v3590, 0.0
    %3609 = vadd.xlane.f32.xlu0 %v3608
    %v3610 = vpop.xlane.xlu0 %3609
    %v3611 = vsel %vm112, %v3591, 0.0
    %3612 = vadd.xlane.f32.xlu0 %v3611
    %v3613 = vpop.xlane.xlu0 %3612
    %v3614 = vsel %vm112, %v3592, 0.0
    %3615 = vadd.xlane.f32.xlu0 %v3614
    %v3616 = vpop.xlane.xlu0 %3615
    %v3617 = vmul.f32 %v3595, %v137
    %v3618 = vmul.f32 %v3598, %v137
    %v3619 = vmul.f32 %v3601, %v137
    %v3620 = vmul.f32 %v3604, %v137
    %v3621 = vmul.f32 %v3607, %v137
    %v3622 = vmul.f32 %v3610, %v137
    %v3623 = vmul.f32 %v3613, %v137
    %v3624 = vmul.f32 %v3616, %v137
    %v3625 = vsub.f32 %v3585, %v3617
    %v3626 = vsub.f32 %v3586, %v3618
    %v3627 = vsub.f32 %v3587, %v3619
    %v3628 = vsub.f32 %v3588, %v3620
    %v3629 = vsub.f32 %v3589, %v3621
    %v3630 = vsub.f32 %v3590, %v3622
    %v3631 = vsub.f32 %v3591, %v3623
    %v3632 = vsub.f32 %v3592, %v3624
    %v3633 = vmul.f32 %v3625, %v3625
    %v3634 = vmul.f32 %v3626, %v3626
    %v3635 = vmul.f32 %v3627, %v3627
    %v3636 = vmul.f32 %v3628, %v3628
    %v3637 = vmul.f32 %v3629, %v3629
    %v3638 = vmul.f32 %v3630, %v3630
    %v3639 = vmul.f32 %v3631, %v3631
    %v3640 = vmul.f32 %v3632, %v3632
    %v3641 = vsel %vm112, %v3633, 0.0
    %3642 = vadd.xlane.f32.xlu0 %v3641
    %v3643 = vpop.xlane.xlu0 %3642
    %v3644 = vsel %vm112, %v3634, 0.0
    %3645 = vadd.xlane.f32.xlu0 %v3644
    %v3646 = vpop.xlane.xlu0 %3645
    %v3647 = vsel %vm112, %v3635, 0.0
    %3648 = vadd.xlane.f32.xlu0 %v3647
    %v3649 = vpop.xlane.xlu0 %3648
    %v3650 = vsel %vm112, %v3636, 0.0
    %3651 = vadd.xlane.f32.xlu0 %v3650
    %v3652 = vpop.xlane.xlu0 %3651
    %v3653 = vsel %vm112, %v3637, 0.0
    %3654 = vadd.xlane.f32.xlu0 %v3653
    %v3655 = vpop.xlane.xlu0 %3654
    %v3656 = vsel %vm112, %v3638, 0.0
    %3657 = vadd.xlane.f32.xlu0 %v3656
    %v3658 = vpop.xlane.xlu0 %3657
    %v3659 = vsel %vm112, %v3639, 0.0
    %3660 = vadd.xlane.f32.xlu0 %v3659
    %v3661 = vpop.xlane.xlu0 %3660
    %v3662 = vsel %vm112, %v3640, 0.0
    %3663 = vadd.xlane.f32.xlu0 %v3662
    %v3664 = vpop.xlane.xlu0 %3663
    %v3665 = vmul.f32 %v3643, %v137
    %v3666 = vmul.f32 %v3646, %v137
    %v3667 = vmul.f32 %v3649, %v137
    %v3668 = vmul.f32 %v3652, %v137
    %v3669 = vmul.f32 %v3655, %v137
    %v3670 = vmul.f32 %v3658, %v137
    %v3671 = vmul.f32 %v3661, %v137
    %v3672 = vmul.f32 %v3664, %v137
    %v3673 = vadd.f32 %v3665, 1e-05
    %v3674 = vadd.f32 %v3666, 1e-05
    %v3675 = vadd.f32 %v3667, 1e-05
    %v3676 = vadd.f32 %v3668, 1e-05
    %v3677 = vadd.f32 %v3669, 1e-05
    %v3678 = vadd.f32 %v3670, 1e-05
    %v3679 = vadd.f32 %v3671, 1e-05
    %v3680 = vadd.f32 %v3672, 1e-05
    %v3681 = vrsqrt.pop %v3673
    %v3682 = vrsqrt.pop %v3674
    %v3683 = vrsqrt.pop %v3675
    %v3684 = vrsqrt.pop %v3676
    %v3685 = vrsqrt.pop %v3677
    %v3686 = vrsqrt.pop %v3678
    %v3687 = vrsqrt.pop %v3679
    %v3688 = vrsqrt.pop %v3680
    %v3689 = vmul.f32 %v3625, %v3681
    %v3690 = vmul.f32 %v3626, %v3682
    %v3691 = vmul.f32 %v3627, %v3683
    %v3692 = vmul.f32 %v3628, %v3684
    %v3693 = vmul.f32 %v3629, %v3685
    %v3694 = vmul.f32 %v3630, %v3686
    %v3695 = vmul.f32 %v3631, %v3687
    %v3696 = vmul.f32 %v3632, %v3688
    %v3697 = vlaneseq
    %v3698 = vshrl.u32 %v3697, 7
    %v3699 = vsub.s32 3, %v3698
    %v3700 = vrot.slane %v111, %v3699
    %v3701 = vmul.f32 %v3689, %v3700
    %v3702 = vmul.f32 %v3690, %v3700
    %v3703 = vmul.f32 %v3691, %v3700
    %v3704 = vmul.f32 %v3692, %v3700
    %v3705 = vmul.f32 %v3693, %v3700
    %v3706 = vmul.f32 %v3694, %v3700
    %v3707 = vmul.f32 %v3695, %v3700
    %v3708 = vmul.f32 %v3696, %v3700
    %v3709 = vlaneseq
    %v3710 = vshrl.u32 %v3709, 7
    %v3711 = vsub.s32 4, %v3710
    %v3712 = vrot.slane %v111, %v3711
    %v3713 = vadd.f32 %v3701, %v3712
    %v3714 = vadd.f32 %v3702, %v3712
    %v3715 = vadd.f32 %v3703, %v3712
    %v3716 = vadd.f32 %v3704, %v3712
    %v3717 = vadd.f32 %v3705, %v3712
    %v3718 = vadd.f32 %v3706, %v3712
    %v3719 = vadd.f32 %v3707, %v3712
    %v3720 = vadd.f32 %v3708, %v3712
    %v3721 = vlaneseq
    %v3722 = vshrl.u32 %v3721, 7
    %v3723 = vsub.s32 5, %v3722
    %v3724 = vrot.slane %v111, %v3723
    %3729 = vrot.lane.b32.xlu0 %v96, 64
    %v3730 = vpop.permute.xlu0 %3729
    %3731 = vrot.lane.b32.xlu0 %v99, 64
    %v3732 = vpop.permute.xlu0 %3731
    %3733 = vrot.lane.b32.xlu0 %v102, 64
    %v3734 = vpop.permute.xlu0 %3733
    %3735 = vrot.lane.b32.xlu0 %v105, 64
    %v3736 = vpop.permute.xlu0 %3735
    %v3742 = vsel %vm112, %v3713, 0
    %v3745 = vsel %vm112, %v3714, 0
    %v3748 = vsel %vm112, %v3715, 0
    %v3751 = vsel %vm112, %v3716, 0
    %v3754 = vsel %vm112, %v3717, 0
    %v3757 = vsel %vm112, %v3718, 0
    %v3760 = vsel %vm112, %v3719, 0
    %v3763 = vsel %vm112, %v3720, 0
    %3765 = vmatprep.subr.mxu0 0.0
    %3766 = vmatpush1.msra.mxu0 0.0
    %3767 = vmatprep.subr.mxu0 0.0
    %3768 = vmatpush1.msra.mxu0 0.0
    %3769 = vmatprep.subr.mxu0 0.0
    %3770 = vmatpush1.msra.mxu0 0.0
    %3771 = vmatprep.subr.mxu0 0.0
    %3772 = vmatpush1.msra.mxu0 0.0
    %3773 = vmatprep.subr.mxu0 0.0
    %3774 = vmatpush1.msra.mxu0 0.0
    %3775 = vmatprep.subr.mxu0 0.0
    %3776 = vmatpush1.msra.mxu0 0.0
    %3777 = vmatprep.subr.mxu0 0.0
    %3778 = vmatpush1.msra.mxu0 0.0
    %3779 = vmatprep.subr.mxu0 0.0
    %3780 = vmatpush1.msra.mxu0 0.0
    %3781 = vmatprep.subr.mxu0 0.0
    %3782 = vmatpush1.msra.mxu0 0.0
    %3783 = vmatprep.subr.mxu0 0.0
    %3784 = vmatpush1.msra.mxu0 0.0
    %3785 = vmatprep.subr.mxu0 0.0
    %3786 = vmatpush1.msra.mxu0 0.0
    %3787 = vmatprep.subr.mxu0 0.0
    %3788 = vmatpush1.msra.mxu0 0.0
    %3789 = vmatprep.subr.mxu0 0.0
    %3790 = vmatpush1.msra.mxu0 %v3736
    %3791 = vmatprep.subr.mxu0 0.0
    %3792 = vmatpush1.msra.mxu0 %v3734
    %3793 = vmatprep.subr.mxu0 0.0
    %3794 = vmatpush1.msra.mxu0 %v3732
    %3795 = vmatprep.subr.mxu0 0.0
    %3796 = vmatpush1.msra.mxu0 %v3730
    %3797 = vmatprep.subr.mxu0 0.0
    %3798 = vmatpush2.msra.mxu0 0.0
    %3799 = vmatprep.subr.mxu0 0.0
    %3800 = vmatpush2.msra.mxu0 0.0
    %3801 = vmatprep.subr.mxu0 0.0
    %3802 = vmatpush2.msra.mxu0 0.0
    %3803 = vmatprep.subr.mxu0 0.0
    %3804 = vmatpush2.msra.mxu0 0.0
    %3805 = vmatprep.subr.mxu0 0.0
    %3806 = vmatpush2.msra.mxu0 0.0
    %3807 = vmatprep.subr.mxu0 0.0
    %3808 = vmatpush2.msra.mxu0 0.0
    %3809 = vmatprep.subr.mxu0 0.0
    %3810 = vmatpush2.msra.mxu0 0.0
    %3811 = vmatprep.subr.mxu0 0.0
    %3812 = vmatpush2.msra.mxu0 0.0
    %3813 = vmatprep.subr.mxu0 0.0
    %3814 = vmatpush2.msra.mxu0 0.0
    %3815 = vmatprep.subr.mxu0 0.0
    %3816 = vmatpush2.msra.mxu0 0.0
    %3817 = vmatprep.subr.mxu0 0.0
    %3818 = vmatpush2.msra.mxu0 0.0
    %3819 = vmatprep.subr.mxu0 0.0
    %3820 = vmatpush2.msra.mxu0 0.0
    %3821 = vmatprep.subr.mxu0 0.0
    %3822 = vmatpush2.msra.mxu0 0.0
    %3823 = vmatprep.subr.mxu0 0.0
    %3824 = vmatpush2.msra.mxu0 0.0
    %3825 = vmatprep.subr.mxu0 0.0
    %3826 = vmatpush2.msra.mxu0 0.0
    %3827 = vmatprep.subr.mxu0 0.0
    %3828 = vmatpush2.msra.mxu0 0.0
    %3829 = vmatprep.mubr.f32.mxu0 0.0
    %3830 = vmatmul.mubr.f32.gmra.mxu0 %v3742
    %v3831 = vpop.f32.mrf.mxu0
    %v3832 = vadd.f32 %v3724, %v3831
    %v3833 = vpop.f32.mrf.mxu0
    %3834 = vmatprep.mubr.f32.mxu0 0.0
    %3835 = vmatmul.mubr.f32.gmra.mxu0 %v3745
    %v3836 = vpop.f32.mrf.mxu0
    %v3837 = vadd.f32 %v3724, %v3836
    %v3838 = vpop.f32.mrf.mxu0
    %3839 = vmatprep.mubr.f32.mxu0 0.0
    %3840 = vmatmul.mubr.f32.gmra.mxu0 %v3748
    %v3841 = vpop.f32.mrf.mxu0
    %v3842 = vadd.f32 %v3724, %v3841
    %v3843 = vpop.f32.mrf.mxu0
    %3844 = vmatprep.mubr.f32.mxu0 0.0
    %3845 = vmatmul.mubr.f32.gmra.mxu0 %v3751
    %v3846 = vpop.f32.mrf.mxu0
    %v3847 = vadd.f32 %v3724, %v3846
    %v3848 = vpop.f32.mrf.mxu0
    %3849 = vmatprep.mubr.f32.mxu0 0.0
    %3850 = vmatmul.mubr.f32.gmra.mxu0 %v3754
    %v3851 = vpop.f32.mrf.mxu0
    %v3852 = vadd.f32 %v3724, %v3851
    %v3853 = vpop.f32.mrf.mxu0
    %3854 = vmatprep.mubr.f32.mxu0 0.0
    %3855 = vmatmul.mubr.f32.gmra.mxu0 %v3757
    %v3856 = vpop.f32.mrf.mxu0
    %v3857 = vadd.f32 %v3724, %v3856
    %v3858 = vpop.f32.mrf.mxu0
    %3859 = vmatprep.mubr.f32.mxu0 0.0
    %3860 = vmatmul.mubr.f32.gmra.mxu0 %v3760
    %v3861 = vpop.f32.mrf.mxu0
    %v3862 = vadd.f32 %v3724, %v3861
    %v3863 = vpop.f32.mrf.mxu0
    %3864 = vmatprep.mubr.f32.mxu0 0.0
    %3865 = vmatmul.mubr.f32.gmra.mxu0 %v3763
    %v3866 = vpop.f32.mrf.mxu0
    %v3867 = vadd.f32 %v3724, %v3866
    %v3868 = vpop.f32.mrf.mxu0
    %3869 = vdwg.mxu0
    %v3870 = vmul.f32 %v3832, 0.5
    %v3871 = vmul.f32 %v3837, 0.5
    %v3872 = vmul.f32 %v3842, 0.5
    %v3873 = vmul.f32 %v3847, 0.5
    %v3874 = vmul.f32 %v3852, 0.5
    %v3875 = vmul.f32 %v3857, 0.5
    %v3876 = vmul.f32 %v3862, 0.5
    %v3877 = vmul.f32 %v3867, 0.5
    %v3878 = vmul.f32 %v3832, 0.70710677
    %v3879 = vmul.f32 %v3837, 0.70710677
    %v3880 = vmul.f32 %v3842, 0.70710677
    %v3881 = vmul.f32 %v3847, 0.70710677
    %v3882 = vmul.f32 %v3852, 0.70710677
    %v3883 = vmul.f32 %v3857, 0.70710677
    %v3884 = vmul.f32 %v3862, 0.70710677
    %v3885 = vmul.f32 %v3867, 0.70710677
    %v3886 = verf.f32.pop %v3878
    %v3887 = verf.f32.pop %v3879
    %v3888 = verf.f32.pop %v3880
    %v3889 = verf.f32.pop %v3881
    %v3890 = verf.f32.pop %v3882
    %v3891 = verf.f32.pop %v3883
    %v3892 = verf.f32.pop %v3884
    %v3893 = verf.f32.pop %v3885
    %v3894 = vadd.f32 %v3886, 1.0
    %v3895 = vadd.f32 %v3887, 1.0
    %v3896 = vadd.f32 %v3888, 1.0
    %v3897 = vadd.f32 %v3889, 1.0
    %v3898 = vadd.f32 %v3890, 1.0
    %v3899 = vadd.f32 %v3891, 1.0
    %v3900 = vadd.f32 %v3892, 1.0
    %v3901 = vadd.f32 %v3893, 1.0
    %v3902 = vmul.f32 %v3870, %v3894
    %v3903 = vmul.f32 %v3871, %v3895
    %v3904 = vmul.f32 %v3872, %v3896
    %v3905 = vmul.f32 %v3873, %v3897
    %v3906 = vmul.f32 %v3874, %v3898
    %v3907 = vmul.f32 %v3875, %v3899
    %v3908 = vmul.f32 %v3876, %v3900
    %v3909 = vmul.f32 %v3877, %v3901
    %vm3910 = vcmask 523264
    %v3912 = vsel %vm3910, %v3902, 0
    %v3915 = vsel %vm3910, %v3903, 0
    %v3918 = vsel %vm3910, %v3904, 0
    %v3921 = vsel %vm3910, %v3905, 0
    %v3924 = vsel %vm3910, %v3906, 0
    %v3927 = vsel %vm3910, %v3907, 0
    %v3930 = vsel %vm3910, %v3908, 0
    %v3933 = vsel %vm3910, %v3909, 0
    %3935 = vmatprep.subr.mxu0 0.0
    %3936 = vmatpush1.msra.mxu0 0.0
    %3937 = vmatprep.subr.mxu0 0.0
    %3938 = vmatpush1.msra.mxu0 0.0
    %3939 = vmatprep.subr.mxu0 0.0
    %3940 = vmatpush1.msra.mxu0 0.0
    %3941 = vmatprep.subr.mxu0 0.0
    %3942 = vmatpush1.msra.mxu0 0.0
    %3943 = vmatprep.subr.mxu0 0.0
    %3944 = vmatpush1.msra.mxu0 0.0
    %3945 = vmatprep.subr.mxu0 0.0
    %3946 = vmatpush1.msra.mxu0 0.0
    %3947 = vmatprep.subr.mxu0 0.0
    %3948 = vmatpush1.msra.mxu0 0.0
    %3949 = vmatprep.subr.mxu0 0.0
    %3950 = vmatpush1.msra.mxu0 0.0
    %3951 = vmatprep.subr.mxu0 0.0
    %3952 = vmatpush1.msra.mxu0 %v110
    %3953 = vmatprep.subr.mxu0 0.0
    %3954 = vmatpush1.msra.mxu0 %v109
    %3955 = vmatprep.subr.mxu0 0.0
    %3956 = vmatpush1.msra.mxu0 %v108
    %3957 = vmatprep.subr.mxu0 0.0
    %3958 = vmatpush1.msra.mxu0 %v107
    %3959 = vmatprep.subr.mxu0 0.0
    %3960 = vmatpush1.msra.mxu0 %v106
    %3961 = vmatprep.subr.mxu0 0.0
    %3962 = vmatpush1.msra.mxu0 %v103
    %3963 = vmatprep.subr.mxu0 0.0
    %3964 = vmatpush1.msra.mxu0 %v100
    %3965 = vmatprep.subr.mxu0 0.0
    %3966 = vmatpush1.msra.mxu0 %v97
    %3967 = vmatprep.subr.mxu0 0.0
    %3968 = vmatpush2.msra.mxu0 0.0
    %3969 = vmatprep.subr.mxu0 0.0
    %3970 = vmatpush2.msra.mxu0 0.0
    %3971 = vmatprep.subr.mxu0 0.0
    %3972 = vmatpush2.msra.mxu0 0.0
    %3973 = vmatprep.subr.mxu0 0.0
    %3974 = vmatpush2.msra.mxu0 0.0
    %3975 = vmatprep.subr.mxu0 0.0
    %3976 = vmatpush2.msra.mxu0 0.0
    %3977 = vmatprep.subr.mxu0 0.0
    %3978 = vmatpush2.msra.mxu0 0.0
    %3979 = vmatprep.subr.mxu0 0.0
    %3980 = vmatpush2.msra.mxu0 0.0
    %3981 = vmatprep.subr.mxu0 0.0
    %3982 = vmatpush2.msra.mxu0 0.0
    %3983 = vmatprep.subr.mxu0 0.0
    %3984 = vmatpush2.msra.mxu0 0.0
    %3985 = vmatprep.subr.mxu0 0.0
    %3986 = vmatpush2.msra.mxu0 0.0
    %3987 = vmatprep.subr.mxu0 0.0
    %3988 = vmatpush2.msra.mxu0 0.0
    %3989 = vmatprep.subr.mxu0 0.0
    %3990 = vmatpush2.msra.mxu0 0.0
    %3991 = vmatprep.subr.mxu0 0.0
    %3992 = vmatpush2.msra.mxu0 0.0
    %3993 = vmatprep.subr.mxu0 0.0
    %3994 = vmatpush2.msra.mxu0 0.0
    %3995 = vmatprep.subr.mxu0 0.0
    %3996 = vmatpush2.msra.mxu0 0.0
    %3997 = vmatprep.subr.mxu0 0.0
    %3998 = vmatpush2.msra.mxu0 0.0
    %3999 = vmatprep.mubr.f32.mxu0 0.0
    %4000 = vmatmul.mubr.f32.gmra.mxu0 %v3912
    %v4001 = vpop.f32.mrf.mxu0
    %v4002 = vadd.f32 0.0, %v4001
    %v4003 = vpop.f32.mrf.mxu0
    %4004 = vmatprep.mubr.f32.mxu0 0.0
    %4005 = vmatmul.mubr.f32.gmra.mxu0 %v3915
    %v4006 = vpop.f32.mrf.mxu0
    %v4007 = vadd.f32 0.0, %v4006
    %v4008 = vpop.f32.mrf.mxu0
    %4009 = vmatprep.mubr.f32.mxu0 0.0
    %4010 = vmatmul.mubr.f32.gmra.mxu0 %v3918
    %v4011 = vpop.f32.mrf.mxu0
    %v4012 = vadd.f32 0.0, %v4011
    %v4013 = vpop.f32.mrf.mxu0
    %4014 = vmatprep.mubr.f32.mxu0 0.0
    %4015 = vmatmul.mubr.f32.gmra.mxu0 %v3921
    %v4016 = vpop.f32.mrf.mxu0
    %v4017 = vadd.f32 0.0, %v4016
    %v4018 = vpop.f32.mrf.mxu0
    %4019 = vmatprep.mubr.f32.mxu0 0.0
    %4020 = vmatmul.mubr.f32.gmra.mxu0 %v3924
    %v4021 = vpop.f32.mrf.mxu0
    %v4022 = vadd.f32 0.0, %v4021
    %v4023 = vpop.f32.mrf.mxu0
    %4024 = vmatprep.mubr.f32.mxu0 0.0
    %4025 = vmatmul.mubr.f32.gmra.mxu0 %v3927
    %v4026 = vpop.f32.mrf.mxu0
    %v4027 = vadd.f32 0.0, %v4026
    %v4028 = vpop.f32.mrf.mxu0
    %4029 = vmatprep.mubr.f32.mxu0 0.0
    %4030 = vmatmul.mubr.f32.gmra.mxu0 %v3930
    %v4031 = vpop.f32.mrf.mxu0
    %v4032 = vadd.f32 0.0, %v4031
    %v4033 = vpop.f32.mrf.mxu0
    %4034 = vmatprep.mubr.f32.mxu0 0.0
    %4035 = vmatmul.mubr.f32.gmra.mxu0 %v3933
    %v4036 = vpop.f32.mrf.mxu0
    %v4037 = vadd.f32 0.0, %v4036
    %v4038 = vpop.f32.mrf.mxu0
    %4039 = vdwg.mxu0
    %v4040 = vadd.f32 %v3585, %v4002
    %v4041 = vadd.f32 %v3586, %v4007
    %v4042 = vadd.f32 %v3587, %v4012
    %v4043 = vadd.f32 %v3588, %v4017
    %v4044 = vadd.f32 %v3589, %v4022
    %v4045 = vadd.f32 %v3590, %v4027
    %v4046 = vadd.f32 %v3591, %v4032
    %v4047 = vadd.f32 %v3592, %v4037
    %v4048 = vlaneseq
    %v4049 = vshrl.u32 %v4048, 7
    %v4050 = vsub.s32 6, %v4049
    %v4051 = vrot.slane %v111, %v4050
    %v4052 = vadd.f32 %v4040, %v4051
    %v4053 = vadd.f32 %v4041, %v4051
    %v4054 = vadd.f32 %v4042, %v4051
    %v4055 = vadd.f32 %v4043, %v4051
    %v4056 = vadd.f32 %v4044, %v4051
    %v4057 = vadd.f32 %v4045, %v4051
    %v4058 = vadd.f32 %v4046, %v4051
    %v4059 = vadd.f32 %v4047, %v4051
    %s4060 = scalar_lea.vmem [#allocation5], 192
    %v4061 = vld [vmem:[%s4060] sm:$0xff]
    %v4062 = vld [vmem:[%s4060 + $0x8] sm:$0xff]
    %v4063 = vld [vmem:[%s4060 + $0x10] sm:$0xff]
    %v4064 = vld [vmem:[%s4060 + $0x18] sm:$0xff]
    %v4065 = vld [vmem:[%s4060 + $0x20] sm:$0xff]
    %v4066 = vld [vmem:[%s4060 + $0x28] sm:$0xff]
    %v4067 = vld [vmem:[%s4060 + $0x30] sm:$0xff]
    %v4068 = vld [vmem:[%s4060 + $0x38] sm:$0xff]
    %v4069 = vld [vmem:[%s4060 + $0x40] sm:$0xff]
    %v4070 = vld [vmem:[%s4060 + $0x48] sm:$0xff]
    %v4071 = vld [vmem:[%s4060 + $0x50] sm:$0xff]
    %v4072 = vld [vmem:[%s4060 + $0x58] sm:$0xff]
    %v4073 = vld [vmem:[%s4060 + $0x70] sm:$0xff]
    %v4074 = vld [vmem:[%s4060 + $0x88] sm:$0xff]
    %v4075 = vld [vmem:[%s4060 + $0xa0] sm:$0xff]
    %v4076 = vld [vmem:[%s4060 + $0xb8] sm:$0xff]
    %s4077 = scalar_lea.vmem [#allocation7], 8
    %v4078 = vld [vmem:[%s4077] sm:$0xff]
    %v4079 = vsel %vm112, %v4052, 0.0
    %4080 = vadd.xlane.f32.xlu0 %v4079
    %v4081 = vpop.xlane.xlu0 %4080
    %v4082 = vsel %vm112, %v4053, 0.0
    %4083 = vadd.xlane.f32.xlu0 %v4082
    %v4084 = vpop.xlane.xlu0 %4083
    %v4085 = vsel %vm112, %v4054, 0.0
    %4086 = vadd.xlane.f32.xlu0 %v4085
    %v4087 = vpop.xlane.xlu0 %4086
    %v4088 = vsel %vm112, %v4055, 0.0
    %4089 = vadd.xlane.f32.xlu0 %v4088
    %v4090 = vpop.xlane.xlu0 %4089
    %v4091 = vsel %vm112, %v4056, 0.0
    %4092 = vadd.xlane.f32.xlu0 %v4091
    %v4093 = vpop.xlane.xlu0 %4092
    %v4094 = vsel %vm112, %v4057, 0.0
    %4095 = vadd.xlane.f32.xlu0 %v4094
    %v4096 = vpop.xlane.xlu0 %4095
    %v4097 = vsel %vm112, %v4058, 0.0
    %4098 = vadd.xlane.f32.xlu0 %v4097
    %v4099 = vpop.xlane.xlu0 %4098
    %v4100 = vsel %vm112, %v4059, 0.0
    %4101 = vadd.xlane.f32.xlu0 %v4100
    %v4102 = vpop.xlane.xlu0 %4101
    %v4103 = vmul.f32 %v4081, %v137
    %v4104 = vmul.f32 %v4084, %v137
    %v4105 = vmul.f32 %v4087, %v137
    %v4106 = vmul.f32 %v4090, %v137
    %v4107 = vmul.f32 %v4093, %v137
    %v4108 = vmul.f32 %v4096, %v137
    %v4109 = vmul.f32 %v4099, %v137
    %v4110 = vmul.f32 %v4102, %v137
    %v4111 = vsub.f32 %v4052, %v4103
    %v4112 = vsub.f32 %v4053, %v4104
    %v4113 = vsub.f32 %v4054, %v4105
    %v4114 = vsub.f32 %v4055, %v4106
    %v4115 = vsub.f32 %v4056, %v4107
    %v4116 = vsub.f32 %v4057, %v4108
    %v4117 = vsub.f32 %v4058, %v4109
    %v4118 = vsub.f32 %v4059, %v4110
    %v4119 = vmul.f32 %v4111, %v4111
    %v4120 = vmul.f32 %v4112, %v4112
    %v4121 = vmul.f32 %v4113, %v4113
    %v4122 = vmul.f32 %v4114, %v4114
    %v4123 = vmul.f32 %v4115, %v4115
    %v4124 = vmul.f32 %v4116, %v4116
    %v4125 = vmul.f32 %v4117, %v4117
    %v4126 = vmul.f32 %v4118, %v4118
    %v4127 = vsel %vm112, %v4119, 0.0
    %4128 = vadd.xlane.f32.xlu0 %v4127
    %v4129 = vpop.xlane.xlu0 %4128
    %v4130 = vsel %vm112, %v4120, 0.0
    %4131 = vadd.xlane.f32.xlu0 %v4130
    %v4132 = vpop.xlane.xlu0 %4131
    %v4133 = vsel %vm112, %v4121, 0.0
    %4134 = vadd.xlane.f32.xlu0 %v4133
    %v4135 = vpop.xlane.xlu0 %4134
    %v4136 = vsel %vm112, %v4122, 0.0
    %4137 = vadd.xlane.f32.xlu0 %v4136
    %v4138 = vpop.xlane.xlu0 %4137
    %v4139 = vsel %vm112, %v4123, 0.0
    %4140 = vadd.xlane.f32.xlu0 %v4139
    %v4141 = vpop.xlane.xlu0 %4140
    %v4142 = vsel %vm112, %v4124, 0.0
    %4143 = vadd.xlane.f32.xlu0 %v4142
    %v4144 = vpop.xlane.xlu0 %4143
    %v4145 = vsel %vm112, %v4125, 0.0
    %4146 = vadd.xlane.f32.xlu0 %v4145
    %v4147 = vpop.xlane.xlu0 %4146
    %v4148 = vsel %vm112, %v4126, 0.0
    %4149 = vadd.xlane.f32.xlu0 %v4148
    %v4150 = vpop.xlane.xlu0 %4149
    %v4151 = vmul.f32 %v4129, %v137
    %v4152 = vmul.f32 %v4132, %v137
    %v4153 = vmul.f32 %v4135, %v137
    %v4154 = vmul.f32 %v4138, %v137
    %v4155 = vmul.f32 %v4141, %v137
    %v4156 = vmul.f32 %v4144, %v137
    %v4157 = vmul.f32 %v4147, %v137
    %v4158 = vmul.f32 %v4150, %v137
    %v4159 = vadd.f32 %v4151, 1e-05
    %v4160 = vadd.f32 %v4152, 1e-05
    %v4161 = vadd.f32 %v4153, 1e-05
    %v4162 = vadd.f32 %v4154, 1e-05
    %v4163 = vadd.f32 %v4155, 1e-05
    %v4164 = vadd.f32 %v4156, 1e-05
    %v4165 = vadd.f32 %v4157, 1e-05
    %v4166 = vadd.f32 %v4158, 1e-05
    %v4167 = vrsqrt.pop %v4159
    %v4168 = vrsqrt.pop %v4160
    %v4169 = vrsqrt.pop %v4161
    %v4170 = vrsqrt.pop %v4162
    %v4171 = vrsqrt.pop %v4163
    %v4172 = vrsqrt.pop %v4164
    %v4173 = vrsqrt.pop %v4165
    %v4174 = vrsqrt.pop %v4166
    %v4175 = vmul.f32 %v4111, %v4167
    %v4176 = vmul.f32 %v4112, %v4168
    %v4177 = vmul.f32 %v4113, %v4169
    %v4178 = vmul.f32 %v4114, %v4170
    %v4179 = vmul.f32 %v4115, %v4171
    %v4180 = vmul.f32 %v4116, %v4172
    %v4181 = vmul.f32 %v4117, %v4173
    %v4182 = vmul.f32 %v4118, %v4174
    %v4183 = vlaneseq
    %v4184 = vshrl.u32 %v4183, 7
    %v4185 = vsub.s32 0, %v4184
    %v4186 = vrot.slane %v4078, %v4185
    %v4187 = vmul.f32 %v4175, %v4186
    %v4188 = vmul.f32 %v4176, %v4186
    %v4189 = vmul.f32 %v4177, %v4186
    %v4190 = vmul.f32 %v4178, %v4186
    %v4191 = vmul.f32 %v4179, %v4186
    %v4192 = vmul.f32 %v4180, %v4186
    %v4193 = vmul.f32 %v4181, %v4186
    %v4194 = vmul.f32 %v4182, %v4186
    %v4195 = vlaneseq
    %v4196 = vshrl.u32 %v4195, 7
    %v4197 = vsub.s32 1, %v4196
    %v4198 = vrot.slane %v4078, %v4197
    %v4199 = vadd.f32 %v4187, %v4198
    %v4200 = vadd.f32 %v4188, %v4198
    %v4201 = vadd.f32 %v4189, %v4198
    %v4202 = vadd.f32 %v4190, %v4198
    %v4203 = vadd.f32 %v4191, %v4198
    %v4204 = vadd.f32 %v4192, %v4198
    %v4205 = vadd.f32 %v4193, %v4198
    %v4206 = vadd.f32 %v4194, %v4198
    %v4208 = vsel %vm112, %v4199, 0
    %v4211 = vsel %vm112, %v4200, 0
    %v4214 = vsel %vm112, %v4201, 0
    %v4217 = vsel %vm112, %v4202, 0
    %v4220 = vsel %vm112, %v4203, 0
    %v4223 = vsel %vm112, %v4204, 0
    %v4226 = vsel %vm112, %v4205, 0
    %v4229 = vsel %vm112, %v4206, 0
    %4231 = vmatprep.subr.mxu0 0.0
    %4232 = vmatpush1.msra.mxu0 0.0
    %4233 = vmatprep.subr.mxu0 0.0
    %4234 = vmatpush1.msra.mxu0 0.0
    %4235 = vmatprep.subr.mxu0 0.0
    %4236 = vmatpush1.msra.mxu0 0.0
    %4237 = vmatprep.subr.mxu0 0.0
    %4238 = vmatpush1.msra.mxu0 0.0
    %4239 = vmatprep.subr.mxu0 0.0
    %4240 = vmatpush1.msra.mxu0 0.0
    %4241 = vmatprep.subr.mxu0 0.0
    %4242 = vmatpush1.msra.mxu0 0.0
    %4243 = vmatprep.subr.mxu0 0.0
    %4244 = vmatpush1.msra.mxu0 0.0
    %4245 = vmatprep.subr.mxu0 0.0
    %4246 = vmatpush1.msra.mxu0 0.0
    %4247 = vmatprep.subr.mxu0 0.0
    %4248 = vmatpush1.msra.mxu0 0.0
    %4249 = vmatprep.subr.mxu0 0.0
    %4250 = vmatpush1.msra.mxu0 0.0
    %4251 = vmatprep.subr.mxu0 0.0
    %4252 = vmatpush1.msra.mxu0 0.0
    %4253 = vmatprep.subr.mxu0 0.0
    %4254 = vmatpush1.msra.mxu0 0.0
    %4255 = vmatprep.subr.mxu0 %v4071
    %4256 = vmatpush1.msra.mxu0 %v4070
    %4257 = vmatprep.subr.mxu0 %v4068
    %4258 = vmatpush1.msra.mxu0 %v4067
    %4259 = vmatprep.subr.mxu0 %v4065
    %4260 = vmatpush1.msra.mxu0 %v4064
    %4261 = vmatprep.subr.mxu0 %v4062
    %4262 = vmatpush1.msra.mxu0 %v4061
    %4263 = vmatprep.subr.mxu0 0.0
    %4264 = vmatpush2.msra.mxu0 0.0
    %4265 = vmatprep.subr.mxu0 0.0
    %4266 = vmatpush2.msra.mxu0 0.0
    %4267 = vmatprep.subr.mxu0 0.0
    %4268 = vmatpush2.msra.mxu0 0.0
    %4269 = vmatprep.subr.mxu0 0.0
    %4270 = vmatpush2.msra.mxu0 0.0
    %4271 = vmatprep.subr.mxu0 0.0
    %4272 = vmatpush2.msra.mxu0 0.0
    %4273 = vmatprep.subr.mxu0 0.0
    %4274 = vmatpush2.msra.mxu0 0.0
    %4275 = vmatprep.subr.mxu0 0.0
    %4276 = vmatpush2.msra.mxu0 0.0
    %4277 = vmatprep.subr.mxu0 0.0
    %4278 = vmatpush2.msra.mxu0 0.0
    %4279 = vmatprep.subr.mxu0 0.0
    %4280 = vmatpush2.msra.mxu0 0.0
    %4281 = vmatprep.subr.mxu0 0.0
    %4282 = vmatpush2.msra.mxu0 0.0
    %4283 = vmatprep.subr.mxu0 0.0
    %4284 = vmatpush2.msra.mxu0 0.0
    %4285 = vmatprep.subr.mxu0 0.0
    %4286 = vmatpush2.msra.mxu0 0.0
    %4287 = vmatprep.subr.mxu0 0.0
    %4288 = vmatpush2.msra.mxu0 0.0
    %4289 = vmatprep.subr.mxu0 0.0
    %4290 = vmatpush2.msra.mxu0 0.0
    %4291 = vmatprep.subr.mxu0 0.0
    %4292 = vmatpush2.msra.mxu0 0.0
    %4293 = vmatprep.subr.mxu0 0.0
    %4294 = vmatpush2.msra.mxu0 0.0
    %4295 = vmatprep.mubr.f32.mxu0 0.0
    %4296 = vmatmul.mubr.f32.gmra.mxu0 %v4208
    %v4297 = vpop.f32.mrf.mxu0
    %v4298 = vadd.f32 0.0, %v4297
    %v4299 = vpop.f32.mrf.mxu0
    %v4300 = vadd.f32 0.0, %v4299
    %4301 = vmatprep.mubr.f32.mxu0 0.0
    %4302 = vmatmul.mubr.f32.gmra.mxu0 %v4211
    %v4303 = vpop.f32.mrf.mxu0
    %v4304 = vadd.f32 0.0, %v4303
    %v4305 = vpop.f32.mrf.mxu0
    %v4306 = vadd.f32 0.0, %v4305
    %4307 = vmatprep.mubr.f32.mxu0 0.0
    %4308 = vmatmul.mubr.f32.gmra.mxu0 %v4214
    %v4309 = vpop.f32.mrf.mxu0
    %v4310 = vadd.f32 0.0, %v4309
    %v4311 = vpop.f32.mrf.mxu0
    %v4312 = vadd.f32 0.0, %v4311
    %4313 = vmatprep.mubr.f32.mxu0 0.0
    %4314 = vmatmul.mubr.f32.gmra.mxu0 %v4217
    %v4315 = vpop.f32.mrf.mxu0
    %v4316 = vadd.f32 0.0, %v4315
    %v4317 = vpop.f32.mrf.mxu0
    %v4318 = vadd.f32 0.0, %v4317
    %4319 = vmatprep.mubr.f32.mxu0 0.0
    %4320 = vmatmul.mubr.f32.gmra.mxu0 %v4220
    %v4321 = vpop.f32.mrf.mxu0
    %v4322 = vadd.f32 0.0, %v4321
    %v4323 = vpop.f32.mrf.mxu0
    %v4324 = vadd.f32 0.0, %v4323
    %4325 = vmatprep.mubr.f32.mxu0 0.0
    %4326 = vmatmul.mubr.f32.gmra.mxu0 %v4223
    %v4327 = vpop.f32.mrf.mxu0
    %v4328 = vadd.f32 0.0, %v4327
    %v4329 = vpop.f32.mrf.mxu0
    %v4330 = vadd.f32 0.0, %v4329
    %4331 = vmatprep.mubr.f32.mxu0 0.0
    %4332 = vmatmul.mubr.f32.gmra.mxu0 %v4226
    %v4333 = vpop.f32.mrf.mxu0
    %v4334 = vadd.f32 0.0, %v4333
    %v4335 = vpop.f32.mrf.mxu0
    %v4336 = vadd.f32 0.0, %v4335
    %4337 = vmatprep.mubr.f32.mxu0 0.0
    %4338 = vmatmul.mubr.f32.gmra.mxu0 %v4229
    %v4339 = vpop.f32.mrf.mxu0
    %v4340 = vadd.f32 0.0, %v4339
    %v4341 = vpop.f32.mrf.mxu0
    %v4342 = vadd.f32 0.0, %v4341
    %4343 = vdwg.mxu0
    %4346 = vrot.lane.b32.xlu0 %v4298, 96
    %v4347 = vpop.permute.xlu0 %4346
    %4348 = vrot.lane.b32.xlu0 %v4304, 96
    %v4349 = vpop.permute.xlu0 %4348
    %v4350 = vsel %vm385, %v4298, 0
    %v4352 = vsel %vm385, %v4304, 0
    %v4354 = vsel %vm385, %v4347, 0
    %v4356 = vsel %vm385, %v4349, 0
    %4358 = vmatprep.subr.mxu0 0.0
    %4359 = vmatpush1.xpose.msra.mxu0 0.0
    %4360 = vmatprep.subr.mxu0 0.0
    %4361 = vmatpush1.xpose.msra.mxu0 0.0
    %4362 = vmatprep.subr.mxu0 0.0
    %4363 = vmatpush1.xpose.msra.mxu0 0.0
    %4364 = vmatprep.subr.mxu0 0.0
    %4365 = vmatpush1.xpose.msra.mxu0 0.0
    %4366 = vmatprep.subr.mxu0 0.0
    %4367 = vmatpush1.xpose.msra.mxu0 0.0
    %4368 = vmatprep.subr.mxu0 0.0
    %4369 = vmatpush1.xpose.msra.mxu0 0.0
    %4370 = vmatprep.subr.mxu0 0.0
    %4371 = vmatpush1.xpose.msra.mxu0 0.0
    %4372 = vmatprep.subr.mxu0 0.0
    %4373 = vmatpush1.xpose.msra.mxu0 0.0
    %4374 = vmatprep.subr.mxu0 0.0
    %4375 = vmatpush1.xpose.msra.mxu0 0.0
    %4376 = vmatprep.subr.mxu0 0.0
    %4377 = vmatpush1.xpose.msra.mxu0 0.0
    %4378 = vmatprep.subr.mxu0 0.0
    %4379 = vmatpush1.xpose.msra.mxu0 0.0
    %4380 = vmatprep.subr.mxu0 0.0
    %4381 = vmatpush1.xpose.msra.mxu0 0.0
    %4382 = vmatprep.subr.mxu0 0.0
    %4383 = vmatpush1.xpose.msra.mxu0 0.0
    %4384 = vmatprep.subr.mxu0 0.0
    %4385 = vmatpush1.xpose.msra.mxu0 0.0
    %4386 = vmatprep.subr.mxu0 0.0
    %4387 = vmatpush1.xpose.msra.mxu0 %v4356
    %4388 = vmatprep.subr.mxu0 0.0
    %4389 = vmatpush1.xpose.msra.mxu0 %v4354
    %4390 = vmatprep.subr.mxu0 0.0
    %4391 = vmatpush2.xpose.msra.mxu0 0.0
    %4392 = vmatprep.subr.mxu0 0.0
    %4393 = vmatpush2.xpose.msra.mxu0 0.0
    %4394 = vmatprep.subr.mxu0 0.0
    %4395 = vmatpush2.xpose.msra.mxu0 0.0
    %4396 = vmatprep.subr.mxu0 0.0
    %4397 = vmatpush2.xpose.msra.mxu0 0.0
    %4398 = vmatprep.subr.mxu0 0.0
    %4399 = vmatpush2.xpose.msra.mxu0 0.0
    %4400 = vmatprep.subr.mxu0 0.0
    %4401 = vmatpush2.xpose.msra.mxu0 0.0
    %4402 = vmatprep.subr.mxu0 0.0
    %4403 = vmatpush2.xpose.msra.mxu0 0.0
    %4404 = vmatprep.subr.mxu0 0.0
    %4405 = vmatpush2.xpose.msra.mxu0 0.0
    %4406 = vmatprep.subr.mxu0 0.0
    %4407 = vmatpush2.xpose.msra.mxu0 0.0
    %4408 = vmatprep.subr.mxu0 0.0
    %4409 = vmatpush2.xpose.msra.mxu0 0.0
    %4410 = vmatprep.subr.mxu0 0.0
    %4411 = vmatpush2.xpose.msra.mxu0 0.0
    %4412 = vmatprep.subr.mxu0 0.0
    %4413 = vmatpush2.xpose.msra.mxu0 0.0
    %4414 = vmatprep.subr.mxu0 0.0
    %4415 = vmatpush2.xpose.msra.mxu0 0.0
    %4416 = vmatprep.subr.mxu0 0.0
    %4417 = vmatpush2.xpose.msra.mxu0 0.0
    %4418 = vmatprep.subr.mxu0 0.0
    %4419 = vmatpush2.xpose.msra.mxu0 0.0
    %4420 = vmatprep.subr.mxu0 0.0
    %4421 = vmatpush2.xpose.msra.mxu0 0.0
    %4422 = vmatprep.mubr.f32.mxu0 0.0
    %4423 = vmatmul.mubr.f32.gmra.mxu0 %v4350
    %v4424 = vpop.f32.mrf.mxu0
    %v4425 = vadd.f32 %v94, %v4424
    %v4426 = vpop.f32.mrf.mxu0
    %4427 = vmatprep.mubr.f32.mxu0 0.0
    %4428 = vmatmul.mubr.f32.gmra.mxu0 %v4352
    %v4429 = vpop.f32.mrf.mxu0
    %v4430 = vadd.f32 %v94, %v4429
    %v4431 = vpop.f32.mrf.mxu0
    %4432 = vdwg.mxu0
    %4435 = vrot.lane.b32.xlu0 %v4310, 96
    %v4436 = vpop.permute.xlu0 %4435
    %4437 = vrot.lane.b32.xlu0 %v4316, 96
    %v4438 = vpop.permute.xlu0 %4437
    %v4439 = vsel %vm385, %v4310, 0
    %v4441 = vsel %vm385, %v4316, 0
    %v4443 = vsel %vm385, %v4436, 0
    %v4445 = vsel %vm385, %v4438, 0
    %4447 = vmatprep.subr.mxu0 0.0
    %4448 = vmatpush1.xpose.msra.mxu0 0.0
    %4449 = vmatprep.subr.mxu0 0.0
    %4450 = vmatpush1.xpose.msra.mxu0 0.0
    %4451 = vmatprep.subr.mxu0 0.0
    %4452 = vmatpush1.xpose.msra.mxu0 0.0
    %4453 = vmatprep.subr.mxu0 0.0
    %4454 = vmatpush1.xpose.msra.mxu0 0.0
    %4455 = vmatprep.subr.mxu0 0.0
    %4456 = vmatpush1.xpose.msra.mxu0 0.0
    %4457 = vmatprep.subr.mxu0 0.0
    %4458 = vmatpush1.xpose.msra.mxu0 0.0
    %4459 = vmatprep.subr.mxu0 0.0
    %4460 = vmatpush1.xpose.msra.mxu0 0.0
    %4461 = vmatprep.subr.mxu0 0.0
    %4462 = vmatpush1.xpose.msra.mxu0 0.0
    %4463 = vmatprep.subr.mxu0 0.0
    %4464 = vmatpush1.xpose.msra.mxu0 0.0
    %4465 = vmatprep.subr.mxu0 0.0
    %4466 = vmatpush1.xpose.msra.mxu0 0.0
    %4467 = vmatprep.subr.mxu0 0.0
    %4468 = vmatpush1.xpose.msra.mxu0 0.0
    %4469 = vmatprep.subr.mxu0 0.0
    %4470 = vmatpush1.xpose.msra.mxu0 0.0
    %4471 = vmatprep.subr.mxu0 0.0
    %4472 = vmatpush1.xpose.msra.mxu0 0.0
    %4473 = vmatprep.subr.mxu0 0.0
    %4474 = vmatpush1.xpose.msra.mxu0 0.0
    %4475 = vmatprep.subr.mxu0 0.0
    %4476 = vmatpush1.xpose.msra.mxu0 %v4445
    %4477 = vmatprep.subr.mxu0 0.0
    %4478 = vmatpush1.xpose.msra.mxu0 %v4443
    %4479 = vmatprep.subr.mxu0 0.0
    %4480 = vmatpush2.xpose.msra.mxu0 0.0
    %4481 = vmatprep.subr.mxu0 0.0
    %4482 = vmatpush2.xpose.msra.mxu0 0.0
    %4483 = vmatprep.subr.mxu0 0.0
    %4484 = vmatpush2.xpose.msra.mxu0 0.0
    %4485 = vmatprep.subr.mxu0 0.0
    %4486 = vmatpush2.xpose.msra.mxu0 0.0
    %4487 = vmatprep.subr.mxu0 0.0
    %4488 = vmatpush2.xpose.msra.mxu0 0.0
    %4489 = vmatprep.subr.mxu0 0.0
    %4490 = vmatpush2.xpose.msra.mxu0 0.0
    %4491 = vmatprep.subr.mxu0 0.0
    %4492 = vmatpush2.xpose.msra.mxu0 0.0
    %4493 = vmatprep.subr.mxu0 0.0
    %4494 = vmatpush2.xpose.msra.mxu0 0.0
    %4495 = vmatprep.subr.mxu0 0.0
    %4496 = vmatpush2.xpose.msra.mxu0 0.0
    %4497 = vmatprep.subr.mxu0 0.0
    %4498 = vmatpush2.xpose.msra.mxu0 0.0
    %4499 = vmatprep.subr.mxu0 0.0
    %4500 = vmatpush2.xpose.msra.mxu0 0.0
    %4501 = vmatprep.subr.mxu0 0.0
    %4502 = vmatpush2.xpose.msra.mxu0 0.0
    %4503 = vmatprep.subr.mxu0 0.0
    %4504 = vmatpush2.xpose.msra.mxu0 0.0
    %4505 = vmatprep.subr.mxu0 0.0
    %4506 = vmatpush2.xpose.msra.mxu0 0.0
    %4507 = vmatprep.subr.mxu0 0.0
    %4508 = vmatpush2.xpose.msra.mxu0 0.0
    %4509 = vmatprep.subr.mxu0 0.0
    %4510 = vmatpush2.xpose.msra.mxu0 0.0
    %4511 = vmatprep.mubr.f32.mxu0 0.0
    %4512 = vmatmul.mubr.f32.gmra.mxu0 %v4439
    %v4513 = vpop.f32.mrf.mxu0
    %v4514 = vadd.f32 %v94, %v4513
    %v4515 = vpop.f32.mrf.mxu0
    %4516 = vmatprep.mubr.f32.mxu0 0.0
    %4517 = vmatmul.mubr.f32.gmra.mxu0 %v4441
    %v4518 = vpop.f32.mrf.mxu0
    %v4519 = vadd.f32 %v94, %v4518
    %v4520 = vpop.f32.mrf.mxu0
    %4521 = vdwg.mxu0
    %4524 = vrot.lane.b32.xlu0 %v4322, 96
    %v4525 = vpop.permute.xlu0 %4524
    %4526 = vrot.lane.b32.xlu0 %v4328, 96
    %v4527 = vpop.permute.xlu0 %4526
    %v4528 = vsel %vm385, %v4322, 0
    %v4530 = vsel %vm385, %v4328, 0
    %v4532 = vsel %vm385, %v4525, 0
    %v4534 = vsel %vm385, %v4527, 0
    %4536 = vmatprep.subr.mxu0 0.0
    %4537 = vmatpush1.xpose.msra.mxu0 0.0
    %4538 = vmatprep.subr.mxu0 0.0
    %4539 = vmatpush1.xpose.msra.mxu0 0.0
    %4540 = vmatprep.subr.mxu0 0.0
    %4541 = vmatpush1.xpose.msra.mxu0 0.0
    %4542 = vmatprep.subr.mxu0 0.0
    %4543 = vmatpush1.xpose.msra.mxu0 0.0
    %4544 = vmatprep.subr.mxu0 0.0
    %4545 = vmatpush1.xpose.msra.mxu0 0.0
    %4546 = vmatprep.subr.mxu0 0.0
    %4547 = vmatpush1.xpose.msra.mxu0 0.0
    %4548 = vmatprep.subr.mxu0 0.0
    %4549 = vmatpush1.xpose.msra.mxu0 0.0
    %4550 = vmatprep.subr.mxu0 0.0
    %4551 = vmatpush1.xpose.msra.mxu0 0.0
    %4552 = vmatprep.subr.mxu0 0.0
    %4553 = vmatpush1.xpose.msra.mxu0 0.0
    %4554 = vmatprep.subr.mxu0 0.0
    %4555 = vmatpush1.xpose.msra.mxu0 0.0
    %4556 = vmatprep.subr.mxu0 0.0
    %4557 = vmatpush1.xpose.msra.mxu0 0.0
    %4558 = vmatprep.subr.mxu0 0.0
    %4559 = vmatpush1.xpose.msra.mxu0 0.0
    %4560 = vmatprep.subr.mxu0 0.0
    %4561 = vmatpush1.xpose.msra.mxu0 0.0
    %4562 = vmatprep.subr.mxu0 0.0
    %4563 = vmatpush1.xpose.msra.mxu0 0.0
    %4564 = vmatprep.subr.mxu0 0.0
    %4565 = vmatpush1.xpose.msra.mxu0 %v4534
    %4566 = vmatprep.subr.mxu0 0.0
    %4567 = vmatpush1.xpose.msra.mxu0 %v4532
    %4568 = vmatprep.subr.mxu0 0.0
    %4569 = vmatpush2.xpose.msra.mxu0 0.0
    %4570 = vmatprep.subr.mxu0 0.0
    %4571 = vmatpush2.xpose.msra.mxu0 0.0
    %4572 = vmatprep.subr.mxu0 0.0
    %4573 = vmatpush2.xpose.msra.mxu0 0.0
    %4574 = vmatprep.subr.mxu0 0.0
    %4575 = vmatpush2.xpose.msra.mxu0 0.0
    %4576 = vmatprep.subr.mxu0 0.0
    %4577 = vmatpush2.xpose.msra.mxu0 0.0
    %4578 = vmatprep.subr.mxu0 0.0
    %4579 = vmatpush2.xpose.msra.mxu0 0.0
    %4580 = vmatprep.subr.mxu0 0.0
    %4581 = vmatpush2.xpose.msra.mxu0 0.0
    %4582 = vmatprep.subr.mxu0 0.0
    %4583 = vmatpush2.xpose.msra.mxu0 0.0
    %4584 = vmatprep.subr.mxu0 0.0
    %4585 = vmatpush2.xpose.msra.mxu0 0.0
    %4586 = vmatprep.subr.mxu0 0.0
    %4587 = vmatpush2.xpose.msra.mxu0 0.0
    %4588 = vmatprep.subr.mxu0 0.0
    %4589 = vmatpush2.xpose.msra.mxu0 0.0
    %4590 = vmatprep.subr.mxu0 0.0
    %4591 = vmatpush2.xpose.msra.mxu0 0.0
    %4592 = vmatprep.subr.mxu0 0.0
    %4593 = vmatpush2.xpose.msra.mxu0 0.0
    %4594 = vmatprep.subr.mxu0 0.0
    %4595 = vmatpush2.xpose.msra.mxu0 0.0
    %4596 = vmatprep.subr.mxu0 0.0
    %4597 = vmatpush2.xpose.msra.mxu0 0.0
    %4598 = vmatprep.subr.mxu0 0.0
    %4599 = vmatpush2.xpose.msra.mxu0 0.0
    %4600 = vmatprep.mubr.f32.mxu0 0.0
    %4601 = vmatmul.mubr.f32.gmra.mxu0 %v4528
    %v4602 = vpop.f32.mrf.mxu0
    %v4603 = vadd.f32 %v94, %v4602
    %v4604 = vpop.f32.mrf.mxu0
    %4605 = vmatprep.mubr.f32.mxu0 0.0
    %4606 = vmatmul.mubr.f32.gmra.mxu0 %v4530
    %v4607 = vpop.f32.mrf.mxu0
    %v4608 = vadd.f32 %v94, %v4607
    %v4609 = vpop.f32.mrf.mxu0
    %4610 = vdwg.mxu0
    %4613 = vrot.lane.b32.xlu0 %v4334, 96
    %v4614 = vpop.permute.xlu0 %4613
    %4615 = vrot.lane.b32.xlu0 %v4340, 96
    %v4616 = vpop.permute.xlu0 %4615
    %v4617 = vsel %vm385, %v4334, 0
    %v4619 = vsel %vm385, %v4340, 0
    %v4621 = vsel %vm385, %v4614, 0
    %v4623 = vsel %vm385, %v4616, 0
    %4625 = vmatprep.subr.mxu0 0.0
    %4626 = vmatpush1.xpose.msra.mxu0 0.0
    %4627 = vmatprep.subr.mxu0 0.0
    %4628 = vmatpush1.xpose.msra.mxu0 0.0
    %4629 = vmatprep.subr.mxu0 0.0
    %4630 = vmatpush1.xpose.msra.mxu0 0.0
    %4631 = vmatprep.subr.mxu0 0.0
    %4632 = vmatpush1.xpose.msra.mxu0 0.0
    %4633 = vmatprep.subr.mxu0 0.0
    %4634 = vmatpush1.xpose.msra.mxu0 0.0
    %4635 = vmatprep.subr.mxu0 0.0
    %4636 = vmatpush1.xpose.msra.mxu0 0.0
    %4637 = vmatprep.subr.mxu0 0.0
    %4638 = vmatpush1.xpose.msra.mxu0 0.0
    %4639 = vmatprep.subr.mxu0 0.0
    %4640 = vmatpush1.xpose.msra.mxu0 0.0
    %4641 = vmatprep.subr.mxu0 0.0
    %4642 = vmatpush1.xpose.msra.mxu0 0.0
    %4643 = vmatprep.subr.mxu0 0.0
    %4644 = vmatpush1.xpose.msra.mxu0 0.0
    %4645 = vmatprep.subr.mxu0 0.0
    %4646 = vmatpush1.xpose.msra.mxu0 0.0
    %4647 = vmatprep.subr.mxu0 0.0
    %4648 = vmatpush1.xpose.msra.mxu0 0.0
    %4649 = vmatprep.subr.mxu0 0.0
    %4650 = vmatpush1.xpose.msra.mxu0 0.0
    %4651 = vmatprep.subr.mxu0 0.0
    %4652 = vmatpush1.xpose.msra.mxu0 0.0
    %4653 = vmatprep.subr.mxu0 0.0
    %4654 = vmatpush1.xpose.msra.mxu0 %v4623
    %4655 = vmatprep.subr.mxu0 0.0
    %4656 = vmatpush1.xpose.msra.mxu0 %v4621
    %4657 = vmatprep.subr.mxu0 0.0
    %4658 = vmatpush2.xpose.msra.mxu0 0.0
    %4659 = vmatprep.subr.mxu0 0.0
    %4660 = vmatpush2.xpose.msra.mxu0 0.0
    %4661 = vmatprep.subr.mxu0 0.0
    %4662 = vmatpush2.xpose.msra.mxu0 0.0
    %4663 = vmatprep.subr.mxu0 0.0
    %4664 = vmatpush2.xpose.msra.mxu0 0.0
    %4665 = vmatprep.subr.mxu0 0.0
    %4666 = vmatpush2.xpose.msra.mxu0 0.0
    %4667 = vmatprep.subr.mxu0 0.0
    %4668 = vmatpush2.xpose.msra.mxu0 0.0
    %4669 = vmatprep.subr.mxu0 0.0
    %4670 = vmatpush2.xpose.msra.mxu0 0.0
    %4671 = vmatprep.subr.mxu0 0.0
    %4672 = vmatpush2.xpose.msra.mxu0 0.0
    %4673 = vmatprep.subr.mxu0 0.0
    %4674 = vmatpush2.xpose.msra.mxu0 0.0
    %4675 = vmatprep.subr.mxu0 0.0
    %4676 = vmatpush2.xpose.msra.mxu0 0.0
    %4677 = vmatprep.subr.mxu0 0.0
    %4678 = vmatpush2.xpose.msra.mxu0 0.0
    %4679 = vmatprep.subr.mxu0 0.0
    %4680 = vmatpush2.xpose.msra.mxu0 0.0
    %4681 = vmatprep.subr.mxu0 0.0
    %4682 = vmatpush2.xpose.msra.mxu0 0.0
    %4683 = vmatprep.subr.mxu0 0.0
    %4684 = vmatpush2.xpose.msra.mxu0 0.0
    %4685 = vmatprep.subr.mxu0 0.0
    %4686 = vmatpush2.xpose.msra.mxu0 0.0
    %4687 = vmatprep.subr.mxu0 0.0
    %4688 = vmatpush2.xpose.msra.mxu0 0.0
    %4689 = vmatprep.mubr.f32.mxu0 0.0
    %4690 = vmatmul.mubr.f32.gmra.mxu0 %v4617
    %v4691 = vpop.f32.mrf.mxu0
    %v4692 = vadd.f32 %v94, %v4691
    %v4693 = vpop.f32.mrf.mxu0
    %4694 = vmatprep.mubr.f32.mxu0 0.0
    %4695 = vmatmul.mubr.f32.gmra.mxu0 %v4619
    %v4696 = vpop.f32.mrf.mxu0
    %v4697 = vadd.f32 %v94, %v4696
    %v4698 = vpop.f32.mrf.mxu0
    %4699 = vdwg.mxu0
    %v4700 = vsel %vm736, %v4425, -inf
    %4701 = vmax.xlane.f32.xlu0 %v4700
    %v4702 = vpop.xlane.xlu0 %4701
    %v4703 = vsel %vm736, %v4430, -inf
    %4704 = vmax.xlane.f32.xlu0 %v4703
    %v4705 = vpop.xlane.xlu0 %4704
    %v4706 = vsel %vm736, %v4514, -inf
    %4707 = vmax.xlane.f32.xlu0 %v4706
    %v4708 = vpop.xlane.xlu0 %4707
    %v4709 = vsel %vm736, %v4519, -inf
    %4710 = vmax.xlane.f32.xlu0 %v4709
    %v4711 = vpop.xlane.xlu0 %4710
    %v4712 = vsel %vm736, %v4603, -inf
    %4713 = vmax.xlane.f32.xlu0 %v4712
    %v4714 = vpop.xlane.xlu0 %4713
    %v4715 = vsel %vm736, %v4608, -inf
    %4716 = vmax.xlane.f32.xlu0 %v4715
    %v4717 = vpop.xlane.xlu0 %4716
    %v4718 = vsel %vm736, %v4692, -inf
    %4719 = vmax.xlane.f32.xlu0 %v4718
    %v4720 = vpop.xlane.xlu0 %4719
    %v4721 = vsel %vm736, %v4697, -inf
    %4722 = vmax.xlane.f32.xlu0 %v4721
    %v4723 = vpop.xlane.xlu0 %4722
    %v4724 = vsub.f32 %v4425, %v4702
    %v4725 = vsub.f32 %v4430, %v4705
    %v4726 = vsub.f32 %v4514, %v4708
    %v4727 = vsub.f32 %v4519, %v4711
    %v4728 = vsub.f32 %v4603, %v4714
    %v4729 = vsub.f32 %v4608, %v4717
    %v4730 = vsub.f32 %v4692, %v4720
    %v4731 = vsub.f32 %v4697, %v4723
    %v4732 = vmul.f32 %v4724, 1.442695
    %v4733 = vpow.pop %v4732
    %v4734 = vmul.f32 %v4725, 1.442695
    %v4735 = vpow.pop %v4734
    %v4736 = vmul.f32 %v4726, 1.442695
    %v4737 = vpow.pop %v4736
    %v4738 = vmul.f32 %v4727, 1.442695
    %v4739 = vpow.pop %v4738
    %v4740 = vmul.f32 %v4728, 1.442695
    %v4741 = vpow.pop %v4740
    %v4742 = vmul.f32 %v4729, 1.442695
    %v4743 = vpow.pop %v4742
    %v4744 = vmul.f32 %v4730, 1.442695
    %v4745 = vpow.pop %v4744
    %v4746 = vmul.f32 %v4731, 1.442695
    %v4747 = vpow.pop %v4746
    %v4748 = vsel %vm736, %v4733, 0.0
    %4749 = vadd.xlane.f32.xlu0 %v4748
    %v4750 = vpop.xlane.xlu0 %4749
    %v4751 = vsel %vm736, %v4735, 0.0
    %4752 = vadd.xlane.f32.xlu0 %v4751
    %v4753 = vpop.xlane.xlu0 %4752
    %v4754 = vsel %vm736, %v4737, 0.0
    %4755 = vadd.xlane.f32.xlu0 %v4754
    %v4756 = vpop.xlane.xlu0 %4755
    %v4757 = vsel %vm736, %v4739, 0.0
    %4758 = vadd.xlane.f32.xlu0 %v4757
    %v4759 = vpop.xlane.xlu0 %4758
    %v4760 = vsel %vm736, %v4741, 0.0
    %4761 = vadd.xlane.f32.xlu0 %v4760
    %v4762 = vpop.xlane.xlu0 %4761
    %v4763 = vsel %vm736, %v4743, 0.0
    %4764 = vadd.xlane.f32.xlu0 %v4763
    %v4765 = vpop.xlane.xlu0 %4764
    %v4766 = vsel %vm736, %v4745, 0.0
    %4767 = vadd.xlane.f32.xlu0 %v4766
    %v4768 = vpop.xlane.xlu0 %4767
    %v4769 = vsel %vm736, %v4747, 0.0
    %4770 = vadd.xlane.f32.xlu0 %v4769
    %v4771 = vpop.xlane.xlu0 %4770
    %v4772 = vrcp.pop %v4750
    %v4773 = vrcp.pop %v4753
    %v4774 = vrcp.pop %v4756
    %v4775 = vrcp.pop %v4759
    %v4776 = vrcp.pop %v4762
    %v4777 = vrcp.pop %v4765
    %v4778 = vrcp.pop %v4768
    %v4779 = vrcp.pop %v4771
    %v4780 = vmul.f32 %v4733, %v4772
    %v4781 = vmul.f32 %v4735, %v4773
    %v4782 = vmul.f32 %v4737, %v4774
    %v4783 = vmul.f32 %v4739, %v4775
    %v4784 = vmul.f32 %v4741, %v4776
    %v4785 = vmul.f32 %v4743, %v4777
    %v4786 = vmul.f32 %v4745, %v4778
    %v4787 = vmul.f32 %v4747, %v4779
    %4788 = vrot.lane.b32.xlu0 %v4298, 120
    %v4789 = vpop.permute.xlu0 %4788
    %4790 = vrot.lane.b32.xlu0 %v4304, 120
    %v4791 = vpop.permute.xlu0 %4790
    %4792 = vrot.lane.b32.xlu0 %v4298, 88
    %v4793 = vpop.permute.xlu0 %4792
    %4794 = vrot.lane.b32.xlu0 %v4304, 88
    %v4795 = vpop.permute.xlu0 %4794
    %v4796 = vsel %vm385, %v4789, 0
    %v4798 = vsel %vm385, %v4791, 0
    %v4800 = vsel %vm385, %v4793, 0
    %v4802 = vsel %vm385, %v4795, 0
    %4804 = vmatprep.subr.mxu0 0.0
    %4805 = vmatpush1.xpose.msra.mxu0 0.0
    %4806 = vmatprep.subr.mxu0 0.0
    %4807 = vmatpush1.xpose.msra.mxu0 0.0
    %4808 = vmatprep.subr.mxu0 0.0
    %4809 = vmatpush1.xpose.msra.mxu0 0.0
    %4810 = vmatprep.subr.mxu0 0.0
    %4811 = vmatpush1.xpose.msra.mxu0 0.0
    %4812 = vmatprep.subr.mxu0 0.0
    %4813 = vmatpush1.xpose.msra.mxu0 0.0
    %4814 = vmatprep.subr.mxu0 0.0
    %4815 = vmatpush1.xpose.msra.mxu0 0.0
    %4816 = vmatprep.subr.mxu0 0.0
    %4817 = vmatpush1.xpose.msra.mxu0 0.0
    %4818 = vmatprep.subr.mxu0 0.0
    %4819 = vmatpush1.xpose.msra.mxu0 0.0
    %4820 = vmatprep.subr.mxu0 0.0
    %4821 = vmatpush1.xpose.msra.mxu0 0.0
    %4822 = vmatprep.subr.mxu0 0.0
    %4823 = vmatpush1.xpose.msra.mxu0 0.0
    %4824 = vmatprep.subr.mxu0 0.0
    %4825 = vmatpush1.xpose.msra.mxu0 0.0
    %4826 = vmatprep.subr.mxu0 0.0
    %4827 = vmatpush1.xpose.msra.mxu0 0.0
    %4828 = vmatprep.subr.mxu0 0.0
    %4829 = vmatpush1.xpose.msra.mxu0 0.0
    %4830 = vmatprep.subr.mxu0 0.0
    %4831 = vmatpush1.xpose.msra.mxu0 0.0
    %4832 = vmatprep.subr.mxu0 0.0
    %4833 = vmatpush1.xpose.msra.mxu0 %v4802
    %4834 = vmatprep.subr.mxu0 0.0
    %4835 = vmatpush1.xpose.msra.mxu0 %v4800
    %4836 = vmatprep.subr.mxu0 0.0
    %4837 = vmatpush2.xpose.msra.mxu0 0.0
    %4838 = vmatprep.subr.mxu0 0.0
    %4839 = vmatpush2.xpose.msra.mxu0 0.0
    %4840 = vmatprep.subr.mxu0 0.0
    %4841 = vmatpush2.xpose.msra.mxu0 0.0
    %4842 = vmatprep.subr.mxu0 0.0
    %4843 = vmatpush2.xpose.msra.mxu0 0.0
    %4844 = vmatprep.subr.mxu0 0.0
    %4845 = vmatpush2.xpose.msra.mxu0 0.0
    %4846 = vmatprep.subr.mxu0 0.0
    %4847 = vmatpush2.xpose.msra.mxu0 0.0
    %4848 = vmatprep.subr.mxu0 0.0
    %4849 = vmatpush2.xpose.msra.mxu0 0.0
    %4850 = vmatprep.subr.mxu0 0.0
    %4851 = vmatpush2.xpose.msra.mxu0 0.0
    %4852 = vmatprep.subr.mxu0 0.0
    %4853 = vmatpush2.xpose.msra.mxu0 0.0
    %4854 = vmatprep.subr.mxu0 0.0
    %4855 = vmatpush2.xpose.msra.mxu0 0.0
    %4856 = vmatprep.subr.mxu0 0.0
    %4857 = vmatpush2.xpose.msra.mxu0 0.0
    %4858 = vmatprep.subr.mxu0 0.0
    %4859 = vmatpush2.xpose.msra.mxu0 0.0
    %4860 = vmatprep.subr.mxu0 0.0
    %4861 = vmatpush2.xpose.msra.mxu0 0.0
    %4862 = vmatprep.subr.mxu0 0.0
    %4863 = vmatpush2.xpose.msra.mxu0 0.0
    %4864 = vmatprep.subr.mxu0 0.0
    %4865 = vmatpush2.xpose.msra.mxu0 0.0
    %4866 = vmatprep.subr.mxu0 0.0
    %4867 = vmatpush2.xpose.msra.mxu0 0.0
    %4868 = vmatprep.mubr.f32.mxu0 0.0
    %4869 = vmatmul.mubr.f32.gmra.mxu0 %v4796
    %v4870 = vpop.f32.mrf.mxu0
    %v4871 = vadd.f32 %v94, %v4870
    %v4872 = vpop.f32.mrf.mxu0
    %4873 = vmatprep.mubr.f32.mxu0 0.0
    %4874 = vmatmul.mubr.f32.gmra.mxu0 %v4798
    %v4875 = vpop.f32.mrf.mxu0
    %v4876 = vadd.f32 %v94, %v4875
    %v4877 = vpop.f32.mrf.mxu0
    %4878 = vdwg.mxu0
    %4879 = vrot.lane.b32.xlu0 %v4310, 120
    %v4880 = vpop.permute.xlu0 %4879
    %4881 = vrot.lane.b32.xlu0 %v4316, 120
    %v4882 = vpop.permute.xlu0 %4881
    %4883 = vrot.lane.b32.xlu0 %v4310, 88
    %v4884 = vpop.permute.xlu0 %4883
    %4885 = vrot.lane.b32.xlu0 %v4316, 88
    %v4886 = vpop.permute.xlu0 %4885
    %v4887 = vsel %vm385, %v4880, 0
    %v4889 = vsel %vm385, %v4882, 0
    %v4891 = vsel %vm385, %v4884, 0
    %v4893 = vsel %vm385, %v4886, 0
    %4895 = vmatprep.subr.mxu0 0.0
    %4896 = vmatpush1.xpose.msra.mxu0 0.0
    %4897 = vmatprep.subr.mxu0 0.0
    %4898 = vmatpush1.xpose.msra.mxu0 0.0
    %4899 = vmatprep.subr.mxu0 0.0
    %4900 = vmatpush1.xpose.msra.mxu0 0.0
    %4901 = vmatprep.subr.mxu0 0.0
    %4902 = vmatpush1.xpose.msra.mxu0 0.0
    %4903 = vmatprep.subr.mxu0 0.0
    %4904 = vmatpush1.xpose.msra.mxu0 0.0
    %4905 = vmatprep.subr.mxu0 0.0
    %4906 = vmatpush1.xpose.msra.mxu0 0.0
    %4907 = vmatprep.subr.mxu0 0.0
    %4908 = vmatpush1.xpose.msra.mxu0 0.0
    %4909 = vmatprep.subr.mxu0 0.0
    %4910 = vmatpush1.xpose.msra.mxu0 0.0
    %4911 = vmatprep.subr.mxu0 0.0
    %4912 = vmatpush1.xpose.msra.mxu0 0.0
    %4913 = vmatprep.subr.mxu0 0.0
    %4914 = vmatpush1.xpose.msra.mxu0 0.0
    %4915 = vmatprep.subr.mxu0 0.0
    %4916 = vmatpush1.xpose.msra.mxu0 0.0
    %4917 = vmatprep.subr.mxu0 0.0
    %4918 = vmatpush1.xpose.msra.mxu0 0.0
    %4919 = vmatprep.subr.mxu0 0.0
    %4920 = vmatpush1.xpose.msra.mxu0 0.0
    %4921 = vmatprep.subr.mxu0 0.0
    %4922 = vmatpush1.xpose.msra.mxu0 0.0
    %4923 = vmatprep.subr.mxu0 0.0
    %4924 = vmatpush1.xpose.msra.mxu0 %v4893
    %4925 = vmatprep.subr.mxu0 0.0
    %4926 = vmatpush1.xpose.msra.mxu0 %v4891
    %4927 = vmatprep.subr.mxu0 0.0
    %4928 = vmatpush2.xpose.msra.mxu0 0.0
    %4929 = vmatprep.subr.mxu0 0.0
    %4930 = vmatpush2.xpose.msra.mxu0 0.0
    %4931 = vmatprep.subr.mxu0 0.0
    %4932 = vmatpush2.xpose.msra.mxu0 0.0
    %4933 = vmatprep.subr.mxu0 0.0
    %4934 = vmatpush2.xpose.msra.mxu0 0.0
    %4935 = vmatprep.subr.mxu0 0.0
    %4936 = vmatpush2.xpose.msra.mxu0 0.0
    %4937 = vmatprep.subr.mxu0 0.0
    %4938 = vmatpush2.xpose.msra.mxu0 0.0
    %4939 = vmatprep.subr.mxu0 0.0
    %4940 = vmatpush2.xpose.msra.mxu0 0.0
    %4941 = vmatprep.subr.mxu0 0.0
    %4942 = vmatpush2.xpose.msra.mxu0 0.0
    %4943 = vmatprep.subr.mxu0 0.0
    %4944 = vmatpush2.xpose.msra.mxu0 0.0
    %4945 = vmatprep.subr.mxu0 0.0
    %4946 = vmatpush2.xpose.msra.mxu0 0.0
    %4947 = vmatprep.subr.mxu0 0.0
    %4948 = vmatpush2.xpose.msra.mxu0 0.0
    %4949 = vmatprep.subr.mxu0 0.0
    %4950 = vmatpush2.xpose.msra.mxu0 0.0
    %4951 = vmatprep.subr.mxu0 0.0
    %4952 = vmatpush2.xpose.msra.mxu0 0.0
    %4953 = vmatprep.subr.mxu0 0.0
    %4954 = vmatpush2.xpose.msra.mxu0 0.0
    %4955 = vmatprep.subr.mxu0 0.0
    %4956 = vmatpush2.xpose.msra.mxu0 0.0
    %4957 = vmatprep.subr.mxu0 0.0
    %4958 = vmatpush2.xpose.msra.mxu0 0.0
    %4959 = vmatprep.mubr.f32.mxu0 0.0
    %4960 = vmatmul.mubr.f32.gmra.mxu0 %v4887
    %v4961 = vpop.f32.mrf.mxu0
    %v4962 = vadd.f32 %v94, %v4961
    %v4963 = vpop.f32.mrf.mxu0
    %4964 = vmatprep.mubr.f32.mxu0 0.0
    %4965 = vmatmul.mubr.f32.gmra.mxu0 %v4889
    %v4966 = vpop.f32.mrf.mxu0
    %v4967 = vadd.f32 %v94, %v4966
    %v4968 = vpop.f32.mrf.mxu0
    %4969 = vdwg.mxu0
    %4970 = vrot.lane.b32.xlu0 %v4322, 120
    %v4971 = vpop.permute.xlu0 %4970
    %4972 = vrot.lane.b32.xlu0 %v4328, 120
    %v4973 = vpop.permute.xlu0 %4972
    %4974 = vrot.lane.b32.xlu0 %v4322, 88
    %v4975 = vpop.permute.xlu0 %4974
    %4976 = vrot.lane.b32.xlu0 %v4328, 88
    %v4977 = vpop.permute.xlu0 %4976
    %v4978 = vsel %vm385, %v4971, 0
    %v4980 = vsel %vm385, %v4973, 0
    %v4982 = vsel %vm385, %v4975, 0
    %v4984 = vsel %vm385, %v4977, 0
    %4986 = vmatprep.subr.mxu0 0.0
    %4987 = vmatpush1.xpose.msra.mxu0 0.0
    %4988 = vmatprep.subr.mxu0 0.0
    %4989 = vmatpush1.xpose.msra.mxu0 0.0
    %4990 = vmatprep.subr.mxu0 0.0
    %4991 = vmatpush1.xpose.msra.mxu0 0.0
    %4992 = vmatprep.subr.mxu0 0.0
    %4993 = vmatpush1.xpose.msra.mxu0 0.0
    %4994 = vmatprep.subr.mxu0 0.0
    %4995 = vmatpush1.xpose.msra.mxu0 0.0
    %4996 = vmatprep.subr.mxu0 0.0
    %4997 = vmatpush1.xpose.msra.mxu0 0.0
    %4998 = vmatprep.subr.mxu0 0.0
    %4999 = vmatpush1.xpose.msra.mxu0 0.0
    %5000 = vmatprep.subr.mxu0 0.0
    %5001 = vmatpush1.xpose.msra.mxu0 0.0
    %5002 = vmatprep.subr.mxu0 0.0
    %5003 = vmatpush1.xpose.msra.mxu0 0.0
    %5004 = vmatprep.subr.mxu0 0.0
    %5005 = vmatpush1.xpose.msra.mxu0 0.0
    %5006 = vmatprep.subr.mxu0 0.0
    %5007 = vmatpush1.xpose.msra.mxu0 0.0
    %5008 = vmatprep.subr.mxu0 0.0
    %5009 = vmatpush1.xpose.msra.mxu0 0.0
    %5010 = vmatprep.subr.mxu0 0.0
    %5011 = vmatpush1.xpose.msra.mxu0 0.0
    %5012 = vmatprep.subr.mxu0 0.0
    %5013 = vmatpush1.xpose.msra.mxu0 0.0
    %5014 = vmatprep.subr.mxu0 0.0
    %5015 = vmatpush1.xpose.msra.mxu0 %v4984
    %5016 = vmatprep.subr.mxu0 0.0
    %5017 = vmatpush1.xpose.msra.mxu0 %v4982
    %5018 = vmatprep.subr.mxu0 0.0
    %5019 = vmatpush2.xpose.msra.mxu0 0.0
    %5020 = vmatprep.subr.mxu0 0.0
    %5021 = vmatpush2.xpose.msra.mxu0 0.0
    %5022 = vmatprep.subr.mxu0 0.0
    %5023 = vmatpush2.xpose.msra.mxu0 0.0
    %5024 = vmatprep.subr.mxu0 0.0
    %5025 = vmatpush2.xpose.msra.mxu0 0.0
    %5026 = vmatprep.subr.mxu0 0.0
    %5027 = vmatpush2.xpose.msra.mxu0 0.0
    %5028 = vmatprep.subr.mxu0 0.0
    %5029 = vmatpush2.xpose.msra.mxu0 0.0
    %5030 = vmatprep.subr.mxu0 0.0
    %5031 = vmatpush2.xpose.msra.mxu0 0.0
    %5032 = vmatprep.subr.mxu0 0.0
    %5033 = vmatpush2.xpose.msra.mxu0 0.0
    %5034 = vmatprep.subr.mxu0 0.0
    %5035 = vmatpush2.xpose.msra.mxu0 0.0
    %5036 = vmatprep.subr.mxu0 0.0
    %5037 = vmatpush2.xpose.msra.mxu0 0.0
    %5038 = vmatprep.subr.mxu0 0.0
    %5039 = vmatpush2.xpose.msra.mxu0 0.0
    %5040 = vmatprep.subr.mxu0 0.0
    %5041 = vmatpush2.xpose.msra.mxu0 0.0
    %5042 = vmatprep.subr.mxu0 0.0
    %5043 = vmatpush2.xpose.msra.mxu0 0.0
    %5044 = vmatprep.subr.mxu0 0.0
    %5045 = vmatpush2.xpose.msra.mxu0 0.0
    %5046 = vmatprep.subr.mxu0 0.0
    %5047 = vmatpush2.xpose.msra.mxu0 0.0
    %5048 = vmatprep.subr.mxu0 0.0
    %5049 = vmatpush2.xpose.msra.mxu0 0.0
    %5050 = vmatprep.mubr.f32.mxu0 0.0
    %5051 = vmatmul.mubr.f32.gmra.mxu0 %v4978
    %v5052 = vpop.f32.mrf.mxu0
    %v5053 = vadd.f32 %v94, %v5052
    %v5054 = vpop.f32.mrf.mxu0
    %5055 = vmatprep.mubr.f32.mxu0 0.0
    %5056 = vmatmul.mubr.f32.gmra.mxu0 %v4980
    %v5057 = vpop.f32.mrf.mxu0
    %v5058 = vadd.f32 %v94, %v5057
    %v5059 = vpop.f32.mrf.mxu0
    %5060 = vdwg.mxu0
    %5061 = vrot.lane.b32.xlu0 %v4334, 120
    %v5062 = vpop.permute.xlu0 %5061
    %5063 = vrot.lane.b32.xlu0 %v4340, 120
    %v5064 = vpop.permute.xlu0 %5063
    %5065 = vrot.lane.b32.xlu0 %v4334, 88
    %v5066 = vpop.permute.xlu0 %5065
    %5067 = vrot.lane.b32.xlu0 %v4340, 88
    %v5068 = vpop.permute.xlu0 %5067
    %v5069 = vsel %vm385, %v5062, 0
    %v5071 = vsel %vm385, %v5064, 0
    %v5073 = vsel %vm385, %v5066, 0
    %v5075 = vsel %vm385, %v5068, 0
    %5077 = vmatprep.subr.mxu0 0.0
    %5078 = vmatpush1.xpose.msra.mxu0 0.0
    %5079 = vmatprep.subr.mxu0 0.0
    %5080 = vmatpush1.xpose.msra.mxu0 0.0
    %5081 = vmatprep.subr.mxu0 0.0
    %5082 = vmatpush1.xpose.msra.mxu0 0.0
    %5083 = vmatprep.subr.mxu0 0.0
    %5084 = vmatpush1.xpose.msra.mxu0 0.0
    %5085 = vmatprep.subr.mxu0 0.0
    %5086 = vmatpush1.xpose.msra.mxu0 0.0
    %5087 = vmatprep.subr.mxu0 0.0
    %5088 = vmatpush1.xpose.msra.mxu0 0.0
    %5089 = vmatprep.subr.mxu0 0.0
    %5090 = vmatpush1.xpose.msra.mxu0 0.0
    %5091 = vmatprep.subr.mxu0 0.0
    %5092 = vmatpush1.xpose.msra.mxu0 0.0
    %5093 = vmatprep.subr.mxu0 0.0
    %5094 = vmatpush1.xpose.msra.mxu0 0.0
    %5095 = vmatprep.subr.mxu0 0.0
    %5096 = vmatpush1.xpose.msra.mxu0 0.0
    %5097 = vmatprep.subr.mxu0 0.0
    %5098 = vmatpush1.xpose.msra.mxu0 0.0
    %5099 = vmatprep.subr.mxu0 0.0
    %5100 = vmatpush1.xpose.msra.mxu0 0.0
    %5101 = vmatprep.subr.mxu0 0.0
    %5102 = vmatpush1.xpose.msra.mxu0 0.0
    %5103 = vmatprep.subr.mxu0 0.0
    %5104 = vmatpush1.xpose.msra.mxu0 0.0
    %5105 = vmatprep.subr.mxu0 0.0
    %5106 = vmatpush1.xpose.msra.mxu0 %v5075
    %5107 = vmatprep.subr.mxu0 0.0
    %5108 = vmatpush1.xpose.msra.mxu0 %v5073
    %5109 = vmatprep.subr.mxu0 0.0
    %5110 = vmatpush2.xpose.msra.mxu0 0.0
    %5111 = vmatprep.subr.mxu0 0.0
    %5112 = vmatpush2.xpose.msra.mxu0 0.0
    %5113 = vmatprep.subr.mxu0 0.0
    %5114 = vmatpush2.xpose.msra.mxu0 0.0
    %5115 = vmatprep.subr.mxu0 0.0
    %5116 = vmatpush2.xpose.msra.mxu0 0.0
    %5117 = vmatprep.subr.mxu0 0.0
    %5118 = vmatpush2.xpose.msra.mxu0 0.0
    %5119 = vmatprep.subr.mxu0 0.0
    %5120 = vmatpush2.xpose.msra.mxu0 0.0
    %5121 = vmatprep.subr.mxu0 0.0
    %5122 = vmatpush2.xpose.msra.mxu0 0.0
    %5123 = vmatprep.subr.mxu0 0.0
    %5124 = vmatpush2.xpose.msra.mxu0 0.0
    %5125 = vmatprep.subr.mxu0 0.0
    %5126 = vmatpush2.xpose.msra.mxu0 0.0
    %5127 = vmatprep.subr.mxu0 0.0
    %5128 = vmatpush2.xpose.msra.mxu0 0.0
    %5129 = vmatprep.subr.mxu0 0.0
    %5130 = vmatpush2.xpose.msra.mxu0 0.0
    %5131 = vmatprep.subr.mxu0 0.0
    %5132 = vmatpush2.xpose.msra.mxu0 0.0
    %5133 = vmatprep.subr.mxu0 0.0
    %5134 = vmatpush2.xpose.msra.mxu0 0.0
    %5135 = vmatprep.subr.mxu0 0.0
    %5136 = vmatpush2.xpose.msra.mxu0 0.0
    %5137 = vmatprep.subr.mxu0 0.0
    %5138 = vmatpush2.xpose.msra.mxu0 0.0
    %5139 = vmatprep.subr.mxu0 0.0
    %5140 = vmatpush2.xpose.msra.mxu0 0.0
    %5141 = vmatprep.mubr.f32.mxu0 0.0
    %5142 = vmatmul.mubr.f32.gmra.mxu0 %v5069
    %v5143 = vpop.f32.mrf.mxu0
    %v5144 = vadd.f32 %v94, %v5143
    %v5145 = vpop.f32.mrf.mxu0
    %5146 = vmatprep.mubr.f32.mxu0 0.0
    %5147 = vmatmul.mubr.f32.gmra.mxu0 %v5071
    %v5148 = vpop.f32.mrf.mxu0
    %v5149 = vadd.f32 %v94, %v5148
    %v5150 = vpop.f32.mrf.mxu0
    %5151 = vdwg.mxu0
    %v5152 = vsel %vm736, %v4871, -inf
    %5153 = vmax.xlane.f32.xlu0 %v5152
    %v5154 = vpop.xlane.xlu0 %5153
    %v5155 = vsel %vm736, %v4876, -inf
    %5156 = vmax.xlane.f32.xlu0 %v5155
    %v5157 = vpop.xlane.xlu0 %5156
    %v5158 = vsel %vm736, %v4962, -inf
    %5159 = vmax.xlane.f32.xlu0 %v5158
    %v5160 = vpop.xlane.xlu0 %5159
    %v5161 = vsel %vm736, %v4967, -inf
    %5162 = vmax.xlane.f32.xlu0 %v5161
    %v5163 = vpop.xlane.xlu0 %5162
    %v5164 = vsel %vm736, %v5053, -inf
    %5165 = vmax.xlane.f32.xlu0 %v5164
    %v5166 = vpop.xlane.xlu0 %5165
    %v5167 = vsel %vm736, %v5058, -inf
    %5168 = vmax.xlane.f32.xlu0 %v5167
    %v5169 = vpop.xlane.xlu0 %5168
    %v5170 = vsel %vm736, %v5144, -inf
    %5171 = vmax.xlane.f32.xlu0 %v5170
    %v5172 = vpop.xlane.xlu0 %5171
    %v5173 = vsel %vm736, %v5149, -inf
    %5174 = vmax.xlane.f32.xlu0 %v5173
    %v5175 = vpop.xlane.xlu0 %5174
    %v5176 = vsub.f32 %v4871, %v5154
    %v5177 = vsub.f32 %v4876, %v5157
    %v5178 = vsub.f32 %v4962, %v5160
    %v5179 = vsub.f32 %v4967, %v5163
    %v5180 = vsub.f32 %v5053, %v5166
    %v5181 = vsub.f32 %v5058, %v5169
    %v5182 = vsub.f32 %v5144, %v5172
    %v5183 = vsub.f32 %v5149, %v5175
    %v5184 = vmul.f32 %v5176, 1.442695
    %v5185 = vpow.pop %v5184
    %v5186 = vmul.f32 %v5177, 1.442695
    %v5187 = vpow.pop %v5186
    %v5188 = vmul.f32 %v5178, 1.442695
    %v5189 = vpow.pop %v5188
    %v5190 = vmul.f32 %v5179, 1.442695
    %v5191 = vpow.pop %v5190
    %v5192 = vmul.f32 %v5180, 1.442695
    %v5193 = vpow.pop %v5192
    %v5194 = vmul.f32 %v5181, 1.442695
    %v5195 = vpow.pop %v5194
    %v5196 = vmul.f32 %v5182, 1.442695
    %v5197 = vpow.pop %v5196
    %v5198 = vmul.f32 %v5183, 1.442695
    %v5199 = vpow.pop %v5198
    %v5200 = vsel %vm736, %v5185, 0.0
    %5201 = vadd.xlane.f32.xlu0 %v5200
    %v5202 = vpop.xlane.xlu0 %5201
    %v5203 = vsel %vm736, %v5187, 0.0
    %5204 = vadd.xlane.f32.xlu0 %v5203
    %v5205 = vpop.xlane.xlu0 %5204
    %v5206 = vsel %vm736, %v5189, 0.0
    %5207 = vadd.xlane.f32.xlu0 %v5206
    %v5208 = vpop.xlane.xlu0 %5207
    %v5209 = vsel %vm736, %v5191, 0.0
    %5210 = vadd.xlane.f32.xlu0 %v5209
    %v5211 = vpop.xlane.xlu0 %5210
    %v5212 = vsel %vm736, %v5193, 0.0
    %5213 = vadd.xlane.f32.xlu0 %v5212
    %v5214 = vpop.xlane.xlu0 %5213
    %v5215 = vsel %vm736, %v5195, 0.0
    %5216 = vadd.xlane.f32.xlu0 %v5215
    %v5217 = vpop.xlane.xlu0 %5216
    %v5218 = vsel %vm736, %v5197, 0.0
    %5219 = vadd.xlane.f32.xlu0 %v5218
    %v5220 = vpop.xlane.xlu0 %5219
    %v5221 = vsel %vm736, %v5199, 0.0
    %5222 = vadd.xlane.f32.xlu0 %v5221
    %v5223 = vpop.xlane.xlu0 %5222
    %v5224 = vrcp.pop %v5202
    %v5225 = vrcp.pop %v5205
    %v5226 = vrcp.pop %v5208
    %v5227 = vrcp.pop %v5211
    %v5228 = vrcp.pop %v5214
    %v5229 = vrcp.pop %v5217
    %v5230 = vrcp.pop %v5220
    %v5231 = vrcp.pop %v5223
    %v5232 = vmul.f32 %v5185, %v5224
    %v5233 = vmul.f32 %v5187, %v5225
    %v5234 = vmul.f32 %v5189, %v5226
    %v5235 = vmul.f32 %v5191, %v5227
    %v5236 = vmul.f32 %v5193, %v5228
    %v5237 = vmul.f32 %v5195, %v5229
    %v5238 = vmul.f32 %v5197, %v5230
    %v5239 = vmul.f32 %v5199, %v5231
    %5240 = vrot.lane.b32.xlu0 %v4298, 32
    %v5241 = vpop.permute.xlu0 %5240
    %5242 = vrot.lane.b32.xlu0 %v4304, 32
    %v5243 = vpop.permute.xlu0 %5242
    %v5247 = vsel %vm736, %v5232, 0
    %v5250 = vsel %vm736, %v5233, 0
    %5252 = vmatprep.subr.mxu0 0.0
    %5253 = vmatpush1.msra.mxu0 0.0
    %5254 = vmatprep.subr.mxu0 0.0
    %5255 = vmatpush1.msra.mxu0 0.0
    %5256 = vmatprep.subr.mxu0 0.0
    %5257 = vmatpush1.msra.mxu0 0.0
    %5258 = vmatprep.subr.mxu0 0.0
    %5259 = vmatpush1.msra.mxu0 0.0
    %5260 = vmatprep.subr.mxu0 0.0
    %5261 = vmatpush1.msra.mxu0 0.0
    %5262 = vmatprep.subr.mxu0 0.0
    %5263 = vmatpush1.msra.mxu0 0.0
    %5264 = vmatprep.subr.mxu0 0.0
    %5265 = vmatpush1.msra.mxu0 0.0
    %5266 = vmatprep.subr.mxu0 0.0
    %5267 = vmatpush1.msra.mxu0 0.0
    %5268 = vmatprep.subr.mxu0 0.0
    %5269 = vmatpush1.msra.mxu0 0.0
    %5270 = vmatprep.subr.mxu0 0.0
    %5271 = vmatpush1.msra.mxu0 0.0
    %5272 = vmatprep.subr.mxu0 0.0
    %5273 = vmatpush1.msra.mxu0 0.0
    %5274 = vmatprep.subr.mxu0 0.0
    %5275 = vmatpush1.msra.mxu0 0.0
    %5276 = vmatprep.subr.mxu0 0.0
    %5277 = vmatpush1.msra.mxu0 0.0
    %5278 = vmatprep.subr.mxu0 0.0
    %5279 = vmatpush1.msra.mxu0 0.0
    %5280 = vmatprep.subr.mxu0 0.0
    %5281 = vmatpush1.msra.mxu0 %v5243
    %5282 = vmatprep.subr.mxu0 0.0
    %5283 = vmatpush1.msra.mxu0 %v5241
    %5284 = vmatprep.subr.mxu0 0.0
    %5285 = vmatpush2.msra.mxu0 0.0
    %5286 = vmatprep.subr.mxu0 0.0
    %5287 = vmatpush2.msra.mxu0 0.0
    %5288 = vmatprep.subr.mxu0 0.0
    %5289 = vmatpush2.msra.mxu0 0.0
    %5290 = vmatprep.subr.mxu0 0.0
    %5291 = vmatpush2.msra.mxu0 0.0
    %5292 = vmatprep.subr.mxu0 0.0
    %5293 = vmatpush2.msra.mxu0 0.0
    %5294 = vmatprep.subr.mxu0 0.0
    %5295 = vmatpush2.msra.mxu0 0.0
    %5296 = vmatprep.subr.mxu0 0.0
    %5297 = vmatpush2.msra.mxu0 0.0
    %5298 = vmatprep.subr.mxu0 0.0
    %5299 = vmatpush2.msra.mxu0 0.0
    %5300 = vmatprep.subr.mxu0 0.0
    %5301 = vmatpush2.msra.mxu0 0.0
    %5302 = vmatprep.subr.mxu0 0.0
    %5303 = vmatpush2.msra.mxu0 0.0
    %5304 = vmatprep.subr.mxu0 0.0
    %5305 = vmatpush2.msra.mxu0 0.0
    %5306 = vmatprep.subr.mxu0 0.0
    %5307 = vmatpush2.msra.mxu0 0.0
    %5308 = vmatprep.subr.mxu0 0.0
    %5309 = vmatpush2.msra.mxu0 0.0
    %5310 = vmatprep.subr.mxu0 0.0
    %5311 = vmatpush2.msra.mxu0 0.0
    %5312 = vmatprep.subr.mxu0 0.0
    %5313 = vmatpush2.msra.mxu0 0.0
    %5314 = vmatprep.subr.mxu0 0.0
    %5315 = vmatpush2.msra.mxu0 0.0
    %5316 = vmatprep.mubr.f32.mxu0 0.0
    %5317 = vmatmul.mubr.f32.gmra.mxu0 %v5247
    %v5318 = vpop.f32.mrf.mxu0
    %v5319 = vadd.f32 0.0, %v5318
    %v5320 = vpop.f32.mrf.mxu0
    %5321 = vmatprep.mubr.f32.mxu0 0.0
    %5322 = vmatmul.mubr.f32.gmra.mxu0 %v5250
    %v5323 = vpop.f32.mrf.mxu0
    %v5324 = vadd.f32 0.0, %v5323
    %v5325 = vpop.f32.mrf.mxu0
    %5326 = vdwg.mxu0
    %5327 = vrot.lane.b32.xlu0 %v4310, 32
    %v5328 = vpop.permute.xlu0 %5327
    %5329 = vrot.lane.b32.xlu0 %v4316, 32
    %v5330 = vpop.permute.xlu0 %5329
    %v5334 = vsel %vm736, %v5234, 0
    %v5337 = vsel %vm736, %v5235, 0
    %5339 = vmatprep.subr.mxu0 0.0
    %5340 = vmatpush1.msra.mxu0 0.0
    %5341 = vmatprep.subr.mxu0 0.0
    %5342 = vmatpush1.msra.mxu0 0.0
    %5343 = vmatprep.subr.mxu0 0.0
    %5344 = vmatpush1.msra.mxu0 0.0
    %5345 = vmatprep.subr.mxu0 0.0
    %5346 = vmatpush1.msra.mxu0 0.0
    %5347 = vmatprep.subr.mxu0 0.0
    %5348 = vmatpush1.msra.mxu0 0.0
    %5349 = vmatprep.subr.mxu0 0.0
    %5350 = vmatpush1.msra.mxu0 0.0
    %5351 = vmatprep.subr.mxu0 0.0
    %5352 = vmatpush1.msra.mxu0 0.0
    %5353 = vmatprep.subr.mxu0 0.0
    %5354 = vmatpush1.msra.mxu0 0.0
    %5355 = vmatprep.subr.mxu0 0.0
    %5356 = vmatpush1.msra.mxu0 0.0
    %5357 = vmatprep.subr.mxu0 0.0
    %5358 = vmatpush1.msra.mxu0 0.0
    %5359 = vmatprep.subr.mxu0 0.0
    %5360 = vmatpush1.msra.mxu0 0.0
    %5361 = vmatprep.subr.mxu0 0.0
    %5362 = vmatpush1.msra.mxu0 0.0
    %5363 = vmatprep.subr.mxu0 0.0
    %5364 = vmatpush1.msra.mxu0 0.0
    %5365 = vmatprep.subr.mxu0 0.0
    %5366 = vmatpush1.msra.mxu0 0.0
    %5367 = vmatprep.subr.mxu0 0.0
    %5368 = vmatpush1.msra.mxu0 %v5330
    %5369 = vmatprep.subr.mxu0 0.0
    %5370 = vmatpush1.msra.mxu0 %v5328
    %5371 = vmatprep.subr.mxu0 0.0
    %5372 = vmatpush2.msra.mxu0 0.0
    %5373 = vmatprep.subr.mxu0 0.0
    %5374 = vmatpush2.msra.mxu0 0.0
    %5375 = vmatprep.subr.mxu0 0.0
    %5376 = vmatpush2.msra.mxu0 0.0
    %5377 = vmatprep.subr.mxu0 0.0
    %5378 = vmatpush2.msra.mxu0 0.0
    %5379 = vmatprep.subr.mxu0 0.0
    %5380 = vmatpush2.msra.mxu0 0.0
    %5381 = vmatprep.subr.mxu0 0.0
    %5382 = vmatpush2.msra.mxu0 0.0
    %5383 = vmatprep.subr.mxu0 0.0
    %5384 = vmatpush2.msra.mxu0 0.0
    %5385 = vmatprep.subr.mxu0 0.0
    %5386 = vmatpush2.msra.mxu0 0.0
    %5387 = vmatprep.subr.mxu0 0.0
    %5388 = vmatpush2.msra.mxu0 0.0
    %5389 = vmatprep.subr.mxu0 0.0
    %5390 = vmatpush2.msra.mxu0 0.0
    %5391 = vmatprep.subr.mxu0 0.0
    %5392 = vmatpush2.msra.mxu0 0.0
    %5393 = vmatprep.subr.mxu0 0.0
    %5394 = vmatpush2.msra.mxu0 0.0
    %5395 = vmatprep.subr.mxu0 0.0
    %5396 = vmatpush2.msra.mxu0 0.0
    %5397 = vmatprep.subr.mxu0 0.0
    %5398 = vmatpush2.msra.mxu0 0.0
    %5399 = vmatprep.subr.mxu0 0.0
    %5400 = vmatpush2.msra.mxu0 0.0
    %5401 = vmatprep.subr.mxu0 0.0
    %5402 = vmatpush2.msra.mxu0 0.0
    %5403 = vmatprep.mubr.f32.mxu0 0.0
    %5404 = vmatmul.mubr.f32.gmra.mxu0 %v5334
    %v5405 = vpop.f32.mrf.mxu0
    %v5406 = vadd.f32 0.0, %v5405
    %v5407 = vpop.f32.mrf.mxu0
    %5408 = vmatprep.mubr.f32.mxu0 0.0
    %5409 = vmatmul.mubr.f32.gmra.mxu0 %v5337
    %v5410 = vpop.f32.mrf.mxu0
    %v5411 = vadd.f32 0.0, %v5410
    %v5412 = vpop.f32.mrf.mxu0
    %5413 = vdwg.mxu0
    %5414 = vrot.lane.b32.xlu0 %v4322, 32
    %v5415 = vpop.permute.xlu0 %5414
    %5416 = vrot.lane.b32.xlu0 %v4328, 32
    %v5417 = vpop.permute.xlu0 %5416
    %v5421 = vsel %vm736, %v5236, 0
    %v5424 = vsel %vm736, %v5237, 0
    %5426 = vmatprep.subr.mxu0 0.0
    %5427 = vmatpush1.msra.mxu0 0.0
    %5428 = vmatprep.subr.mxu0 0.0
    %5429 = vmatpush1.msra.mxu0 0.0
    %5430 = vmatprep.subr.mxu0 0.0
    %5431 = vmatpush1.msra.mxu0 0.0
    %5432 = vmatprep.subr.mxu0 0.0
    %5433 = vmatpush1.msra.mxu0 0.0
    %5434 = vmatprep.subr.mxu0 0.0
    %5435 = vmatpush1.msra.mxu0 0.0
    %5436 = vmatprep.subr.mxu0 0.0
    %5437 = vmatpush1.msra.mxu0 0.0
    %5438 = vmatprep.subr.mxu0 0.0
    %5439 = vmatpush1.msra.mxu0 0.0
    %5440 = vmatprep.subr.mxu0 0.0
    %5441 = vmatpush1.msra.mxu0 0.0
    %5442 = vmatprep.subr.mxu0 0.0
    %5443 = vmatpush1.msra.mxu0 0.0
    %5444 = vmatprep.subr.mxu0 0.0
    %5445 = vmatpush1.msra.mxu0 0.0
    %5446 = vmatprep.subr.mxu0 0.0
    %5447 = vmatpush1.msra.mxu0 0.0
    %5448 = vmatprep.subr.mxu0 0.0
    %5449 = vmatpush1.msra.mxu0 0.0
    %5450 = vmatprep.subr.mxu0 0.0
    %5451 = vmatpush1.msra.mxu0 0.0
    %5452 = vmatprep.subr.mxu0 0.0
    %5453 = vmatpush1.msra.mxu0 0.0
    %5454 = vmatprep.subr.mxu0 0.0
    %5455 = vmatpush1.msra.mxu0 %v5417
    %5456 = vmatprep.subr.mxu0 0.0
    %5457 = vmatpush1.msra.mxu0 %v5415
    %5458 = vmatprep.subr.mxu0 0.0
    %5459 = vmatpush2.msra.mxu0 0.0
    %5460 = vmatprep.subr.mxu0 0.0
    %5461 = vmatpush2.msra.mxu0 0.0
    %5462 = vmatprep.subr.mxu0 0.0
    %5463 = vmatpush2.msra.mxu0 0.0
    %5464 = vmatprep.subr.mxu0 0.0
    %5465 = vmatpush2.msra.mxu0 0.0
    %5466 = vmatprep.subr.mxu0 0.0
    %5467 = vmatpush2.msra.mxu0 0.0
    %5468 = vmatprep.subr.mxu0 0.0
    %5469 = vmatpush2.msra.mxu0 0.0
    %5470 = vmatprep.subr.mxu0 0.0
    %5471 = vmatpush2.msra.mxu0 0.0
    %5472 = vmatprep.subr.mxu0 0.0
    %5473 = vmatpush2.msra.mxu0 0.0
    %5474 = vmatprep.subr.mxu0 0.0
    %5475 = vmatpush2.msra.mxu0 0.0
    %5476 = vmatprep.subr.mxu0 0.0
    %5477 = vmatpush2.msra.mxu0 0.0
    %5478 = vmatprep.subr.mxu0 0.0
    %5479 = vmatpush2.msra.mxu0 0.0
    %5480 = vmatprep.subr.mxu0 0.0
    %5481 = vmatpush2.msra.mxu0 0.0
    %5482 = vmatprep.subr.mxu0 0.0
    %5483 = vmatpush2.msra.mxu0 0.0
    %5484 = vmatprep.subr.mxu0 0.0
    %5485 = vmatpush2.msra.mxu0 0.0
    %5486 = vmatprep.subr.mxu0 0.0
    %5487 = vmatpush2.msra.mxu0 0.0
    %5488 = vmatprep.subr.mxu0 0.0
    %5489 = vmatpush2.msra.mxu0 0.0
    %5490 = vmatprep.mubr.f32.mxu0 0.0
    %5491 = vmatmul.mubr.f32.gmra.mxu0 %v5421
    %v5492 = vpop.f32.mrf.mxu0
    %v5493 = vadd.f32 0.0, %v5492
    %v5494 = vpop.f32.mrf.mxu0
    %5495 = vmatprep.mubr.f32.mxu0 0.0
    %5496 = vmatmul.mubr.f32.gmra.mxu0 %v5424
    %v5497 = vpop.f32.mrf.mxu0
    %v5498 = vadd.f32 0.0, %v5497
    %v5499 = vpop.f32.mrf.mxu0
    %5500 = vdwg.mxu0
    %5501 = vrot.lane.b32.xlu0 %v4334, 32
    %v5502 = vpop.permute.xlu0 %5501
    %5503 = vrot.lane.b32.xlu0 %v4340, 32
    %v5504 = vpop.permute.xlu0 %5503
    %v5508 = vsel %vm736, %v5238, 0
    %v5511 = vsel %vm736, %v5239, 0
    %5513 = vmatprep.subr.mxu0 0.0
    %5514 = vmatpush1.msra.mxu0 0.0
    %5515 = vmatprep.subr.mxu0 0.0
    %5516 = vmatpush1.msra.mxu0 0.0
    %5517 = vmatprep.subr.mxu0 0.0
    %5518 = vmatpush1.msra.mxu0 0.0
    %5519 = vmatprep.subr.mxu0 0.0
    %5520 = vmatpush1.msra.mxu0 0.0
    %5521 = vmatprep.subr.mxu0 0.0
    %5522 = vmatpush1.msra.mxu0 0.0
    %5523 = vmatprep.subr.mxu0 0.0
    %5524 = vmatpush1.msra.mxu0 0.0
    %5525 = vmatprep.subr.mxu0 0.0
    %5526 = vmatpush1.msra.mxu0 0.0
    %5527 = vmatprep.subr.mxu0 0.0
    %5528 = vmatpush1.msra.mxu0 0.0
    %5529 = vmatprep.subr.mxu0 0.0
    %5530 = vmatpush1.msra.mxu0 0.0
    %5531 = vmatprep.subr.mxu0 0.0
    %5532 = vmatpush1.msra.mxu0 0.0
    %5533 = vmatprep.subr.mxu0 0.0
    %5534 = vmatpush1.msra.mxu0 0.0
    %5535 = vmatprep.subr.mxu0 0.0
    %5536 = vmatpush1.msra.mxu0 0.0
    %5537 = vmatprep.subr.mxu0 0.0
    %5538 = vmatpush1.msra.mxu0 0.0
    %5539 = vmatprep.subr.mxu0 0.0
    %5540 = vmatpush1.msra.mxu0 0.0
    %5541 = vmatprep.subr.mxu0 0.0
    %5542 = vmatpush1.msra.mxu0 %v5504
    %5543 = vmatprep.subr.mxu0 0.0
    %5544 = vmatpush1.msra.mxu0 %v5502
    %5545 = vmatprep.subr.mxu0 0.0
    %5546 = vmatpush2.msra.mxu0 0.0
    %5547 = vmatprep.subr.mxu0 0.0
    %5548 = vmatpush2.msra.mxu0 0.0
    %5549 = vmatprep.subr.mxu0 0.0
    %5550 = vmatpush2.msra.mxu0 0.0
    %5551 = vmatprep.subr.mxu0 0.0
    %5552 = vmatpush2.msra.mxu0 0.0
    %5553 = vmatprep.subr.mxu0 0.0
    %5554 = vmatpush2.msra.mxu0 0.0
    %5555 = vmatprep.subr.mxu0 0.0
    %5556 = vmatpush2.msra.mxu0 0.0
    %5557 = vmatprep.subr.mxu0 0.0
    %5558 = vmatpush2.msra.mxu0 0.0
    %5559 = vmatprep.subr.mxu0 0.0
    %5560 = vmatpush2.msra.mxu0 0.0
    %5561 = vmatprep.subr.mxu0 0.0
    %5562 = vmatpush2.msra.mxu0 0.0
    %5563 = vmatprep.subr.mxu0 0.0
    %5564 = vmatpush2.msra.mxu0 0.0
    %5565 = vmatprep.subr.mxu0 0.0
    %5566 = vmatpush2.msra.mxu0 0.0
    %5567 = vmatprep.subr.mxu0 0.0
    %5568 = vmatpush2.msra.mxu0 0.0
    %5569 = vmatprep.subr.mxu0 0.0
    %5570 = vmatpush2.msra.mxu0 0.0
    %5571 = vmatprep.subr.mxu0 0.0
    %5572 = vmatpush2.msra.mxu0 0.0
    %5573 = vmatprep.subr.mxu0 0.0
    %5574 = vmatpush2.msra.mxu0 0.0
    %5575 = vmatprep.subr.mxu0 0.0
    %5576 = vmatpush2.msra.mxu0 0.0
    %5577 = vmatprep.mubr.f32.mxu0 0.0
    %5578 = vmatmul.mubr.f32.gmra.mxu0 %v5508
    %v5579 = vpop.f32.mrf.mxu0
    %v5580 = vadd.f32 0.0, %v5579
    %v5581 = vpop.f32.mrf.mxu0
    %5582 = vmatprep.mubr.f32.mxu0 0.0
    %5583 = vmatmul.mubr.f32.gmra.mxu0 %v5511
    %v5584 = vpop.f32.mrf.mxu0
    %v5585 = vadd.f32 0.0, %v5584
    %v5586 = vpop.f32.mrf.mxu0
    %5587 = vdwg.mxu0
    %5588 = vrot.lane.b32.xlu0 %v4298, 64
    %v5589 = vpop.permute.xlu0 %5588
    %5590 = vrot.lane.b32.xlu0 %v4304, 64
    %v5591 = vpop.permute.xlu0 %5590
    %v5595 = vsel %vm736, %v4780, 0
    %v5598 = vsel %vm736, %v4781, 0
    %5600 = vmatprep.subr.mxu0 0.0
    %5601 = vmatpush1.msra.mxu0 0.0
    %5602 = vmatprep.subr.mxu0 0.0
    %5603 = vmatpush1.msra.mxu0 0.0
    %5604 = vmatprep.subr.mxu0 0.0
    %5605 = vmatpush1.msra.mxu0 0.0
    %5606 = vmatprep.subr.mxu0 0.0
    %5607 = vmatpush1.msra.mxu0 0.0
    %5608 = vmatprep.subr.mxu0 0.0
    %5609 = vmatpush1.msra.mxu0 0.0
    %5610 = vmatprep.subr.mxu0 0.0
    %5611 = vmatpush1.msra.mxu0 0.0
    %5612 = vmatprep.subr.mxu0 0.0
    %5613 = vmatpush1.msra.mxu0 0.0
    %5614 = vmatprep.subr.mxu0 0.0
    %5615 = vmatpush1.msra.mxu0 0.0
    %5616 = vmatprep.subr.mxu0 0.0
    %5617 = vmatpush1.msra.mxu0 0.0
    %5618 = vmatprep.subr.mxu0 0.0
    %5619 = vmatpush1.msra.mxu0 0.0
    %5620 = vmatprep.subr.mxu0 0.0
    %5621 = vmatpush1.msra.mxu0 0.0
    %5622 = vmatprep.subr.mxu0 0.0
    %5623 = vmatpush1.msra.mxu0 0.0
    %5624 = vmatprep.subr.mxu0 0.0
    %5625 = vmatpush1.msra.mxu0 0.0
    %5626 = vmatprep.subr.mxu0 0.0
    %5627 = vmatpush1.msra.mxu0 0.0
    %5628 = vmatprep.subr.mxu0 0.0
    %5629 = vmatpush1.msra.mxu0 %v5591
    %5630 = vmatprep.subr.mxu0 0.0
    %5631 = vmatpush1.msra.mxu0 %v5589
    %5632 = vmatprep.subr.mxu0 0.0
    %5633 = vmatpush2.msra.mxu0 0.0
    %5634 = vmatprep.subr.mxu0 0.0
    %5635 = vmatpush2.msra.mxu0 0.0
    %5636 = vmatprep.subr.mxu0 0.0
    %5637 = vmatpush2.msra.mxu0 0.0
    %5638 = vmatprep.subr.mxu0 0.0
    %5639 = vmatpush2.msra.mxu0 0.0
    %5640 = vmatprep.subr.mxu0 0.0
    %5641 = vmatpush2.msra.mxu0 0.0
    %5642 = vmatprep.subr.mxu0 0.0
    %5643 = vmatpush2.msra.mxu0 0.0
    %5644 = vmatprep.subr.mxu0 0.0
    %5645 = vmatpush2.msra.mxu0 0.0
    %5646 = vmatprep.subr.mxu0 0.0
    %5647 = vmatpush2.msra.mxu0 0.0
    %5648 = vmatprep.subr.mxu0 0.0
    %5649 = vmatpush2.msra.mxu0 0.0
    %5650 = vmatprep.subr.mxu0 0.0
    %5651 = vmatpush2.msra.mxu0 0.0
    %5652 = vmatprep.subr.mxu0 0.0
    %5653 = vmatpush2.msra.mxu0 0.0
    %5654 = vmatprep.subr.mxu0 0.0
    %5655 = vmatpush2.msra.mxu0 0.0
    %5656 = vmatprep.subr.mxu0 0.0
    %5657 = vmatpush2.msra.mxu0 0.0
    %5658 = vmatprep.subr.mxu0 0.0
    %5659 = vmatpush2.msra.mxu0 0.0
    %5660 = vmatprep.subr.mxu0 0.0
    %5661 = vmatpush2.msra.mxu0 0.0
    %5662 = vmatprep.subr.mxu0 0.0
    %5663 = vmatpush2.msra.mxu0 0.0
    %5664 = vmatprep.mubr.f32.mxu0 0.0
    %5665 = vmatmul.mubr.f32.gmra.mxu0 %v5595
    %v5666 = vpop.f32.mrf.mxu0
    %v5667 = vadd.f32 %v5319, %v5666
    %v5668 = vpop.f32.mrf.mxu0
    %5669 = vmatprep.mubr.f32.mxu0 0.0
    %5670 = vmatmul.mubr.f32.gmra.mxu0 %v5598
    %v5671 = vpop.f32.mrf.mxu0
    %v5672 = vadd.f32 %v5324, %v5671
    %v5673 = vpop.f32.mrf.mxu0
    %5674 = vdwg.mxu0
    %5675 = vrot.lane.b32.xlu0 %v4310, 64
    %v5676 = vpop.permute.xlu0 %5675
    %5677 = vrot.lane.b32.xlu0 %v4316, 64
    %v5678 = vpop.permute.xlu0 %5677
    %v5682 = vsel %vm736, %v4782, 0
    %v5685 = vsel %vm736, %v4783, 0
    %5687 = vmatprep.subr.mxu0 0.0
    %5688 = vmatpush1.msra.mxu0 0.0
    %5689 = vmatprep.subr.mxu0 0.0
    %5690 = vmatpush1.msra.mxu0 0.0
    %5691 = vmatprep.subr.mxu0 0.0
    %5692 = vmatpush1.msra.mxu0 0.0
    %5693 = vmatprep.subr.mxu0 0.0
    %5694 = vmatpush1.msra.mxu0 0.0
    %5695 = vmatprep.subr.mxu0 0.0
    %5696 = vmatpush1.msra.mxu0 0.0
    %5697 = vmatprep.subr.mxu0 0.0
    %5698 = vmatpush1.msra.mxu0 0.0
    %5699 = vmatprep.subr.mxu0 0.0
    %5700 = vmatpush1.msra.mxu0 0.0
    %5701 = vmatprep.subr.mxu0 0.0
    %5702 = vmatpush1.msra.mxu0 0.0
    %5703 = vmatprep.subr.mxu0 0.0
    %5704 = vmatpush1.msra.mxu0 0.0
    %5705 = vmatprep.subr.mxu0 0.0
    %5706 = vmatpush1.msra.mxu0 0.0
    %5707 = vmatprep.subr.mxu0 0.0
    %5708 = vmatpush1.msra.mxu0 0.0
    %5709 = vmatprep.subr.mxu0 0.0
    %5710 = vmatpush1.msra.mxu0 0.0
    %5711 = vmatprep.subr.mxu0 0.0
    %5712 = vmatpush1.msra.mxu0 0.0
    %5713 = vmatprep.subr.mxu0 0.0
    %5714 = vmatpush1.msra.mxu0 0.0
    %5715 = vmatprep.subr.mxu0 0.0
    %5716 = vmatpush1.msra.mxu0 %v5678
    %5717 = vmatprep.subr.mxu0 0.0
    %5718 = vmatpush1.msra.mxu0 %v5676
    %5719 = vmatprep.subr.mxu0 0.0
    %5720 = vmatpush2.msra.mxu0 0.0
    %5721 = vmatprep.subr.mxu0 0.0
    %5722 = vmatpush2.msra.mxu0 0.0
    %5723 = vmatprep.subr.mxu0 0.0
    %5724 = vmatpush2.msra.mxu0 0.0
    %5725 = vmatprep.subr.mxu0 0.0
    %5726 = vmatpush2.msra.mxu0 0.0
    %5727 = vmatprep.subr.mxu0 0.0
    %5728 = vmatpush2.msra.mxu0 0.0
    %5729 = vmatprep.subr.mxu0 0.0
    %5730 = vmatpush2.msra.mxu0 0.0
    %5731 = vmatprep.subr.mxu0 0.0
    %5732 = vmatpush2.msra.mxu0 0.0
    %5733 = vmatprep.subr.mxu0 0.0
    %5734 = vmatpush2.msra.mxu0 0.0
    %5735 = vmatprep.subr.mxu0 0.0
    %5736 = vmatpush2.msra.mxu0 0.0
    %5737 = vmatprep.subr.mxu0 0.0
    %5738 = vmatpush2.msra.mxu0 0.0
    %5739 = vmatprep.subr.mxu0 0.0
    %5740 = vmatpush2.msra.mxu0 0.0
    %5741 = vmatprep.subr.mxu0 0.0
    %5742 = vmatpush2.msra.mxu0 0.0
    %5743 = vmatprep.subr.mxu0 0.0
    %5744 = vmatpush2.msra.mxu0 0.0
    %5745 = vmatprep.subr.mxu0 0.0
    %5746 = vmatpush2.msra.mxu0 0.0
    %5747 = vmatprep.subr.mxu0 0.0
    %5748 = vmatpush2.msra.mxu0 0.0
    %5749 = vmatprep.subr.mxu0 0.0
    %5750 = vmatpush2.msra.mxu0 0.0
    %5751 = vmatprep.mubr.f32.mxu0 0.0
    %5752 = vmatmul.mubr.f32.gmra.mxu0 %v5682
    %v5753 = vpop.f32.mrf.mxu0
    %v5754 = vadd.f32 %v5406, %v5753
    %v5755 = vpop.f32.mrf.mxu0
    %5756 = vmatprep.mubr.f32.mxu0 0.0
    %5757 = vmatmul.mubr.f32.gmra.mxu0 %v5685
    %v5758 = vpop.f32.mrf.mxu0
    %v5759 = vadd.f32 %v5411, %v5758
    %v5760 = vpop.f32.mrf.mxu0
    %5761 = vdwg.mxu0
    %5762 = vrot.lane.b32.xlu0 %v4322, 64
    %v5763 = vpop.permute.xlu0 %5762
    %5764 = vrot.lane.b32.xlu0 %v4328, 64
    %v5765 = vpop.permute.xlu0 %5764
    %v5769 = vsel %vm736, %v4784, 0
    %v5772 = vsel %vm736, %v4785, 0
    %5774 = vmatprep.subr.mxu0 0.0
    %5775 = vmatpush1.msra.mxu0 0.0
    %5776 = vmatprep.subr.mxu0 0.0
    %5777 = vmatpush1.msra.mxu0 0.0
    %5778 = vmatprep.subr.mxu0 0.0
    %5779 = vmatpush1.msra.mxu0 0.0
    %5780 = vmatprep.subr.mxu0 0.0
    %5781 = vmatpush1.msra.mxu0 0.0
    %5782 = vmatprep.subr.mxu0 0.0
    %5783 = vmatpush1.msra.mxu0 0.0
    %5784 = vmatprep.subr.mxu0 0.0
    %5785 = vmatpush1.msra.mxu0 0.0
    %5786 = vmatprep.subr.mxu0 0.0
    %5787 = vmatpush1.msra.mxu0 0.0
    %5788 = vmatprep.subr.mxu0 0.0
    %5789 = vmatpush1.msra.mxu0 0.0
    %5790 = vmatprep.subr.mxu0 0.0
    %5791 = vmatpush1.msra.mxu0 0.0
    %5792 = vmatprep.subr.mxu0 0.0
    %5793 = vmatpush1.msra.mxu0 0.0
    %5794 = vmatprep.subr.mxu0 0.0
    %5795 = vmatpush1.msra.mxu0 0.0
    %5796 = vmatprep.subr.mxu0 0.0
    %5797 = vmatpush1.msra.mxu0 0.0
    %5798 = vmatprep.subr.mxu0 0.0
    %5799 = vmatpush1.msra.mxu0 0.0
    %5800 = vmatprep.subr.mxu0 0.0
    %5801 = vmatpush1.msra.mxu0 0.0
    %5802 = vmatprep.subr.mxu0 0.0
    %5803 = vmatpush1.msra.mxu0 %v5765
    %5804 = vmatprep.subr.mxu0 0.0
    %5805 = vmatpush1.msra.mxu0 %v5763
    %5806 = vmatprep.subr.mxu0 0.0
    %5807 = vmatpush2.msra.mxu0 0.0
    %5808 = vmatprep.subr.mxu0 0.0
    %5809 = vmatpush2.msra.mxu0 0.0
    %5810 = vmatprep.subr.mxu0 0.0
    %5811 = vmatpush2.msra.mxu0 0.0
    %5812 = vmatprep.subr.mxu0 0.0
    %5813 = vmatpush2.msra.mxu0 0.0
    %5814 = vmatprep.subr.mxu0 0.0
    %5815 = vmatpush2.msra.mxu0 0.0
    %5816 = vmatprep.subr.mxu0 0.0
    %5817 = vmatpush2.msra.mxu0 0.0
    %5818 = vmatprep.subr.mxu0 0.0
    %5819 = vmatpush2.msra.mxu0 0.0
    %5820 = vmatprep.subr.mxu0 0.0
    %5821 = vmatpush2.msra.mxu0 0.0
    %5822 = vmatprep.subr.mxu0 0.0
    %5823 = vmatpush2.msra.mxu0 0.0
    %5824 = vmatprep.subr.mxu0 0.0
    %5825 = vmatpush2.msra.mxu0 0.0
    %5826 = vmatprep.subr.mxu0 0.0
    %5827 = vmatpush2.msra.mxu0 0.0
    %5828 = vmatprep.subr.mxu0 0.0
    %5829 = vmatpush2.msra.mxu0 0.0
    %5830 = vmatprep.subr.mxu0 0.0
    %5831 = vmatpush2.msra.mxu0 0.0
    %5832 = vmatprep.subr.mxu0 0.0
    %5833 = vmatpush2.msra.mxu0 0.0
    %5834 = vmatprep.subr.mxu0 0.0
    %5835 = vmatpush2.msra.mxu0 0.0
    %5836 = vmatprep.subr.mxu0 0.0
    %5837 = vmatpush2.msra.mxu0 0.0
    %5838 = vmatprep.mubr.f32.mxu0 0.0
    %5839 = vmatmul.mubr.f32.gmra.mxu0 %v5769
    %v5840 = vpop.f32.mrf.mxu0
    %v5841 = vadd.f32 %v5493, %v5840
    %v5842 = vpop.f32.mrf.mxu0
    %5843 = vmatprep.mubr.f32.mxu0 0.0
    %5844 = vmatmul.mubr.f32.gmra.mxu0 %v5772
    %v5845 = vpop.f32.mrf.mxu0
    %v5846 = vadd.f32 %v5498, %v5845
    %v5847 = vpop.f32.mrf.mxu0
    %5848 = vdwg.mxu0
    %5849 = vrot.lane.b32.xlu0 %v4334, 64
    %v5850 = vpop.permute.xlu0 %5849
    %5851 = vrot.lane.b32.xlu0 %v4340, 64
    %v5852 = vpop.permute.xlu0 %5851
    %v5856 = vsel %vm736, %v4786, 0
    %v5859 = vsel %vm736, %v4787, 0
    %5861 = vmatprep.subr.mxu0 0.0
    %5862 = vmatpush1.msra.mxu0 0.0
    %5863 = vmatprep.subr.mxu0 0.0
    %5864 = vmatpush1.msra.mxu0 0.0
    %5865 = vmatprep.subr.mxu0 0.0
    %5866 = vmatpush1.msra.mxu0 0.0
    %5867 = vmatprep.subr.mxu0 0.0
    %5868 = vmatpush1.msra.mxu0 0.0
    %5869 = vmatprep.subr.mxu0 0.0
    %5870 = vmatpush1.msra.mxu0 0.0
    %5871 = vmatprep.subr.mxu0 0.0
    %5872 = vmatpush1.msra.mxu0 0.0
    %5873 = vmatprep.subr.mxu0 0.0
    %5874 = vmatpush1.msra.mxu0 0.0
    %5875 = vmatprep.subr.mxu0 0.0
    %5876 = vmatpush1.msra.mxu0 0.0
    %5877 = vmatprep.subr.mxu0 0.0
    %5878 = vmatpush1.msra.mxu0 0.0
    %5879 = vmatprep.subr.mxu0 0.0
    %5880 = vmatpush1.msra.mxu0 0.0
    %5881 = vmatprep.subr.mxu0 0.0
    %5882 = vmatpush1.msra.mxu0 0.0
    %5883 = vmatprep.subr.mxu0 0.0
    %5884 = vmatpush1.msra.mxu0 0.0
    %5885 = vmatprep.subr.mxu0 0.0
    %5886 = vmatpush1.msra.mxu0 0.0
    %5887 = vmatprep.subr.mxu0 0.0
    %5888 = vmatpush1.msra.mxu0 0.0
    %5889 = vmatprep.subr.mxu0 0.0
    %5890 = vmatpush1.msra.mxu0 %v5852
    %5891 = vmatprep.subr.mxu0 0.0
    %5892 = vmatpush1.msra.mxu0 %v5850
    %5893 = vmatprep.subr.mxu0 0.0
    %5894 = vmatpush2.msra.mxu0 0.0
    %5895 = vmatprep.subr.mxu0 0.0
    %5896 = vmatpush2.msra.mxu0 0.0
    %5897 = vmatprep.subr.mxu0 0.0
    %5898 = vmatpush2.msra.mxu0 0.0
    %5899 = vmatprep.subr.mxu0 0.0
    %5900 = vmatpush2.msra.mxu0 0.0
    %5901 = vmatprep.subr.mxu0 0.0
    %5902 = vmatpush2.msra.mxu0 0.0
    %5903 = vmatprep.subr.mxu0 0.0
    %5904 = vmatpush2.msra.mxu0 0.0
    %5905 = vmatprep.subr.mxu0 0.0
    %5906 = vmatpush2.msra.mxu0 0.0
    %5907 = vmatprep.subr.mxu0 0.0
    %5908 = vmatpush2.msra.mxu0 0.0
    %5909 = vmatprep.subr.mxu0 0.0
    %5910 = vmatpush2.msra.mxu0 0.0
    %5911 = vmatprep.subr.mxu0 0.0
    %5912 = vmatpush2.msra.mxu0 0.0
    %5913 = vmatprep.subr.mxu0 0.0
    %5914 = vmatpush2.msra.mxu0 0.0
    %5915 = vmatprep.subr.mxu0 0.0
    %5916 = vmatpush2.msra.mxu0 0.0
    %5917 = vmatprep.subr.mxu0 0.0
    %5918 = vmatpush2.msra.mxu0 0.0
    %5919 = vmatprep.subr.mxu0 0.0
    %5920 = vmatpush2.msra.mxu0 0.0
    %5921 = vmatprep.subr.mxu0 0.0
    %5922 = vmatpush2.msra.mxu0 0.0
    %5923 = vmatprep.subr.mxu0 0.0
    %5924 = vmatpush2.msra.mxu0 0.0
    %5925 = vmatprep.mubr.f32.mxu0 0.0
    %5926 = vmatmul.mubr.f32.gmra.mxu0 %v5856
    %v5927 = vpop.f32.mrf.mxu0
    %v5928 = vadd.f32 %v5580, %v5927
    %v5929 = vpop.f32.mrf.mxu0
    %5930 = vmatprep.mubr.f32.mxu0 0.0
    %5931 = vmatmul.mubr.f32.gmra.mxu0 %v5859
    %v5932 = vpop.f32.mrf.mxu0
    %v5933 = vadd.f32 %v5585, %v5932
    %v5934 = vpop.f32.mrf.mxu0
    %5935 = vdwg.mxu0
    %5936 = vrot.lane.b32.xlu0 %v4298, 112
    %v5937 = vpop.permute.xlu0 %5936
    %5938 = vrot.lane.b32.xlu0 %v4304, 112
    %v5939 = vpop.permute.xlu0 %5938
    %5940 = vrot.lane.b32.xlu0 %v4298, 80
    %v5941 = vpop.permute.xlu0 %5940
    %5942 = vrot.lane.b32.xlu0 %v4304, 80
    %v5943 = vpop.permute.xlu0 %5942
    %v5944 = vsel %vm385, %v5937, 0
    %v5946 = vsel %vm385, %v5939, 0
    %v5948 = vsel %vm385, %v5941, 0
    %v5950 = vsel %vm385, %v5943, 0
    %5952 = vmatprep.subr.mxu0 0.0
    %5953 = vmatpush1.xpose.msra.mxu0 0.0
    %5954 = vmatprep.subr.mxu0 0.0
    %5955 = vmatpush1.xpose.msra.mxu0 0.0
    %5956 = vmatprep.subr.mxu0 0.0
    %5957 = vmatpush1.xpose.msra.mxu0 0.0
    %5958 = vmatprep.subr.mxu0 0.0
    %5959 = vmatpush1.xpose.msra.mxu0 0.0
    %5960 = vmatprep.subr.mxu0 0.0
    %5961 = vmatpush1.xpose.msra.mxu0 0.0
    %5962 = vmatprep.subr.mxu0 0.0
    %5963 = vmatpush1.xpose.msra.mxu0 0.0
    %5964 = vmatprep.subr.mxu0 0.0
    %5965 = vmatpush1.xpose.msra.mxu0 0.0
    %5966 = vmatprep.subr.mxu0 0.0
    %5967 = vmatpush1.xpose.msra.mxu0 0.0
    %5968 = vmatprep.subr.mxu0 0.0
    %5969 = vmatpush1.xpose.msra.mxu0 0.0
    %5970 = vmatprep.subr.mxu0 0.0
    %5971 = vmatpush1.xpose.msra.mxu0 0.0
    %5972 = vmatprep.subr.mxu0 0.0
    %5973 = vmatpush1.xpose.msra.mxu0 0.0
    %5974 = vmatprep.subr.mxu0 0.0
    %5975 = vmatpush1.xpose.msra.mxu0 0.0
    %5976 = vmatprep.subr.mxu0 0.0
    %5977 = vmatpush1.xpose.msra.mxu0 0.0
    %5978 = vmatprep.subr.mxu0 0.0
    %5979 = vmatpush1.xpose.msra.mxu0 0.0
    %5980 = vmatprep.subr.mxu0 0.0
    %5981 = vmatpush1.xpose.msra.mxu0 %v5950
    %5982 = vmatprep.subr.mxu0 0.0
    %5983 = vmatpush1.xpose.msra.mxu0 %v5948
    %5984 = vmatprep.subr.mxu0 0.0
    %5985 = vmatpush2.xpose.msra.mxu0 0.0
    %5986 = vmatprep.subr.mxu0 0.0
    %5987 = vmatpush2.xpose.msra.mxu0 0.0
    %5988 = vmatprep.subr.mxu0 0.0
    %5989 = vmatpush2.xpose.msra.mxu0 0.0
    %5990 = vmatprep.subr.mxu0 0.0
    %5991 = vmatpush2.xpose.msra.mxu0 0.0
    %5992 = vmatprep.subr.mxu0 0.0
    %5993 = vmatpush2.xpose.msra.mxu0 0.0
    %5994 = vmatprep.subr.mxu0 0.0
    %5995 = vmatpush2.xpose.msra.mxu0 0.0
    %5996 = vmatprep.subr.mxu0 0.0
    %5997 = vmatpush2.xpose.msra.mxu0 0.0
    %5998 = vmatprep.subr.mxu0 0.0
    %5999 = vmatpush2.xpose.msra.mxu0 0.0
    %6000 = vmatprep.subr.mxu0 0.0
    %6001 = vmatpush2.xpose.msra.mxu0 0.0
    %6002 = vmatprep.subr.mxu0 0.0
    %6003 = vmatpush2.xpose.msra.mxu0 0.0
    %6004 = vmatprep.subr.mxu0 0.0
    %6005 = vmatpush2.xpose.msra.mxu0 0.0
    %6006 = vmatprep.subr.mxu0 0.0
    %6007 = vmatpush2.xpose.msra.mxu0 0.0
    %6008 = vmatprep.subr.mxu0 0.0
    %6009 = vmatpush2.xpose.msra.mxu0 0.0
    %6010 = vmatprep.subr.mxu0 0.0
    %6011 = vmatpush2.xpose.msra.mxu0 0.0
    %6012 = vmatprep.subr.mxu0 0.0
    %6013 = vmatpush2.xpose.msra.mxu0 0.0
    %6014 = vmatprep.subr.mxu0 0.0
    %6015 = vmatpush2.xpose.msra.mxu0 0.0
    %6016 = vmatprep.mubr.f32.mxu0 0.0
    %6017 = vmatmul.mubr.f32.gmra.mxu0 %v5944
    %v6018 = vpop.f32.mrf.mxu0
    %v6019 = vadd.f32 %v94, %v6018
    %v6020 = vpop.f32.mrf.mxu0
    %6021 = vmatprep.mubr.f32.mxu0 0.0
    %6022 = vmatmul.mubr.f32.gmra.mxu0 %v5946
    %v6023 = vpop.f32.mrf.mxu0
    %v6024 = vadd.f32 %v94, %v6023
    %v6025 = vpop.f32.mrf.mxu0
    %6026 = vdwg.mxu0
    %6027 = vrot.lane.b32.xlu0 %v4310, 112
    %v6028 = vpop.permute.xlu0 %6027
    %6029 = vrot.lane.b32.xlu0 %v4316, 112
    %v6030 = vpop.permute.xlu0 %6029
    %6031 = vrot.lane.b32.xlu0 %v4310, 80
    %v6032 = vpop.permute.xlu0 %6031
    %6033 = vrot.lane.b32.xlu0 %v4316, 80
    %v6034 = vpop.permute.xlu0 %6033
    %v6035 = vsel %vm385, %v6028, 0
    %v6037 = vsel %vm385, %v6030, 0
    %v6039 = vsel %vm385, %v6032, 0
    %v6041 = vsel %vm385, %v6034, 0
    %6043 = vmatprep.subr.mxu0 0.0
    %6044 = vmatpush1.xpose.msra.mxu0 0.0
    %6045 = vmatprep.subr.mxu0 0.0
    %6046 = vmatpush1.xpose.msra.mxu0 0.0
    %6047 = vmatprep.subr.mxu0 0.0
    %6048 = vmatpush1.xpose.msra.mxu0 0.0
    %6049 = vmatprep.subr.mxu0 0.0
    %6050 = vmatpush1.xpose.msra.mxu0 0.0
    %6051 = vmatprep.subr.mxu0 0.0
    %6052 = vmatpush1.xpose.msra.mxu0 0.0
    %6053 = vmatprep.subr.mxu0 0.0
    %6054 = vmatpush1.xpose.msra.mxu0 0.0
    %6055 = vmatprep.subr.mxu0 0.0
    %6056 = vmatpush1.xpose.msra.mxu0 0.0
    %6057 = vmatprep.subr.mxu0 0.0
    %6058 = vmatpush1.xpose.msra.mxu0 0.0
    %6059 = vmatprep.subr.mxu0 0.0
    %6060 = vmatpush1.xpose.msra.mxu0 0.0
    %6061 = vmatprep.subr.mxu0 0.0
    %6062 = vmatpush1.xpose.msra.mxu0 0.0
    %6063 = vmatprep.subr.mxu0 0.0
    %6064 = vmatpush1.xpose.msra.mxu0 0.0
    %6065 = vmatprep.subr.mxu0 0.0
    %6066 = vmatpush1.xpose.msra.mxu0 0.0
    %6067 = vmatprep.subr.mxu0 0.0
    %6068 = vmatpush1.xpose.msra.mxu0 0.0
    %6069 = vmatprep.subr.mxu0 0.0
    %6070 = vmatpush1.xpose.msra.mxu0 0.0
    %6071 = vmatprep.subr.mxu0 0.0
    %6072 = vmatpush1.xpose.msra.mxu0 %v6041
    %6073 = vmatprep.subr.mxu0 0.0
    %6074 = vmatpush1.xpose.msra.mxu0 %v6039
    %6075 = vmatprep.subr.mxu0 0.0
    %6076 = vmatpush2.xpose.msra.mxu0 0.0
    %6077 = vmatprep.subr.mxu0 0.0
    %6078 = vmatpush2.xpose.msra.mxu0 0.0
    %6079 = vmatprep.subr.mxu0 0.0
    %6080 = vmatpush2.xpose.msra.mxu0 0.0
    %6081 = vmatprep.subr.mxu0 0.0
    %6082 = vmatpush2.xpose.msra.mxu0 0.0
    %6083 = vmatprep.subr.mxu0 0.0
    %6084 = vmatpush2.xpose.msra.mxu0 0.0
    %6085 = vmatprep.subr.mxu0 0.0
    %6086 = vmatpush2.xpose.msra.mxu0 0.0
    %6087 = vmatprep.subr.mxu0 0.0
    %6088 = vmatpush2.xpose.msra.mxu0 0.0
    %6089 = vmatprep.subr.mxu0 0.0
    %6090 = vmatpush2.xpose.msra.mxu0 0.0
    %6091 = vmatprep.subr.mxu0 0.0
    %6092 = vmatpush2.xpose.msra.mxu0 0.0
    %6093 = vmatprep.subr.mxu0 0.0
    %6094 = vmatpush2.xpose.msra.mxu0 0.0
    %6095 = vmatprep.subr.mxu0 0.0
    %6096 = vmatpush2.xpose.msra.mxu0 0.0
    %6097 = vmatprep.subr.mxu0 0.0
    %6098 = vmatpush2.xpose.msra.mxu0 0.0
    %6099 = vmatprep.subr.mxu0 0.0
    %6100 = vmatpush2.xpose.msra.mxu0 0.0
    %6101 = vmatprep.subr.mxu0 0.0
    %6102 = vmatpush2.xpose.msra.mxu0 0.0
    %6103 = vmatprep.subr.mxu0 0.0
    %6104 = vmatpush2.xpose.msra.mxu0 0.0
    %6105 = vmatprep.subr.mxu0 0.0
    %6106 = vmatpush2.xpose.msra.mxu0 0.0
    %6107 = vmatprep.mubr.f32.mxu0 0.0
    %6108 = vmatmul.mubr.f32.gmra.mxu0 %v6035
    %v6109 = vpop.f32.mrf.mxu0
    %v6110 = vadd.f32 %v94, %v6109
    %v6111 = vpop.f32.mrf.mxu0
    %6112 = vmatprep.mubr.f32.mxu0 0.0
    %6113 = vmatmul.mubr.f32.gmra.mxu0 %v6037
    %v6114 = vpop.f32.mrf.mxu0
    %v6115 = vadd.f32 %v94, %v6114
    %v6116 = vpop.f32.mrf.mxu0
    %6117 = vdwg.mxu0
    %6118 = vrot.lane.b32.xlu0 %v4322, 112
    %v6119 = vpop.permute.xlu0 %6118
    %6120 = vrot.lane.b32.xlu0 %v4328, 112
    %v6121 = vpop.permute.xlu0 %6120
    %6122 = vrot.lane.b32.xlu0 %v4322, 80
    %v6123 = vpop.permute.xlu0 %6122
    %6124 = vrot.lane.b32.xlu0 %v4328, 80
    %v6125 = vpop.permute.xlu0 %6124
    %v6126 = vsel %vm385, %v6119, 0
    %v6128 = vsel %vm385, %v6121, 0
    %v6130 = vsel %vm385, %v6123, 0
    %v6132 = vsel %vm385, %v6125, 0
    %6134 = vmatprep.subr.mxu0 0.0
    %6135 = vmatpush1.xpose.msra.mxu0 0.0
    %6136 = vmatprep.subr.mxu0 0.0
    %6137 = vmatpush1.xpose.msra.mxu0 0.0
    %6138 = vmatprep.subr.mxu0 0.0
    %6139 = vmatpush1.xpose.msra.mxu0 0.0
    %6140 = vmatprep.subr.mxu0 0.0
    %6141 = vmatpush1.xpose.msra.mxu0 0.0
    %6142 = vmatprep.subr.mxu0 0.0
    %6143 = vmatpush1.xpose.msra.mxu0 0.0
    %6144 = vmatprep.subr.mxu0 0.0
    %6145 = vmatpush1.xpose.msra.mxu0 0.0
    %6146 = vmatprep.subr.mxu0 0.0
    %6147 = vmatpush1.xpose.msra.mxu0 0.0
    %6148 = vmatprep.subr.mxu0 0.0
    %6149 = vmatpush1.xpose.msra.mxu0 0.0
    %6150 = vmatprep.subr.mxu0 0.0
    %6151 = vmatpush1.xpose.msra.mxu0 0.0
    %6152 = vmatprep.subr.mxu0 0.0
    %6153 = vmatpush1.xpose.msra.mxu0 0.0
    %6154 = vmatprep.subr.mxu0 0.0
    %6155 = vmatpush1.xpose.msra.mxu0 0.0
    %6156 = vmatprep.subr.mxu0 0.0
    %6157 = vmatpush1.xpose.msra.mxu0 0.0
    %6158 = vmatprep.subr.mxu0 0.0
    %6159 = vmatpush1.xpose.msra.mxu0 0.0
    %6160 = vmatprep.subr.mxu0 0.0
    %6161 = vmatpush1.xpose.msra.mxu0 0.0
    %6162 = vmatprep.subr.mxu0 0.0
    %6163 = vmatpush1.xpose.msra.mxu0 %v6132
    %6164 = vmatprep.subr.mxu0 0.0
    %6165 = vmatpush1.xpose.msra.mxu0 %v6130
    %6166 = vmatprep.subr.mxu0 0.0
    %6167 = vmatpush2.xpose.msra.mxu0 0.0
    %6168 = vmatprep.subr.mxu0 0.0
    %6169 = vmatpush2.xpose.msra.mxu0 0.0
    %6170 = vmatprep.subr.mxu0 0.0
    %6171 = vmatpush2.xpose.msra.mxu0 0.0
    %6172 = vmatprep.subr.mxu0 0.0
    %6173 = vmatpush2.xpose.msra.mxu0 0.0
    %6174 = vmatprep.subr.mxu0 0.0
    %6175 = vmatpush2.xpose.msra.mxu0 0.0
    %6176 = vmatprep.subr.mxu0 0.0
    %6177 = vmatpush2.xpose.msra.mxu0 0.0
    %6178 = vmatprep.subr.mxu0 0.0
    %6179 = vmatpush2.xpose.msra.mxu0 0.0
    %6180 = vmatprep.subr.mxu0 0.0
    %6181 = vmatpush2.xpose.msra.mxu0 0.0
    %6182 = vmatprep.subr.mxu0 0.0
    %6183 = vmatpush2.xpose.msra.mxu0 0.0
    %6184 = vmatprep.subr.mxu0 0.0
    %6185 = vmatpush2.xpose.msra.mxu0 0.0
    %6186 = vmatprep.subr.mxu0 0.0
    %6187 = vmatpush2.xpose.msra.mxu0 0.0
    %6188 = vmatprep.subr.mxu0 0.0
    %6189 = vmatpush2.xpose.msra.mxu0 0.0
    %6190 = vmatprep.subr.mxu0 0.0
    %6191 = vmatpush2.xpose.msra.mxu0 0.0
    %6192 = vmatprep.subr.mxu0 0.0
    %6193 = vmatpush2.xpose.msra.mxu0 0.0
    %6194 = vmatprep.subr.mxu0 0.0
    %6195 = vmatpush2.xpose.msra.mxu0 0.0
    %6196 = vmatprep.subr.mxu0 0.0
    %6197 = vmatpush2.xpose.msra.mxu0 0.0
    %6198 = vmatprep.mubr.f32.mxu0 0.0
    %6199 = vmatmul.mubr.f32.gmra.mxu0 %v6126
    %v6200 = vpop.f32.mrf.mxu0
    %v6201 = vadd.f32 %v94, %v6200
    %v6202 = vpop.f32.mrf.mxu0
    %6203 = vmatprep.mubr.f32.mxu0 0.0
    %6204 = vmatmul.mubr.f32.gmra.mxu0 %v6128
    %v6205 = vpop.f32.mrf.mxu0
    %v6206 = vadd.f32 %v94, %v6205
    %v6207 = vpop.f32.mrf.mxu0
    %6208 = vdwg.mxu0
    %6209 = vrot.lane.b32.xlu0 %v4334, 112
    %v6210 = vpop.permute.xlu0 %6209
    %6211 = vrot.lane.b32.xlu0 %v4340, 112
    %v6212 = vpop.permute.xlu0 %6211
    %6213 = vrot.lane.b32.xlu0 %v4334, 80
    %v6214 = vpop.permute.xlu0 %6213
    %6215 = vrot.lane.b32.xlu0 %v4340, 80
    %v6216 = vpop.permute.xlu0 %6215
    %v6217 = vsel %vm385, %v6210, 0
    %v6219 = vsel %vm385, %v6212, 0
    %v6221 = vsel %vm385, %v6214, 0
    %v6223 = vsel %vm385, %v6216, 0
    %6225 = vmatprep.subr.mxu0 0.0
    %6226 = vmatpush1.xpose.msra.mxu0 0.0
    %6227 = vmatprep.subr.mxu0 0.0
    %6228 = vmatpush1.xpose.msra.mxu0 0.0
    %6229 = vmatprep.subr.mxu0 0.0
    %6230 = vmatpush1.xpose.msra.mxu0 0.0
    %6231 = vmatprep.subr.mxu0 0.0
    %6232 = vmatpush1.xpose.msra.mxu0 0.0
    %6233 = vmatprep.subr.mxu0 0.0
    %6234 = vmatpush1.xpose.msra.mxu0 0.0
    %6235 = vmatprep.subr.mxu0 0.0
    %6236 = vmatpush1.xpose.msra.mxu0 0.0
    %6237 = vmatprep.subr.mxu0 0.0
    %6238 = vmatpush1.xpose.msra.mxu0 0.0
    %6239 = vmatprep.subr.mxu0 0.0
    %6240 = vmatpush1.xpose.msra.mxu0 0.0
    %6241 = vmatprep.subr.mxu0 0.0
    %6242 = vmatpush1.xpose.msra.mxu0 0.0
    %6243 = vmatprep.subr.mxu0 0.0
    %6244 = vmatpush1.xpose.msra.mxu0 0.0
    %6245 = vmatprep.subr.mxu0 0.0
    %6246 = vmatpush1.xpose.msra.mxu0 0.0
    %6247 = vmatprep.subr.mxu0 0.0
    %6248 = vmatpush1.xpose.msra.mxu0 0.0
    %6249 = vmatprep.subr.mxu0 0.0
    %6250 = vmatpush1.xpose.msra.mxu0 0.0
    %6251 = vmatprep.subr.mxu0 0.0
    %6252 = vmatpush1.xpose.msra.mxu0 0.0
    %6253 = vmatprep.subr.mxu0 0.0
    %6254 = vmatpush1.xpose.msra.mxu0 %v6223
    %6255 = vmatprep.subr.mxu0 0.0
    %6256 = vmatpush1.xpose.msra.mxu0 %v6221
    %6257 = vmatprep.subr.mxu0 0.0
    %6258 = vmatpush2.xpose.msra.mxu0 0.0
    %6259 = vmatprep.subr.mxu0 0.0
    %6260 = vmatpush2.xpose.msra.mxu0 0.0
    %6261 = vmatprep.subr.mxu0 0.0
    %6262 = vmatpush2.xpose.msra.mxu0 0.0
    %6263 = vmatprep.subr.mxu0 0.0
    %6264 = vmatpush2.xpose.msra.mxu0 0.0
    %6265 = vmatprep.subr.mxu0 0.0
    %6266 = vmatpush2.xpose.msra.mxu0 0.0
    %6267 = vmatprep.subr.mxu0 0.0
    %6268 = vmatpush2.xpose.msra.mxu0 0.0
    %6269 = vmatprep.subr.mxu0 0.0
    %6270 = vmatpush2.xpose.msra.mxu0 0.0
    %6271 = vmatprep.subr.mxu0 0.0
    %6272 = vmatpush2.xpose.msra.mxu0 0.0
    %6273 = vmatprep.subr.mxu0 0.0
    %6274 = vmatpush2.xpose.msra.mxu0 0.0
    %6275 = vmatprep.subr.mxu0 0.0
    %6276 = vmatpush2.xpose.msra.mxu0 0.0
    %6277 = vmatprep.subr.mxu0 0.0
    %6278 = vmatpush2.xpose.msra.mxu0 0.0
    %6279 = vmatprep.subr.mxu0 0.0
    %6280 = vmatpush2.xpose.msra.mxu0 0.0
    %6281 = vmatprep.subr.mxu0 0.0
    %6282 = vmatpush2.xpose.msra.mxu0 0.0
    %6283 = vmatprep.subr.mxu0 0.0
    %6284 = vmatpush2.xpose.msra.mxu0 0.0
    %6285 = vmatprep.subr.mxu0 0.0
    %6286 = vmatpush2.xpose.msra.mxu0 0.0
    %6287 = vmatprep.subr.mxu0 0.0
    %6288 = vmatpush2.xpose.msra.mxu0 0.0
    %6289 = vmatprep.mubr.f32.mxu0 0.0
    %6290 = vmatmul.mubr.f32.gmra.mxu0 %v6217
    %v6291 = vpop.f32.mrf.mxu0
    %v6292 = vadd.f32 %v94, %v6291
    %v6293 = vpop.f32.mrf.mxu0
    %6294 = vmatprep.mubr.f32.mxu0 0.0
    %6295 = vmatmul.mubr.f32.gmra.mxu0 %v6219
    %v6296 = vpop.f32.mrf.mxu0
    %v6297 = vadd.f32 %v94, %v6296
    %v6298 = vpop.f32.mrf.mxu0
    %6299 = vdwg.mxu0
    %v6300 = vsel %vm736, %v6019, -inf
    %6301 = vmax.xlane.f32.xlu0 %v6300
    %v6302 = vpop.xlane.xlu0 %6301
    %v6303 = vsel %vm736, %v6024, -inf
    %6304 = vmax.xlane.f32.xlu0 %v6303
    %v6305 = vpop.xlane.xlu0 %6304
    %v6306 = vsel %vm736, %v6110, -inf
    %6307 = vmax.xlane.f32.xlu0 %v6306
    %v6308 = vpop.xlane.xlu0 %6307
    %v6309 = vsel %vm736, %v6115, -inf
    %6310 = vmax.xlane.f32.xlu0 %v6309
    %v6311 = vpop.xlane.xlu0 %6310
    %v6312 = vsel %vm736, %v6201, -inf
    %6313 = vmax.xlane.f32.xlu0 %v6312
    %v6314 = vpop.xlane.xlu0 %6313
    %v6315 = vsel %vm736, %v6206, -inf
    %6316 = vmax.xlane.f32.xlu0 %v6315
    %v6317 = vpop.xlane.xlu0 %6316
    %v6318 = vsel %vm736, %v6292, -inf
    %6319 = vmax.xlane.f32.xlu0 %v6318
    %v6320 = vpop.xlane.xlu0 %6319
    %v6321 = vsel %vm736, %v6297, -inf
    %6322 = vmax.xlane.f32.xlu0 %v6321
    %v6323 = vpop.xlane.xlu0 %6322
    %v6324 = vsub.f32 %v6019, %v6302
    %v6325 = vsub.f32 %v6024, %v6305
    %v6326 = vsub.f32 %v6110, %v6308
    %v6327 = vsub.f32 %v6115, %v6311
    %v6328 = vsub.f32 %v6201, %v6314
    %v6329 = vsub.f32 %v6206, %v6317
    %v6330 = vsub.f32 %v6292, %v6320
    %v6331 = vsub.f32 %v6297, %v6323
    %v6332 = vmul.f32 %v6324, 1.442695
    %v6333 = vpow.pop %v6332
    %v6334 = vmul.f32 %v6325, 1.442695
    %v6335 = vpow.pop %v6334
    %v6336 = vmul.f32 %v6326, 1.442695
    %v6337 = vpow.pop %v6336
    %v6338 = vmul.f32 %v6327, 1.442695
    %v6339 = vpow.pop %v6338
    %v6340 = vmul.f32 %v6328, 1.442695
    %v6341 = vpow.pop %v6340
    %v6342 = vmul.f32 %v6329, 1.442695
    %v6343 = vpow.pop %v6342
    %v6344 = vmul.f32 %v6330, 1.442695
    %v6345 = vpow.pop %v6344
    %v6346 = vmul.f32 %v6331, 1.442695
    %v6347 = vpow.pop %v6346
    %v6348 = vsel %vm736, %v6333, 0.0
    %6349 = vadd.xlane.f32.xlu0 %v6348
    %v6350 = vpop.xlane.xlu0 %6349
    %v6351 = vsel %vm736, %v6335, 0.0
    %6352 = vadd.xlane.f32.xlu0 %v6351
    %v6353 = vpop.xlane.xlu0 %6352
    %v6354 = vsel %vm736, %v6337, 0.0
    %6355 = vadd.xlane.f32.xlu0 %v6354
    %v6356 = vpop.xlane.xlu0 %6355
    %v6357 = vsel %vm736, %v6339, 0.0
    %6358 = vadd.xlane.f32.xlu0 %v6357
    %v6359 = vpop.xlane.xlu0 %6358
    %v6360 = vsel %vm736, %v6341, 0.0
    %6361 = vadd.xlane.f32.xlu0 %v6360
    %v6362 = vpop.xlane.xlu0 %6361
    %v6363 = vsel %vm736, %v6343, 0.0
    %6364 = vadd.xlane.f32.xlu0 %v6363
    %v6365 = vpop.xlane.xlu0 %6364
    %v6366 = vsel %vm736, %v6345, 0.0
    %6367 = vadd.xlane.f32.xlu0 %v6366
    %v6368 = vpop.xlane.xlu0 %6367
    %v6369 = vsel %vm736, %v6347, 0.0
    %6370 = vadd.xlane.f32.xlu0 %v6369
    %v6371 = vpop.xlane.xlu0 %6370
    %v6372 = vrcp.pop %v6350
    %v6373 = vrcp.pop %v6353
    %v6374 = vrcp.pop %v6356
    %v6375 = vrcp.pop %v6359
    %v6376 = vrcp.pop %v6362
    %v6377 = vrcp.pop %v6365
    %v6378 = vrcp.pop %v6368
    %v6379 = vrcp.pop %v6371
    %v6380 = vmul.f32 %v6333, %v6372
    %v6381 = vmul.f32 %v6335, %v6373
    %v6382 = vmul.f32 %v6337, %v6374
    %v6383 = vmul.f32 %v6339, %v6375
    %v6384 = vmul.f32 %v6341, %v6376
    %v6385 = vmul.f32 %v6343, %v6377
    %v6386 = vmul.f32 %v6345, %v6378
    %v6387 = vmul.f32 %v6347, %v6379
    %v6389 = vsel %vm736, %v6380, 0
    %v6392 = vsel %vm736, %v6381, 0
    %6394 = vmatprep.subr.mxu0 0.0
    %6395 = vmatpush1.msra.mxu0 0.0
    %6396 = vmatprep.subr.mxu0 0.0
    %6397 = vmatpush1.msra.mxu0 0.0
    %6398 = vmatprep.subr.mxu0 0.0
    %6399 = vmatpush1.msra.mxu0 0.0
    %6400 = vmatprep.subr.mxu0 0.0
    %6401 = vmatpush1.msra.mxu0 0.0
    %6402 = vmatprep.subr.mxu0 0.0
    %6403 = vmatpush1.msra.mxu0 0.0
    %6404 = vmatprep.subr.mxu0 0.0
    %6405 = vmatpush1.msra.mxu0 0.0
    %6406 = vmatprep.subr.mxu0 0.0
    %6407 = vmatpush1.msra.mxu0 0.0
    %6408 = vmatprep.subr.mxu0 0.0
    %6409 = vmatpush1.msra.mxu0 0.0
    %6410 = vmatprep.subr.mxu0 0.0
    %6411 = vmatpush1.msra.mxu0 0.0
    %6412 = vmatprep.subr.mxu0 0.0
    %6413 = vmatpush1.msra.mxu0 0.0
    %6414 = vmatprep.subr.mxu0 0.0
    %6415 = vmatpush1.msra.mxu0 0.0
    %6416 = vmatprep.subr.mxu0 0.0
    %6417 = vmatpush1.msra.mxu0 0.0
    %6418 = vmatprep.subr.mxu0 0.0
    %6419 = vmatpush1.msra.mxu0 0.0
    %6420 = vmatprep.subr.mxu0 0.0
    %6421 = vmatpush1.msra.mxu0 0.0
    %6422 = vmatprep.subr.mxu0 0.0
    %6423 = vmatpush1.msra.mxu0 %v4306
    %6424 = vmatprep.subr.mxu0 0.0
    %6425 = vmatpush1.msra.mxu0 %v4300
    %6426 = vmatprep.subr.mxu0 0.0
    %6427 = vmatpush2.msra.mxu0 0.0
    %6428 = vmatprep.subr.mxu0 0.0
    %6429 = vmatpush2.msra.mxu0 0.0
    %6430 = vmatprep.subr.mxu0 0.0
    %6431 = vmatpush2.msra.mxu0 0.0
    %6432 = vmatprep.subr.mxu0 0.0
    %6433 = vmatpush2.msra.mxu0 0.0
    %6434 = vmatprep.subr.mxu0 0.0
    %6435 = vmatpush2.msra.mxu0 0.0
    %6436 = vmatprep.subr.mxu0 0.0
    %6437 = vmatpush2.msra.mxu0 0.0
    %6438 = vmatprep.subr.mxu0 0.0
    %6439 = vmatpush2.msra.mxu0 0.0
    %6440 = vmatprep.subr.mxu0 0.0
    %6441 = vmatpush2.msra.mxu0 0.0
    %6442 = vmatprep.subr.mxu0 0.0
    %6443 = vmatpush2.msra.mxu0 0.0
    %6444 = vmatprep.subr.mxu0 0.0
    %6445 = vmatpush2.msra.mxu0 0.0
    %6446 = vmatprep.subr.mxu0 0.0
    %6447 = vmatpush2.msra.mxu0 0.0
    %6448 = vmatprep.subr.mxu0 0.0
    %6449 = vmatpush2.msra.mxu0 0.0
    %6450 = vmatprep.subr.mxu0 0.0
    %6451 = vmatpush2.msra.mxu0 0.0
    %6452 = vmatprep.subr.mxu0 0.0
    %6453 = vmatpush2.msra.mxu0 0.0
    %6454 = vmatprep.subr.mxu0 0.0
    %6455 = vmatpush2.msra.mxu0 0.0
    %6456 = vmatprep.subr.mxu0 0.0
    %6457 = vmatpush2.msra.mxu0 0.0
    %6458 = vmatprep.mubr.f32.mxu0 0.0
    %6459 = vmatmul.mubr.f32.gmra.mxu0 %v6389
    %v6460 = vpop.f32.mrf.mxu0
    %v6461 = vadd.f32 0.0, %v6460
    %v6462 = vpop.f32.mrf.mxu0
    %6463 = vmatprep.mubr.f32.mxu0 0.0
    %6464 = vmatmul.mubr.f32.gmra.mxu0 %v6392
    %v6465 = vpop.f32.mrf.mxu0
    %v6466 = vadd.f32 0.0, %v6465
    %v6467 = vpop.f32.mrf.mxu0
    %6468 = vdwg.mxu0
    %v6470 = vsel %vm736, %v6382, 0
    %v6473 = vsel %vm736, %v6383, 0
    %6475 = vmatprep.subr.mxu0 0.0
    %6476 = vmatpush1.msra.mxu0 0.0
    %6477 = vmatprep.subr.mxu0 0.0
    %6478 = vmatpush1.msra.mxu0 0.0
    %6479 = vmatprep.subr.mxu0 0.0
    %6480 = vmatpush1.msra.mxu0 0.0
    %6481 = vmatprep.subr.mxu0 0.0
    %6482 = vmatpush1.msra.mxu0 0.0
    %6483 = vmatprep.subr.mxu0 0.0
    %6484 = vmatpush1.msra.mxu0 0.0
    %6485 = vmatprep.subr.mxu0 0.0
    %6486 = vmatpush1.msra.mxu0 0.0
    %6487 = vmatprep.subr.mxu0 0.0
    %6488 = vmatpush1.msra.mxu0 0.0
    %6489 = vmatprep.subr.mxu0 0.0
    %6490 = vmatpush1.msra.mxu0 0.0
    %6491 = vmatprep.subr.mxu0 0.0
    %6492 = vmatpush1.msra.mxu0 0.0
    %6493 = vmatprep.subr.mxu0 0.0
    %6494 = vmatpush1.msra.mxu0 0.0
    %6495 = vmatprep.subr.mxu0 0.0
    %6496 = vmatpush1.msra.mxu0 0.0
    %6497 = vmatprep.subr.mxu0 0.0
    %6498 = vmatpush1.msra.mxu0 0.0
    %6499 = vmatprep.subr.mxu0 0.0
    %6500 = vmatpush1.msra.mxu0 0.0
    %6501 = vmatprep.subr.mxu0 0.0
    %6502 = vmatpush1.msra.mxu0 0.0
    %6503 = vmatprep.subr.mxu0 0.0
    %6504 = vmatpush1.msra.mxu0 %v4318
    %6505 = vmatprep.subr.mxu0 0.0
    %6506 = vmatpush1.msra.mxu0 %v4312
    %6507 = vmatprep.subr.mxu0 0.0
    %6508 = vmatpush2.msra.mxu0 0.0
    %6509 = vmatprep.subr.mxu0 0.0
    %6510 = vmatpush2.msra.mxu0 0.0
    %6511 = vmatprep.subr.mxu0 0.0
    %6512 = vmatpush2.msra.mxu0 0.0
    %6513 = vmatprep.subr.mxu0 0.0
    %6514 = vmatpush2.msra.mxu0 0.0
    %6515 = vmatprep.subr.mxu0 0.0
    %6516 = vmatpush2.msra.mxu0 0.0
    %6517 = vmatprep.subr.mxu0 0.0
    %6518 = vmatpush2.msra.mxu0 0.0
    %6519 = vmatprep.subr.mxu0 0.0
    %6520 = vmatpush2.msra.mxu0 0.0
    %6521 = vmatprep.subr.mxu0 0.0
    %6522 = vmatpush2.msra.mxu0 0.0
    %6523 = vmatprep.subr.mxu0 0.0
    %6524 = vmatpush2.msra.mxu0 0.0
    %6525 = vmatprep.subr.mxu0 0.0
    %6526 = vmatpush2.msra.mxu0 0.0
    %6527 = vmatprep.subr.mxu0 0.0
    %6528 = vmatpush2.msra.mxu0 0.0
    %6529 = vmatprep.subr.mxu0 0.0
    %6530 = vmatpush2.msra.mxu0 0.0
    %6531 = vmatprep.subr.mxu0 0.0
    %6532 = vmatpush2.msra.mxu0 0.0
    %6533 = vmatprep.subr.mxu0 0.0
    %6534 = vmatpush2.msra.mxu0 0.0
    %6535 = vmatprep.subr.mxu0 0.0
    %6536 = vmatpush2.msra.mxu0 0.0
    %6537 = vmatprep.subr.mxu0 0.0
    %6538 = vmatpush2.msra.mxu0 0.0
    %6539 = vmatprep.mubr.f32.mxu0 0.0
    %6540 = vmatmul.mubr.f32.gmra.mxu0 %v6470
    %v6541 = vpop.f32.mrf.mxu0
    %v6542 = vadd.f32 0.0, %v6541
    %v6543 = vpop.f32.mrf.mxu0
    %6544 = vmatprep.mubr.f32.mxu0 0.0
    %6545 = vmatmul.mubr.f32.gmra.mxu0 %v6473
    %v6546 = vpop.f32.mrf.mxu0
    %v6547 = vadd.f32 0.0, %v6546
    %v6548 = vpop.f32.mrf.mxu0
    %6549 = vdwg.mxu0
    %v6551 = vsel %vm736, %v6384, 0
    %v6554 = vsel %vm736, %v6385, 0
    %6556 = vmatprep.subr.mxu0 0.0
    %6557 = vmatpush1.msra.mxu0 0.0
    %6558 = vmatprep.subr.mxu0 0.0
    %6559 = vmatpush1.msra.mxu0 0.0
    %6560 = vmatprep.subr.mxu0 0.0
    %6561 = vmatpush1.msra.mxu0 0.0
    %6562 = vmatprep.subr.mxu0 0.0
    %6563 = vmatpush1.msra.mxu0 0.0
    %6564 = vmatprep.subr.mxu0 0.0
    %6565 = vmatpush1.msra.mxu0 0.0
    %6566 = vmatprep.subr.mxu0 0.0
    %6567 = vmatpush1.msra.mxu0 0.0
    %6568 = vmatprep.subr.mxu0 0.0
    %6569 = vmatpush1.msra.mxu0 0.0
    %6570 = vmatprep.subr.mxu0 0.0
    %6571 = vmatpush1.msra.mxu0 0.0
    %6572 = vmatprep.subr.mxu0 0.0
    %6573 = vmatpush1.msra.mxu0 0.0
    %6574 = vmatprep.subr.mxu0 0.0
    %6575 = vmatpush1.msra.mxu0 0.0
    %6576 = vmatprep.subr.mxu0 0.0
    %6577 = vmatpush1.msra.mxu0 0.0
    %6578 = vmatprep.subr.mxu0 0.0
    %6579 = vmatpush1.msra.mxu0 0.0
    %6580 = vmatprep.subr.mxu0 0.0
    %6581 = vmatpush1.msra.mxu0 0.0
    %6582 = vmatprep.subr.mxu0 0.0
    %6583 = vmatpush1.msra.mxu0 0.0
    %6584 = vmatprep.subr.mxu0 0.0
    %6585 = vmatpush1.msra.mxu0 %v4330
    %6586 = vmatprep.subr.mxu0 0.0
    %6587 = vmatpush1.msra.mxu0 %v4324
    %6588 = vmatprep.subr.mxu0 0.0
    %6589 = vmatpush2.msra.mxu0 0.0
    %6590 = vmatprep.subr.mxu0 0.0
    %6591 = vmatpush2.msra.mxu0 0.0
    %6592 = vmatprep.subr.mxu0 0.0
    %6593 = vmatpush2.msra.mxu0 0.0
    %6594 = vmatprep.subr.mxu0 0.0
    %6595 = vmatpush2.msra.mxu0 0.0
    %6596 = vmatprep.subr.mxu0 0.0
    %6597 = vmatpush2.msra.mxu0 0.0
    %6598 = vmatprep.subr.mxu0 0.0
    %6599 = vmatpush2.msra.mxu0 0.0
    %6600 = vmatprep.subr.mxu0 0.0
    %6601 = vmatpush2.msra.mxu0 0.0
    %6602 = vmatprep.subr.mxu0 0.0
    %6603 = vmatpush2.msra.mxu0 0.0
    %6604 = vmatprep.subr.mxu0 0.0
    %6605 = vmatpush2.msra.mxu0 0.0
    %6606 = vmatprep.subr.mxu0 0.0
    %6607 = vmatpush2.msra.mxu0 0.0
    %6608 = vmatprep.subr.mxu0 0.0
    %6609 = vmatpush2.msra.mxu0 0.0
    %6610 = vmatprep.subr.mxu0 0.0
    %6611 = vmatpush2.msra.mxu0 0.0
    %6612 = vmatprep.subr.mxu0 0.0
    %6613 = vmatpush2.msra.mxu0 0.0
    %6614 = vmatprep.subr.mxu0 0.0
    %6615 = vmatpush2.msra.mxu0 0.0
    %6616 = vmatprep.subr.mxu0 0.0
    %6617 = vmatpush2.msra.mxu0 0.0
    %6618 = vmatprep.subr.mxu0 0.0
    %6619 = vmatpush2.msra.mxu0 0.0
    %6620 = vmatprep.mubr.f32.mxu0 0.0
    %6621 = vmatmul.mubr.f32.gmra.mxu0 %v6551
    %v6622 = vpop.f32.mrf.mxu0
    %v6623 = vadd.f32 0.0, %v6622
    %v6624 = vpop.f32.mrf.mxu0
    %6625 = vmatprep.mubr.f32.mxu0 0.0
    %6626 = vmatmul.mubr.f32.gmra.mxu0 %v6554
    %v6627 = vpop.f32.mrf.mxu0
    %v6628 = vadd.f32 0.0, %v6627
    %v6629 = vpop.f32.mrf.mxu0
    %6630 = vdwg.mxu0
    %v6632 = vsel %vm736, %v6386, 0
    %v6635 = vsel %vm736, %v6387, 0
    %6637 = vmatprep.subr.mxu0 0.0
    %6638 = vmatpush1.msra.mxu0 0.0
    %6639 = vmatprep.subr.mxu0 0.0
    %6640 = vmatpush1.msra.mxu0 0.0
    %6641 = vmatprep.subr.mxu0 0.0
    %6642 = vmatpush1.msra.mxu0 0.0
    %6643 = vmatprep.subr.mxu0 0.0
    %6644 = vmatpush1.msra.mxu0 0.0
    %6645 = vmatprep.subr.mxu0 0.0
    %6646 = vmatpush1.msra.mxu0 0.0
    %6647 = vmatprep.subr.mxu0 0.0
    %6648 = vmatpush1.msra.mxu0 0.0
    %6649 = vmatprep.subr.mxu0 0.0
    %6650 = vmatpush1.msra.mxu0 0.0
    %6651 = vmatprep.subr.mxu0 0.0
    %6652 = vmatpush1.msra.mxu0 0.0
    %6653 = vmatprep.subr.mxu0 0.0
    %6654 = vmatpush1.msra.mxu0 0.0
    %6655 = vmatprep.subr.mxu0 0.0
    %6656 = vmatpush1.msra.mxu0 0.0
    %6657 = vmatprep.subr.mxu0 0.0
    %6658 = vmatpush1.msra.mxu0 0.0
    %6659 = vmatprep.subr.mxu0 0.0
    %6660 = vmatpush1.msra.mxu0 0.0
    %6661 = vmatprep.subr.mxu0 0.0
    %6662 = vmatpush1.msra.mxu0 0.0
    %6663 = vmatprep.subr.mxu0 0.0
    %6664 = vmatpush1.msra.mxu0 0.0
    %6665 = vmatprep.subr.mxu0 0.0
    %6666 = vmatpush1.msra.mxu0 %v4342
    %6667 = vmatprep.subr.mxu0 0.0
    %6668 = vmatpush1.msra.mxu0 %v4336
    %6669 = vmatprep.subr.mxu0 0.0
    %6670 = vmatpush2.msra.mxu0 0.0
    %6671 = vmatprep.subr.mxu0 0.0
    %6672 = vmatpush2.msra.mxu0 0.0
    %6673 = vmatprep.subr.mxu0 0.0
    %6674 = vmatpush2.msra.mxu0 0.0
    %6675 = vmatprep.subr.mxu0 0.0
    %6676 = vmatpush2.msra.mxu0 0.0
    %6677 = vmatprep.subr.mxu0 0.0
    %6678 = vmatpush2.msra.mxu0 0.0
    %6679 = vmatprep.subr.mxu0 0.0
    %6680 = vmatpush2.msra.mxu0 0.0
    %6681 = vmatprep.subr.mxu0 0.0
    %6682 = vmatpush2.msra.mxu0 0.0
    %6683 = vmatprep.subr.mxu0 0.0
    %6684 = vmatpush2.msra.mxu0 0.0
    %6685 = vmatprep.subr.mxu0 0.0
    %6686 = vmatpush2.msra.mxu0 0.0
    %6687 = vmatprep.subr.mxu0 0.0
    %6688 = vmatpush2.msra.mxu0 0.0
    %6689 = vmatprep.subr.mxu0 0.0
    %6690 = vmatpush2.msra.mxu0 0.0
    %6691 = vmatprep.subr.mxu0 0.0
    %6692 = vmatpush2.msra.mxu0 0.0
    %6693 = vmatprep.subr.mxu0 0.0
    %6694 = vmatpush2.msra.mxu0 0.0
    %6695 = vmatprep.subr.mxu0 0.0
    %6696 = vmatpush2.msra.mxu0 0.0
    %6697 = vmatprep.subr.mxu0 0.0
    %6698 = vmatpush2.msra.mxu0 0.0
    %6699 = vmatprep.subr.mxu0 0.0
    %6700 = vmatpush2.msra.mxu0 0.0
    %6701 = vmatprep.mubr.f32.mxu0 0.0
    %6702 = vmatmul.mubr.f32.gmra.mxu0 %v6632
    %v6703 = vpop.f32.mrf.mxu0
    %v6704 = vadd.f32 0.0, %v6703
    %v6705 = vpop.f32.mrf.mxu0
    %6706 = vmatprep.mubr.f32.mxu0 0.0
    %6707 = vmatmul.mubr.f32.gmra.mxu0 %v6635
    %v6708 = vpop.f32.mrf.mxu0
    %v6709 = vadd.f32 0.0, %v6708
    %v6710 = vpop.f32.mrf.mxu0
    %6711 = vdwg.mxu0
    %v6712 = vadd.f32 %v5667, %v6461
    %v6713 = vadd.f32 %v5672, %v6466
    %v6714 = vadd.f32 %v5754, %v6542
    %v6715 = vadd.f32 %v5759, %v6547
    %v6716 = vadd.f32 %v5841, %v6623
    %v6717 = vadd.f32 %v5846, %v6628
    %v6718 = vadd.f32 %v5928, %v6704
    %v6719 = vadd.f32 %v5933, %v6709
    %6720 = vrot.lane.b32.xlu0 %v4298, 104
    %v6721 = vpop.permute.xlu0 %6720
    %6722 = vrot.lane.b32.xlu0 %v4304, 104
    %v6723 = vpop.permute.xlu0 %6722
    %6724 = vrot.lane.b32.xlu0 %v4298, 72
    %v6725 = vpop.permute.xlu0 %6724
    %6726 = vrot.lane.b32.xlu0 %v4304, 72
    %v6727 = vpop.permute.xlu0 %6726
    %v6728 = vsel %vm385, %v6721, 0
    %v6730 = vsel %vm385, %v6723, 0
    %v6732 = vsel %vm385, %v6725, 0
    %v6734 = vsel %vm385, %v6727, 0
    %6736 = vmatprep.subr.mxu0 0.0
    %6737 = vmatpush1.xpose.msra.mxu0 0.0
    %6738 = vmatprep.subr.mxu0 0.0
    %6739 = vmatpush1.xpose.msra.mxu0 0.0
    %6740 = vmatprep.subr.mxu0 0.0
    %6741 = vmatpush1.xpose.msra.mxu0 0.0
    %6742 = vmatprep.subr.mxu0 0.0
    %6743 = vmatpush1.xpose.msra.mxu0 0.0
    %6744 = vmatprep.subr.mxu0 0.0
    %6745 = vmatpush1.xpose.msra.mxu0 0.0
    %6746 = vmatprep.subr.mxu0 0.0
    %6747 = vmatpush1.xpose.msra.mxu0 0.0
    %6748 = vmatprep.subr.mxu0 0.0
    %6749 = vmatpush1.xpose.msra.mxu0 0.0
    %6750 = vmatprep.subr.mxu0 0.0
    %6751 = vmatpush1.xpose.msra.mxu0 0.0
    %6752 = vmatprep.subr.mxu0 0.0
    %6753 = vmatpush1.xpose.msra.mxu0 0.0
    %6754 = vmatprep.subr.mxu0 0.0
    %6755 = vmatpush1.xpose.msra.mxu0 0.0
    %6756 = vmatprep.subr.mxu0 0.0
    %6757 = vmatpush1.xpose.msra.mxu0 0.0
    %6758 = vmatprep.subr.mxu0 0.0
    %6759 = vmatpush1.xpose.msra.mxu0 0.0
    %6760 = vmatprep.subr.mxu0 0.0
    %6761 = vmatpush1.xpose.msra.mxu0 0.0
    %6762 = vmatprep.subr.mxu0 0.0
    %6763 = vmatpush1.xpose.msra.mxu0 0.0
    %6764 = vmatprep.subr.mxu0 0.0
    %6765 = vmatpush1.xpose.msra.mxu0 %v6734
    %6766 = vmatprep.subr.mxu0 0.0
    %6767 = vmatpush1.xpose.msra.mxu0 %v6732
    %6768 = vmatprep.subr.mxu0 0.0
    %6769 = vmatpush2.xpose.msra.mxu0 0.0
    %6770 = vmatprep.subr.mxu0 0.0
    %6771 = vmatpush2.xpose.msra.mxu0 0.0
    %6772 = vmatprep.subr.mxu0 0.0
    %6773 = vmatpush2.xpose.msra.mxu0 0.0
    %6774 = vmatprep.subr.mxu0 0.0
    %6775 = vmatpush2.xpose.msra.mxu0 0.0
    %6776 = vmatprep.subr.mxu0 0.0
    %6777 = vmatpush2.xpose.msra.mxu0 0.0
    %6778 = vmatprep.subr.mxu0 0.0
    %6779 = vmatpush2.xpose.msra.mxu0 0.0
    %6780 = vmatprep.subr.mxu0 0.0
    %6781 = vmatpush2.xpose.msra.mxu0 0.0
    %6782 = vmatprep.subr.mxu0 0.0
    %6783 = vmatpush2.xpose.msra.mxu0 0.0
    %6784 = vmatprep.subr.mxu0 0.0
    %6785 = vmatpush2.xpose.msra.mxu0 0.0
    %6786 = vmatprep.subr.mxu0 0.0
    %6787 = vmatpush2.xpose.msra.mxu0 0.0
    %6788 = vmatprep.subr.mxu0 0.0
    %6789 = vmatpush2.xpose.msra.mxu0 0.0
    %6790 = vmatprep.subr.mxu0 0.0
    %6791 = vmatpush2.xpose.msra.mxu0 0.0
    %6792 = vmatprep.subr.mxu0 0.0
    %6793 = vmatpush2.xpose.msra.mxu0 0.0
    %6794 = vmatprep.subr.mxu0 0.0
    %6795 = vmatpush2.xpose.msra.mxu0 0.0
    %6796 = vmatprep.subr.mxu0 0.0
    %6797 = vmatpush2.xpose.msra.mxu0 0.0
    %6798 = vmatprep.subr.mxu0 0.0
    %6799 = vmatpush2.xpose.msra.mxu0 0.0
    %6800 = vmatprep.mubr.f32.mxu0 0.0
    %6801 = vmatmul.mubr.f32.gmra.mxu0 %v6728
    %v6802 = vpop.f32.mrf.mxu0
    %v6803 = vadd.f32 %v94, %v6802
    %v6804 = vpop.f32.mrf.mxu0
    %6805 = vmatprep.mubr.f32.mxu0 0.0
    %6806 = vmatmul.mubr.f32.gmra.mxu0 %v6730
    %v6807 = vpop.f32.mrf.mxu0
    %v6808 = vadd.f32 %v94, %v6807
    %v6809 = vpop.f32.mrf.mxu0
    %6810 = vdwg.mxu0
    %6811 = vrot.lane.b32.xlu0 %v4310, 104
    %v6812 = vpop.permute.xlu0 %6811
    %6813 = vrot.lane.b32.xlu0 %v4316, 104
    %v6814 = vpop.permute.xlu0 %6813
    %6815 = vrot.lane.b32.xlu0 %v4310, 72
    %v6816 = vpop.permute.xlu0 %6815
    %6817 = vrot.lane.b32.xlu0 %v4316, 72
    %v6818 = vpop.permute.xlu0 %6817
    %v6819 = vsel %vm385, %v6812, 0
    %v6821 = vsel %vm385, %v6814, 0
    %v6823 = vsel %vm385, %v6816, 0
    %v6825 = vsel %vm385, %v6818, 0
    %6827 = vmatprep.subr.mxu0 0.0
    %6828 = vmatpush1.xpose.msra.mxu0 0.0
    %6829 = vmatprep.subr.mxu0 0.0
    %6830 = vmatpush1.xpose.msra.mxu0 0.0
    %6831 = vmatprep.subr.mxu0 0.0
    %6832 = vmatpush1.xpose.msra.mxu0 0.0
    %6833 = vmatprep.subr.mxu0 0.0
    %6834 = vmatpush1.xpose.msra.mxu0 0.0
    %6835 = vmatprep.subr.mxu0 0.0
    %6836 = vmatpush1.xpose.msra.mxu0 0.0
    %6837 = vmatprep.subr.mxu0 0.0
    %6838 = vmatpush1.xpose.msra.mxu0 0.0
    %6839 = vmatprep.subr.mxu0 0.0
    %6840 = vmatpush1.xpose.msra.mxu0 0.0
    %6841 = vmatprep.subr.mxu0 0.0
    %6842 = vmatpush1.xpose.msra.mxu0 0.0
    %6843 = vmatprep.subr.mxu0 0.0
    %6844 = vmatpush1.xpose.msra.mxu0 0.0
    %6845 = vmatprep.subr.mxu0 0.0
    %6846 = vmatpush1.xpose.msra.mxu0 0.0
    %6847 = vmatprep.subr.mxu0 0.0
    %6848 = vmatpush1.xpose.msra.mxu0 0.0
    %6849 = vmatprep.subr.mxu0 0.0
    %6850 = vmatpush1.xpose.msra.mxu0 0.0
    %6851 = vmatprep.subr.mxu0 0.0
    %6852 = vmatpush1.xpose.msra.mxu0 0.0
    %6853 = vmatprep.subr.mxu0 0.0
    %6854 = vmatpush1.xpose.msra.mxu0 0.0
    %6855 = vmatprep.subr.mxu0 0.0
    %6856 = vmatpush1.xpose.msra.mxu0 %v6825
    %6857 = vmatprep.subr.mxu0 0.0
    %6858 = vmatpush1.xpose.msra.mxu0 %v6823
    %6859 = vmatprep.subr.mxu0 0.0
    %6860 = vmatpush2.xpose.msra.mxu0 0.0
    %6861 = vmatprep.subr.mxu0 0.0
    %6862 = vmatpush2.xpose.msra.mxu0 0.0
    %6863 = vmatprep.subr.mxu0 0.0
    %6864 = vmatpush2.xpose.msra.mxu0 0.0
    %6865 = vmatprep.subr.mxu0 0.0
    %6866 = vmatpush2.xpose.msra.mxu0 0.0
    %6867 = vmatprep.subr.mxu0 0.0
    %6868 = vmatpush2.xpose.msra.mxu0 0.0
    %6869 = vmatprep.subr.mxu0 0.0
    %6870 = vmatpush2.xpose.msra.mxu0 0.0
    %6871 = vmatprep.subr.mxu0 0.0
    %6872 = vmatpush2.xpose.msra.mxu0 0.0
    %6873 = vmatprep.subr.mxu0 0.0
    %6874 = vmatpush2.xpose.msra.mxu0 0.0
    %6875 = vmatprep.subr.mxu0 0.0
    %6876 = vmatpush2.xpose.msra.mxu0 0.0
    %6877 = vmatprep.subr.mxu0 0.0
    %6878 = vmatpush2.xpose.msra.mxu0 0.0
    %6879 = vmatprep.subr.mxu0 0.0
    %6880 = vmatpush2.xpose.msra.mxu0 0.0
    %6881 = vmatprep.subr.mxu0 0.0
    %6882 = vmatpush2.xpose.msra.mxu0 0.0
    %6883 = vmatprep.subr.mxu0 0.0
    %6884 = vmatpush2.xpose.msra.mxu0 0.0
    %6885 = vmatprep.subr.mxu0 0.0
    %6886 = vmatpush2.xpose.msra.mxu0 0.0
    %6887 = vmatprep.subr.mxu0 0.0
    %6888 = vmatpush2.xpose.msra.mxu0 0.0
    %6889 = vmatprep.subr.mxu0 0.0
    %6890 = vmatpush2.xpose.msra.mxu0 0.0
    %6891 = vmatprep.mubr.f32.mxu0 0.0
    %6892 = vmatmul.mubr.f32.gmra.mxu0 %v6819
    %v6893 = vpop.f32.mrf.mxu0
    %v6894 = vadd.f32 %v94, %v6893
    %v6895 = vpop.f32.mrf.mxu0
    %6896 = vmatprep.mubr.f32.mxu0 0.0
    %6897 = vmatmul.mubr.f32.gmra.mxu0 %v6821
    %v6898 = vpop.f32.mrf.mxu0
    %v6899 = vadd.f32 %v94, %v6898
    %v6900 = vpop.f32.mrf.mxu0
    %6901 = vdwg.mxu0
    %6902 = vrot.lane.b32.xlu0 %v4322, 104
    %v6903 = vpop.permute.xlu0 %6902
    %6904 = vrot.lane.b32.xlu0 %v4328, 104
    %v6905 = vpop.permute.xlu0 %6904
    %6906 = vrot.lane.b32.xlu0 %v4322, 72
    %v6907 = vpop.permute.xlu0 %6906
    %6908 = vrot.lane.b32.xlu0 %v4328, 72
    %v6909 = vpop.permute.xlu0 %6908
    %v6910 = vsel %vm385, %v6903, 0
    %v6912 = vsel %vm385, %v6905, 0
    %v6914 = vsel %vm385, %v6907, 0
    %v6916 = vsel %vm385, %v6909, 0
    %6918 = vmatprep.subr.mxu0 0.0
    %6919 = vmatpush1.xpose.msra.mxu0 0.0
    %6920 = vmatprep.subr.mxu0 0.0
    %6921 = vmatpush1.xpose.msra.mxu0 0.0
    %6922 = vmatprep.subr.mxu0 0.0
    %6923 = vmatpush1.xpose.msra.mxu0 0.0
    %6924 = vmatprep.subr.mxu0 0.0
    %6925 = vmatpush1.xpose.msra.mxu0 0.0
    %6926 = vmatprep.subr.mxu0 0.0
    %6927 = vmatpush1.xpose.msra.mxu0 0.0
    %6928 = vmatprep.subr.mxu0 0.0
    %6929 = vmatpush1.xpose.msra.mxu0 0.0
    %6930 = vmatprep.subr.mxu0 0.0
    %6931 = vmatpush1.xpose.msra.mxu0 0.0
    %6932 = vmatprep.subr.mxu0 0.0
    %6933 = vmatpush1.xpose.msra.mxu0 0.0
    %6934 = vmatprep.subr.mxu0 0.0
    %6935 = vmatpush1.xpose.msra.mxu0 0.0
    %6936 = vmatprep.subr.mxu0 0.0
    %6937 = vmatpush1.xpose.msra.mxu0 0.0
    %6938 = vmatprep.subr.mxu0 0.0
    %6939 = vmatpush1.xpose.msra.mxu0 0.0
    %6940 = vmatprep.subr.mxu0 0.0
    %6941 = vmatpush1.xpose.msra.mxu0 0.0
    %6942 = vmatprep.subr.mxu0 0.0
    %6943 = vmatpush1.xpose.msra.mxu0 0.0
    %6944 = vmatprep.subr.mxu0 0.0
    %6945 = vmatpush1.xpose.msra.mxu0 0.0
    %6946 = vmatprep.subr.mxu0 0.0
    %6947 = vmatpush1.xpose.msra.mxu0 %v6916
    %6948 = vmatprep.subr.mxu0 0.0
    %6949 = vmatpush1.xpose.msra.mxu0 %v6914
    %6950 = vmatprep.subr.mxu0 0.0
    %6951 = vmatpush2.xpose.msra.mxu0 0.0
    %6952 = vmatprep.subr.mxu0 0.0
    %6953 = vmatpush2.xpose.msra.mxu0 0.0
    %6954 = vmatprep.subr.mxu0 0.0
    %6955 = vmatpush2.xpose.msra.mxu0 0.0
    %6956 = vmatprep.subr.mxu0 0.0
    %6957 = vmatpush2.xpose.msra.mxu0 0.0
    %6958 = vmatprep.subr.mxu0 0.0
    %6959 = vmatpush2.xpose.msra.mxu0 0.0
    %6960 = vmatprep.subr.mxu0 0.0
    %6961 = vmatpush2.xpose.msra.mxu0 0.0
    %6962 = vmatprep.subr.mxu0 0.0
    %6963 = vmatpush2.xpose.msra.mxu0 0.0
    %6964 = vmatprep.subr.mxu0 0.0
    %6965 = vmatpush2.xpose.msra.mxu0 0.0
    %6966 = vmatprep.subr.mxu0 0.0
    %6967 = vmatpush2.xpose.msra.mxu0 0.0
    %6968 = vmatprep.subr.mxu0 0.0
    %6969 = vmatpush2.xpose.msra.mxu0 0.0
    %6970 = vmatprep.subr.mxu0 0.0
    %6971 = vmatpush2.xpose.msra.mxu0 0.0
    %6972 = vmatprep.subr.mxu0 0.0
    %6973 = vmatpush2.xpose.msra.mxu0 0.0
    %6974 = vmatprep.subr.mxu0 0.0
    %6975 = vmatpush2.xpose.msra.mxu0 0.0
    %6976 = vmatprep.subr.mxu0 0.0
    %6977 = vmatpush2.xpose.msra.mxu0 0.0
    %6978 = vmatprep.subr.mxu0 0.0
    %6979 = vmatpush2.xpose.msra.mxu0 0.0
    %6980 = vmatprep.subr.mxu0 0.0
    %6981 = vmatpush2.xpose.msra.mxu0 0.0
    %6982 = vmatprep.mubr.f32.mxu0 0.0
    %6983 = vmatmul.mubr.f32.gmra.mxu0 %v6910
    %v6984 = vpop.f32.mrf.mxu0
    %v6985 = vadd.f32 %v94, %v6984
    %v6986 = vpop.f32.mrf.mxu0
    %6987 = vmatprep.mubr.f32.mxu0 0.0
    %6988 = vmatmul.mubr.f32.gmra.mxu0 %v6912
    %v6989 = vpop.f32.mrf.mxu0
    %v6990 = vadd.f32 %v94, %v6989
    %v6991 = vpop.f32.mrf.mxu0
    %6992 = vdwg.mxu0
    %6993 = vrot.lane.b32.xlu0 %v4334, 104
    %v6994 = vpop.permute.xlu0 %6993
    %6995 = vrot.lane.b32.xlu0 %v4340, 104
    %v6996 = vpop.permute.xlu0 %6995
    %6997 = vrot.lane.b32.xlu0 %v4334, 72
    %v6998 = vpop.permute.xlu0 %6997
    %6999 = vrot.lane.b32.xlu0 %v4340, 72
    %v7000 = vpop.permute.xlu0 %6999
    %v7001 = vsel %vm385, %v6994, 0
    %v7003 = vsel %vm385, %v6996, 0
    %v7005 = vsel %vm385, %v6998, 0
    %v7007 = vsel %vm385, %v7000, 0
    %7009 = vmatprep.subr.mxu0 0.0
    %7010 = vmatpush1.xpose.msra.mxu0 0.0
    %7011 = vmatprep.subr.mxu0 0.0
    %7012 = vmatpush1.xpose.msra.mxu0 0.0
    %7013 = vmatprep.subr.mxu0 0.0
    %7014 = vmatpush1.xpose.msra.mxu0 0.0
    %7015 = vmatprep.subr.mxu0 0.0
    %7016 = vmatpush1.xpose.msra.mxu0 0.0
    %7017 = vmatprep.subr.mxu0 0.0
    %7018 = vmatpush1.xpose.msra.mxu0 0.0
    %7019 = vmatprep.subr.mxu0 0.0
    %7020 = vmatpush1.xpose.msra.mxu0 0.0
    %7021 = vmatprep.subr.mxu0 0.0
    %7022 = vmatpush1.xpose.msra.mxu0 0.0
    %7023 = vmatprep.subr.mxu0 0.0
    %7024 = vmatpush1.xpose.msra.mxu0 0.0
    %7025 = vmatprep.subr.mxu0 0.0
    %7026 = vmatpush1.xpose.msra.mxu0 0.0
    %7027 = vmatprep.subr.mxu0 0.0
    %7028 = vmatpush1.xpose.msra.mxu0 0.0
    %7029 = vmatprep.subr.mxu0 0.0
    %7030 = vmatpush1.xpose.msra.mxu0 0.0
    %7031 = vmatprep.subr.mxu0 0.0
    %7032 = vmatpush1.xpose.msra.mxu0 0.0
    %7033 = vmatprep.subr.mxu0 0.0
    %7034 = vmatpush1.xpose.msra.mxu0 0.0
    %7035 = vmatprep.subr.mxu0 0.0
    %7036 = vmatpush1.xpose.msra.mxu0 0.0
    %7037 = vmatprep.subr.mxu0 0.0
    %7038 = vmatpush1.xpose.msra.mxu0 %v7007
    %7039 = vmatprep.subr.mxu0 0.0
    %7040 = vmatpush1.xpose.msra.mxu0 %v7005
    %7041 = vmatprep.subr.mxu0 0.0
    %7042 = vmatpush2.xpose.msra.mxu0 0.0
    %7043 = vmatprep.subr.mxu0 0.0
    %7044 = vmatpush2.xpose.msra.mxu0 0.0
    %7045 = vmatprep.subr.mxu0 0.0
    %7046 = vmatpush2.xpose.msra.mxu0 0.0
    %7047 = vmatprep.subr.mxu0 0.0
    %7048 = vmatpush2.xpose.msra.mxu0 0.0
    %7049 = vmatprep.subr.mxu0 0.0
    %7050 = vmatpush2.xpose.msra.mxu0 0.0
    %7051 = vmatprep.subr.mxu0 0.0
    %7052 = vmatpush2.xpose.msra.mxu0 0.0
    %7053 = vmatprep.subr.mxu0 0.0
    %7054 = vmatpush2.xpose.msra.mxu0 0.0
    %7055 = vmatprep.subr.mxu0 0.0
    %7056 = vmatpush2.xpose.msra.mxu0 0.0
    %7057 = vmatprep.subr.mxu0 0.0
    %7058 = vmatpush2.xpose.msra.mxu0 0.0
    %7059 = vmatprep.subr.mxu0 0.0
    %7060 = vmatpush2.xpose.msra.mxu0 0.0
    %7061 = vmatprep.subr.mxu0 0.0
    %7062 = vmatpush2.xpose.msra.mxu0 0.0
    %7063 = vmatprep.subr.mxu0 0.0
    %7064 = vmatpush2.xpose.msra.mxu0 0.0
    %7065 = vmatprep.subr.mxu0 0.0
    %7066 = vmatpush2.xpose.msra.mxu0 0.0
    %7067 = vmatprep.subr.mxu0 0.0
    %7068 = vmatpush2.xpose.msra.mxu0 0.0
    %7069 = vmatprep.subr.mxu0 0.0
    %7070 = vmatpush2.xpose.msra.mxu0 0.0
    %7071 = vmatprep.subr.mxu0 0.0
    %7072 = vmatpush2.xpose.msra.mxu0 0.0
    %7073 = vmatprep.mubr.f32.mxu0 0.0
    %7074 = vmatmul.mubr.f32.gmra.mxu0 %v7001
    %v7075 = vpop.f32.mrf.mxu0
    %v7076 = vadd.f32 %v94, %v7075
    %v7077 = vpop.f32.mrf.mxu0
    %7078 = vmatprep.mubr.f32.mxu0 0.0
    %7079 = vmatmul.mubr.f32.gmra.mxu0 %v7003
    %v7080 = vpop.f32.mrf.mxu0
    %v7081 = vadd.f32 %v94, %v7080
    %v7082 = vpop.f32.mrf.mxu0
    %7083 = vdwg.mxu0
    %v7084 = vsel %vm736, %v6803, -inf
    %7085 = vmax.xlane.f32.xlu0 %v7084
    %v7086 = vpop.xlane.xlu0 %7085
    %v7087 = vsel %vm736, %v6808, -inf
    %7088 = vmax.xlane.f32.xlu0 %v7087
    %v7089 = vpop.xlane.xlu0 %7088
    %v7090 = vsel %vm736, %v6894, -inf
    %7091 = vmax.xlane.f32.xlu0 %v7090
    %v7092 = vpop.xlane.xlu0 %7091
    %v7093 = vsel %vm736, %v6899, -inf
    %7094 = vmax.xlane.f32.xlu0 %v7093
    %v7095 = vpop.xlane.xlu0 %7094
    %v7096 = vsel %vm736, %v6985, -inf
    %7097 = vmax.xlane.f32.xlu0 %v7096
    %v7098 = vpop.xlane.xlu0 %7097
    %v7099 = vsel %vm736, %v6990, -inf
    %7100 = vmax.xlane.f32.xlu0 %v7099
    %v7101 = vpop.xlane.xlu0 %7100
    %v7102 = vsel %vm736, %v7076, -inf
    %7103 = vmax.xlane.f32.xlu0 %v7102
    %v7104 = vpop.xlane.xlu0 %7103
    %v7105 = vsel %vm736, %v7081, -inf
    %7106 = vmax.xlane.f32.xlu0 %v7105
    %v7107 = vpop.xlane.xlu0 %7106
    %v7108 = vsub.f32 %v6803, %v7086
    %v7109 = vsub.f32 %v6808, %v7089
    %v7110 = vsub.f32 %v6894, %v7092
    %v7111 = vsub.f32 %v6899, %v7095
    %v7112 = vsub.f32 %v6985, %v7098
    %v7113 = vsub.f32 %v6990, %v7101
    %v7114 = vsub.f32 %v7076, %v7104
    %v7115 = vsub.f32 %v7081, %v7107
    %v7116 = vmul.f32 %v7108, 1.442695
    %v7117 = vpow.pop %v7116
    %v7118 = vmul.f32 %v7109, 1.442695
    %v7119 = vpow.pop %v7118
    %v7120 = vmul.f32 %v7110, 1.442695
    %v7121 = vpow.pop %v7120
    %v7122 = vmul.f32 %v7111, 1.442695
    %v7123 = vpow.pop %v7122
    %v7124 = vmul.f32 %v7112, 1.442695
    %v7125 = vpow.pop %v7124
    %v7126 = vmul.f32 %v7113, 1.442695
    %v7127 = vpow.pop %v7126
    %v7128 = vmul.f32 %v7114, 1.442695
    %v7129 = vpow.pop %v7128
    %v7130 = vmul.f32 %v7115, 1.442695
    %v7131 = vpow.pop %v7130
    %v7132 = vsel %vm736, %v7117, 0.0
    %7133 = vadd.xlane.f32.xlu0 %v7132
    %v7134 = vpop.xlane.xlu0 %7133
    %v7135 = vsel %vm736, %v7119, 0.0
    %7136 = vadd.xlane.f32.xlu0 %v7135
    %v7137 = vpop.xlane.xlu0 %7136
    %v7138 = vsel %vm736, %v7121, 0.0
    %7139 = vadd.xlane.f32.xlu0 %v7138
    %v7140 = vpop.xlane.xlu0 %7139
    %v7141 = vsel %vm736, %v7123, 0.0
    %7142 = vadd.xlane.f32.xlu0 %v7141
    %v7143 = vpop.xlane.xlu0 %7142
    %v7144 = vsel %vm736, %v7125, 0.0
    %7145 = vadd.xlane.f32.xlu0 %v7144
    %v7146 = vpop.xlane.xlu0 %7145
    %v7147 = vsel %vm736, %v7127, 0.0
    %7148 = vadd.xlane.f32.xlu0 %v7147
    %v7149 = vpop.xlane.xlu0 %7148
    %v7150 = vsel %vm736, %v7129, 0.0
    %7151 = vadd.xlane.f32.xlu0 %v7150
    %v7152 = vpop.xlane.xlu0 %7151
    %v7153 = vsel %vm736, %v7131, 0.0
    %7154 = vadd.xlane.f32.xlu0 %v7153
    %v7155 = vpop.xlane.xlu0 %7154
    %v7156 = vrcp.pop %v7134
    %v7157 = vrcp.pop %v7137
    %v7158 = vrcp.pop %v7140
    %v7159 = vrcp.pop %v7143
    %v7160 = vrcp.pop %v7146
    %v7161 = vrcp.pop %v7149
    %v7162 = vrcp.pop %v7152
    %v7163 = vrcp.pop %v7155
    %v7164 = vmul.f32 %v7117, %v7156
    %v7165 = vmul.f32 %v7119, %v7157
    %v7166 = vmul.f32 %v7121, %v7158
    %v7167 = vmul.f32 %v7123, %v7159
    %v7168 = vmul.f32 %v7125, %v7160
    %v7169 = vmul.f32 %v7127, %v7161
    %v7170 = vmul.f32 %v7129, %v7162
    %v7171 = vmul.f32 %v7131, %v7163
    %7174 = vrot.lane.b32.xlu0 %v4300, 96
    %v7175 = vpop.permute.xlu0 %7174
    %7176 = vrot.lane.b32.xlu0 %v4306, 96
    %v7177 = vpop.permute.xlu0 %7176
    %v7181 = vsel %vm736, %v7164, 0
    %v7184 = vsel %vm736, %v7165, 0
    %7186 = vmatprep.subr.mxu0 0.0
    %7187 = vmatpush1.msra.mxu0 0.0
    %7188 = vmatprep.subr.mxu0 0.0
    %7189 = vmatpush1.msra.mxu0 0.0
    %7190 = vmatprep.subr.mxu0 0.0
    %7191 = vmatpush1.msra.mxu0 0.0
    %7192 = vmatprep.subr.mxu0 0.0
    %7193 = vmatpush1.msra.mxu0 0.0
    %7194 = vmatprep.subr.mxu0 0.0
    %7195 = vmatpush1.msra.mxu0 0.0
    %7196 = vmatprep.subr.mxu0 0.0
    %7197 = vmatpush1.msra.mxu0 0.0
    %7198 = vmatprep.subr.mxu0 0.0
    %7199 = vmatpush1.msra.mxu0 0.0
    %7200 = vmatprep.subr.mxu0 0.0
    %7201 = vmatpush1.msra.mxu0 0.0
    %7202 = vmatprep.subr.mxu0 0.0
    %7203 = vmatpush1.msra.mxu0 0.0
    %7204 = vmatprep.subr.mxu0 0.0
    %7205 = vmatpush1.msra.mxu0 0.0
    %7206 = vmatprep.subr.mxu0 0.0
    %7207 = vmatpush1.msra.mxu0 0.0
    %7208 = vmatprep.subr.mxu0 0.0
    %7209 = vmatpush1.msra.mxu0 0.0
    %7210 = vmatprep.subr.mxu0 0.0
    %7211 = vmatpush1.msra.mxu0 0.0
    %7212 = vmatprep.subr.mxu0 0.0
    %7213 = vmatpush1.msra.mxu0 0.0
    %7214 = vmatprep.subr.mxu0 0.0
    %7215 = vmatpush1.msra.mxu0 %v7177
    %7216 = vmatprep.subr.mxu0 0.0
    %7217 = vmatpush1.msra.mxu0 %v7175
    %7218 = vmatprep.subr.mxu0 0.0
    %7219 = vmatpush2.msra.mxu0 0.0
    %7220 = vmatprep.subr.mxu0 0.0
    %7221 = vmatpush2.msra.mxu0 0.0
    %7222 = vmatprep.subr.mxu0 0.0
    %7223 = vmatpush2.msra.mxu0 0.0
    %7224 = vmatprep.subr.mxu0 0.0
    %7225 = vmatpush2.msra.mxu0 0.0
    %7226 = vmatprep.subr.mxu0 0.0
    %7227 = vmatpush2.msra.mxu0 0.0
    %7228 = vmatprep.subr.mxu0 0.0
    %7229 = vmatpush2.msra.mxu0 0.0
    %7230 = vmatprep.subr.mxu0 0.0
    %7231 = vmatpush2.msra.mxu0 0.0
    %7232 = vmatprep.subr.mxu0 0.0
    %7233 = vmatpush2.msra.mxu0 0.0
    %7234 = vmatprep.subr.mxu0 0.0
    %7235 = vmatpush2.msra.mxu0 0.0
    %7236 = vmatprep.subr.mxu0 0.0
    %7237 = vmatpush2.msra.mxu0 0.0
    %7238 = vmatprep.subr.mxu0 0.0
    %7239 = vmatpush2.msra.mxu0 0.0
    %7240 = vmatprep.subr.mxu0 0.0
    %7241 = vmatpush2.msra.mxu0 0.0
    %7242 = vmatprep.subr.mxu0 0.0
    %7243 = vmatpush2.msra.mxu0 0.0
    %7244 = vmatprep.subr.mxu0 0.0
    %7245 = vmatpush2.msra.mxu0 0.0
    %7246 = vmatprep.subr.mxu0 0.0
    %7247 = vmatpush2.msra.mxu0 0.0
    %7248 = vmatprep.subr.mxu0 0.0
    %7249 = vmatpush2.msra.mxu0 0.0
    %7250 = vmatprep.mubr.f32.mxu0 0.0
    %7251 = vmatmul.mubr.f32.gmra.mxu0 %v7181
    %v7252 = vpop.f32.mrf.mxu0
    %v7253 = vadd.f32 0.0, %v7252
    %v7254 = vpop.f32.mrf.mxu0
    %7255 = vmatprep.mubr.f32.mxu0 0.0
    %7256 = vmatmul.mubr.f32.gmra.mxu0 %v7184
    %v7257 = vpop.f32.mrf.mxu0
    %v7258 = vadd.f32 0.0, %v7257
    %v7259 = vpop.f32.mrf.mxu0
    %7260 = vdwg.mxu0
    %7263 = vrot.lane.b32.xlu0 %v4312, 96
    %v7264 = vpop.permute.xlu0 %7263
    %7265 = vrot.lane.b32.xlu0 %v4318, 96
    %v7266 = vpop.permute.xlu0 %7265
    %v7270 = vsel %vm736, %v7166, 0
    %v7273 = vsel %vm736, %v7167, 0
    %7275 = vmatprep.subr.mxu0 0.0
    %7276 = vmatpush1.msra.mxu0 0.0
    %7277 = vmatprep.subr.mxu0 0.0
    %7278 = vmatpush1.msra.mxu0 0.0
    %7279 = vmatprep.subr.mxu0 0.0
    %7280 = vmatpush1.msra.mxu0 0.0
    %7281 = vmatprep.subr.mxu0 0.0
    %7282 = vmatpush1.msra.mxu0 0.0
    %7283 = vmatprep.subr.mxu0 0.0
    %7284 = vmatpush1.msra.mxu0 0.0
    %7285 = vmatprep.subr.mxu0 0.0
    %7286 = vmatpush1.msra.mxu0 0.0
    %7287 = vmatprep.subr.mxu0 0.0
    %7288 = vmatpush1.msra.mxu0 0.0
    %7289 = vmatprep.subr.mxu0 0.0
    %7290 = vmatpush1.msra.mxu0 0.0
    %7291 = vmatprep.subr.mxu0 0.0
    %7292 = vmatpush1.msra.mxu0 0.0
    %7293 = vmatprep.subr.mxu0 0.0
    %7294 = vmatpush1.msra.mxu0 0.0
    %7295 = vmatprep.subr.mxu0 0.0
    %7296 = vmatpush1.msra.mxu0 0.0
    %7297 = vmatprep.subr.mxu0 0.0
    %7298 = vmatpush1.msra.mxu0 0.0
    %7299 = vmatprep.subr.mxu0 0.0
    %7300 = vmatpush1.msra.mxu0 0.0
    %7301 = vmatprep.subr.mxu0 0.0
    %7302 = vmatpush1.msra.mxu0 0.0
    %7303 = vmatprep.subr.mxu0 0.0
    %7304 = vmatpush1.msra.mxu0 %v7266
    %7305 = vmatprep.subr.mxu0 0.0
    %7306 = vmatpush1.msra.mxu0 %v7264
    %7307 = vmatprep.subr.mxu0 0.0
    %7308 = vmatpush2.msra.mxu0 0.0
    %7309 = vmatprep.subr.mxu0 0.0
    %7310 = vmatpush2.msra.mxu0 0.0
    %7311 = vmatprep.subr.mxu0 0.0
    %7312 = vmatpush2.msra.mxu0 0.0
    %7313 = vmatprep.subr.mxu0 0.0
    %7314 = vmatpush2.msra.mxu0 0.0
    %7315 = vmatprep.subr.mxu0 0.0
    %7316 = vmatpush2.msra.mxu0 0.0
    %7317 = vmatprep.subr.mxu0 0.0
    %7318 = vmatpush2.msra.mxu0 0.0
    %7319 = vmatprep.subr.mxu0 0.0
    %7320 = vmatpush2.msra.mxu0 0.0
    %7321 = vmatprep.subr.mxu0 0.0
    %7322 = vmatpush2.msra.mxu0 0.0
    %7323 = vmatprep.subr.mxu0 0.0
    %7324 = vmatpush2.msra.mxu0 0.0
    %7325 = vmatprep.subr.mxu0 0.0
    %7326 = vmatpush2.msra.mxu0 0.0
    %7327 = vmatprep.subr.mxu0 0.0
    %7328 = vmatpush2.msra.mxu0 0.0
    %7329 = vmatprep.subr.mxu0 0.0
    %7330 = vmatpush2.msra.mxu0 0.0
    %7331 = vmatprep.subr.mxu0 0.0
    %7332 = vmatpush2.msra.mxu0 0.0
    %7333 = vmatprep.subr.mxu0 0.0
    %7334 = vmatpush2.msra.mxu0 0.0
    %7335 = vmatprep.subr.mxu0 0.0
    %7336 = vmatpush2.msra.mxu0 0.0
    %7337 = vmatprep.subr.mxu0 0.0
    %7338 = vmatpush2.msra.mxu0 0.0
    %7339 = vmatprep.mubr.f32.mxu0 0.0
    %7340 = vmatmul.mubr.f32.gmra.mxu0 %v7270
    %v7341 = vpop.f32.mrf.mxu0
    %v7342 = vadd.f32 0.0, %v7341
    %v7343 = vpop.f32.mrf.mxu0
    %7344 = vmatprep.mubr.f32.mxu0 0.0
    %7345 = vmatmul.mubr.f32.gmra.mxu0 %v7273
    %v7346 = vpop.f32.mrf.mxu0
    %v7347 = vadd.f32 0.0, %v7346
    %v7348 = vpop.f32.mrf.mxu0
    %7349 = vdwg.mxu0
    %7352 = vrot.lane.b32.xlu0 %v4324, 96
    %v7353 = vpop.permute.xlu0 %7352
    %7354 = vrot.lane.b32.xlu0 %v4330, 96
    %v7355 = vpop.permute.xlu0 %7354
    %v7359 = vsel %vm736, %v7168, 0
    %v7362 = vsel %vm736, %v7169, 0
    %7364 = vmatprep.subr.mxu0 0.0
    %7365 = vmatpush1.msra.mxu0 0.0
    %7366 = vmatprep.subr.mxu0 0.0
    %7367 = vmatpush1.msra.mxu0 0.0
    %7368 = vmatprep.subr.mxu0 0.0
    %7369 = vmatpush1.msra.mxu0 0.0
    %7370 = vmatprep.subr.mxu0 0.0
    %7371 = vmatpush1.msra.mxu0 0.0
    %7372 = vmatprep.subr.mxu0 0.0
    %7373 = vmatpush1.msra.mxu0 0.0
    %7374 = vmatprep.subr.mxu0 0.0
    %7375 = vmatpush1.msra.mxu0 0.0
    %7376 = vmatprep.subr.mxu0 0.0
    %7377 = vmatpush1.msra.mxu0 0.0
    %7378 = vmatprep.subr.mxu0 0.0
    %7379 = vmatpush1.msra.mxu0 0.0
    %7380 = vmatprep.subr.mxu0 0.0
    %7381 = vmatpush1.msra.mxu0 0.0
    %7382 = vmatprep.subr.mxu0 0.0
    %7383 = vmatpush1.msra.mxu0 0.0
    %7384 = vmatprep.subr.mxu0 0.0
    %7385 = vmatpush1.msra.mxu0 0.0
    %7386 = vmatprep.subr.mxu0 0.0
    %7387 = vmatpush1.msra.mxu0 0.0
    %7388 = vmatprep.subr.mxu0 0.0
    %7389 = vmatpush1.msra.mxu0 0.0
    %7390 = vmatprep.subr.mxu0 0.0
    %7391 = vmatpush1.msra.mxu0 0.0
    %7392 = vmatprep.subr.mxu0 0.0
    %7393 = vmatpush1.msra.mxu0 %v7355
    %7394 = vmatprep.subr.mxu0 0.0
    %7395 = vmatpush1.msra.mxu0 %v7353
    %7396 = vmatprep.subr.mxu0 0.0
    %7397 = vmatpush2.msra.mxu0 0.0
    %7398 = vmatprep.subr.mxu0 0.0
    %7399 = vmatpush2.msra.mxu0 0.0
    %7400 = vmatprep.subr.mxu0 0.0
    %7401 = vmatpush2.msra.mxu0 0.0
    %7402 = vmatprep.subr.mxu0 0.0
    %7403 = vmatpush2.msra.mxu0 0.0
    %7404 = vmatprep.subr.mxu0 0.0
    %7405 = vmatpush2.msra.mxu0 0.0
    %7406 = vmatprep.subr.mxu0 0.0
    %7407 = vmatpush2.msra.mxu0 0.0
    %7408 = vmatprep.subr.mxu0 0.0
    %7409 = vmatpush2.msra.mxu0 0.0
    %7410 = vmatprep.subr.mxu0 0.0
    %7411 = vmatpush2.msra.mxu0 0.0
    %7412 = vmatprep.subr.mxu0 0.0
    %7413 = vmatpush2.msra.mxu0 0.0
    %7414 = vmatprep.subr.mxu0 0.0
    %7415 = vmatpush2.msra.mxu0 0.0
    %7416 = vmatprep.subr.mxu0 0.0
    %7417 = vmatpush2.msra.mxu0 0.0
    %7418 = vmatprep.subr.mxu0 0.0
    %7419 = vmatpush2.msra.mxu0 0.0
    %7420 = vmatprep.subr.mxu0 0.0
    %7421 = vmatpush2.msra.mxu0 0.0
    %7422 = vmatprep.subr.mxu0 0.0
    %7423 = vmatpush2.msra.mxu0 0.0
    %7424 = vmatprep.subr.mxu0 0.0
    %7425 = vmatpush2.msra.mxu0 0.0
    %7426 = vmatprep.subr.mxu0 0.0
    %7427 = vmatpush2.msra.mxu0 0.0
    %7428 = vmatprep.mubr.f32.mxu0 0.0
    %7429 = vmatmul.mubr.f32.gmra.mxu0 %v7359
    %v7430 = vpop.f32.mrf.mxu0
    %v7431 = vadd.f32 0.0, %v7430
    %v7432 = vpop.f32.mrf.mxu0
    %7433 = vmatprep.mubr.f32.mxu0 0.0
    %7434 = vmatmul.mubr.f32.gmra.mxu0 %v7362
    %v7435 = vpop.f32.mrf.mxu0
    %v7436 = vadd.f32 0.0, %v7435
    %v7437 = vpop.f32.mrf.mxu0
    %7438 = vdwg.mxu0
    %7441 = vrot.lane.b32.xlu0 %v4336, 96
    %v7442 = vpop.permute.xlu0 %7441
    %7443 = vrot.lane.b32.xlu0 %v4342, 96
    %v7444 = vpop.permute.xlu0 %7443
    %v7448 = vsel %vm736, %v7170, 0
    %v7451 = vsel %vm736, %v7171, 0
    %7453 = vmatprep.subr.mxu0 0.0
    %7454 = vmatpush1.msra.mxu0 0.0
    %7455 = vmatprep.subr.mxu0 0.0
    %7456 = vmatpush1.msra.mxu0 0.0
    %7457 = vmatprep.subr.mxu0 0.0
    %7458 = vmatpush1.msra.mxu0 0.0
    %7459 = vmatprep.subr.mxu0 0.0
    %7460 = vmatpush1.msra.mxu0 0.0
    %7461 = vmatprep.subr.mxu0 0.0
    %7462 = vmatpush1.msra.mxu0 0.0
    %7463 = vmatprep.subr.mxu0 0.0
    %7464 = vmatpush1.msra.mxu0 0.0
    %7465 = vmatprep.subr.mxu0 0.0
    %7466 = vmatpush1.msra.mxu0 0.0
    %7467 = vmatprep.subr.mxu0 0.0
    %7468 = vmatpush1.msra.mxu0 0.0
    %7469 = vmatprep.subr.mxu0 0.0
    %7470 = vmatpush1.msra.mxu0 0.0
    %7471 = vmatprep.subr.mxu0 0.0
    %7472 = vmatpush1.msra.mxu0 0.0
    %7473 = vmatprep.subr.mxu0 0.0
    %7474 = vmatpush1.msra.mxu0 0.0
    %7475 = vmatprep.subr.mxu0 0.0
    %7476 = vmatpush1.msra.mxu0 0.0
    %7477 = vmatprep.subr.mxu0 0.0
    %7478 = vmatpush1.msra.mxu0 0.0
    %7479 = vmatprep.subr.mxu0 0.0
    %7480 = vmatpush1.msra.mxu0 0.0
    %7481 = vmatprep.subr.mxu0 0.0
    %7482 = vmatpush1.msra.mxu0 %v7444
    %7483 = vmatprep.subr.mxu0 0.0
    %7484 = vmatpush1.msra.mxu0 %v7442
    %7485 = vmatprep.subr.mxu0 0.0
    %7486 = vmatpush2.msra.mxu0 0.0
    %7487 = vmatprep.subr.mxu0 0.0
    %7488 = vmatpush2.msra.mxu0 0.0
    %7489 = vmatprep.subr.mxu0 0.0
    %7490 = vmatpush2.msra.mxu0 0.0
    %7491 = vmatprep.subr.mxu0 0.0
    %7492 = vmatpush2.msra.mxu0 0.0
    %7493 = vmatprep.subr.mxu0 0.0
    %7494 = vmatpush2.msra.mxu0 0.0
    %7495 = vmatprep.subr.mxu0 0.0
    %7496 = vmatpush2.msra.mxu0 0.0
    %7497 = vmatprep.subr.mxu0 0.0
    %7498 = vmatpush2.msra.mxu0 0.0
    %7499 = vmatprep.subr.mxu0 0.0
    %7500 = vmatpush2.msra.mxu0 0.0
    %7501 = vmatprep.subr.mxu0 0.0
    %7502 = vmatpush2.msra.mxu0 0.0
    %7503 = vmatprep.subr.mxu0 0.0
    %7504 = vmatpush2.msra.mxu0 0.0
    %7505 = vmatprep.subr.mxu0 0.0
    %7506 = vmatpush2.msra.mxu0 0.0
    %7507 = vmatprep.subr.mxu0 0.0
    %7508 = vmatpush2.msra.mxu0 0.0
    %7509 = vmatprep.subr.mxu0 0.0
    %7510 = vmatpush2.msra.mxu0 0.0
    %7511 = vmatprep.subr.mxu0 0.0
    %7512 = vmatpush2.msra.mxu0 0.0
    %7513 = vmatprep.subr.mxu0 0.0
    %7514 = vmatpush2.msra.mxu0 0.0
    %7515 = vmatprep.subr.mxu0 0.0
    %7516 = vmatpush2.msra.mxu0 0.0
    %7517 = vmatprep.mubr.f32.mxu0 0.0
    %7518 = vmatmul.mubr.f32.gmra.mxu0 %v7448
    %v7519 = vpop.f32.mrf.mxu0
    %v7520 = vadd.f32 0.0, %v7519
    %v7521 = vpop.f32.mrf.mxu0
    %7522 = vmatprep.mubr.f32.mxu0 0.0
    %7523 = vmatmul.mubr.f32.gmra.mxu0 %v7451
    %v7524 = vpop.f32.mrf.mxu0
    %v7525 = vadd.f32 0.0, %v7524
    %v7526 = vpop.f32.mrf.mxu0
    %7527 = vdwg.mxu0
    %v7528 = vadd.f32 %v6712, %v7253
    %v7529 = vadd.f32 %v6713, %v7258
    %v7530 = vadd.f32 %v6714, %v7342
    %v7531 = vadd.f32 %v6715, %v7347
    %v7532 = vadd.f32 %v6716, %v7431
    %v7533 = vadd.f32 %v6717, %v7436
    %v7534 = vadd.f32 %v6718, %v7520
    %v7535 = vadd.f32 %v6719, %v7525
    %v7536 = vadd.f32 %v4052, %v7528
    %v7537 = vadd.f32 %v4053, %v7529
    %v7538 = vadd.f32 %v4054, %v7530
    %v7539 = vadd.f32 %v4055, %v7531
    %v7540 = vadd.f32 %v4056, %v7532
    %v7541 = vadd.f32 %v4057, %v7533
    %v7542 = vadd.f32 %v4058, %v7534
    %v7543 = vadd.f32 %v4059, %v7535
    %v7544 = vlaneseq
    %v7545 = vshrl.u32 %v7544, 7
    %v7546 = vsub.s32 2, %v7545
    %v7547 = vrot.slane %v4078, %v7546
    %v7548 = vadd.f32 %v7536, %v7547
    %v7549 = vadd.f32 %v7537, %v7547
    %v7550 = vadd.f32 %v7538, %v7547
    %v7551 = vadd.f32 %v7539, %v7547
    %v7552 = vadd.f32 %v7540, %v7547
    %v7553 = vadd.f32 %v7541, %v7547
    %v7554 = vadd.f32 %v7542, %v7547
    %v7555 = vadd.f32 %v7543, %v7547
    %v7556 = vsel %vm112, %v7548, 0.0
    %7557 = vadd.xlane.f32.xlu0 %v7556
    %v7558 = vpop.xlane.xlu0 %7557
    %v7559 = vsel %vm112, %v7549, 0.0
    %7560 = vadd.xlane.f32.xlu0 %v7559
    %v7561 = vpop.xlane.xlu0 %7560
    %v7562 = vsel %vm112, %v7550, 0.0
    %7563 = vadd.xlane.f32.xlu0 %v7562
    %v7564 = vpop.xlane.xlu0 %7563
    %v7565 = vsel %vm112, %v7551, 0.0
    %7566 = vadd.xlane.f32.xlu0 %v7565
    %v7567 = vpop.xlane.xlu0 %7566
    %v7568 = vsel %vm112, %v7552, 0.0
    %7569 = vadd.xlane.f32.xlu0 %v7568
    %v7570 = vpop.xlane.xlu0 %7569
    %v7571 = vsel %vm112, %v7553, 0.0
    %7572 = vadd.xlane.f32.xlu0 %v7571
    %v7573 = vpop.xlane.xlu0 %7572
    %v7574 = vsel %vm112, %v7554, 0.0
    %7575 = vadd.xlane.f32.xlu0 %v7574
    %v7576 = vpop.xlane.xlu0 %7575
    %v7577 = vsel %vm112, %v7555, 0.0
    %7578 = vadd.xlane.f32.xlu0 %v7577
    %v7579 = vpop.xlane.xlu0 %7578
    %v7580 = vmul.f32 %v7558, %v137
    %v7581 = vmul.f32 %v7561, %v137
    %v7582 = vmul.f32 %v7564, %v137
    %v7583 = vmul.f32 %v7567, %v137
    %v7584 = vmul.f32 %v7570, %v137
    %v7585 = vmul.f32 %v7573, %v137
    %v7586 = vmul.f32 %v7576, %v137
    %v7587 = vmul.f32 %v7579, %v137
    %v7588 = vsub.f32 %v7548, %v7580
    %v7589 = vsub.f32 %v7549, %v7581
    %v7590 = vsub.f32 %v7550, %v7582
    %v7591 = vsub.f32 %v7551, %v7583
    %v7592 = vsub.f32 %v7552, %v7584
    %v7593 = vsub.f32 %v7553, %v7585
    %v7594 = vsub.f32 %v7554, %v7586
    %v7595 = vsub.f32 %v7555, %v7587
    %v7596 = vmul.f32 %v7588, %v7588
    %v7597 = vmul.f32 %v7589, %v7589
    %v7598 = vmul.f32 %v7590, %v7590
    %v7599 = vmul.f32 %v7591, %v7591
    %v7600 = vmul.f32 %v7592, %v7592
    %v7601 = vmul.f32 %v7593, %v7593
    %v7602 = vmul.f32 %v7594, %v7594
    %v7603 = vmul.f32 %v7595, %v7595
    %v7604 = vsel %vm112, %v7596, 0.0
    %7605 = vadd.xlane.f32.xlu0 %v7604
    %v7606 = vpop.xlane.xlu0 %7605
    %v7607 = vsel %vm112, %v7597, 0.0
    %7608 = vadd.xlane.f32.xlu0 %v7607
    %v7609 = vpop.xlane.xlu0 %7608
    %v7610 = vsel %vm112, %v7598, 0.0
    %7611 = vadd.xlane.f32.xlu0 %v7610
    %v7612 = vpop.xlane.xlu0 %7611
    %v7613 = vsel %vm112, %v7599, 0.0
    %7614 = vadd.xlane.f32.xlu0 %v7613
    %v7615 = vpop.xlane.xlu0 %7614
    %v7616 = vsel %vm112, %v7600, 0.0
    %7617 = vadd.xlane.f32.xlu0 %v7616
    %v7618 = vpop.xlane.xlu0 %7617
    %v7619 = vsel %vm112, %v7601, 0.0
    %7620 = vadd.xlane.f32.xlu0 %v7619
    %v7621 = vpop.xlane.xlu0 %7620
    %v7622 = vsel %vm112, %v7602, 0.0
    %7623 = vadd.xlane.f32.xlu0 %v7622
    %v7624 = vpop.xlane.xlu0 %7623
    %v7625 = vsel %vm112, %v7603, 0.0
    %7626 = vadd.xlane.f32.xlu0 %v7625
    %v7627 = vpop.xlane.xlu0 %7626
    %v7628 = vmul.f32 %v7606, %v137
    %v7629 = vmul.f32 %v7609, %v137
    %v7630 = vmul.f32 %v7612, %v137
    %v7631 = vmul.f32 %v7615, %v137
    %v7632 = vmul.f32 %v7618, %v137
    %v7633 = vmul.f32 %v7621, %v137
    %v7634 = vmul.f32 %v7624, %v137
    %v7635 = vmul.f32 %v7627, %v137
    %v7636 = vadd.f32 %v7628, 1e-05
    %v7637 = vadd.f32 %v7629, 1e-05
    %v7638 = vadd.f32 %v7630, 1e-05
    %v7639 = vadd.f32 %v7631, 1e-05
    %v7640 = vadd.f32 %v7632, 1e-05
    %v7641 = vadd.f32 %v7633, 1e-05
    %v7642 = vadd.f32 %v7634, 1e-05
    %v7643 = vadd.f32 %v7635, 1e-05
    %v7644 = vrsqrt.pop %v7636
    %v7645 = vrsqrt.pop %v7637
    %v7646 = vrsqrt.pop %v7638
    %v7647 = vrsqrt.pop %v7639
    %v7648 = vrsqrt.pop %v7640
    %v7649 = vrsqrt.pop %v7641
    %v7650 = vrsqrt.pop %v7642
    %v7651 = vrsqrt.pop %v7643
    %v7652 = vmul.f32 %v7588, %v7644
    %v7653 = vmul.f32 %v7589, %v7645
    %v7654 = vmul.f32 %v7590, %v7646
    %v7655 = vmul.f32 %v7591, %v7647
    %v7656 = vmul.f32 %v7592, %v7648
    %v7657 = vmul.f32 %v7593, %v7649
    %v7658 = vmul.f32 %v7594, %v7650
    %v7659 = vmul.f32 %v7595, %v7651
    %v7660 = vlaneseq
    %v7661 = vshrl.u32 %v7660, 7
    %v7662 = vsub.s32 3, %v7661
    %v7663 = vrot.slane %v4078, %v7662
    %v7664 = vmul.f32 %v7652, %v7663
    %v7665 = vmul.f32 %v7653, %v7663
    %v7666 = vmul.f32 %v7654, %v7663
    %v7667 = vmul.f32 %v7655, %v7663
    %v7668 = vmul.f32 %v7656, %v7663
    %v7669 = vmul.f32 %v7657, %v7663
    %v7670 = vmul.f32 %v7658, %v7663
    %v7671 = vmul.f32 %v7659, %v7663
    %v7672 = vlaneseq
    %v7673 = vshrl.u32 %v7672, 7
    %v7674 = vsub.s32 4, %v7673
    %v7675 = vrot.slane %v4078, %v7674
    %v7676 = vadd.f32 %v7664, %v7675
    %v7677 = vadd.f32 %v7665, %v7675
    %v7678 = vadd.f32 %v7666, %v7675
    %v7679 = vadd.f32 %v7667, %v7675
    %v7680 = vadd.f32 %v7668, %v7675
    %v7681 = vadd.f32 %v7669, %v7675
    %v7682 = vadd.f32 %v7670, %v7675
    %v7683 = vadd.f32 %v7671, %v7675
    %v7684 = vlaneseq
    %v7685 = vshrl.u32 %v7684, 7
    %v7686 = vsub.s32 5, %v7685
    %v7687 = vrot.slane %v4078, %v7686
    %7692 = vrot.lane.b32.xlu0 %v4062, 64
    %v7693 = vpop.permute.xlu0 %7692
    %7694 = vrot.lane.b32.xlu0 %v4065, 64
    %v7695 = vpop.permute.xlu0 %7694
    %7696 = vrot.lane.b32.xlu0 %v4068, 64
    %v7697 = vpop.permute.xlu0 %7696
    %7698 = vrot.lane.b32.xlu0 %v4071, 64
    %v7699 = vpop.permute.xlu0 %7698
    %v7705 = vsel %vm112, %v7676, 0
    %v7708 = vsel %vm112, %v7677, 0
    %v7711 = vsel %vm112, %v7678, 0
    %v7714 = vsel %vm112, %v7679, 0
    %v7717 = vsel %vm112, %v7680, 0
    %v7720 = vsel %vm112, %v7681, 0
    %v7723 = vsel %vm112, %v7682, 0
    %v7726 = vsel %vm112, %v7683, 0
    %7728 = vmatprep.subr.mxu0 0.0
    %7729 = vmatpush1.msra.mxu0 0.0
    %7730 = vmatprep.subr.mxu0 0.0
    %7731 = vmatpush1.msra.mxu0 0.0
    %7732 = vmatprep.subr.mxu0 0.0
    %7733 = vmatpush1.msra.mxu0 0.0
    %7734 = vmatprep.subr.mxu0 0.0
    %7735 = vmatpush1.msra.mxu0 0.0
    %7736 = vmatprep.subr.mxu0 0.0
    %7737 = vmatpush1.msra.mxu0 0.0
    %7738 = vmatprep.subr.mxu0 0.0
    %7739 = vmatpush1.msra.mxu0 0.0
    %7740 = vmatprep.subr.mxu0 0.0
    %7741 = vmatpush1.msra.mxu0 0.0
    %7742 = vmatprep.subr.mxu0 0.0
    %7743 = vmatpush1.msra.mxu0 0.0
    %7744 = vmatprep.subr.mxu0 0.0
    %7745 = vmatpush1.msra.mxu0 0.0
    %7746 = vmatprep.subr.mxu0 0.0
    %7747 = vmatpush1.msra.mxu0 0.0
    %7748 = vmatprep.subr.mxu0 0.0
    %7749 = vmatpush1.msra.mxu0 0.0
    %7750 = vmatprep.subr.mxu0 0.0
    %7751 = vmatpush1.msra.mxu0 0.0
    %7752 = vmatprep.subr.mxu0 0.0
    %7753 = vmatpush1.msra.mxu0 %v7699
    %7754 = vmatprep.subr.mxu0 0.0
    %7755 = vmatpush1.msra.mxu0 %v7697
    %7756 = vmatprep.subr.mxu0 0.0
    %7757 = vmatpush1.msra.mxu0 %v7695
    %7758 = vmatprep.subr.mxu0 0.0
    %7759 = vmatpush1.msra.mxu0 %v7693
    %7760 = vmatprep.subr.mxu0 0.0
    %7761 = vmatpush2.msra.mxu0 0.0
    %7762 = vmatprep.subr.mxu0 0.0
    %7763 = vmatpush2.msra.mxu0 0.0
    %7764 = vmatprep.subr.mxu0 0.0
    %7765 = vmatpush2.msra.mxu0 0.0
    %7766 = vmatprep.subr.mxu0 0.0
    %7767 = vmatpush2.msra.mxu0 0.0
    %7768 = vmatprep.subr.mxu0 0.0
    %7769 = vmatpush2.msra.mxu0 0.0
    %7770 = vmatprep.subr.mxu0 0.0
    %7771 = vmatpush2.msra.mxu0 0.0
    %7772 = vmatprep.subr.mxu0 0.0
    %7773 = vmatpush2.msra.mxu0 0.0
    %7774 = vmatprep.subr.mxu0 0.0
    %7775 = vmatpush2.msra.mxu0 0.0
    %7776 = vmatprep.subr.mxu0 0.0
    %7777 = vmatpush2.msra.mxu0 0.0
    %7778 = vmatprep.subr.mxu0 0.0
    %7779 = vmatpush2.msra.mxu0 0.0
    %7780 = vmatprep.subr.mxu0 0.0
    %7781 = vmatpush2.msra.mxu0 0.0
    %7782 = vmatprep.subr.mxu0 0.0
    %7783 = vmatpush2.msra.mxu0 0.0
    %7784 = vmatprep.subr.mxu0 0.0
    %7785 = vmatpush2.msra.mxu0 0.0
    %7786 = vmatprep.subr.mxu0 0.0
    %7787 = vmatpush2.msra.mxu0 0.0
    %7788 = vmatprep.subr.mxu0 0.0
    %7789 = vmatpush2.msra.mxu0 0.0
    %7790 = vmatprep.subr.mxu0 0.0
    %7791 = vmatpush2.msra.mxu0 0.0
    %7792 = vmatprep.mubr.f32.mxu0 0.0
    %7793 = vmatmul.mubr.f32.gmra.mxu0 %v7705
    %v7794 = vpop.f32.mrf.mxu0
    %v7795 = vadd.f32 %v7687, %v7794
    %v7796 = vpop.f32.mrf.mxu0
    %7797 = vmatprep.mubr.f32.mxu0 0.0
    %7798 = vmatmul.mubr.f32.gmra.mxu0 %v7708
    %v7799 = vpop.f32.mrf.mxu0
    %v7800 = vadd.f32 %v7687, %v7799
    %v7801 = vpop.f32.mrf.mxu0
    %7802 = vmatprep.mubr.f32.mxu0 0.0
    %7803 = vmatmul.mubr.f32.gmra.mxu0 %v7711
    %v7804 = vpop.f32.mrf.mxu0
    %v7805 = vadd.f32 %v7687, %v7804
    %v7806 = vpop.f32.mrf.mxu0
    %7807 = vmatprep.mubr.f32.mxu0 0.0
    %7808 = vmatmul.mubr.f32.gmra.mxu0 %v7714
    %v7809 = vpop.f32.mrf.mxu0
    %v7810 = vadd.f32 %v7687, %v7809
    %v7811 = vpop.f32.mrf.mxu0
    %7812 = vmatprep.mubr.f32.mxu0 0.0
    %7813 = vmatmul.mubr.f32.gmra.mxu0 %v7717
    %v7814 = vpop.f32.mrf.mxu0
    %v7815 = vadd.f32 %v7687, %v7814
    %v7816 = vpop.f32.mrf.mxu0
    %7817 = vmatprep.mubr.f32.mxu0 0.0
    %7818 = vmatmul.mubr.f32.gmra.mxu0 %v7720
    %v7819 = vpop.f32.mrf.mxu0
    %v7820 = vadd.f32 %v7687, %v7819
    %v7821 = vpop.f32.mrf.mxu0
    %7822 = vmatprep.mubr.f32.mxu0 0.0
    %7823 = vmatmul.mubr.f32.gmra.mxu0 %v7723
    %v7824 = vpop.f32.mrf.mxu0
    %v7825 = vadd.f32 %v7687, %v7824
    %v7826 = vpop.f32.mrf.mxu0
    %7827 = vmatprep.mubr.f32.mxu0 0.0
    %7828 = vmatmul.mubr.f32.gmra.mxu0 %v7726
    %v7829 = vpop.f32.mrf.mxu0
    %v7830 = vadd.f32 %v7687, %v7829
    %v7831 = vpop.f32.mrf.mxu0
    %7832 = vdwg.mxu0
    %v7833 = vmul.f32 %v7795, 0.5
    %v7834 = vmul.f32 %v7800, 0.5
    %v7835 = vmul.f32 %v7805, 0.5
    %v7836 = vmul.f32 %v7810, 0.5
    %v7837 = vmul.f32 %v7815, 0.5
    %v7838 = vmul.f32 %v7820, 0.5
    %v7839 = vmul.f32 %v7825, 0.5
    %v7840 = vmul.f32 %v7830, 0.5
    %v7841 = vmul.f32 %v7795, 0.70710677
    %v7842 = vmul.f32 %v7800, 0.70710677
    %v7843 = vmul.f32 %v7805, 0.70710677
    %v7844 = vmul.f32 %v7810, 0.70710677
    %v7845 = vmul.f32 %v7815, 0.70710677
    %v7846 = vmul.f32 %v7820, 0.70710677
    %v7847 = vmul.f32 %v7825, 0.70710677
    %v7848 = vmul.f32 %v7830, 0.70710677
    %v7849 = verf.f32.pop %v7841
    %v7850 = verf.f32.pop %v7842
    %v7851 = verf.f32.pop %v7843
    %v7852 = verf.f32.pop %v7844
    %v7853 = verf.f32.pop %v7845
    %v7854 = verf.f32.pop %v7846
    %v7855 = verf.f32.pop %v7847
    %v7856 = verf.f32.pop %v7848
    %v7857 = vadd.f32 %v7849, 1.0
    %v7858 = vadd.f32 %v7850, 1.0
    %v7859 = vadd.f32 %v7851, 1.0
    %v7860 = vadd.f32 %v7852, 1.0
    %v7861 = vadd.f32 %v7853, 1.0
    %v7862 = vadd.f32 %v7854, 1.0
    %v7863 = vadd.f32 %v7855, 1.0
    %v7864 = vadd.f32 %v7856, 1.0
    %v7865 = vmul.f32 %v7833, %v7857
    %v7866 = vmul.f32 %v7834, %v7858
    %v7867 = vmul.f32 %v7835, %v7859
    %v7868 = vmul.f32 %v7836, %v7860
    %v7869 = vmul.f32 %v7837, %v7861
    %v7870 = vmul.f32 %v7838, %v7862
    %v7871 = vmul.f32 %v7839, %v7863
    %v7872 = vmul.f32 %v7840, %v7864
    %v7874 = vsel %vm3910, %v7865, 0
    %v7877 = vsel %vm3910, %v7866, 0
    %v7880 = vsel %vm3910, %v7867, 0
    %v7883 = vsel %vm3910, %v7868, 0
    %v7886 = vsel %vm3910, %v7869, 0
    %v7889 = vsel %vm3910, %v7870, 0
    %v7892 = vsel %vm3910, %v7871, 0
    %v7895 = vsel %vm3910, %v7872, 0
    %7897 = vmatprep.subr.mxu0 0.0
    %7898 = vmatpush1.msra.mxu0 0.0
    %7899 = vmatprep.subr.mxu0 0.0
    %7900 = vmatpush1.msra.mxu0 0.0
    %7901 = vmatprep.subr.mxu0 0.0
    %7902 = vmatpush1.msra.mxu0 0.0
    %7903 = vmatprep.subr.mxu0 0.0
    %7904 = vmatpush1.msra.mxu0 0.0
    %7905 = vmatprep.subr.mxu0 0.0
    %7906 = vmatpush1.msra.mxu0 0.0
    %7907 = vmatprep.subr.mxu0 0.0
    %7908 = vmatpush1.msra.mxu0 0.0
    %7909 = vmatprep.subr.mxu0 0.0
    %7910 = vmatpush1.msra.mxu0 0.0
    %7911 = vmatprep.subr.mxu0 0.0
    %7912 = vmatpush1.msra.mxu0 0.0
    %7913 = vmatprep.subr.mxu0 0.0
    %7914 = vmatpush1.msra.mxu0 %v4076
    %7915 = vmatprep.subr.mxu0 0.0
    %7916 = vmatpush1.msra.mxu0 %v4075
    %7917 = vmatprep.subr.mxu0 0.0
    %7918 = vmatpush1.msra.mxu0 %v4074
    %7919 = vmatprep.subr.mxu0 0.0
    %7920 = vmatpush1.msra.mxu0 %v4073
    %7921 = vmatprep.subr.mxu0 0.0
    %7922 = vmatpush1.msra.mxu0 %v4072
    %7923 = vmatprep.subr.mxu0 0.0
    %7924 = vmatpush1.msra.mxu0 %v4069
    %7925 = vmatprep.subr.mxu0 0.0
    %7926 = vmatpush1.msra.mxu0 %v4066
    %7927 = vmatprep.subr.mxu0 0.0
    %7928 = vmatpush1.msra.mxu0 %v4063
    %7929 = vmatprep.subr.mxu0 0.0
    %7930 = vmatpush2.msra.mxu0 0.0
    %7931 = vmatprep.subr.mxu0 0.0
    %7932 = vmatpush2.msra.mxu0 0.0
    %7933 = vmatprep.subr.mxu0 0.0
    %7934 = vmatpush2.msra.mxu0 0.0
    %7935 = vmatprep.subr.mxu0 0.0
    %7936 = vmatpush2.msra.mxu0 0.0
    %7937 = vmatprep.subr.mxu0 0.0
    %7938 = vmatpush2.msra.mxu0 0.0
    %7939 = vmatprep.subr.mxu0 0.0
    %7940 = vmatpush2.msra.mxu0 0.0
    %7941 = vmatprep.subr.mxu0 0.0
    %7942 = vmatpush2.msra.mxu0 0.0
    %7943 = vmatprep.subr.mxu0 0.0
    %7944 = vmatpush2.msra.mxu0 0.0
    %7945 = vmatprep.subr.mxu0 0.0
    %7946 = vmatpush2.msra.mxu0 0.0
    %7947 = vmatprep.subr.mxu0 0.0
    %7948 = vmatpush2.msra.mxu0 0.0
    %7949 = vmatprep.subr.mxu0 0.0
    %7950 = vmatpush2.msra.mxu0 0.0
    %7951 = vmatprep.subr.mxu0 0.0
    %7952 = vmatpush2.msra.mxu0 0.0
    %7953 = vmatprep.subr.mxu0 0.0
    %7954 = vmatpush2.msra.mxu0 0.0
    %7955 = vmatprep.subr.mxu0 0.0
    %7956 = vmatpush2.msra.mxu0 0.0
    %7957 = vmatprep.subr.mxu0 0.0
    %7958 = vmatpush2.msra.mxu0 0.0
    %7959 = vmatprep.subr.mxu0 0.0
    %7960 = vmatpush2.msra.mxu0 0.0
    %7961 = vmatprep.mubr.f32.mxu0 0.0
    %7962 = vmatmul.mubr.f32.gmra.mxu0 %v7874
    %v7963 = vpop.f32.mrf.mxu0
    %v7964 = vadd.f32 0.0, %v7963
    %v7965 = vpop.f32.mrf.mxu0
    %7966 = vmatprep.mubr.f32.mxu0 0.0
    %7967 = vmatmul.mubr.f32.gmra.mxu0 %v7877
    %v7968 = vpop.f32.mrf.mxu0
    %v7969 = vadd.f32 0.0, %v7968
    %v7970 = vpop.f32.mrf.mxu0
    %7971 = vmatprep.mubr.f32.mxu0 0.0
    %7972 = vmatmul.mubr.f32.gmra.mxu0 %v7880
    %v7973 = vpop.f32.mrf.mxu0
    %v7974 = vadd.f32 0.0, %v7973
    %v7975 = vpop.f32.mrf.mxu0
    %7976 = vmatprep.mubr.f32.mxu0 0.0
    %7977 = vmatmul.mubr.f32.gmra.mxu0 %v7883
    %v7978 = vpop.f32.mrf.mxu0
    %v7979 = vadd.f32 0.0, %v7978
    %v7980 = vpop.f32.mrf.mxu0
    %7981 = vmatprep.mubr.f32.mxu0 0.0
    %7982 = vmatmul.mubr.f32.gmra.mxu0 %v7886
    %v7983 = vpop.f32.mrf.mxu0
    %v7984 = vadd.f32 0.0, %v7983
    %v7985 = vpop.f32.mrf.mxu0
    %7986 = vmatprep.mubr.f32.mxu0 0.0
    %7987 = vmatmul.mubr.f32.gmra.mxu0 %v7889
    %v7988 = vpop.f32.mrf.mxu0
    %v7989 = vadd.f32 0.0, %v7988
    %v7990 = vpop.f32.mrf.mxu0
    %7991 = vmatprep.mubr.f32.mxu0 0.0
    %7992 = vmatmul.mubr.f32.gmra.mxu0 %v7892
    %v7993 = vpop.f32.mrf.mxu0
    %v7994 = vadd.f32 0.0, %v7993
    %v7995 = vpop.f32.mrf.mxu0
    %7996 = vmatprep.mubr.f32.mxu0 0.0
    %7997 = vmatmul.mubr.f32.gmra.mxu0 %v7895
    %v7998 = vpop.f32.mrf.mxu0
    %v7999 = vadd.f32 0.0, %v7998
    %v8000 = vpop.f32.mrf.mxu0
    %8001 = vdwg.mxu0
    %v8002 = vadd.f32 %v7548, %v7964
    %v8003 = vadd.f32 %v7549, %v7969
    %v8004 = vadd.f32 %v7550, %v7974
    %v8005 = vadd.f32 %v7551, %v7979
    %v8006 = vadd.f32 %v7552, %v7984
    %v8007 = vadd.f32 %v7553, %v7989
    %v8008 = vadd.f32 %v7554, %v7994
    %v8009 = vadd.f32 %v7555, %v7999
    %v8010 = vlaneseq
    %v8011 = vshrl.u32 %v8010, 7
    %v8012 = vsub.s32 6, %v8011
    %v8013 = vrot.slane %v4078, %v8012
    %v8014 = vadd.f32 %v8002, %v8013
    %v8015 = vadd.f32 %v8003, %v8013
    %v8016 = vadd.f32 %v8004, %v8013
    %v8017 = vadd.f32 %v8005, %v8013
    %v8018 = vadd.f32 %v8006, %v8013
    %v8019 = vadd.f32 %v8007, %v8013
    %v8020 = vadd.f32 %v8008, %v8013
    %v8021 = vadd.f32 %v8009, %v8013
    %v8022 = vld [vmem:[#allocation8 + $0x10] sm:$0x1]
    %v8023 = vld [vmem:[#allocation8 + $0x11] sm:$0x1]
    %v8024 = vsel %vm112, %v8014, 0.0
    %8025 = vadd.xlane.f32.xlu0 %v8024
    %v8026 = vpop.xlane.xlu0 %8025
    %v8027 = vsel %vm112, %v8015, 0.0
    %8028 = vadd.xlane.f32.xlu0 %v8027
    %v8029 = vpop.xlane.xlu0 %8028
    %v8030 = vsel %vm112, %v8016, 0.0
    %8031 = vadd.xlane.f32.xlu0 %v8030
    %v8032 = vpop.xlane.xlu0 %8031
    %v8033 = vsel %vm112, %v8017, 0.0
    %8034 = vadd.xlane.f32.xlu0 %v8033
    %v8035 = vpop.xlane.xlu0 %8034
    %v8036 = vsel %vm112, %v8018, 0.0
    %8037 = vadd.xlane.f32.xlu0 %v8036
    %v8038 = vpop.xlane.xlu0 %8037
    %v8039 = vsel %vm112, %v8019, 0.0
    %8040 = vadd.xlane.f32.xlu0 %v8039
    %v8041 = vpop.xlane.xlu0 %8040
    %v8042 = vsel %vm112, %v8020, 0.0
    %8043 = vadd.xlane.f32.xlu0 %v8042
    %v8044 = vpop.xlane.xlu0 %8043
    %v8045 = vsel %vm112, %v8021, 0.0
    %8046 = vadd.xlane.f32.xlu0 %v8045
    %v8047 = vpop.xlane.xlu0 %8046
    %v8048 = vmul.f32 %v8026, %v137
    %v8049 = vmul.f32 %v8029, %v137
    %v8050 = vmul.f32 %v8032, %v137
    %v8051 = vmul.f32 %v8035, %v137
    %v8052 = vmul.f32 %v8038, %v137
    %v8053 = vmul.f32 %v8041, %v137
    %v8054 = vmul.f32 %v8044, %v137
    %v8055 = vmul.f32 %v8047, %v137
    %v8056 = vsub.f32 %v8014, %v8048
    %v8057 = vsub.f32 %v8015, %v8049
    %v8058 = vsub.f32 %v8016, %v8050
    %v8059 = vsub.f32 %v8017, %v8051
    %v8060 = vsub.f32 %v8018, %v8052
    %v8061 = vsub.f32 %v8019, %v8053
    %v8062 = vsub.f32 %v8020, %v8054
    %v8063 = vsub.f32 %v8021, %v8055
    %v8064 = vmul.f32 %v8056, %v8056
    %v8065 = vmul.f32 %v8057, %v8057
    %v8066 = vmul.f32 %v8058, %v8058
    %v8067 = vmul.f32 %v8059, %v8059
    %v8068 = vmul.f32 %v8060, %v8060
    %v8069 = vmul.f32 %v8061, %v8061
    %v8070 = vmul.f32 %v8062, %v8062
    %v8071 = vmul.f32 %v8063, %v8063
    %v8072 = vsel %vm112, %v8064, 0.0
    %8073 = vadd.xlane.f32.xlu0 %v8072
    %v8074 = vpop.xlane.xlu0 %8073
    %v8075 = vsel %vm112, %v8065, 0.0
    %8076 = vadd.xlane.f32.xlu0 %v8075
    %v8077 = vpop.xlane.xlu0 %8076
    %v8078 = vsel %vm112, %v8066, 0.0
    %8079 = vadd.xlane.f32.xlu0 %v8078
    %v8080 = vpop.xlane.xlu0 %8079
    %v8081 = vsel %vm112, %v8067, 0.0
    %8082 = vadd.xlane.f32.xlu0 %v8081
    %v8083 = vpop.xlane.xlu0 %8082
    %v8084 = vsel %vm112, %v8068, 0.0
    %8085 = vadd.xlane.f32.xlu0 %v8084
    %v8086 = vpop.xlane.xlu0 %8085
    %v8087 = vsel %vm112, %v8069, 0.0
    %8088 = vadd.xlane.f32.xlu0 %v8087
    %v8089 = vpop.xlane.xlu0 %8088
    %v8090 = vsel %vm112, %v8070, 0.0
    %8091 = vadd.xlane.f32.xlu0 %v8090
    %v8092 = vpop.xlane.xlu0 %8091
    %v8093 = vsel %vm112, %v8071, 0.0
    %8094 = vadd.xlane.f32.xlu0 %v8093
    %v8095 = vpop.xlane.xlu0 %8094
    %v8096 = vmul.f32 %v8074, %v137
    %v8097 = vmul.f32 %v8077, %v137
    %v8098 = vmul.f32 %v8080, %v137
    %v8099 = vmul.f32 %v8083, %v137
    %v8100 = vmul.f32 %v8086, %v137
    %v8101 = vmul.f32 %v8089, %v137
    %v8102 = vmul.f32 %v8092, %v137
    %v8103 = vmul.f32 %v8095, %v137
    %v8104 = vadd.f32 %v8096, 1e-05
    %v8105 = vadd.f32 %v8097, 1e-05
    %v8106 = vadd.f32 %v8098, 1e-05
    %v8107 = vadd.f32 %v8099, 1e-05
    %v8108 = vadd.f32 %v8100, 1e-05
    %v8109 = vadd.f32 %v8101, 1e-05
    %v8110 = vadd.f32 %v8102, 1e-05
    %v8111 = vadd.f32 %v8103, 1e-05
    %v8112 = vrsqrt.pop %v8104
    %v8113 = vrsqrt.pop %v8105
    %v8114 = vrsqrt.pop %v8106
    %v8115 = vrsqrt.pop %v8107
    %v8116 = vrsqrt.pop %v8108
    %v8117 = vrsqrt.pop %v8109
    %v8118 = vrsqrt.pop %v8110
    %v8119 = vrsqrt.pop %v8111
    %v8120 = vmul.f32 %v8056, %v8112
    %v8121 = vmul.f32 %v8057, %v8113
    %v8122 = vmul.f32 %v8058, %v8114
    %v8123 = vmul.f32 %v8059, %v8115
    %v8124 = vmul.f32 %v8060, %v8116
    %v8125 = vmul.f32 %v8061, %v8117
    %v8126 = vmul.f32 %v8062, %v8118
    %v8127 = vmul.f32 %v8063, %v8119
    %v8128 = vlaneseq
    %v8129 = vshrl.u32 %v8128, 7
    %v8130 = vsub.s32 0, %v8129
    %v8131 = vrot.slane %v8022, %v8130
    %v8132 = vmul.f32 %v8120, %v8131
    %v8133 = vmul.f32 %v8121, %v8131
    %v8134 = vmul.f32 %v8122, %v8131
    %v8135 = vmul.f32 %v8123, %v8131
    %v8136 = vmul.f32 %v8124, %v8131
    %v8137 = vmul.f32 %v8125, %v8131
    %v8138 = vmul.f32 %v8126, %v8131
    %v8139 = vmul.f32 %v8127, %v8131
    %v8140 = vlaneseq
    %v8141 = vshrl.u32 %v8140, 7
    %v8142 = vsub.s32 0, %v8141
    %v8143 = vrot.slane %v8023, %v8142
    %v8144 = vadd.f32 %v8132, %v8143
    %v8145 = vadd.f32 %v8133, %v8143
    %v8146 = vadd.f32 %v8134, %v8143
    %v8147 = vadd.f32 %v8135, %v8143
    %v8148 = vadd.f32 %v8136, %v8143
    %v8149 = vadd.f32 %v8137, %v8143
    %v8150 = vadd.f32 %v8138, %v8143
    %v8151 = vadd.f32 %v8139, %v8143
    %8152 = vst.msk [vmem:[#allocation10] sm:$0xff] %vm112, %v8144
    %8153 = vst.msk [vmem:[#allocation10 + $0x8] sm:$0xff] %vm112, %v8145
    %8154 = vst.msk [vmem:[#allocation10 + $0x10] sm:$0xff] %vm112, %v8146
    %8155 = vst.msk [vmem:[#allocation10 + $0x18] sm:$0xff] %vm112, %v8147
    %8156 = vst.msk [vmem:[#allocation10 + $0x20] sm:$0xff] %vm112, %v8148
    %8157 = vst.msk [vmem:[#allocation10 + $0x28] sm:$0xff] %vm112, %v8149
    %8158 = vst.msk [vmem:[#allocation10 + $0x30] sm:$0xff] %vm112, %v8150
    %8159 = vst.msk [vmem:[#allocation10 + $0x38] sm:$0xff] %vm112, %v8151
    // Predicated region
    $region34: #{tpu_custom_call.1} parent=1 // pred_check
      _
    $region35: #{tpu_custom_call.1} parent=1 // pred_check_branch
      %8161 = sbr.rel (0) target = $region37
    $region36: #{tpu_custom_call.1} parent=1 // pred_region
      %s8163 = ssub.s32 1024, 1024
      %8164 = vsyncadd [#allocation4], %s8163
      %s8165 = sshll.u32 [#allocation10], 4
      %s8166 = int_to_ptr.vmem [resolvable:$true] %s8165
      %8171 = dma.vmem_to_hbm [thread:$0]  %s8166, 1024, %s4, [#allocation4], 128, 128, 8
    $region37: #{tpu_custom_call.1} parent=1 // pred_fallthru
      _
    // Predicated region
    $region38: #{tpu_custom_call.1} parent=1 // pred_check
      _
    $region39: #{tpu_custom_call.1} parent=1 // pred_check_branch
      %8173 = sbr.rel (0) target = $region41
    $region40: #{tpu_custom_call.1} parent=1 // pred_region
      %8174 = dma.done [#allocation4], 1024
    $region41: #{tpu_custom_call.1} parent=1 // pred_fallthru
      _
    %8175 = vsyncpa [#allocation3], 1
    %8176 = vsyncpa [#allocation6], 1
    %8177 = vsyncpa [#allocation9], 1
    %8178 = vsyncpa [#allocation4], 1

</llo_original>
